<compile_context>
chip_gen: v5e
topology: v5e:2x2
jax: 0.10.0
libtpu: 0.0.40
codegen_flags: <defaults>
</compile_context>

<pallas_src>
import jax
import jax.numpy as jnp
from jax.experimental import pallas as pl
from jax.experimental.pallas import tpu as pltpu

EPS = 1e-5
LANES = 128


def _round_up(x, m):
    return (x + m - 1) // m * m


def _mosaic_params(semantics, est_bytes):
    """dimension_semantics + VMEM limit at ~75% of physical VMEM (48 MiB on v7x,
    96 MiB on v5e/v6e); never the full budget (reviews #4/#5)."""
    cap = 48 << 20                                   # safe default on every generation
    try:
        cap = int(pltpu.get_tpu_info().vmem_capacity_bytes * 3 // 4)
    except Exception:
        pass
    limit = int(min(max(est_bytes + (4 << 20), 16 << 20), cap))
    return pltpu.CompilerParams(dimension_semantics=semantics,
                                vmem_limit_bytes=limit)


# ---------------------------------------------------------------------------
# Pass 1/2: per-image 3x3 conv (in-VMEM patch construction) + fused BN stats.
# Optionally fuses the previous layer's BN affine + ReLU on the input tile.
# ---------------------------------------------------------------------------
def _conv3x3_pass(x, w9, scale, shift, *, H, W):
    N, HW, Cp = x.shape
    Co = w9.shape[2]
    fused = scale is not None

    def kernel(*refs):
        if fused:
            x_ref, s_ref, b_ref, w_ref, c_ref, st_ref, pad_ref = refs
            act = jnp.maximum(x_ref[...] * s_ref[...] + b_ref[...], 0.0)  # bn1 + ReLU (VPU)
        else:
            x_ref, w_ref, c_ref, st_ref, pad_ref = refs
            act = x_ref[...]

        # Zero-padded (H+2, W+2, Cp) activation slab built in VMEM scratch.
        pad_ref[...] = jnp.zeros(pad_ref.shape, pad_ref.dtype)
        pad_ref[1:H + 1, 1:W + 1, :] = act.reshape(H, W, Cp)

        # 3x3 / stride-1 conv = 9 shifted, accumulating MXU matmuls (f32 acc).
        for k in range(9):
            dy, dx = divmod(k, 3)
            lhs = pad_ref[dy:dy + H, dx:dx + W, :].reshape(HW, Cp)
            contrib = jnp.dot(lhs, w_ref[k], preferred_element_type=jnp.float32)
            if k == 0:
                c_ref[...] = contrib
            else:
                c_ref[...] += contrib

        # Fused per-image BatchNorm statistics (partials, reduced over N in XLA).
        y = c_ref[...]
        st_ref[0:1, :] = jnp.sum(y, axis=0, keepdims=True)
        st_ref[1:2, :] = jnp.sum(y * y, axis=0, keepdims=True)

    in_specs = [pl.BlockSpec((None, HW, Cp), lambda n: (n, 0, 0))]     # streamed per image
    operands = [x]
    if fused:
        in_specs += [pl.BlockSpec((1, Cp), lambda n: (0, 0)),          # resident scale
                     pl.BlockSpec((1, Cp), lambda n: (0, 0))]          # resident shift
        operands += [scale, shift]
    # TODO(synk): pipeline_mode=pl.Buffered(1) on these resident blocks (review #6).
    in_specs.append(pl.BlockSpec((9, Cp, Co), lambda n: (0, 0, 0)))    # resident weights
    operands.append(w9)

    est = 4 * (2 * HW * Cp + 2 * 9 * Cp * Co + 2 * HW * Co
               + (H + 2) * (W + 2) * Cp + 8 * Co)
    conv_out, stats = pl.pallas_call(
        kernel,
        grid=(N,),
        in_specs=in_specs,
        out_specs=(pl.BlockSpec((None, HW, Co), lambda n: (n, 0, 0)),
                   pl.BlockSpec((None, 2, Co), lambda n: (n, 0, 0))),  # per-image [sum; sum^2]
        out_shape=(jax.ShapeDtypeStruct((N, HW, Co), jnp.float32),
                   jax.ShapeDtypeStruct((N, 2, Co), jnp.float32)),
        scratch_shapes=[pltpu.VMEM((H + 2, W + 2, Cp), jnp.float32)],
        compiler_params=_mosaic_params(("parallel",), est),
    )(*operands)
    return conv_out, stats


# ---------------------------------------------------------------------------
# Tiny XLA glue: partial stats -> biased batch mean/var -> affine scale/shift.
# ---------------------------------------------------------------------------
def _bn_affine(stats, gamma, beta, m_total, cp):
    psum = jnp.sum(stats, axis=0)                       # (2, Cp): [sum, sum^2]
    mean = psum[0] / m_total
    # E[x^2]-E[x]^2 in f32; clamp guards catastrophic cancellation (review note).
    var = jnp.maximum(psum[1] / m_total - mean * mean, 0.0)
    g = jnp.pad(gamma.astype(jnp.float32), (0, cp - gamma.shape[0]))
    b = jnp.pad(beta.astype(jnp.float32), (0, cp - beta.shape[0]))
    scale = g * jax.lax.rsqrt(var + EPS)
    shift = b - mean * scale
    return scale.reshape(1, cp), shift.reshape(1, cp)


# ---------------------------------------------------------------------------
# Pass 3: bn2 affine + residual add (no ReLU).  Residual is the same
# channel-padded x buffer that fed conv1 (review #8).
# ---------------------------------------------------------------------------
def _affine_residual(c2, scale, shift, residual):
    N, HW, Cp = c2.shape

    def kernel(c_ref, s_ref, b_ref, r_ref, o_ref):
        o_ref[...] = c_ref[...] * s_ref[...] + b_ref[...] + r_ref[...]

    est = 4 * (2 * 3 * HW * Cp + 4 * Cp)
    return pl.pallas_call(
        kernel,
        grid=(N,),
        in_specs=[pl.BlockSpec((None, HW, Cp), lambda n: (n, 0, 0)),
                  pl.BlockSpec((1, Cp), lambda n: (0, 0)),
                  pl.BlockSpec((1, Cp), lambda n: (0, 0)),
                  pl.BlockSpec((None, HW, Cp), lambda n: (n, 0, 0))],
        out_specs=pl.BlockSpec((None, HW, Cp), lambda n: (n, 0, 0)),
        out_shape=jax.ShapeDtypeStruct((N, HW, Cp), jnp.float32),
        compiler_params=_mosaic_params(("parallel",), est),
    )(c2, scale, shift, residual)


# ---------------------------------------------------------------------------
# BasicBlock forward
# ---------------------------------------------------------------------------
@jax.jit
def basic_block_forward(x_nchw, w1_hwio, g1, b1, w2_hwio, g2, b2):
    """x: (N, Cin, H, W) NCHW; conv weights HWIO (3, 3, Cin, Cout).
    stride=1 / downsample=None  =>  Cin == Cout (needed for the skip add)."""
    N, Cin, H, W = x_nchw.shape
    Cout = w1_hwio.shape[3]
    assert Cin == Cout, "BasicBlock with downsample=None requires Cin == Cout"
    Cp = _round_up(Cout, LANES)
    M = N * H * W

    # NCHW -> NHWC at the XLA boundary (module interface is NCHW; review #11).
    # One channel-padded f32 buffer serves both the conv1 input and the residual.
    x_p = jnp.pad(
        jnp.transpose(x_nchw, (0, 2, 3, 1)).astype(jnp.float32).reshape(N, H * W, Cin),
        ((0, 0), (0, 0), (0, Cp - Cin)))
    w1p = jnp.pad(w1_hwio.reshape(9, Cin, Cout).astype(jnp.float32),
                  ((0, 0), (0, Cp - Cin), (0, Cp - Cout)))
    w2p = jnp.pad(w2_hwio.reshape(9, Cout, Cout).astype(jnp.float32),
                  ((0, 0), (0, Cp - Cout), (0, Cp - Cout)))

    # conv1 + fused batch-stat accumulation
    c1, st1 = _conv3x3_pass(x_p, w1p, None, None, H=H, W=W)
    scale1, shift1 = _bn_affine(st1, g1, b1, M, Cp)

    # conv2 with bn1 affine + ReLU fused into its patch construction
    c2, st2 = _conv3x3_pass(c1, w2p, scale1, shift1, H=H, W=W)
    scale2, shift2 = _bn_affine(st2, g2, b2, M, Cp)

    # bn2 affine + residual add
    out = _affine_residual(c2, scale2, shift2, x_p)

    out = out[:, :, :Cout].reshape(N, H, W, Cout)
    return jnp.transpose(out, (0, 3, 1, 2))            # back to NCHW


# ---------------------------------------------------------------------------
# Pure-JAX reference for verification
# ---------------------------------------------------------------------------
def ref_basic_block(x_nchw, w1, g1, b1, w2, g2, b2):
    x = jnp.transpose(x_nchw, (0, 2, 3, 1)).astype(jnp.float32)

    def conv(x, w):
        return jax.lax.conv_general_dilated(
            x, w, (1, 1), ((1, 1), (1, 1)),
            dimension_numbers=("NHWC", "HWIO", "NHWC"))

    def bn(y, g, b):
        mean = jnp.mean(y, axis=(0, 1, 2), keepdims=True)
        var = jnp.mean((y - mean) ** 2, axis=(0, 1, 2), keepdims=True)
        return (y - mean) * jax.lax.rsqrt(var + EPS) * g + b

    y = jnp.maximum(bn(conv(x, w1), g1, b1), 0.0)
    y = bn(conv(y, w2), g2, b2) + x
    return jnp.transpose(y, (0, 3, 1, 2))


if __name__ == "__main__":
    N, C, H, W = 2, 4, 16, 16          # in_channels == out_channels, stride=1, downsample=None

    key = jax.random.PRNGKey(0)
    kx, kw1, kw2, kg1, kb1, kg2, kb2 = jax.random.split(key, 7)

    x = jax.random.normal(kx, (N, C, H, W), dtype=jnp.float32)
    w1 = jax.random.normal(kw1, (3, 3, C, C), dtype=jnp.float32) * 0.1   # HWIO
    w2 = jax.random.normal(kw2, (3, 3, C, C), dtype=jnp.float32) * 0.1
    g1 = 1.0 + 0.1 * jax.random.normal(kg1, (C,), dtype=jnp.float32)
    b1 = 0.1 * jax.random.normal(kb1, (C,), dtype=jnp.float32)
    g2 = 1.0 + 0.1 * jax.random.normal(kg2, (C,), dtype=jnp.float32)
    b2 = 0.1 * jax.random.normal(kb2, (C,), dtype=jnp.float32)

    out = jax.block_until_ready(basic_block_forward(x, w1, g1, b1, w2, g2, b2))
    ref = jax.block_until_ready(ref_basic_block(x, w1, g1, b1, w2, g2, b2))

    max_err = float(jnp.max(jnp.abs(out - ref)))
    assert out.shape == (N, C, H, W), out.shape
    assert max_err < 1e-3, f"mismatch vs reference: {max_err}"

    print("KERNEL_OK")
</pallas_src>

<mosaic_0001>
module attributes {stable_mosaic.version = 11 : i64} {
  func.func @kernel(%arg0: i32, %arg1: memref<1x256x128xf32, #tpu.memory_space<vmem>>, %arg2: memref<9x128x128xf32, #tpu.memory_space<vmem>>, %arg3: memref<1x256x128xf32, #tpu.memory_space<vmem>>, %arg4: memref<1x2x128xf32, #tpu.memory_space<vmem>>, %arg5: memref<18x18x128xf32, #tpu.memory_space<vmem>>) attributes {dimension_semantics = [#tpu.dimension_semantics<parallel>], iteration_bounds = array<i64: 2>, scalar_prefetch = 0 : i64, scratch_operands = 1 : i64, tpu.core_type = #tpu.core_type<tc>, window_params = [{transform_indices = @transform_0, window_bounds = array<i64: 1, 256, 128>}, {pipeline_mode = #tpu.pipeline_mode<synchronous>, transform_indices = @transform_1, window_bounds = array<i64: 9, 128, 128>}, {transform_indices = @transform_2, window_bounds = array<i64: 1, 256, 128>}, {transform_indices = @transform_3, window_bounds = array<i64: 1, 2, 128>}]} {
    %c0 = arith.constant 0 : index
    %c0_0 = arith.constant 0 : index
    %c0_1 = arith.constant 0 : index
    %0 = vector.load %arg1[%c0, %c0_0, %c0_1] : memref<1x256x128xf32, #tpu.memory_space<vmem>>, vector<1x256x128xf32>
    %1 = vector.shape_cast %0 : vector<1x256x128xf32> to vector<256x128xf32>
    %cst = arith.constant 0.000000e+00 : f32
    %2 = vector.broadcast %cst : f32 to vector<18x18x128xf32>
    %c0_2 = arith.constant 0 : index
    %c0_3 = arith.constant 0 : index
    %c0_4 = arith.constant 0 : index
    %3 = vector.load %arg5[%c0_2, %c0_3, %c0_4] : memref<18x18x128xf32, #tpu.memory_space<vmem>>, vector<18x18x128xf32>
    tpu.vector_store %arg5[%c0_2, %c0_3, %c0_4], %2 {strides = array<i32>} : memref<18x18x128xf32, #tpu.memory_space<vmem>>, vector<18x18x128xf32>,
    %4 = vector.shape_cast %1 : vector<256x128xf32> to vector<16x16x128xf32>
    %c1 = arith.constant 1 : index
    %c1_5 = arith.constant 1 : index
    %c0_6 = arith.constant 0 : index
    %5 = vector.load %arg5[%c1, %c1_5, %c0_6] : memref<18x18x128xf32, #tpu.memory_space<vmem>>, vector<16x16x128xf32>
    tpu.vector_store %arg5[%c1, %c1_5, %c0_6], %4 {strides = array<i32>} : memref<18x18x128xf32, #tpu.memory_space<vmem>>, vector<16x16x128xf32>,
    %c0_7 = arith.constant 0 : index
    %c0_8 = arith.constant 0 : index
    %c0_9 = arith.constant 0 : index
    %6 = vector.load %arg5[%c0_7, %c0_8, %c0_9] : memref<18x18x128xf32, #tpu.memory_space<vmem>>, vector<16x16x128xf32>
    %7 = vector.shape_cast %6 : vector<16x16x128xf32> to vector<256x128xf32>
    %c0_10 = arith.constant 0 : index
    %c0_11 = arith.constant 0 : index
    %c0_12 = arith.constant 0 : index
    %8 = vector.load %arg2[%c0_10, %c0_11, %c0_12] : memref<9x128x128xf32, #tpu.memory_space<vmem>>, vector<1x128x128xf32>
    %9 = vector.shape_cast %8 : vector<1x128x128xf32> to vector<128x128xf32>
    %cst_13 = arith.constant dense<0.000000e+00> : vector<256x128xf32>
    %10 = tpu.matmul %7, %9, %cst_13 {dimension_numbers = #tpu.dot_dimension_numbers<[1], [0], [0], [1], [0, 0, 1, 1], [], []>} : vector<256x128xf32>, vector<128x128xf32>, vector<256x128xf32> -> vector<256x128xf32>
    %c0_14 = arith.constant 0 : index
    %c0_15 = arith.constant 0 : index
    %c0_16 = arith.constant 0 : index
    %11 = vector.load %arg3[%c0_14, %c0_15, %c0_16] : memref<1x256x128xf32, #tpu.memory_space<vmem>>, vector<1x256x128xf32>
    %12 = vector.shape_cast %11 : vector<1x256x128xf32> to vector<256x128xf32>
    %13 = vector.shape_cast %10 : vector<256x128xf32> to vector<1x256x128xf32>
    tpu.vector_store %arg3[%c0_14, %c0_15, %c0_16], %13 {strides = array<i32>} : memref<1x256x128xf32, #tpu.memory_space<vmem>>, vector<1x256x128xf32>,
    %c0_17 = arith.constant 0 : index
    %c1_18 = arith.constant 1 : index
    %c0_19 = arith.constant 0 : index
    %14 = vector.load %arg5[%c0_17, %c1_18, %c0_19] : memref<18x18x128xf32, #tpu.memory_space<vmem>>, vector<16x16x128xf32>
    %15 = vector.shape_cast %14 : vector<16x16x128xf32> to vector<256x128xf32>
    %c1_20 = arith.constant 1 : index
    %c0_21 = arith.constant 0 : index
    %c0_22 = arith.constant 0 : index
    %16 = vector.load %arg2[%c1_20, %c0_21, %c0_22] : memref<9x128x128xf32, #tpu.memory_space<vmem>>, vector<1x128x128xf32>
    %17 = vector.shape_cast %16 : vector<1x128x128xf32> to vector<128x128xf32>
    %cst_23 = arith.constant dense<0.000000e+00> : vector<256x128xf32>
    %18 = tpu.matmul %15, %17, %cst_23 {dimension_numbers = #tpu.dot_dimension_numbers<[1], [0], [0], [1], [0, 0, 1, 1], [], []>} : vector<256x128xf32>, vector<128x128xf32>, vector<256x128xf32> -> vector<256x128xf32>
    %c0_24 = arith.constant 0 : index
    %c0_25 = arith.constant 0 : index
    %c0_26 = arith.constant 0 : index
    %19 = vector.load %arg3[%c0_24, %c0_25, %c0_26] : memref<1x256x128xf32, #tpu.memory_space<vmem>>, vector<1x256x128xf32>
    %20 = vector.shape_cast %19 : vector<1x256x128xf32> to vector<256x128xf32>
    %21 = arith.addf %20, %18 : vector<256x128xf32>
    %c0_27 = arith.constant 0 : index
    %c0_28 = arith.constant 0 : index
    %c0_29 = arith.constant 0 : index
    %22 = vector.load %arg3[%c0_27, %c0_28, %c0_29] : memref<1x256x128xf32, #tpu.memory_space<vmem>>, vector<1x256x128xf32>
    %23 = vector.shape_cast %22 : vector<1x256x128xf32> to vector<256x128xf32>
    %24 = vector.shape_cast %21 : vector<256x128xf32> to vector<1x256x128xf32>
    tpu.vector_store %arg3[%c0_27, %c0_28, %c0_29], %24 {strides = array<i32>} : memref<1x256x128xf32, #tpu.memory_space<vmem>>, vector<1x256x128xf32>,
    %c0_30 = arith.constant 0 : index
    %c2 = arith.constant 2 : index
    %c0_31 = arith.constant 0 : index
    %25 = vector.load %arg5[%c0_30, %c2, %c0_31] : memref<18x18x128xf32, #tpu.memory_space<vmem>>, vector<16x16x128xf32>
    %26 = vector.shape_cast %25 : vector<16x16x128xf32> to vector<256x128xf32>
    %c2_32 = arith.constant 2 : index
    %c0_33 = arith.constant 0 : index
    %c0_34 = arith.constant 0 : index
    %27 = vector.load %arg2[%c2_32, %c0_33, %c0_34] : memref<9x128x128xf32, #tpu.memory_space<vmem>>, vector<1x128x128xf32>
    %28 = vector.shape_cast %27 : vector<1x128x128xf32> to vector<128x128xf32>
    %cst_35 = arith.constant dense<0.000000e+00> : vector<256x128xf32>
    %29 = tpu.matmul %26, %28, %cst_35 {dimension_numbers = #tpu.dot_dimension_numbers<[1], [0], [0], [1], [0, 0, 1, 1], [], []>} : vector<256x128xf32>, vector<128x128xf32>, vector<256x128xf32> -> vector<256x128xf32>
    %c0_36 = arith.constant 0 : index
    %c0_37 = arith.constant 0 : index
    %c0_38 = arith.constant 0 : index
    %30 = vector.load %arg3[%c0_36, %c0_37, %c0_38] : memref<1x256x128xf32, #tpu.memory_space<vmem>>, vector<1x256x128xf32>
    %31 = vector.shape_cast %30 : vector<1x256x128xf32> to vector<256x128xf32>
    %32 = arith.addf %31, %29 : vector<256x128xf32>
    %c0_39 = arith.constant 0 : index
    %c0_40 = arith.constant 0 : index
    %c0_41 = arith.constant 0 : index
    %33 = vector.load %arg3[%c0_39, %c0_40, %c0_41] : memref<1x256x128xf32, #tpu.memory_space<vmem>>, vector<1x256x128xf32>
    %34 = vector.shape_cast %33 : vector<1x256x128xf32> to vector<256x128xf32>
    %35 = vector.shape_cast %32 : vector<256x128xf32> to vector<1x256x128xf32>
    tpu.vector_store %arg3[%c0_39, %c0_40, %c0_41], %35 {strides = array<i32>} : memref<1x256x128xf32, #tpu.memory_space<vmem>>, vector<1x256x128xf32>,
    %c1_42 = arith.constant 1 : index
    %c0_43 = arith.constant 0 : index
    %c0_44 = arith.constant 0 : index
    %36 = vector.load %arg5[%c1_42, %c0_43, %c0_44] : memref<18x18x128xf32, #tpu.memory_space<vmem>>, vector<16x16x128xf32>
    %37 = vector.shape_cast %36 : vector<16x16x128xf32> to vector<256x128xf32>
    %c3 = arith.constant 3 : index
    %c0_45 = arith.constant 0 : index
    %c0_46 = arith.constant 0 : index
    %38 = vector.load %arg2[%c3, %c0_45, %c0_46] : memref<9x128x128xf32, #tpu.memory_space<vmem>>, vector<1x128x128xf32>
    %39 = vector.shape_cast %38 : vector<1x128x128xf32> to vector<128x128xf32>
    %cst_47 = arith.constant dense<0.000000e+00> : vector<256x128xf32>
    %40 = tpu.matmul %37, %39, %cst_47 {dimension_numbers = #tpu.dot_dimension_numbers<[1], [0], [0], [1], [0, 0, 1, 1], [], []>} : vector<256x128xf32>, vector<128x128xf32>, vector<256x128xf32> -> vector<256x128xf32>
    %c0_48 = arith.constant 0 : index
    %c0_49 = arith.constant 0 : index
    %c0_50 = arith.constant 0 : index
    %41 = vector.load %arg3[%c0_48, %c0_49, %c0_50] : memref<1x256x128xf32, #tpu.memory_space<vmem>>, vector<1x256x128xf32>
    %42 = vector.shape_cast %41 : vector<1x256x128xf32> to vector<256x128xf32>
    %43 = arith.addf %42, %40 : vector<256x128xf32>
    %c0_51 = arith.constant 0 : index
    %c0_52 = arith.constant 0 : index
    %c0_53 = arith.constant 0 : index
    %44 = vector.load %arg3[%c0_51, %c0_52, %c0_53] : memref<1x256x128xf32, #tpu.memory_space<vmem>>, vector<1x256x128xf32>
    %45 = vector.shape_cast %44 : vector<1x256x128xf32> to vector<256x128xf32>
    %46 = vector.shape_cast %43 : vector<256x128xf32> to vector<1x256x128xf32>
    tpu.vector_store %arg3[%c0_51, %c0_52, %c0_53], %46 {strides = array<i32>} : memref<1x256x128xf32, #tpu.memory_space<vmem>>, vector<1x256x128xf32>,
    %c1_54 = arith.constant 1 : index
    %c1_55 = arith.constant 1 : index
    %c0_56 = arith.constant 0 : index
    %47 = vector.load %arg5[%c1_54, %c1_55, %c0_56] : memref<18x18x128xf32, #tpu.memory_space<vmem>>, vector<16x16x128xf32>
    %48 = vector.shape_cast %47 : vector<16x16x128xf32> to vector<256x128xf32>
    %c4 = arith.constant 4 : index
    %c0_57 = arith.constant 0 : index
    %c0_58 = arith.constant 0 : index
    %49 = vector.load %arg2[%c4, %c0_57, %c0_58] : memref<9x128x128xf32, #tpu.memory_space<vmem>>, vector<1x128x128xf32>
    %50 = vector.shape_cast %49 : vector<1x128x128xf32> to vector<128x128xf32>
    %cst_59 = arith.constant dense<0.000000e+00> : vector<256x128xf32>
    %51 = tpu.matmul %48, %50, %cst_59 {dimension_numbers = #tpu.dot_dimension_numbers<[1], [0], [0], [1], [0, 0, 1, 1], [], []>} : vector<256x128xf32>, vector<128x128xf32>, vector<256x128xf32> -> vector<256x128xf32>
    %c0_60 = arith.constant 0 : index
    %c0_61 = arith.constant 0 : index
    %c0_62 = arith.constant 0 : index
    %52 = vector.load %arg3[%c0_60, %c0_61, %c0_62] : memref<1x256x128xf32, #tpu.memory_space<vmem>>, vector<1x256x128xf32>
    %53 = vector.shape_cast %52 : vector<1x256x128xf32> to vector<256x128xf32>
    %54 = arith.addf %53, %51 : vector<256x128xf32>
    %c0_63 = arith.constant 0 : index
    %c0_64 = arith.constant 0 : index
    %c0_65 = arith.constant 0 : index
    %55 = vector.load %arg3[%c0_63, %c0_64, %c0_65] : memref<1x256x128xf32, #tpu.memory_space<vmem>>, vector<1x256x128xf32>
    %56 = vector.shape_cast %55 : vector<1x256x128xf32> to vector<256x128xf32>
    %57 = vector.shape_cast %54 : vector<256x128xf32> to vector<1x256x128xf32>
    tpu.vector_store %arg3[%c0_63, %c0_64, %c0_65], %57 {strides = array<i32>} : memref<1x256x128xf32, #tpu.memory_space<vmem>>, vector<1x256x128xf32>,
    %c1_66 = arith.constant 1 : index
    %c2_67 = arith.constant 2 : index
    %c0_68 = arith.constant 0 : index
    %58 = vector.load %arg5[%c1_66, %c2_67, %c0_68] : memref<18x18x128xf32, #tpu.memory_space<vmem>>, vector<16x16x128xf32>
    %59 = vector.shape_cast %58 : vector<16x16x128xf32> to vector<256x128xf32>
    %c5 = arith.constant 5 : index
    %c0_69 = arith.constant 0 : index
    %c0_70 = arith.constant 0 : index
    %60 = vector.load %arg2[%c5, %c0_69, %c0_70] : memref<9x128x128xf32, #tpu.memory_space<vmem>>, vector<1x128x128xf32>
    %61 = vector.shape_cast %60 : vector<1x128x128xf32> to vector<128x128xf32>
    %cst_71 = arith.constant dense<0.000000e+00> : vector<256x128xf32>
    %62 = tpu.matmul %59, %61, %cst_71 {dimension_numbers = #tpu.dot_dimension_numbers<[1], [0], [0], [1], [0, 0, 1, 1], [], []>} : vector<256x128xf32>, vector<128x128xf32>, vector<256x128xf32> -> vector<256x128xf32>
    %c0_72 = arith.constant 0 : index
    %c0_73 = arith.constant 0 : index
    %c0_74 = arith.constant 0 : index
    %63 = vector.load %arg3[%c0_72, %c0_73, %c0_74] : memref<1x256x128xf32, #tpu.memory_space<vmem>>, vector<1x256x128xf32>
    %64 = vector.shape_cast %63 : vector<1x256x128xf32> to vector<256x128xf32>
    %65 = arith.addf %64, %62 : vector<256x128xf32>
    %c0_75 = arith.constant 0 : index
    %c0_76 = arith.constant 0 : index
    %c0_77 = arith.constant 0 : index
    %66 = vector.load %arg3[%c0_75, %c0_76, %c0_77] : memref<1x256x128xf32, #tpu.memory_space<vmem>>, vector<1x256x128xf32>
    %67 = vector.shape_cast %66 : vector<1x256x128xf32> to vector<256x128xf32>
    %68 = vector.shape_cast %65 : vector<256x128xf32> to vector<1x256x128xf32>
    tpu.vector_store %arg3[%c0_75, %c0_76, %c0_77], %68 {strides = array<i32>} : memref<1x256x128xf32, #tpu.memory_space<vmem>>, vector<1x256x128xf32>,
    %c2_78 = arith.constant 2 : index
    %c0_79 = arith.constant 0 : index
    %c0_80 = arith.constant 0 : index
    %69 = vector.load %arg5[%c2_78, %c0_79, %c0_80] : memref<18x18x128xf32, #tpu.memory_space<vmem>>, vector<16x16x128xf32>
    %70 = vector.shape_cast %69 : vector<16x16x128xf32> to vector<256x128xf32>
    %c6 = arith.constant 6 : index
    %c0_81 = arith.constant 0 : index
    %c0_82 = arith.constant 0 : index
    %71 = vector.load %arg2[%c6, %c0_81, %c0_82] : memref<9x128x128xf32, #tpu.memory_space<vmem>>, vector<1x128x128xf32>
    %72 = vector.shape_cast %71 : vector<1x128x128xf32> to vector<128x128xf32>
    %cst_83 = arith.constant dense<0.000000e+00> : vector<256x128xf32>
    %73 = tpu.matmul %70, %72, %cst_83 {dimension_numbers = #tpu.dot_dimension_numbers<[1], [0], [0], [1], [0, 0, 1, 1], [], []>} : vector<256x128xf32>, vector<128x128xf32>, vector<256x128xf32> -> vector<256x128xf32>
    %c0_84 = arith.constant 0 : index
    %c0_85 = arith.constant 0 : index
    %c0_86 = arith.constant 0 : index
    %74 = vector.load %arg3[%c0_84, %c0_85, %c0_86] : memref<1x256x128xf32, #tpu.memory_space<vmem>>, vector<1x256x128xf32>
    %75 = vector.shape_cast %74 : vector<1x256x128xf32> to vector<256x128xf32>
    %76 = arith.addf %75, %73 : vector<256x128xf32>
    %c0_87 = arith.constant 0 : index
    %c0_88 = arith.constant 0 : index
    %c0_89 = arith.constant 0 : index
    %77 = vector.load %arg3[%c0_87, %c0_88, %c0_89] : memref<1x256x128xf32, #tpu.memory_space<vmem>>, vector<1x256x128xf32>
    %78 = vector.shape_cast %77 : vector<1x256x128xf32> to vector<256x128xf32>
    %79 = vector.shape_cast %76 : vector<256x128xf32> to vector<1x256x128xf32>
    tpu.vector_store %arg3[%c0_87, %c0_88, %c0_89], %79 {strides = array<i32>} : memref<1x256x128xf32, #tpu.memory_space<vmem>>, vector<1x256x128xf32>,
    %c2_90 = arith.constant 2 : index
    %c1_91 = arith.constant 1 : index
    %c0_92 = arith.constant 0 : index
    %80 = vector.load %arg5[%c2_90, %c1_91, %c0_92] : memref<18x18x128xf32, #tpu.memory_space<vmem>>, vector<16x16x128xf32>
    %81 = vector.shape_cast %80 : vector<16x16x128xf32> to vector<256x128xf32>
    %c7 = arith.constant 7 : index
    %c0_93 = arith.constant 0 : index
    %c0_94 = arith.constant 0 : index
    %82 = vector.load %arg2[%c7, %c0_93, %c0_94] : memref<9x128x128xf32, #tpu.memory_space<vmem>>, vector<1x128x128xf32>
    %83 = vector.shape_cast %82 : vector<1x128x128xf32> to vector<128x128xf32>
    %cst_95 = arith.constant dense<0.000000e+00> : vector<256x128xf32>
    %84 = tpu.matmul %81, %83, %cst_95 {dimension_numbers = #tpu.dot_dimension_numbers<[1], [0], [0], [1], [0, 0, 1, 1], [], []>} : vector<256x128xf32>, vector<128x128xf32>, vector<256x128xf32> -> vector<256x128xf32>
    %c0_96 = arith.constant 0 : index
    %c0_97 = arith.constant 0 : index
    %c0_98 = arith.constant 0 : index
    %85 = vector.load %arg3[%c0_96, %c0_97, %c0_98] : memref<1x256x128xf32, #tpu.memory_space<vmem>>, vector<1x256x128xf32>
    %86 = vector.shape_cast %85 : vector<1x256x128xf32> to vector<256x128xf32>
    %87 = arith.addf %86, %84 : vector<256x128xf32>
    %c0_99 = arith.constant 0 : index
    %c0_100 = arith.constant 0 : index
    %c0_101 = arith.constant 0 : index
    %88 = vector.load %arg3[%c0_99, %c0_100, %c0_101] : memref<1x256x128xf32, #tpu.memory_space<vmem>>, vector<1x256x128xf32>
    %89 = vector.shape_cast %88 : vector<1x256x128xf32> to vector<256x128xf32>
    %90 = vector.shape_cast %87 : vector<256x128xf32> to vector<1x256x128xf32>
    tpu.vector_store %arg3[%c0_99, %c0_100, %c0_101], %90 {strides = array<i32>} : memref<1x256x128xf32, #tpu.memory_space<vmem>>, vector<1x256x128xf32>,
    %c2_102 = arith.constant 2 : index
    %c2_103 = arith.constant 2 : index
    %c0_104 = arith.constant 0 : index
    %91 = vector.load %arg5[%c2_102, %c2_103, %c0_104] : memref<18x18x128xf32, #tpu.memory_space<vmem>>, vector<16x16x128xf32>
    %92 = vector.shape_cast %91 : vector<16x16x128xf32> to vector<256x128xf32>
    %c8 = arith.constant 8 : index
    %c0_105 = arith.constant 0 : index
    %c0_106 = arith.constant 0 : index
    %93 = vector.load %arg2[%c8, %c0_105, %c0_106] : memref<9x128x128xf32, #tpu.memory_space<vmem>>, vector<1x128x128xf32>
    %94 = vector.shape_cast %93 : vector<1x128x128xf32> to vector<128x128xf32>
    %cst_107 = arith.constant dense<0.000000e+00> : vector<256x128xf32>
    %95 = tpu.matmul %92, %94, %cst_107 {dimension_numbers = #tpu.dot_dimension_numbers<[1], [0], [0], [1], [0, 0, 1, 1], [], []>} : vector<256x128xf32>, vector<128x128xf32>, vector<256x128xf32> -> vector<256x128xf32>
    %c0_108 = arith.constant 0 : index
    %c0_109 = arith.constant 0 : index
    %c0_110 = arith.constant 0 : index
    %96 = vector.load %arg3[%c0_108, %c0_109, %c0_110] : memref<1x256x128xf32, #tpu.memory_space<vmem>>, vector<1x256x128xf32>
    %97 = vector.shape_cast %96 : vector<1x256x128xf32> to vector<256x128xf32>
    %98 = arith.addf %97, %95 : vector<256x128xf32>
    %c0_111 = arith.constant 0 : index
    %c0_112 = arith.constant 0 : index
    %c0_113 = arith.constant 0 : index
    %99 = vector.load %arg3[%c0_111, %c0_112, %c0_113] : memref<1x256x128xf32, #tpu.memory_space<vmem>>, vector<1x256x128xf32>
    %100 = vector.shape_cast %99 : vector<1x256x128xf32> to vector<256x128xf32>
    %101 = vector.shape_cast %98 : vector<256x128xf32> to vector<1x256x128xf32>
    tpu.vector_store %arg3[%c0_111, %c0_112, %c0_113], %101 {strides = array<i32>} : memref<1x256x128xf32, #tpu.memory_space<vmem>>, vector<1x256x128xf32>,
    %c0_114 = arith.constant 0 : index
    %c0_115 = arith.constant 0 : index
    %c0_116 = arith.constant 0 : index
    %102 = vector.load %arg3[%c0_114, %c0_115, %c0_116] : memref<1x256x128xf32, #tpu.memory_space<vmem>>, vector<1x256x128xf32>
    %103 = vector.shape_cast %102 : vector<1x256x128xf32> to vector<256x128xf32>
    %cst_117 = arith.constant dense<0.000000e+00> : vector<128xf32>
    %104 = vector.multi_reduction <add>, %103, %cst_117 [0] : vector<256x128xf32> to vector<128xf32>
    %105 = vector.shape_cast %104 : vector<128xf32> to vector<1x128xf32>
    %c0_118 = arith.constant 0 : index
    %c0_119 = arith.constant 0 : index
    %c0_120 = arith.constant 0 : index
    %106 = vector.load %arg4[%c0_118, %c0_119, %c0_120] : memref<1x2x128xf32, #tpu.memory_space<vmem>>, vector<1x1x128xf32>
    %107 = vector.shape_cast %106 : vector<1x1x128xf32> to vector<1x128xf32>
    %108 = vector.shape_cast %105 : vector<1x128xf32> to vector<1x1x128xf32>
    tpu.vector_store %arg4[%c0_118, %c0_119, %c0_120], %108 {strides = array<i32>} : memref<1x2x128xf32, #tpu.memory_space<vmem>>, vector<1x1x128xf32>,
    %109 = arith.mulf %103, %103 : vector<256x128xf32>
    %cst_121 = arith.constant dense<0.000000e+00> : vector<128xf32>
    %110 = vector.multi_reduction <add>, %109, %cst_121 [0] : vector<256x128xf32> to vector<128xf32>
    %111 = vector.shape_cast %110 : vector<128xf32> to vector<1x128xf32>
    %c0_122 = arith.constant 0 : index
    %c1_123 = arith.constant 1 : index
    %c0_124 = arith.constant 0 : index
    %112 = vector.load %arg4[%c0_122, %c1_123, %c0_124] : memref<1x2x128xf32, #tpu.memory_space<vmem>>, vector<1x1x128xf32>
    %113 = vector.shape_cast %112 : vector<1x1x128xf32> to vector<1x128xf32>
    %114 = vector.shape_cast %111 : vector<1x128xf32> to vector<1x1x128xf32>
    tpu.vector_store %arg4[%c0_122, %c1_123, %c0_124], %114 {strides = array<i32>} : memref<1x2x128xf32, #tpu.memory_space<vmem>>, vector<1x1x128xf32>,
    return
  }
  func.func @transform_0(%arg0: i32) -> (i32, i32, i32) {
    %c0_i32 = arith.constant 0 : i32
    %c0_i32_0 = arith.constant 0 : i32
    %c0_i32_1 = arith.constant 0 : i32
    return %arg0, %c0_i32, %c0_i32_0 : i32, i32, i32
  }
  func.func @transform_1(%arg0: i32) -> (i32, i32, i32) {
    %c0_i32 = arith.constant 0 : i32
    %c0_i32_0 = arith.constant 0 : i32
    %c0_i32_1 = arith.constant 0 : i32
    %c0_i32_2 = arith.constant 0 : i32
    return %c0_i32, %c0_i32_0, %c0_i32_1 : i32, i32, i32
  }
  func.func @transform_2(%arg0: i32) -> (i32, i32, i32) {
    %c0_i32 = arith.constant 0 : i32
    %c0_i32_0 = arith.constant 0 : i32
    %c0_i32_1 = arith.constant 0 : i32
    return %arg0, %c0_i32, %c0_i32_0 : i32, i32, i32
  }
  func.func @transform_3(%arg0: i32) -> (i32, i32, i32) {
    %c0_i32 = arith.constant 0 : i32
    %c0_i32_0 = arith.constant 0 : i32
    %c0_i32_1 = arith.constant 0 : i32
    return %arg0, %c0_i32, %c0_i32_0 : i32, i32, i32
  }
}

module attributes {stable_mosaic.version = 11 : i64} {
  func.func @kernel(%arg0: i32, %arg1: memref<1x256x128xf32, #tpu.memory_space<vmem>>, %arg2: memref<1x128xf32, #tpu.memory_space<vmem>>, %arg3: memref<1x128xf32, #tpu.memory_space<vmem>>, %arg4: memref<9x128x128xf32, #tpu.memory_space<vmem>>, %arg5: memref<1x256x128xf32, #tpu.memory_space<vmem>>, %arg6: memref<1x2x128xf32, #tpu.memory_space<vmem>>, %arg7: memref<18x18x128xf32, #tpu.memory_space<vmem>>) attributes {dimension_semantics = [#tpu.dimension_semantics<parallel>], iteration_bounds = array<i64: 2>, scalar_prefetch = 0 : i64, scratch_operands = 1 : i64, tpu.core_type = #tpu.core_type<tc>, window_params = [{transform_indices = @transform_0, window_bounds = array<i64: 1, 256, 128>}, {pipeline_mode = #tpu.pipeline_mode<synchronous>, transform_indices = @transform_1, window_bounds = array<i64: 1, 128>}, {pipeline_mode = #tpu.pipeline_mode<synchronous>, transform_indices = @transform_2, window_bounds = array<i64: 1, 128>}, {pipeline_mode = #tpu.pipeline_mode<synchronous>, transform_indices = @transform_3, window_bounds = array<i64: 9, 128, 128>}, {transform_indices = @transform_4, window_bounds = array<i64: 1, 256, 128>}, {transform_indices = @transform_5, window_bounds = array<i64: 1, 2, 128>}]} {
    %c0 = arith.constant 0 : index
    %c0_0 = arith.constant 0 : index
    %c0_1 = arith.constant 0 : index
    %0 = vector.load %arg1[%c0, %c0_0, %c0_1] : memref<1x256x128xf32, #tpu.memory_space<vmem>>, vector<1x256x128xf32>
    %1 = vector.shape_cast %0 : vector<1x256x128xf32> to vector<256x128xf32>
    %c0_2 = arith.constant 0 : index
    %c0_3 = arith.constant 0 : index
    %2 = vector.load %arg2[%c0_2, %c0_3] : memref<1x128xf32, #tpu.memory_space<vmem>>, vector<1x128xf32>
    %3 = vector.broadcast %2 : vector<1x128xf32> to vector<256x128xf32>
    %4 = arith.mulf %1, %3 : vector<256x128xf32>
    %c0_4 = arith.constant 0 : index
    %c0_5 = arith.constant 0 : index
    %5 = vector.load %arg3[%c0_4, %c0_5] : memref<1x128xf32, #tpu.memory_space<vmem>>, vector<1x128xf32>
    %6 = vector.broadcast %5 : vector<1x128xf32> to vector<256x128xf32>
    %7 = arith.addf %4, %6 : vector<256x128xf32>
    %cst = arith.constant 0.000000e+00 : f32
    %8 = vector.broadcast %cst : f32 to vector<256x128xf32>
    %9 = arith.maximumf %7, %8 : vector<256x128xf32>
    %cst_6 = arith.constant 0.000000e+00 : f32
    %10 = vector.broadcast %cst_6 : f32 to vector<18x18x128xf32>
    %c0_7 = arith.constant 0 : index
    %c0_8 = arith.constant 0 : index
    %c0_9 = arith.constant 0 : index
    %11 = vector.load %arg7[%c0_7, %c0_8, %c0_9] : memref<18x18x128xf32, #tpu.memory_space<vmem>>, vector<18x18x128xf32>
    tpu.vector_store %arg7[%c0_7, %c0_8, %c0_9], %10 {strides = array<i32>} : memref<18x18x128xf32, #tpu.memory_space<vmem>>, vector<18x18x128xf32>,
    %12 = vector.shape_cast %9 : vector<256x128xf32> to vector<16x16x128xf32>
    %c1 = arith.constant 1 : index
    %c1_10 = arith.constant 1 : index
    %c0_11 = arith.constant 0 : index
    %13 = vector.load %arg7[%c1, %c1_10, %c0_11] : memref<18x18x128xf32, #tpu.memory_space<vmem>>, vector<16x16x128xf32>
    tpu.vector_store %arg7[%c1, %c1_10, %c0_11], %12 {strides = array<i32>} : memref<18x18x128xf32, #tpu.memory_space<vmem>>, vector<16x16x128xf32>,
    %c0_12 = arith.constant 0 : index
    %c0_13 = arith.constant 0 : index
    %c0_14 = arith.constant 0 : index
    %14 = vector.load %arg7[%c0_12, %c0_13, %c0_14] : memref<18x18x128xf32, #tpu.memory_space<vmem>>, vector<16x16x128xf32>
    %15 = vector.shape_cast %14 : vector<16x16x128xf32> to vector<256x128xf32>
    %c0_15 = arith.constant 0 : index
    %c0_16 = arith.constant 0 : index
    %c0_17 = arith.constant 0 : index
    %16 = vector.load %arg4[%c0_15, %c0_16, %c0_17] : memref<9x128x128xf32, #tpu.memory_space<vmem>>, vector<1x128x128xf32>
    %17 = vector.shape_cast %16 : vector<1x128x128xf32> to vector<128x128xf32>
    %cst_18 = arith.constant dense<0.000000e+00> : vector<256x128xf32>
    %18 = tpu.matmul %15, %17, %cst_18 {dimension_numbers = #tpu.dot_dimension_numbers<[1], [0], [0], [1], [0, 0, 1, 1], [], []>} : vector<256x128xf32>, vector<128x128xf32>, vector<256x128xf32> -> vector<256x128xf32>
    %c0_19 = arith.constant 0 : index
    %c0_20 = arith.constant 0 : index
    %c0_21 = arith.constant 0 : index
    %19 = vector.load %arg5[%c0_19, %c0_20, %c0_21] : memref<1x256x128xf32, #tpu.memory_space<vmem>>, vector<1x256x128xf32>
    %20 = vector.shape_cast %19 : vector<1x256x128xf32> to vector<256x128xf32>
    %21 = vector.shape_cast %18 : vector<256x128xf32> to vector<1x256x128xf32>
    tpu.vector_store %arg5[%c0_19, %c0_20, %c0_21], %21 {strides = array<i32>} : memref<1x256x128xf32, #tpu.memory_space<vmem>>, vector<1x256x128xf32>,
    %c0_22 = arith.constant 0 : index
    %c1_23 = arith.constant 1 : index
    %c0_24 = arith.constant 0 : index
    %22 = vector.load %arg7[%c0_22, %c1_23, %c0_24] : memref<18x18x128xf32, #tpu.memory_space<vmem>>, vector<16x16x128xf32>
    %23 = vector.shape_cast %22 : vector<16x16x128xf32> to vector<256x128xf32>
    %c1_25 = arith.constant 1 : index
    %c0_26 = arith.constant 0 : index
    %c0_27 = arith.constant 0 : index
    %24 = vector.load %arg4[%c1_25, %c0_26, %c0_27] : memref<9x128x128xf32, #tpu.memory_space<vmem>>, vector<1x128x128xf32>
    %25 = vector.shape_cast %24 : vector<1x128x128xf32> to vector<128x128xf32>
    %cst_28 = arith.constant dense<0.000000e+00> : vector<256x128xf32>
    %26 = tpu.matmul %23, %25, %cst_28 {dimension_numbers = #tpu.dot_dimension_numbers<[1], [0], [0], [1], [0, 0, 1, 1], [], []>} : vector<256x128xf32>, vector<128x128xf32>, vector<256x128xf32> -> vector<256x128xf32>
    %c0_29 = arith.constant 0 : index
    %c0_30 = arith.constant 0 : index
    %c0_31 = arith.constant 0 : index
    %27 = vector.load %arg5[%c0_29, %c0_30, %c0_31] : memref<1x256x128xf32, #tpu.memory_space<vmem>>, vector<1x256x128xf32>
    %28 = vector.shape_cast %27 : vector<1x256x128xf32> to vector<256x128xf32>
    %29 = arith.addf %28, %26 : vector<256x128xf32>
    %c0_32 = arith.constant 0 : index
    %c0_33 = arith.constant 0 : index
    %c0_34 = arith.constant 0 : index
    %30 = vector.load %arg5[%c0_32, %c0_33, %c0_34] : memref<1x256x128xf32, #tpu.memory_space<vmem>>, vector<1x256x128xf32>
    %31 = vector.shape_cast %30 : vector<1x256x128xf32> to vector<256x128xf32>
    %32 = vector.shape_cast %29 : vector<256x128xf32> to vector<1x256x128xf32>
    tpu.vector_store %arg5[%c0_32, %c0_33, %c0_34], %32 {strides = array<i32>} : memref<1x256x128xf32, #tpu.memory_space<vmem>>, vector<1x256x128xf32>,
    %c0_35 = arith.constant 0 : index
    %c2 = arith.constant 2 : index
    %c0_36 = arith.constant 0 : index
    %33 = vector.load %arg7[%c0_35, %c2, %c0_36] : memref<18x18x128xf32, #tpu.memory_space<vmem>>, vector<16x16x128xf32>
    %34 = vector.shape_cast %33 : vector<16x16x128xf32> to vector<256x128xf32>
    %c2_37 = arith.constant 2 : index
    %c0_38 = arith.constant 0 : index
    %c0_39 = arith.constant 0 : index
    %35 = vector.load %arg4[%c2_37, %c0_38, %c0_39] : memref<9x128x128xf32, #tpu.memory_space<vmem>>, vector<1x128x128xf32>
    %36 = vector.shape_cast %35 : vector<1x128x128xf32> to vector<128x128xf32>
    %cst_40 = arith.constant dense<0.000000e+00> : vector<256x128xf32>
    %37 = tpu.matmul %34, %36, %cst_40 {dimension_numbers = #tpu.dot_dimension_numbers<[1], [0], [0], [1], [0, 0, 1, 1], [], []>} : vector<256x128xf32>, vector<128x128xf32>, vector<256x128xf32> -> vector<256x128xf32>
    %c0_41 = arith.constant 0 : index
    %c0_42 = arith.constant 0 : index
    %c0_43 = arith.constant 0 : index
    %38 = vector.load %arg5[%c0_41, %c0_42, %c0_43] : memref<1x256x128xf32, #tpu.memory_space<vmem>>, vector<1x256x128xf32>
    %39 = vector.shape_cast %38 : vector<1x256x128xf32> to vector<256x128xf32>
    %40 = arith.addf %39, %37 : vector<256x128xf32>
    %c0_44 = arith.constant 0 : index
    %c0_45 = arith.constant 0 : index
    %c0_46 = arith.constant 0 : index
    %41 = vector.load %arg5[%c0_44, %c0_45, %c0_46] : memref<1x256x128xf32, #tpu.memory_space<vmem>>, vector<1x256x128xf32>
    %42 = vector.shape_cast %41 : vector<1x256x128xf32> to vector<256x128xf32>
    %43 = vector.shape_cast %40 : vector<256x128xf32> to vector<1x256x128xf32>
    tpu.vector_store %arg5[%c0_44, %c0_45, %c0_46], %43 {strides = array<i32>} : memref<1x256x128xf32, #tpu.memory_space<vmem>>, vector<1x256x128xf32>,
    %c1_47 = arith.constant 1 : index
    %c0_48 = arith.constant 0 : index
    %c0_49 = arith.constant 0 : index
    %44 = vector.load %arg7[%c1_47, %c0_48, %c0_49] : memref<18x18x128xf32, #tpu.memory_space<vmem>>, vector<16x16x128xf32>
    %45 = vector.shape_cast %44 : vector<16x16x128xf32> to vector<256x128xf32>
    %c3 = arith.constant 3 : index
    %c0_50 = arith.constant 0 : index
    %c0_51 = arith.constant 0 : index
    %46 = vector.load %arg4[%c3, %c0_50, %c0_51] : memref<9x128x128xf32, #tpu.memory_space<vmem>>, vector<1x128x128xf32>
    %47 = vector.shape_cast %46 : vector<1x128x128xf32> to vector<128x128xf32>
    %cst_52 = arith.constant dense<0.000000e+00> : vector<256x128xf32>
    %48 = tpu.matmul %45, %47, %cst_52 {dimension_numbers = #tpu.dot_dimension_numbers<[1], [0], [0], [1], [0, 0, 1, 1], [], []>} : vector<256x128xf32>, vector<128x128xf32>, vector<256x128xf32> -> vector<256x128xf32>
    %c0_53 = arith.constant 0 : index
    %c0_54 = arith.constant 0 : index
    %c0_55 = arith.constant 0 : index
    %49 = vector.load %arg5[%c0_53, %c0_54, %c0_55] : memref<1x256x128xf32, #tpu.memory_space<vmem>>, vector<1x256x128xf32>
    %50 = vector.shape_cast %49 : vector<1x256x128xf32> to vector<256x128xf32>
    %51 = arith.addf %50, %48 : vector<256x128xf32>
    %c0_56 = arith.constant 0 : index
    %c0_57 = arith.constant 0 : index
    %c0_58 = arith.constant 0 : index
    %52 = vector.load %arg5[%c0_56, %c0_57, %c0_58] : memref<1x256x128xf32, #tpu.memory_space<vmem>>, vector<1x256x128xf32>
    %53 = vector.shape_cast %52 : vector<1x256x128xf32> to vector<256x128xf32>
    %54 = vector.shape_cast %51 : vector<256x128xf32> to vector<1x256x128xf32>
    tpu.vector_store %arg5[%c0_56, %c0_57, %c0_58], %54 {strides = array<i32>} : memref<1x256x128xf32, #tpu.memory_space<vmem>>, vector<1x256x128xf32>,
    %c1_59 = arith.constant 1 : index
    %c1_60 = arith.constant 1 : index
    %c0_61 = arith.constant 0 : index
    %55 = vector.load %arg7[%c1_59, %c1_60, %c0_61] : memref<18x18x128xf32, #tpu.memory_space<vmem>>, vector<16x16x128xf32>
    %56 = vector.shape_cast %55 : vector<16x16x128xf32> to vector<256x128xf32>
    %c4 = arith.constant 4 : index
    %c0_62 = arith.constant 0 : index
    %c0_63 = arith.constant 0 : index
    %57 = vector.load %arg4[%c4, %c0_62, %c0_63] : memref<9x128x128xf32, #tpu.memory_space<vmem>>, vector<1x128x128xf32>
    %58 = vector.shape_cast %57 : vector<1x128x128xf32> to vector<128x128xf32>
    %cst_64 = arith.constant dense<0.000000e+00> : vector<256x128xf32>
    %59 = tpu.matmul %56, %58, %cst_64 {dimension_numbers = #tpu.dot_dimension_numbers<[1], [0], [0], [1], [0, 0, 1, 1], [], []>} : vector<256x128xf32>, vector<128x128xf32>, vector<256x128xf32> -> vector<256x128xf32>
    %c0_65 = arith.constant 0 : index
    %c0_66 = arith.constant 0 : index
    %c0_67 = arith.constant 0 : index
    %60 = vector.load %arg5[%c0_65, %c0_66, %c0_67] : memref<1x256x128xf32, #tpu.memory_space<vmem>>, vector<1x256x128xf32>
    %61 = vector.shape_cast %60 : vector<1x256x128xf32> to vector<256x128xf32>
    %62 = arith.addf %61, %59 : vector<256x128xf32>
    %c0_68 = arith.constant 0 : index
    %c0_69 = arith.constant 0 : index
    %c0_70 = arith.constant 0 : index
    %63 = vector.load %arg5[%c0_68, %c0_69, %c0_70] : memref<1x256x128xf32, #tpu.memory_space<vmem>>, vector<1x256x128xf32>
    %64 = vector.shape_cast %63 : vector<1x256x128xf32> to vector<256x128xf32>
    %65 = vector.shape_cast %62 : vector<256x128xf32> to vector<1x256x128xf32>
    tpu.vector_store %arg5[%c0_68, %c0_69, %c0_70], %65 {strides = array<i32>} : memref<1x256x128xf32, #tpu.memory_space<vmem>>, vector<1x256x128xf32>,
    %c1_71 = arith.constant 1 : index
    %c2_72 = arith.constant 2 : index
    %c0_73 = arith.constant 0 : index
    %66 = vector.load %arg7[%c1_71, %c2_72, %c0_73] : memref<18x18x128xf32, #tpu.memory_space<vmem>>, vector<16x16x128xf32>
    %67 = vector.shape_cast %66 : vector<16x16x128xf32> to vector<256x128xf32>
    %c5 = arith.constant 5 : index
    %c0_74 = arith.constant 0 : index
    %c0_75 = arith.constant 0 : index
    %68 = vector.load %arg4[%c5, %c0_74, %c0_75] : memref<9x128x128xf32, #tpu.memory_space<vmem>>, vector<1x128x128xf32>
    %69 = vector.shape_cast %68 : vector<1x128x128xf32> to vector<128x128xf32>
    %cst_76 = arith.constant dense<0.000000e+00> : vector<256x128xf32>
    %70 = tpu.matmul %67, %69, %cst_76 {dimension_numbers = #tpu.dot_dimension_numbers<[1], [0], [0], [1], [0, 0, 1, 1], [], []>} : vector<256x128xf32>, vector<128x128xf32>, vector<256x128xf32> -> vector<256x128xf32>
    %c0_77 = arith.constant 0 : index
    %c0_78 = arith.constant 0 : index
    %c0_79 = arith.constant 0 : index
    %71 = vector.load %arg5[%c0_77, %c0_78, %c0_79] : memref<1x256x128xf32, #tpu.memory_space<vmem>>, vector<1x256x128xf32>
    %72 = vector.shape_cast %71 : vector<1x256x128xf32> to vector<256x128xf32>
    %73 = arith.addf %72, %70 : vector<256x128xf32>
    %c0_80 = arith.constant 0 : index
    %c0_81 = arith.constant 0 : index
    %c0_82 = arith.constant 0 : index
    %74 = vector.load %arg5[%c0_80, %c0_81, %c0_82] : memref<1x256x128xf32, #tpu.memory_space<vmem>>, vector<1x256x128xf32>
    %75 = vector.shape_cast %74 : vector<1x256x128xf32> to vector<256x128xf32>
    %76 = vector.shape_cast %73 : vector<256x128xf32> to vector<1x256x128xf32>
    tpu.vector_store %arg5[%c0_80, %c0_81, %c0_82], %76 {strides = array<i32>} : memref<1x256x128xf32, #tpu.memory_space<vmem>>, vector<1x256x128xf32>,
    %c2_83 = arith.constant 2 : index
    %c0_84 = arith.constant 0 : index
    %c0_85 = arith.constant 0 : index
    %77 = vector.load %arg7[%c2_83, %c0_84, %c0_85] : memref<18x18x128xf32, #tpu.memory_space<vmem>>, vector<16x16x128xf32>
    %78 = vector.shape_cast %77 : vector<16x16x128xf32> to vector<256x128xf32>
    %c6 = arith.constant 6 : index
    %c0_86 = arith.constant 0 : index
    %c0_87 = arith.constant 0 : index
    %79 = vector.load %arg4[%c6, %c0_86, %c0_87] : memref<9x128x128xf32, #tpu.memory_space<vmem>>, vector<1x128x128xf32>
    %80 = vector.shape_cast %79 : vector<1x128x128xf32> to vector<128x128xf32>
    %cst_88 = arith.constant dense<0.000000e+00> : vector<256x128xf32>
    %81 = tpu.matmul %78, %80, %cst_88 {dimension_numbers = #tpu.dot_dimension_numbers<[1], [0], [0], [1], [0, 0, 1, 1], [], []>} : vector<256x128xf32>, vector<128x128xf32>, vector<256x128xf32> -> vector<256x128xf32>
    %c0_89 = arith.constant 0 : index
    %c0_90 = arith.constant 0 : index
    %c0_91 = arith.constant 0 : index
    %82 = vector.load %arg5[%c0_89, %c0_90, %c0_91] : memref<1x256x128xf32, #tpu.memory_space<vmem>>, vector<1x256x128xf32>
    %83 = vector.shape_cast %82 : vector<1x256x128xf32> to vector<256x128xf32>
    %84 = arith.addf %83, %81 : vector<256x128xf32>
    %c0_92 = arith.constant 0 : index
    %c0_93 = arith.constant 0 : index
    %c0_94 = arith.constant 0 : index
    %85 = vector.load %arg5[%c0_92, %c0_93, %c0_94] : memref<1x256x128xf32, #tpu.memory_space<vmem>>, vector<1x256x128xf32>
    %86 = vector.shape_cast %85 : vector<1x256x128xf32> to vector<256x128xf32>
    %87 = vector.shape_cast %84 : vector<256x128xf32> to vector<1x256x128xf32>
    tpu.vector_store %arg5[%c0_92, %c0_93, %c0_94], %87 {strides = array<i32>} : memref<1x256x128xf32, #tpu.memory_space<vmem>>, vector<1x256x128xf32>,
    %c2_95 = arith.constant 2 : index
    %c1_96 = arith.constant 1 : index
    %c0_97 = arith.constant 0 : index
    %88 = vector.load %arg7[%c2_95, %c1_96, %c0_97] : memref<18x18x128xf32, #tpu.memory_space<vmem>>, vector<16x16x128xf32>
    %89 = vector.shape_cast %88 : vector<16x16x128xf32> to vector<256x128xf32>
    %c7 = arith.constant 7 : index
    %c0_98 = arith.constant 0 : index
    %c0_99 = arith.constant 0 : index
    %90 = vector.load %arg4[%c7, %c0_98, %c0_99] : memref<9x128x128xf32, #tpu.memory_space<vmem>>, vector<1x128x128xf32>
    %91 = vector.shape_cast %90 : vector<1x128x128xf32> to vector<128x128xf32>
    %cst_100 = arith.constant dense<0.000000e+00> : vector<256x128xf32>
    %92 = tpu.matmul %89, %91, %cst_100 {dimension_numbers = #tpu.dot_dimension_numbers<[1], [0], [0], [1], [0, 0, 1, 1], [], []>} : vector<256x128xf32>, vector<128x128xf32>, vector<256x128xf32> -> vector<256x128xf32>
    %c0_101 = arith.constant 0 : index
    %c0_102 = arith.constant 0 : index
    %c0_103 = arith.constant 0 : index
    %93 = vector.load %arg5[%c0_101, %c0_102, %c0_103] : memref<1x256x128xf32, #tpu.memory_space<vmem>>, vector<1x256x128xf32>
    %94 = vector.shape_cast %93 : vector<1x256x128xf32> to vector<256x128xf32>
    %95 = arith.addf %94, %92 : vector<256x128xf32>
    %c0_104 = arith.constant 0 : index
    %c0_105 = arith.constant 0 : index
    %c0_106 = arith.constant 0 : index
    %96 = vector.load %arg5[%c0_104, %c0_105, %c0_106] : memref<1x256x128xf32, #tpu.memory_space<vmem>>, vector<1x256x128xf32>
    %97 = vector.shape_cast %96 : vector<1x256x128xf32> to vector<256x128xf32>
    %98 = vector.shape_cast %95 : vector<256x128xf32> to vector<1x256x128xf32>
    tpu.vector_store %arg5[%c0_104, %c0_105, %c0_106], %98 {strides = array<i32>} : memref<1x256x128xf32, #tpu.memory_space<vmem>>, vector<1x256x128xf32>,
    %c2_107 = arith.constant 2 : index
    %c2_108 = arith.constant 2 : index
    %c0_109 = arith.constant 0 : index
    %99 = vector.load %arg7[%c2_107, %c2_108, %c0_109] : memref<18x18x128xf32, #tpu.memory_space<vmem>>, vector<16x16x128xf32>
    %100 = vector.shape_cast %99 : vector<16x16x128xf32> to vector<256x128xf32>
    %c8 = arith.constant 8 : index
    %c0_110 = arith.constant 0 : index
    %c0_111 = arith.constant 0 : index
    %101 = vector.load %arg4[%c8, %c0_110, %c0_111] : memref<9x128x128xf32, #tpu.memory_space<vmem>>, vector<1x128x128xf32>
    %102 = vector.shape_cast %101 : vector<1x128x128xf32> to vector<128x128xf32>
    %cst_112 = arith.constant dense<0.000000e+00> : vector<256x128xf32>
    %103 = tpu.matmul %100, %102, %cst_112 {dimension_numbers = #tpu.dot_dimension_numbers<[1], [0], [0], [1], [0, 0, 1, 1], [], []>} : vector<256x128xf32>, vector<128x128xf32>, vector<256x128xf32> -> vector<256x128xf32>
    %c0_113 = arith.constant 0 : index
    %c0_114 = arith.constant 0 : index
    %c0_115 = arith.constant 0 : index
    %104 = vector.load %arg5[%c0_113, %c0_114, %c0_115] : memref<1x256x128xf32, #tpu.memory_space<vmem>>, vector<1x256x128xf32>
    %105 = vector.shape_cast %104 : vector<1x256x128xf32> to vector<256x128xf32>
    %106 = arith.addf %105, %103 : vector<256x128xf32>
    %c0_116 = arith.constant 0 : index
    %c0_117 = arith.constant 0 : index
    %c0_118 = arith.constant 0 : index
    %107 = vector.load %arg5[%c0_116, %c0_117, %c0_118] : memref<1x256x128xf32, #tpu.memory_space<vmem>>, vector<1x256x128xf32>
    %108 = vector.shape_cast %107 : vector<1x256x128xf32> to vector<256x128xf32>
    %109 = vector.shape_cast %106 : vector<256x128xf32> to vector<1x256x128xf32>
    tpu.vector_store %arg5[%c0_116, %c0_117, %c0_118], %109 {strides = array<i32>} : memref<1x256x128xf32, #tpu.memory_space<vmem>>, vector<1x256x128xf32>,
    %c0_119 = arith.constant 0 : index
    %c0_120 = arith.constant 0 : index
    %c0_121 = arith.constant 0 : index
    %110 = vector.load %arg5[%c0_119, %c0_120, %c0_121] : memref<1x256x128xf32, #tpu.memory_space<vmem>>, vector<1x256x128xf32>
    %111 = vector.shape_cast %110 : vector<1x256x128xf32> to vector<256x128xf32>
    %cst_122 = arith.constant dense<0.000000e+00> : vector<128xf32>
    %112 = vector.multi_reduction <add>, %111, %cst_122 [0] : vector<256x128xf32> to vector<128xf32>
    %113 = vector.shape_cast %112 : vector<128xf32> to vector<1x128xf32>
    %c0_123 = arith.constant 0 : index
    %c0_124 = arith.constant 0 : index
    %c0_125 = arith.constant 0 : index
    %114 = vector.load %arg6[%c0_123, %c0_124, %c0_125] : memref<1x2x128xf32, #tpu.memory_space<vmem>>, vector<1x1x128xf32>
    %115 = vector.shape_cast %114 : vector<1x1x128xf32> to vector<1x128xf32>
    %116 = vector.shape_cast %113 : vector<1x128xf32> to vector<1x1x128xf32>
    tpu.vector_store %arg6[%c0_123, %c0_124, %c0_125], %116 {strides = array<i32>} : memref<1x2x128xf32, #tpu.memory_space<vmem>>, vector<1x1x128xf32>,
    %117 = arith.mulf %111, %111 : vector<256x128xf32>
    %cst_126 = arith.constant dense<0.000000e+00> : vector<128xf32>
    %118 = vector.multi_reduction <add>, %117, %cst_126 [0] : vector<256x128xf32> to vector<128xf32>
    %119 = vector.shape_cast %118 : vector<128xf32> to vector<1x128xf32>
    %c0_127 = arith.constant 0 : index
    %c1_128 = arith.constant 1 : index
    %c0_129 = arith.constant 0 : index
    %120 = vector.load %arg6[%c0_127, %c1_128, %c0_129] : memref<1x2x128xf32, #tpu.memory_space<vmem>>, vector<1x1x128xf32>
    %121 = vector.shape_cast %120 : vector<1x1x128xf32> to vector<1x128xf32>
    %122 = vector.shape_cast %119 : vector<1x128xf32> to vector<1x1x128xf32>
    tpu.vector_store %arg6[%c0_127, %c1_128, %c0_129], %122 {strides = array<i32>} : memref<1x2x128xf32, #tpu.memory_space<vmem>>, vector<1x1x128xf32>,
    return
  }
  func.func @transform_0(%arg0: i32) -> (i32, i32, i32) {
    %c0_i32 = arith.constant 0 : i32
    %c0_i32_0 = arith.constant 0 : i32
    %c0_i32_1 = arith.constant 0 : i32
    return %arg0, %c0_i32, %c0_i32_0 : i32, i32, i32
  }
  func.func @transform_1(%arg0: i32) -> (i32, i32) {
    %c0_i32 = arith.constant 0 : i32
    %c0_i32_0 = arith.constant 0 : i32
    %c0_i32_1 = arith.constant 0 : i32
    return %c0_i32, %c0_i32_0 : i32, i32
  }
  func.func @transform_2(%arg0: i32) -> (i32, i32) {
    %c0_i32 = arith.constant 0 : i32
    %c0_i32_0 = arith.constant 0 : i32
    %c0_i32_1 = arith.constant 0 : i32
    return %c0_i32, %c0_i32_0 : i32, i32
  }
  func.func @transform_3(%arg0: i32) -> (i32, i32, i32) {
    %c0_i32 = arith.constant 0 : i32
    %c0_i32_0 = arith.constant 0 : i32
    %c0_i32_1 = arith.constant 0 : i32
    %c0_i32_2 = arith.constant 0 : i32
    return %c0_i32, %c0_i32_0, %c0_i32_1 : i32, i32, i32
  }
  func.func @transform_4(%arg0: i32) -> (i32, i32, i32) {
    %c0_i32 = arith.constant 0 : i32
    %c0_i32_0 = arith.constant 0 : i32
    %c0_i32_1 = arith.constant 0 : i32
    return %arg0, %c0_i32, %c0_i32_0 : i32, i32, i32
  }
  func.func @transform_5(%arg0: i32) -> (i32, i32, i32) {
    %c0_i32 = arith.constant 0 : i32
    %c0_i32_0 = arith.constant 0 : i32
    %c0_i32_1 = arith.constant 0 : i32
    return %arg0, %c0_i32, %c0_i32_0 : i32, i32, i32
  }
}

module attributes {stable_mosaic.version = 11 : i64} {
  func.func @kernel(%arg0: i32, %arg1: memref<1x256x128xf32, #tpu.memory_space<vmem>>, %arg2: memref<1x128xf32, #tpu.memory_space<vmem>>, %arg3: memref<1x128xf32, #tpu.memory_space<vmem>>, %arg4: memref<1x256x128xf32, #tpu.memory_space<vmem>>, %arg5: memref<1x256x128xf32, #tpu.memory_space<vmem>>) attributes {dimension_semantics = [#tpu.dimension_semantics<parallel>], iteration_bounds = array<i64: 2>, scalar_prefetch = 0 : i64, scratch_operands = 0 : i64, tpu.core_type = #tpu.core_type<tc>, window_params = [{transform_indices = @transform_0, window_bounds = array<i64: 1, 256, 128>}, {pipeline_mode = #tpu.pipeline_mode<synchronous>, transform_indices = @transform_1, window_bounds = array<i64: 1, 128>}, {pipeline_mode = #tpu.pipeline_mode<synchronous>, transform_indices = @transform_2, window_bounds = array<i64: 1, 128>}, {transform_indices = @transform_3, window_bounds = array<i64: 1, 256, 128>}, {transform_indices = @transform_4, window_bounds = array<i64: 1, 256, 128>}]} {
    %c0 = arith.constant 0 : index
    %c0_0 = arith.constant 0 : index
    %c0_1 = arith.constant 0 : index
    %0 = vector.load %arg1[%c0, %c0_0, %c0_1] : memref<1x256x128xf32, #tpu.memory_space<vmem>>, vector<1x256x128xf32>
    %1 = vector.shape_cast %0 : vector<1x256x128xf32> to vector<256x128xf32>
    %c0_2 = arith.constant 0 : index
    %c0_3 = arith.constant 0 : index
    %2 = vector.load %arg2[%c0_2, %c0_3] : memref<1x128xf32, #tpu.memory_space<vmem>>, vector<1x128xf32>
    %3 = vector.broadcast %2 : vector<1x128xf32> to vector<256x128xf32>
    %4 = arith.mulf %1, %3 : vector<256x128xf32>
    %c0_4 = arith.constant 0 : index
    %c0_5 = arith.constant 0 : index
    %5 = vector.load %arg3[%c0_4, %c0_5] : memref<1x128xf32, #tpu.memory_space<vmem>>, vector<1x128xf32>
    %6 = vector.broadcast %5 : vector<1x128xf32> to vector<256x128xf32>
    %7 = arith.addf %4, %6 : vector<256x128xf32>
    %c0_6 = arith.constant 0 : index
    %c0_7 = arith.constant 0 : index
    %c0_8 = arith.constant 0 : index
    %8 = vector.load %arg4[%c0_6, %c0_7, %c0_8] : memref<1x256x128xf32, #tpu.memory_space<vmem>>, vector<1x256x128xf32>
    %9 = vector.shape_cast %8 : vector<1x256x128xf32> to vector<256x128xf32>
    %10 = arith.addf %7, %9 : vector<256x128xf32>
    %c0_9 = arith.constant 0 : index
    %c0_10 = arith.constant 0 : index
    %c0_11 = arith.constant 0 : index
    %11 = vector.load %arg5[%c0_9, %c0_10, %c0_11] : memref<1x256x128xf32, #tpu.memory_space<vmem>>, vector<1x256x128xf32>
    %12 = vector.shape_cast %11 : vector<1x256x128xf32> to vector<256x128xf32>
    %13 = vector.shape_cast %10 : vector<256x128xf32> to vector<1x256x128xf32>
    tpu.vector_store %arg5[%c0_9, %c0_10, %c0_11], %13 {strides = array<i32>} : memref<1x256x128xf32, #tpu.memory_space<vmem>>, vector<1x256x128xf32>,
    return
  }
  func.func @transform_0(%arg0: i32) -> (i32, i32, i32) {
    %c0_i32 = arith.constant 0 : i32
    %c0_i32_0 = arith.constant 0 : i32
    %c0_i32_1 = arith.constant 0 : i32
    return %arg0, %c0_i32, %c0_i32_0 : i32, i32, i32
  }
  func.func @transform_1(%arg0: i32) -> (i32, i32) {
    %c0_i32 = arith.constant 0 : i32
    %c0_i32_0 = arith.constant 0 : i32
    %c0_i32_1 = arith.constant 0 : i32
    return %c0_i32, %c0_i32_0 : i32, i32
  }
  func.func @transform_2(%arg0: i32) -> (i32, i32) {
    %c0_i32 = arith.constant 0 : i32
    %c0_i32_0 = arith.constant 0 : i32
    %c0_i32_1 = arith.constant 0 : i32
    return %c0_i32, %c0_i32_0 : i32, i32
  }
  func.func @transform_3(%arg0: i32) -> (i32, i32, i32) {
    %c0_i32 = arith.constant 0 : i32
    %c0_i32_0 = arith.constant 0 : i32
    %c0_i32_1 = arith.constant 0 : i32
    return %arg0, %c0_i32, %c0_i32_0 : i32, i32, i32
  }
  func.func @transform_4(%arg0: i32) -> (i32, i32, i32) {
    %c0_i32 = arith.constant 0 : i32
    %c0_i32_0 = arith.constant 0 : i32
    %c0_i32_1 = arith.constant 0 : i32
    return %arg0, %c0_i32, %c0_i32_0 : i32, i32, i32
  }
}

</mosaic_0001>

<llo_original>
// kernel: basic_block_forward.5
$region0: #{basic_block_forward.5}
  #allocation0 [shape = 'u32[]', space=smem, size = 0x4, offset = 0x4, fixed_abs, tag = 'smem constant byte address 0x4 - core index']
  #allocation1 [shape = 'u32[72,128]{1,0:T(1,128)}', space=vmem, size = 0x9000, scoped, tag = 'internal scratch']
  %s0 = inlined_call_operand.vmem [shape: f32[2,256,128], index: 0, kind: input, shape index: {}]
  %s1 = inlined_call_operand.vmem [shape: f32[1,128], index: 1, kind: input, shape index: {}]
  %s2 = inlined_call_operand.vmem [shape: f32[1,128], index: 2, kind: input, shape index: {}]
  %s3 = inlined_call_operand.vmem [shape: f32[2,256,128], index: 3, kind: input, shape index: {}]
  %s4 = inlined_call_operand.vmem [shape: f32[2,256,128], index: 4, kind: output, shape index: {}]
  %s5 = sld [smem:[#allocation0]]
  $region49: #{basic_block_forward.5} parent=0
    _
  %s7 = ssub.s32 1, %s5
  %s8 = scalar_select 0, %s7, %s5
  loop: start=0, step=1, limit=4
  $region2: #{basic_block_forward.5} parent=0 // loop_pre_header
    _
  $region3: #{basic_block_forward.5} parent=0 // loop_header
    %s10 = sphi 0, %s14
    %p11 = scmp.ge.s32.totalorder %s10, 4
    %s20 = sphi 0, %s22
    %s23 = sphi 0, %s20
    %s24 = sphi 0, %s23
    %s40 = sphi 0, %s24
    %s44 = sphi 0, %s44
    %s46 = sphi 0, %s44
    %s47 = sphi 0, %s46
    %s61 = sphi 0, %s47
    %s65 = sphi 0, %s65
    %s67 = sphi 0, %s65
    %s68 = sphi 0, %s67
    %s82 = sphi 0, %s68
    %s88 = sphi 0, %s90
    %s91 = sphi 0, %s88
    %s92 = sphi 0, %s91
    %s108 = sphi 0, %s92
    %s114 = sphi 0, %s116
    %s117 = sphi 0, %s114
    %s118 = sphi 0, %s117
    %s134 = sphi 0, %s118
  $region4: #{basic_block_forward.5} parent=0 // loop_header_branch
    %13 = sbr.rel (%p11) target = $region8
  $region5: #{basic_block_forward.5} parent=0 // loop_body
    %s15 = ssub.s32 %s10, 1
    %s16 = ssub.s32 %s10, 2
    %s17 = sadd.s32 %s10, 1
    %s18 = ssub.s32 %s10, %s17
    %p19 = scmp.eq.s32.totalorder %s18, 0
    %s21 = sadd.s32 %s20, 1
    %s22 = scalar_select %p19, %s20, %s21
    %p25 = pneg %p19
    %p26 = scmp.eq.s32.totalorder %s10, 1
    %p27 = por %p25, %p26
    %p28 = scmp.ne.s32.totalorder %s20, %s23
    %p29 = scmp.eq.s32.totalorder %s10, 0
    %p30 = por %p28, %p29
    %p31 = scmp.ne.s32.totalorder %s20, %s23
    %p32 = scmp.eq.s32.totalorder %s15, 1
    %p33 = por %p31, %p32
    %p34 = scmp.ne.s32.totalorder %s23, %s24
    %p35 = scmp.eq.s32.totalorder %s15, 0
    %p36 = por %p34, %p35
    %p37 = scmp.ne.s32.totalorder %s23, %s24
    %p38 = scmp.eq.s32.totalorder %s16, 1
    %p39 = por %p37, %p38
    %p41 = scmp.ne.s32.totalorder %s24, %s40
    %p42 = scmp.eq.s32.totalorder %s16, 0
    %p43 = por %p41, %p42
    %s45 = sadd.s32 %s44, 1
    %p48 = scmp.eq.s32.totalorder %s10, 1
    %p49 = scmp.ne.s32.totalorder %s44, %s46
    %p50 = scmp.eq.s32.totalorder %s10, 0
    %p51 = por %p49, %p50
    %p52 = scmp.ne.s32.totalorder %s44, %s46
    %p53 = scmp.eq.s32.totalorder %s15, 1
    %p54 = por %p52, %p53
    %p55 = scmp.ne.s32.totalorder %s46, %s47
    %p56 = scmp.eq.s32.totalorder %s15, 0
    %p57 = por %p55, %p56
    %p58 = scmp.ne.s32.totalorder %s46, %s47
    %p59 = scmp.eq.s32.totalorder %s16, 1
    %p60 = por %p58, %p59
    %p62 = scmp.ne.s32.totalorder %s47, %s61
    %p63 = scmp.eq.s32.totalorder %s16, 0
    %p64 = por %p62, %p63
    %s66 = sadd.s32 %s65, 1
    %p69 = scmp.eq.s32.totalorder %s10, 1
    %p70 = scmp.ne.s32.totalorder %s65, %s67
    %p71 = scmp.eq.s32.totalorder %s10, 0
    %p72 = por %p70, %p71
    %p73 = scmp.ne.s32.totalorder %s65, %s67
    %p74 = scmp.eq.s32.totalorder %s15, 1
    %p75 = por %p73, %p74
    %p76 = scmp.ne.s32.totalorder %s67, %s68
    %p77 = scmp.eq.s32.totalorder %s15, 0
    %p78 = por %p76, %p77
    %p79 = scmp.ne.s32.totalorder %s67, %s68
    %p80 = scmp.eq.s32.totalorder %s16, 1
    %p81 = por %p79, %p80
    %p83 = scmp.ne.s32.totalorder %s68, %s82
    %p84 = scmp.eq.s32.totalorder %s16, 0
    %p85 = por %p83, %p84
    %s86 = ssub.s32 %s10, %s17
    %p87 = scmp.eq.s32.totalorder %s86, 0
    %s89 = sadd.s32 %s88, 1
    %s90 = scalar_select %p87, %s88, %s89
    %p93 = pneg %p87
    %p94 = scmp.eq.s32.totalorder %s10, 1
    %p95 = por %p93, %p94
    %p96 = scmp.ne.s32.totalorder %s88, %s91
    %p97 = scmp.eq.s32.totalorder %s10, 0
    %p98 = por %p96, %p97
    %p99 = scmp.ne.s32.totalorder %s88, %s91
    %p100 = scmp.eq.s32.totalorder %s15, 1
    %p101 = por %p99, %p100
    %p102 = scmp.ne.s32.totalorder %s91, %s92
    %p103 = scmp.eq.s32.totalorder %s15, 0
    %p104 = por %p102, %p103
    %p105 = scmp.ne.s32.totalorder %s91, %s92
    %p106 = scmp.eq.s32.totalorder %s16, 1
    %p107 = por %p105, %p106
    %p109 = scmp.ne.s32.totalorder %s92, %s108
    %p110 = scmp.eq.s32.totalorder %s16, 0
    %p111 = por %p109, %p110
    %s112 = ssub.s32 %s10, %s17
    %p113 = scmp.eq.s32.totalorder %s112, 0
    %s115 = sadd.s32 %s114, 1
    %s116 = scalar_select %p113, %s114, %s115
    %p119 = pneg %p113
    %p120 = scmp.eq.s32.totalorder %s10, 1
    %p121 = por %p119, %p120
    %p122 = scmp.ne.s32.totalorder %s114, %s117
    %p123 = scmp.eq.s32.totalorder %s10, 0
    %p124 = por %p122, %p123
    %p125 = scmp.ne.s32.totalorder %s114, %s117
    %p126 = scmp.eq.s32.totalorder %s15, 1
    %p127 = por %p125, %p126
    %p128 = scmp.ne.s32.totalorder %s117, %s118
    %p129 = scmp.eq.s32.totalorder %s15, 0
    %p130 = por %p128, %p129
    %p131 = scmp.ne.s32.totalorder %s117, %s118
    %p132 = scmp.eq.s32.totalorder %s16, 1
    %p133 = por %p131, %p132
    %p135 = scmp.ne.s32.totalorder %s118, %s134
    %p136 = scmp.eq.s32.totalorder %s16, 0
    %p137 = por %p135, %p136
    %p138 = scmp.le.s32.totalorder 1, %s10
    %p139 = scmp.lt.s32.totalorder %s10, 3
    %p140 = pnand %p138, %p139
    %p141 = pneg %p140
    // Predicated region
    $region9: #{basic_block_forward.5} parent=5 // pred_check
      _
    $region10: #{basic_block_forward.5} parent=5 // pred_check_branch
      %143 = sbr.rel (%p140) target = $region12
    $region11: #{basic_block_forward.5} parent=5 // pred_region
      %s144 = ssub.s32 %s10, 1
      // Predicated region
      $region13: #{basic_block_forward.5} parent=11 // pred_check
        %p145 = pneg %p57
      $region14: #{basic_block_forward.5} parent=11 // pred_check_branch
        %147 = sbr.rel (%p145) target = $region16
      $region15: #{basic_block_forward.5} parent=11 // pred_region
        _
      $region16: #{basic_block_forward.5} parent=11 // pred_fallthru
        _
      // Predicated region
      $region17: #{basic_block_forward.5} parent=11 // pred_check
        %p148 = pneg %p78
      $region18: #{basic_block_forward.5} parent=11 // pred_check_branch
        %150 = sbr.rel (%p148) target = $region20
      $region19: #{basic_block_forward.5} parent=11 // pred_region
        _
      $region20: #{basic_block_forward.5} parent=11 // pred_fallthru
        _
    $region12: #{basic_block_forward.5} parent=5 // pred_fallthru
      _
    %p151 = scmp.lt.s32.totalorder %s10, 2
    // Predicated region
    $region21: #{basic_block_forward.5} parent=5 // pred_check
      %p152 = pneg %p151
    $region22: #{basic_block_forward.5} parent=5 // pred_check_branch
      %154 = sbr.rel (%p152) target = $region24
    $region23: #{basic_block_forward.5} parent=5 // pred_region
      // Predicated region
      $region25: #{basic_block_forward.5} parent=23 // pred_check
        %p155 = pneg %p30
      $region26: #{basic_block_forward.5} parent=23 // pred_check_branch
        %157 = sbr.rel (%p155) target = $region28
      $region27: #{basic_block_forward.5} parent=23 // pred_region
        %p158 = scmp.lt.s32.totalorder %s10, 1
        %s159 = scalar_select %p158, %s10, 1
        %s160 = smul.addr %s159, 32
        %s161 = smul.addr %s160, 8
        %s162 = scalar_lea.vmem %s0, %s161
      $region28: #{basic_block_forward.5} parent=23 // pred_fallthru
        _
      // Predicated region
      $region29: #{basic_block_forward.5} parent=23 // pred_check
        %p163 = pneg %p98
      $region30: #{basic_block_forward.5} parent=23 // pred_check_branch
        %165 = sbr.rel (%p163) target = $region32
      $region31: #{basic_block_forward.5} parent=23 // pred_region
        %p166 = scmp.lt.s32.totalorder %s10, 1
        %s167 = scalar_select %p166, %s10, 1
        %s168 = smul.addr %s167, 32
        %s169 = smul.addr %s168, 8
        %s170 = scalar_lea.vmem %s3, %s169
      $region32: #{basic_block_forward.5} parent=23 // pred_fallthru
        _
    $region24: #{basic_block_forward.5} parent=5 // pred_fallthru
      _
    %p171 = scmp.le.s32.totalorder 1, %s10
    %p172 = scmp.lt.s32.totalorder %s10, 3
    %p173 = pnand %p171, %p172
    %p174 = pneg %p173
    // Predicated region
    $region33: #{basic_block_forward.5} parent=5 // pred_check
      _
    $region34: #{basic_block_forward.5} parent=5 // pred_check_branch
      %176 = sbr.rel (%p173) target = $region36
    $region35: #{basic_block_forward.5} parent=5 // pred_region
      %s177 = ssub.s32 %s10, 1
      %p178 = scmp.lt.s32.totalorder %s15, 1
      %s179 = scalar_select %p178, %s15, 1
      %s180 = smul.addr %s179, 32
      %s181 = smul.addr %s180, 8
      %s182 = scalar_lea.vmem %s0, %s181
      %p183 = pneg %p36
      %p184 = pneg %p33
      %p185 = pneg %p57
      %p186 = pneg %p54
      %p187 = pneg %p78
      %p188 = pneg %p75
      %p189 = scmp.lt.s32.totalorder %s15, 1
      %s190 = scalar_select %p189, %s15, 1
      %s191 = smul.addr %s190, 32
      %s192 = smul.addr %s191, 8
      %s193 = scalar_lea.vmem %s3, %s192
      %p194 = pneg %p104
      %p195 = pneg %p101
      %p196 = pneg %p130
      %p197 = pneg %p127
      %p198 = scmp.lt.s32.totalorder %s15, 1
      %s199 = scalar_select %p198, %s15, 1
      %s200 = smul.addr %s199, 32
      %s201 = smul.addr %s200, 8
      %s202 = scalar_lea.vmem %s4, %s201
      %p203 = scmp.lt.s32.totalorder %s15, 1
      %s204 = scalar_select %p203, %s15, 1
      %s205 = smul.addr %s204, 32
      %s206 = smul.addr %s205, 8
      %s207 = scalar_lea.vmem %s0, %s206
      %p208 = scmp.lt.s32.totalorder %s15, 1
      %s209 = scalar_select %p208, %s15, 1
      %s210 = smul.addr %s209, 32
      %s211 = smul.addr %s210, 8
      %s212 = scalar_lea.vmem %s3, %s211
      %p213 = scmp.lt.s32.totalorder %s15, 1
      %s214 = scalar_select %p213, %s15, 1
      %s215 = smul.addr %s214, 32
      %s216 = smul.addr %s215, 8
      %s217 = scalar_lea.vmem %s4, %s216
      %v218 = vld [vmem:[%s207] sm:$0xff]
      %v219 = vld [vmem:[%s207 + $0x8] sm:$0xff]
      %v220 = vld [vmem:[%s207 + $0x10] sm:$0xff]
      %v221 = vld [vmem:[%s207 + $0x18] sm:$0xff]
      %v222 = vld [vmem:[%s207 + $0x20] sm:$0xff]
      %v223 = vld [vmem:[%s207 + $0x28] sm:$0xff]
      %v224 = vld [vmem:[%s207 + $0x30] sm:$0xff]
      %v225 = vld [vmem:[%s207 + $0x38] sm:$0xff]
      %v226 = vld [vmem:[%s207 + $0x40] sm:$0xff]
      %v227 = vld [vmem:[%s207 + $0x48] sm:$0xff]
      %v228 = vld [vmem:[%s207 + $0x50] sm:$0xff]
      %v229 = vld [vmem:[%s207 + $0x58] sm:$0xff]
      %v230 = vld [vmem:[%s207 + $0x60] sm:$0xff]
      %v231 = vld [vmem:[%s207 + $0x68] sm:$0xff]
      %v232 = vld [vmem:[%s207 + $0x70] sm:$0xff]
      %v233 = vld [vmem:[%s207 + $0x78] sm:$0xff]
      %v234 = vld [vmem:[%s207 + $0x80] sm:$0xff]
      %v235 = vld [vmem:[%s207 + $0x88] sm:$0xff]
      %v236 = vld [vmem:[%s207 + $0x90] sm:$0xff]
      %v237 = vld [vmem:[%s207 + $0x98] sm:$0xff]
      %v238 = vld [vmem:[%s207 + $0xa0] sm:$0xff]
      %v239 = vld [vmem:[%s207 + $0xa8] sm:$0xff]
      %v240 = vld [vmem:[%s207 + $0xb0] sm:$0xff]
      %v241 = vld [vmem:[%s207 + $0xb8] sm:$0xff]
      %v242 = vld [vmem:[%s207 + $0xc0] sm:$0xff]
      %v243 = vld [vmem:[%s207 + $0xc8] sm:$0xff]
      %v244 = vld [vmem:[%s207 + $0xd0] sm:$0xff]
      %v245 = vld [vmem:[%s207 + $0xd8] sm:$0xff]
      %v246 = vld [vmem:[%s207 + $0xe0] sm:$0xff]
      %v247 = vld [vmem:[%s207 + $0xe8] sm:$0xff]
      %v248 = vld [vmem:[%s207 + $0xf0] sm:$0xff]
      %v249 = vld [vmem:[%s207 + $0xf8] sm:$0xff]
      %v250 = vld [vmem:[%s1] sm:$0x1]
      %v252 = vperm.slane %v250, 0
      %v254 = vmul.f32 %v218, %v252
      %v255 = vmul.f32 %v219, %v252
      %v256 = vmul.f32 %v220, %v252
      %v257 = vmul.f32 %v221, %v252
      %v258 = vmul.f32 %v222, %v252
      %v259 = vmul.f32 %v223, %v252
      %v260 = vmul.f32 %v224, %v252
      %v261 = vmul.f32 %v225, %v252
      %v262 = vmul.f32 %v226, %v252
      %v263 = vmul.f32 %v227, %v252
      %v264 = vmul.f32 %v228, %v252
      %v265 = vmul.f32 %v229, %v252
      %v266 = vmul.f32 %v230, %v252
      %v267 = vmul.f32 %v231, %v252
      %v268 = vmul.f32 %v232, %v252
      %v269 = vmul.f32 %v233, %v252
      %v270 = vmul.f32 %v234, %v252
      %v271 = vmul.f32 %v235, %v252
      %v272 = vmul.f32 %v236, %v252
      %v273 = vmul.f32 %v237, %v252
      %v274 = vmul.f32 %v238, %v252
      %v275 = vmul.f32 %v239, %v252
      %v276 = vmul.f32 %v240, %v252
      %v277 = vmul.f32 %v241, %v252
      %v278 = vmul.f32 %v242, %v252
      %v279 = vmul.f32 %v243, %v252
      %v280 = vmul.f32 %v244, %v252
      %v281 = vmul.f32 %v245, %v252
      %v282 = vmul.f32 %v246, %v252
      %v283 = vmul.f32 %v247, %v252
      %v284 = vmul.f32 %v248, %v252
      %v285 = vmul.f32 %v249, %v252
      %v286 = vld [vmem:[%s2] sm:$0x1]
      %v288 = vperm.slane %v286, 0
      %v290 = vadd.f32 %v254, %v288
      %v291 = vadd.f32 %v255, %v288
      %v292 = vadd.f32 %v256, %v288
      %v293 = vadd.f32 %v257, %v288
      %v294 = vadd.f32 %v258, %v288
      %v295 = vadd.f32 %v259, %v288
      %v296 = vadd.f32 %v260, %v288
      %v297 = vadd.f32 %v261, %v288
      %v298 = vadd.f32 %v262, %v288
      %v299 = vadd.f32 %v263, %v288
      %v300 = vadd.f32 %v264, %v288
      %v301 = vadd.f32 %v265, %v288
      %v302 = vadd.f32 %v266, %v288
      %v303 = vadd.f32 %v267, %v288
      %v304 = vadd.f32 %v268, %v288
      %v305 = vadd.f32 %v269, %v288
      %v306 = vadd.f32 %v270, %v288
      %v307 = vadd.f32 %v271, %v288
      %v308 = vadd.f32 %v272, %v288
      %v309 = vadd.f32 %v273, %v288
      %v310 = vadd.f32 %v274, %v288
      %v311 = vadd.f32 %v275, %v288
      %v312 = vadd.f32 %v276, %v288
      %v313 = vadd.f32 %v277, %v288
      %v314 = vadd.f32 %v278, %v288
      %v315 = vadd.f32 %v279, %v288
      %v316 = vadd.f32 %v280, %v288
      %v317 = vadd.f32 %v281, %v288
      %v318 = vadd.f32 %v282, %v288
      %v319 = vadd.f32 %v283, %v288
      %v320 = vadd.f32 %v284, %v288
      %v321 = vadd.f32 %v285, %v288
      %v322 = vld [vmem:[%s212] sm:$0xff]
      %v323 = vld [vmem:[%s212 + $0x8] sm:$0xff]
      %v324 = vld [vmem:[%s212 + $0x10] sm:$0xff]
      %v325 = vld [vmem:[%s212 + $0x18] sm:$0xff]
      %v326 = vld [vmem:[%s212 + $0x20] sm:$0xff]
      %v327 = vld [vmem:[%s212 + $0x28] sm:$0xff]
      %v328 = vld [vmem:[%s212 + $0x30] sm:$0xff]
      %v329 = vld [vmem:[%s212 + $0x38] sm:$0xff]
      %v330 = vld [vmem:[%s212 + $0x40] sm:$0xff]
      %v331 = vld [vmem:[%s212 + $0x48] sm:$0xff]
      %v332 = vld [vmem:[%s212 + $0x50] sm:$0xff]
      %v333 = vld [vmem:[%s212 + $0x58] sm:$0xff]
      %v334 = vld [vmem:[%s212 + $0x60] sm:$0xff]
      %v335 = vld [vmem:[%s212 + $0x68] sm:$0xff]
      %v336 = vld [vmem:[%s212 + $0x70] sm:$0xff]
      %v337 = vld [vmem:[%s212 + $0x78] sm:$0xff]
      %v338 = vld [vmem:[%s212 + $0x80] sm:$0xff]
      %v339 = vld [vmem:[%s212 + $0x88] sm:$0xff]
      %v340 = vld [vmem:[%s212 + $0x90] sm:$0xff]
      %v341 = vld [vmem:[%s212 + $0x98] sm:$0xff]
      %v342 = vld [vmem:[%s212 + $0xa0] sm:$0xff]
      %v343 = vld [vmem:[%s212 + $0xa8] sm:$0xff]
      %v344 = vld [vmem:[%s212 + $0xb0] sm:$0xff]
      %v345 = vld [vmem:[%s212 + $0xb8] sm:$0xff]
      %v346 = vld [vmem:[%s212 + $0xc0] sm:$0xff]
      %v347 = vld [vmem:[%s212 + $0xc8] sm:$0xff]
      %v348 = vld [vmem:[%s212 + $0xd0] sm:$0xff]
      %v349 = vld [vmem:[%s212 + $0xd8] sm:$0xff]
      %v350 = vld [vmem:[%s212 + $0xe0] sm:$0xff]
      %v351 = vld [vmem:[%s212 + $0xe8] sm:$0xff]
      %v352 = vld [vmem:[%s212 + $0xf0] sm:$0xff]
      %v353 = vld [vmem:[%s212 + $0xf8] sm:$0xff]
      %v354 = vadd.f32 %v290, %v322
      %v355 = vadd.f32 %v291, %v323
      %v356 = vadd.f32 %v292, %v324
      %v357 = vadd.f32 %v293, %v325
      %v358 = vadd.f32 %v294, %v326
      %v359 = vadd.f32 %v295, %v327
      %v360 = vadd.f32 %v296, %v328
      %v361 = vadd.f32 %v297, %v329
      %v362 = vadd.f32 %v298, %v330
      %v363 = vadd.f32 %v299, %v331
      %v364 = vadd.f32 %v300, %v332
      %v365 = vadd.f32 %v301, %v333
      %v366 = vadd.f32 %v302, %v334
      %v367 = vadd.f32 %v303, %v335
      %v368 = vadd.f32 %v304, %v336
      %v369 = vadd.f32 %v305, %v337
      %v370 = vadd.f32 %v306, %v338
      %v371 = vadd.f32 %v307, %v339
      %v372 = vadd.f32 %v308, %v340
      %v373 = vadd.f32 %v309, %v341
      %v374 = vadd.f32 %v310, %v342
      %v375 = vadd.f32 %v311, %v343
      %v376 = vadd.f32 %v312, %v344
      %v377 = vadd.f32 %v313, %v345
      %v378 = vadd.f32 %v314, %v346
      %v379 = vadd.f32 %v315, %v347
      %v380 = vadd.f32 %v316, %v348
      %v381 = vadd.f32 %v317, %v349
      %v382 = vadd.f32 %v318, %v350
      %v383 = vadd.f32 %v319, %v351
      %v384 = vadd.f32 %v320, %v352
      %v385 = vadd.f32 %v321, %v353
      %386 = vst [vmem:[%s217] sm:$0xff] %v354
      %387 = vst [vmem:[%s217 + $0x8] sm:$0xff] %v355
      %388 = vst [vmem:[%s217 + $0x10] sm:$0xff] %v356
      %389 = vst [vmem:[%s217 + $0x18] sm:$0xff] %v357
      %390 = vst [vmem:[%s217 + $0x20] sm:$0xff] %v358
      %391 = vst [vmem:[%s217 + $0x28] sm:$0xff] %v359
      %392 = vst [vmem:[%s217 + $0x30] sm:$0xff] %v360
      %393 = vst [vmem:[%s217 + $0x38] sm:$0xff] %v361
      %394 = vst [vmem:[%s217 + $0x40] sm:$0xff] %v362
      %395 = vst [vmem:[%s217 + $0x48] sm:$0xff] %v363
      %396 = vst [vmem:[%s217 + $0x50] sm:$0xff] %v364
      %397 = vst [vmem:[%s217 + $0x58] sm:$0xff] %v365
      %398 = vst [vmem:[%s217 + $0x60] sm:$0xff] %v366
      %399 = vst [vmem:[%s217 + $0x68] sm:$0xff] %v367
      %400 = vst [vmem:[%s217 + $0x70] sm:$0xff] %v368
      %401 = vst [vmem:[%s217 + $0x78] sm:$0xff] %v369
      %402 = vst [vmem:[%s217 + $0x80] sm:$0xff] %v370
      %403 = vst [vmem:[%s217 + $0x88] sm:$0xff] %v371
      %404 = vst [vmem:[%s217 + $0x90] sm:$0xff] %v372
      %405 = vst [vmem:[%s217 + $0x98] sm:$0xff] %v373
      %406 = vst [vmem:[%s217 + $0xa0] sm:$0xff] %v374
      %407 = vst [vmem:[%s217 + $0xa8] sm:$0xff] %v375
      %408 = vst [vmem:[%s217 + $0xb0] sm:$0xff] %v376
      %409 = vst [vmem:[%s217 + $0xb8] sm:$0xff] %v377
      %410 = vst [vmem:[%s217 + $0xc0] sm:$0xff] %v378
      %411 = vst [vmem:[%s217 + $0xc8] sm:$0xff] %v379
      %412 = vst [vmem:[%s217 + $0xd0] sm:$0xff] %v380
      %413 = vst [vmem:[%s217 + $0xd8] sm:$0xff] %v381
      %414 = vst [vmem:[%s217 + $0xe0] sm:$0xff] %v382
      %415 = vst [vmem:[%s217 + $0xe8] sm:$0xff] %v383
      %416 = vst [vmem:[%s217 + $0xf0] sm:$0xff] %v384
      %417 = vst [vmem:[%s217 + $0xf8] sm:$0xff] %v385
      %p418 = scmp.lt.s32.totalorder %s15, 1
      %s419 = scalar_select %p418, %s15, 1
      %s420 = smul.addr %s419, 32
      %s421 = smul.addr %s420, 8
      %s422 = scalar_lea.vmem %s4, %s421
      // Predicated region
      $region37: #{basic_block_forward.5} parent=35 // pred_check
        %p423 = pneg %p127
      $region38: #{basic_block_forward.5} parent=35 // pred_check_branch
        %425 = sbr.rel (%p423) target = $region40
      $region39: #{basic_block_forward.5} parent=35 // pred_region
        _
      $region40: #{basic_block_forward.5} parent=35 // pred_fallthru
        _
    $region36: #{basic_block_forward.5} parent=5 // pred_fallthru
      _
    %p426 = scmp.le.s32.totalorder 2, %s10
    // Predicated region
    $region41: #{basic_block_forward.5} parent=5 // pred_check
      %p427 = pneg %p426
    $region42: #{basic_block_forward.5} parent=5 // pred_check_branch
      %429 = sbr.rel (%p427) target = $region44
    $region43: #{basic_block_forward.5} parent=5 // pred_region
      %s430 = ssub.s32 %s10, 2
      // Predicated region
      $region45: #{basic_block_forward.5} parent=43 // pred_check
        %p431 = pneg %p133
      $region46: #{basic_block_forward.5} parent=43 // pred_check_branch
        %433 = sbr.rel (%p431) target = $region48
      $region47: #{basic_block_forward.5} parent=43 // pred_region
        %p434 = scmp.lt.s32.totalorder %s16, 1
        %s435 = scalar_select %p434, %s16, 1
        %s436 = smul.addr %s435, 32
        %s437 = smul.addr %s436, 8
        %s438 = scalar_lea.vmem %s4, %s437
      $region48: #{basic_block_forward.5} parent=43 // pred_fallthru
        _
    $region44: #{basic_block_forward.5} parent=5 // pred_fallthru
      _
  $region6: #{basic_block_forward.5} parent=0 // loop_footer
    %s14 = sadd.s32 1, %s10
  $region7: #{basic_block_forward.5} parent=0 // loop_footer_branch
    %9 = sbr.rel target = $region3
  $region8: #{basic_block_forward.5} parent=0 // loop_exit
    _

// kernel: basic_block_forward.3
$region0: #{basic_block_forward.3}
  #allocation0 [shape = 'u32[]', space=smem, size = 0x4, offset = 0x4, fixed_abs, tag = 'smem constant byte address 0x4 - core index']
  #allocation1 [shape = 'u32[72,128]{1,0:T(1,128)}', space=vmem, size = 0x9000, scoped, tag = 'internal scratch']
  #allocation2 [shape = 'f32[18,18,128]{2,1,0:T(8,128)}', space=vmem, size = 0x36000, scoped, tag = 'scratch operand']
  %s0 = inlined_call_operand.vmem [shape: f32[2,256,128], index: 0, kind: input, shape index: {}]
  %s1 = inlined_call_operand.vmem [shape: f32[9,128,128], index: 1, kind: input, shape index: {}]
  %s2 = inlined_call_operand.vmem [shape: f32[2,256,128], index: 2, kind: output, shape index: {0}]
  %s3 = inlined_call_operand.vmem [shape: f32[2,2,128], index: 3, kind: output, shape index: {1}]
  %4 = xla_tuple %s2, %s3
  %s5 = sld [smem:[#allocation0]]
  $region49: #{basic_block_forward.3} parent=0
    _
  %s7 = ssub.s32 1, %s5
  %s8 = scalar_select 0, %s7, %s5
  loop: start=0, step=1, limit=4
  $region2: #{basic_block_forward.3} parent=0 // loop_pre_header
    _
  $region3: #{basic_block_forward.3} parent=0 // loop_header
    %s10 = sphi 0, %s14
    %p11 = scmp.ge.s32.totalorder %s10, 4
    %s20 = sphi 0, %s22
    %s23 = sphi 0, %s20
    %s24 = sphi 0, %s23
    %s40 = sphi 0, %s24
    %s44 = sphi 0, %s44
    %s46 = sphi 0, %s44
    %s47 = sphi 0, %s46
    %s61 = sphi 0, %s47
    %s67 = sphi 0, %s69
    %s70 = sphi 0, %s67
    %s71 = sphi 0, %s70
    %s87 = sphi 0, %s71
    %s93 = sphi 0, %s95
    %s96 = sphi 0, %s93
    %s97 = sphi 0, %s96
    %s113 = sphi 0, %s97
  $region4: #{basic_block_forward.3} parent=0 // loop_header_branch
    %13 = sbr.rel (%p11) target = $region8
  $region5: #{basic_block_forward.3} parent=0 // loop_body
    %s15 = ssub.s32 %s10, 1
    %s16 = ssub.s32 %s10, 2
    %s17 = sadd.s32 %s10, 1
    %s18 = ssub.s32 %s10, %s17
    %p19 = scmp.eq.s32.totalorder %s18, 0
    %s21 = sadd.s32 %s20, 1
    %s22 = scalar_select %p19, %s20, %s21
    %p25 = pneg %p19
    %p26 = scmp.eq.s32.totalorder %s10, 1
    %p27 = por %p25, %p26
    %p28 = scmp.ne.s32.totalorder %s20, %s23
    %p29 = scmp.eq.s32.totalorder %s10, 0
    %p30 = por %p28, %p29
    %p31 = scmp.ne.s32.totalorder %s20, %s23
    %p32 = scmp.eq.s32.totalorder %s15, 1
    %p33 = por %p31, %p32
    %p34 = scmp.ne.s32.totalorder %s23, %s24
    %p35 = scmp.eq.s32.totalorder %s15, 0
    %p36 = por %p34, %p35
    %p37 = scmp.ne.s32.totalorder %s23, %s24
    %p38 = scmp.eq.s32.totalorder %s16, 1
    %p39 = por %p37, %p38
    %p41 = scmp.ne.s32.totalorder %s24, %s40
    %p42 = scmp.eq.s32.totalorder %s16, 0
    %p43 = por %p41, %p42
    %s45 = sadd.s32 %s44, 1
    %p48 = scmp.eq.s32.totalorder %s10, 1
    %p49 = scmp.ne.s32.totalorder %s44, %s46
    %p50 = scmp.eq.s32.totalorder %s10, 0
    %p51 = por %p49, %p50
    %p52 = scmp.ne.s32.totalorder %s44, %s46
    %p53 = scmp.eq.s32.totalorder %s15, 1
    %p54 = por %p52, %p53
    %p55 = scmp.ne.s32.totalorder %s46, %s47
    %p56 = scmp.eq.s32.totalorder %s15, 0
    %p57 = por %p55, %p56
    %p58 = scmp.ne.s32.totalorder %s46, %s47
    %p59 = scmp.eq.s32.totalorder %s16, 1
    %p60 = por %p58, %p59
    %p62 = scmp.ne.s32.totalorder %s47, %s61
    %p63 = scmp.eq.s32.totalorder %s16, 0
    %p64 = por %p62, %p63
    %s65 = ssub.s32 %s10, %s17
    %p66 = scmp.eq.s32.totalorder %s65, 0
    %s68 = sadd.s32 %s67, 1
    %s69 = scalar_select %p66, %s67, %s68
    %p72 = pneg %p66
    %p73 = scmp.eq.s32.totalorder %s10, 1
    %p74 = por %p72, %p73
    %p75 = scmp.ne.s32.totalorder %s67, %s70
    %p76 = scmp.eq.s32.totalorder %s10, 0
    %p77 = por %p75, %p76
    %p78 = scmp.ne.s32.totalorder %s67, %s70
    %p79 = scmp.eq.s32.totalorder %s15, 1
    %p80 = por %p78, %p79
    %p81 = scmp.ne.s32.totalorder %s70, %s71
    %p82 = scmp.eq.s32.totalorder %s15, 0
    %p83 = por %p81, %p82
    %p84 = scmp.ne.s32.totalorder %s70, %s71
    %p85 = scmp.eq.s32.totalorder %s16, 1
    %p86 = por %p84, %p85
    %p88 = scmp.ne.s32.totalorder %s71, %s87
    %p89 = scmp.eq.s32.totalorder %s16, 0
    %p90 = por %p88, %p89
    %s91 = ssub.s32 %s10, %s17
    %p92 = scmp.eq.s32.totalorder %s91, 0
    %s94 = sadd.s32 %s93, 1
    %s95 = scalar_select %p92, %s93, %s94
    %p98 = pneg %p92
    %p99 = scmp.eq.s32.totalorder %s10, 1
    %p100 = por %p98, %p99
    %p101 = scmp.ne.s32.totalorder %s93, %s96
    %p102 = scmp.eq.s32.totalorder %s10, 0
    %p103 = por %p101, %p102
    %p104 = scmp.ne.s32.totalorder %s93, %s96
    %p105 = scmp.eq.s32.totalorder %s15, 1
    %p106 = por %p104, %p105
    %p107 = scmp.ne.s32.totalorder %s96, %s97
    %p108 = scmp.eq.s32.totalorder %s15, 0
    %p109 = por %p107, %p108
    %p110 = scmp.ne.s32.totalorder %s96, %s97
    %p111 = scmp.eq.s32.totalorder %s16, 1
    %p112 = por %p110, %p111
    %p114 = scmp.ne.s32.totalorder %s97, %s113
    %p115 = scmp.eq.s32.totalorder %s16, 0
    %p116 = por %p114, %p115
    %p117 = scmp.le.s32.totalorder 1, %s10
    %p118 = scmp.lt.s32.totalorder %s10, 3
    %p119 = pnand %p117, %p118
    %p120 = pneg %p119
    // Predicated region
    $region9: #{basic_block_forward.3} parent=5 // pred_check
      _
    $region10: #{basic_block_forward.3} parent=5 // pred_check_branch
      %122 = sbr.rel (%p119) target = $region12
    $region11: #{basic_block_forward.3} parent=5 // pred_region
      %s123 = ssub.s32 %s10, 1
      // Predicated region
      $region13: #{basic_block_forward.3} parent=11 // pred_check
        %p124 = pneg %p57
      $region14: #{basic_block_forward.3} parent=11 // pred_check_branch
        %126 = sbr.rel (%p124) target = $region16
      $region15: #{basic_block_forward.3} parent=11 // pred_region
        _
      $region16: #{basic_block_forward.3} parent=11 // pred_fallthru
        _
    $region12: #{basic_block_forward.3} parent=5 // pred_fallthru
      _
    %p127 = scmp.lt.s32.totalorder %s10, 2
    // Predicated region
    $region17: #{basic_block_forward.3} parent=5 // pred_check
      %p128 = pneg %p127
    $region18: #{basic_block_forward.3} parent=5 // pred_check_branch
      %130 = sbr.rel (%p128) target = $region20
    $region19: #{basic_block_forward.3} parent=5 // pred_region
      // Predicated region
      $region21: #{basic_block_forward.3} parent=19 // pred_check
        %p131 = pneg %p30
      $region22: #{basic_block_forward.3} parent=19 // pred_check_branch
        %133 = sbr.rel (%p131) target = $region24
      $region23: #{basic_block_forward.3} parent=19 // pred_region
        %p134 = scmp.lt.s32.totalorder %s10, 1
        %s135 = scalar_select %p134, %s10, 1
        %s136 = smul.addr %s135, 32
        %s137 = smul.addr %s136, 8
        %s138 = scalar_lea.vmem %s0, %s137
      $region24: #{basic_block_forward.3} parent=19 // pred_fallthru
        _
    $region20: #{basic_block_forward.3} parent=5 // pred_fallthru
      _
    %p139 = scmp.le.s32.totalorder 1, %s10
    %p140 = scmp.lt.s32.totalorder %s10, 3
    %p141 = pnand %p139, %p140
    %p142 = pneg %p141
    // Predicated region
    $region25: #{basic_block_forward.3} parent=5 // pred_check
      _
    $region26: #{basic_block_forward.3} parent=5 // pred_check_branch
      %144 = sbr.rel (%p141) target = $region28
    $region27: #{basic_block_forward.3} parent=5 // pred_region
      %s145 = ssub.s32 %s10, 1
      %p146 = scmp.lt.s32.totalorder %s15, 1
      %s147 = scalar_select %p146, %s15, 1
      %s148 = smul.addr %s147, 32
      %s149 = smul.addr %s148, 8
      %s150 = scalar_lea.vmem %s0, %s149
      %p151 = pneg %p36
      %p152 = pneg %p33
      %p153 = pneg %p57
      %p154 = pneg %p54
      %p155 = pneg %p83
      %p156 = pneg %p80
      %p157 = scmp.lt.s32.totalorder %s15, 1
      %s158 = scalar_select %p157, %s15, 1
      %s159 = smul.addr %s158, 32
      %s160 = smul.addr %s159, 8
      %s161 = scalar_lea.vmem %s2, %s160
      %p162 = pneg %p109
      %p163 = pneg %p106
      %p164 = scmp.lt.s32.totalorder %s15, 1
      %s165 = scalar_select %p164, %s15, 1
      %s166 = smul.addr %s165, 2
      %s167 = scalar_lea.vmem %s3, %s166
      %p168 = scmp.lt.s32.totalorder %s15, 1
      %s169 = scalar_select %p168, %s15, 1
      %s170 = smul.addr %s169, 32
      %s171 = smul.addr %s170, 8
      %s172 = scalar_lea.vmem %s0, %s171
      %p173 = scmp.lt.s32.totalorder %s15, 1
      %s174 = scalar_select %p173, %s15, 1
      %s175 = smul.addr %s174, 32
      %s176 = smul.addr %s175, 8
      %s177 = scalar_lea.vmem %s2, %s176
      %p178 = scmp.lt.s32.totalorder %s15, 1
      %s179 = scalar_select %p178, %s15, 1
      %s180 = smul.addr %s179, 2
      %s181 = scalar_lea.vmem %s3, %s180
      %v182 = vld [vmem:[%s172] sm:$0xff]
      %v183 = vld [vmem:[%s172 + $0x8] sm:$0xff]
      %v184 = vld [vmem:[%s172 + $0x10] sm:$0xff]
      %v185 = vld [vmem:[%s172 + $0x18] sm:$0xff]
      %v186 = vld [vmem:[%s172 + $0x20] sm:$0xff]
      %v187 = vld [vmem:[%s172 + $0x28] sm:$0xff]
      %v188 = vld [vmem:[%s172 + $0x30] sm:$0xff]
      %v189 = vld [vmem:[%s172 + $0x38] sm:$0xff]
      %v190 = vld [vmem:[%s172 + $0x40] sm:$0xff]
      %v191 = vld [vmem:[%s172 + $0x48] sm:$0xff]
      %v192 = vld [vmem:[%s172 + $0x50] sm:$0xff]
      %v193 = vld [vmem:[%s172 + $0x58] sm:$0xff]
      %v194 = vld [vmem:[%s172 + $0x60] sm:$0xff]
      %v195 = vld [vmem:[%s172 + $0x68] sm:$0xff]
      %v196 = vld [vmem:[%s172 + $0x70] sm:$0xff]
      %v197 = vld [vmem:[%s172 + $0x78] sm:$0xff]
      %v198 = vld [vmem:[%s172 + $0x80] sm:$0xff]
      %v199 = vld [vmem:[%s172 + $0x88] sm:$0xff]
      %v200 = vld [vmem:[%s172 + $0x90] sm:$0xff]
      %v201 = vld [vmem:[%s172 + $0x98] sm:$0xff]
      %v202 = vld [vmem:[%s172 + $0xa0] sm:$0xff]
      %v203 = vld [vmem:[%s172 + $0xa8] sm:$0xff]
      %v204 = vld [vmem:[%s172 + $0xb0] sm:$0xff]
      %v205 = vld [vmem:[%s172 + $0xb8] sm:$0xff]
      %v206 = vld [vmem:[%s172 + $0xc0] sm:$0xff]
      %v207 = vld [vmem:[%s172 + $0xc8] sm:$0xff]
      %v208 = vld [vmem:[%s172 + $0xd0] sm:$0xff]
      %v209 = vld [vmem:[%s172 + $0xd8] sm:$0xff]
      %v210 = vld [vmem:[%s172 + $0xe0] sm:$0xff]
      %v211 = vld [vmem:[%s172 + $0xe8] sm:$0xff]
      %v212 = vld [vmem:[%s172 + $0xf0] sm:$0xff]
      %v213 = vld [vmem:[%s172 + $0xf8] sm:$0xff]
      %214 = vst [vmem:[#allocation2] sm:$0xff] 0.0
      %215 = vst [vmem:[#allocation2 + $0x8] sm:$0xff] 0.0
      %216 = vst [vmem:[#allocation2 + $0x10] sm:$0x3] 0.0
      %217 = vst [vmem:[#allocation2 + $0x18] sm:$0xff] 0.0
      %218 = vst [vmem:[#allocation2 + $0x20] sm:$0xff] 0.0
      %219 = vst [vmem:[#allocation2 + $0x28] sm:$0x3] 0.0
      %220 = vst [vmem:[#allocation2 + $0x30] sm:$0xff] 0.0
      %221 = vst [vmem:[#allocation2 + $0x38] sm:$0xff] 0.0
      %222 = vst [vmem:[#allocation2 + $0x40] sm:$0x3] 0.0
      %223 = vst [vmem:[#allocation2 + $0x48] sm:$0xff] 0.0
      %224 = vst [vmem:[#allocation2 + $0x50] sm:$0xff] 0.0
      %225 = vst [vmem:[#allocation2 + $0x58] sm:$0x3] 0.0
      %226 = vst [vmem:[#allocation2 + $0x60] sm:$0xff] 0.0
      %227 = vst [vmem:[#allocation2 + $0x68] sm:$0xff] 0.0
      %228 = vst [vmem:[#allocation2 + $0x70] sm:$0x3] 0.0
      %229 = vst [vmem:[#allocation2 + $0x78] sm:$0xff] 0.0
      %230 = vst [vmem:[#allocation2 + $0x80] sm:$0xff] 0.0
      %231 = vst [vmem:[#allocation2 + $0x88] sm:$0x3] 0.0
      %232 = vst [vmem:[#allocation2 + $0x90] sm:$0xff] 0.0
      %233 = vst [vmem:[#allocation2 + $0x98] sm:$0xff] 0.0
      %234 = vst [vmem:[#allocation2 + $0xa0] sm:$0x3] 0.0
      %235 = vst [vmem:[#allocation2 + $0xa8] sm:$0xff] 0.0
      %236 = vst [vmem:[#allocation2 + $0xb0] sm:$0xff] 0.0
      %237 = vst [vmem:[#allocation2 + $0xb8] sm:$0x3] 0.0
      %238 = vst [vmem:[#allocation2 + $0xc0] sm:$0xff] 0.0
      %239 = vst [vmem:[#allocation2 + $0xc8] sm:$0xff] 0.0
      %240 = vst [vmem:[#allocation2 + $0xd0] sm:$0x3] 0.0
      %241 = vst [vmem:[#allocation2 + $0xd8] sm:$0xff] 0.0
      %242 = vst [vmem:[#allocation2 + $0xe0] sm:$0xff] 0.0
      %243 = vst [vmem:[#allocation2 + $0xe8] sm:$0x3] 0.0
      %244 = vst [vmem:[#allocation2 + $0xf0] sm:$0xff] 0.0
      %245 = vst [vmem:[#allocation2 + $0xf8] sm:$0xff] 0.0
      %246 = vst [vmem:[#allocation2 + $0x100] sm:$0x3] 0.0
      %247 = vst [vmem:[#allocation2 + $0x108] sm:$0xff] 0.0
      %248 = vst [vmem:[#allocation2 + $0x110] sm:$0xff] 0.0
      %249 = vst [vmem:[#allocation2 + $0x118] sm:$0x3] 0.0
      %250 = vst [vmem:[#allocation2 + $0x120] sm:$0xff] 0.0
      %251 = vst [vmem:[#allocation2 + $0x128] sm:$0xff] 0.0
      %252 = vst [vmem:[#allocation2 + $0x130] sm:$0x3] 0.0
      %253 = vst [vmem:[#allocation2 + $0x138] sm:$0xff] 0.0
      %254 = vst [vmem:[#allocation2 + $0x140] sm:$0xff] 0.0
      %255 = vst [vmem:[#allocation2 + $0x148] sm:$0x3] 0.0
      %256 = vst [vmem:[#allocation2 + $0x150] sm:$0xff] 0.0
      %257 = vst [vmem:[#allocation2 + $0x158] sm:$0xff] 0.0
      %258 = vst [vmem:[#allocation2 + $0x160] sm:$0x3] 0.0
      %259 = vst [vmem:[#allocation2 + $0x168] sm:$0xff] 0.0
      %260 = vst [vmem:[#allocation2 + $0x170] sm:$0xff] 0.0
      %261 = vst [vmem:[#allocation2 + $0x178] sm:$0x3] 0.0
      %262 = vst [vmem:[#allocation2 + $0x180] sm:$0xff] 0.0
      %263 = vst [vmem:[#allocation2 + $0x188] sm:$0xff] 0.0
      %264 = vst [vmem:[#allocation2 + $0x190] sm:$0x3] 0.0
      %265 = vst [vmem:[#allocation2 + $0x198] sm:$0xff] 0.0
      %266 = vst [vmem:[#allocation2 + $0x1a0] sm:$0xff] 0.0
      %267 = vst [vmem:[#allocation2 + $0x1a8] sm:$0x3] 0.0
      %s268 = scalar_lea.vmem [#allocation2], 24
      %269 = vst [vmem:[%s268 + $0x1] sm:$0xff] %v182
      %270 = vst [vmem:[%s268 + $0x9] sm:$0xff] %v183
      %271 = vst [vmem:[%s268 + $0x19] sm:$0xff] %v184
      %272 = vst [vmem:[%s268 + $0x21] sm:$0xff] %v185
      %273 = vst [vmem:[%s268 + $0x31] sm:$0xff] %v186
      %274 = vst [vmem:[%s268 + $0x39] sm:$0xff] %v187
      %275 = vst [vmem:[%s268 + $0x49] sm:$0xff] %v188
      %276 = vst [vmem:[%s268 + $0x51] sm:$0xff] %v189
      %277 = vst [vmem:[%s268 + $0x61] sm:$0xff] %v190
      %278 = vst [vmem:[%s268 + $0x69] sm:$0xff] %v191
      %279 = vst [vmem:[%s268 + $0x79] sm:$0xff] %v192
      %280 = vst [vmem:[%s268 + $0x81] sm:$0xff] %v193
      %281 = vst [vmem:[%s268 + $0x91] sm:$0xff] %v194
      %282 = vst [vmem:[%s268 + $0x99] sm:$0xff] %v195
      %283 = vst [vmem:[%s268 + $0xa9] sm:$0xff] %v196
      %284 = vst [vmem:[%s268 + $0xb1] sm:$0xff] %v197
      %285 = vst [vmem:[%s268 + $0xc1] sm:$0xff] %v198
      %286 = vst [vmem:[%s268 + $0xc9] sm:$0xff] %v199
      %287 = vst [vmem:[%s268 + $0xd9] sm:$0xff] %v200
      %288 = vst [vmem:[%s268 + $0xe1] sm:$0xff] %v201
      %289 = vst [vmem:[%s268 + $0xf1] sm:$0xff] %v202
      %290 = vst [vmem:[%s268 + $0xf9] sm:$0xff] %v203
      %291 = vst [vmem:[%s268 + $0x109] sm:$0xff] %v204
      %292 = vst [vmem:[%s268 + $0x111] sm:$0xff] %v205
      %293 = vst [vmem:[%s268 + $0x121] sm:$0xff] %v206
      %294 = vst [vmem:[%s268 + $0x129] sm:$0xff] %v207
      %295 = vst [vmem:[%s268 + $0x139] sm:$0xff] %v208
      %296 = vst [vmem:[%s268 + $0x141] sm:$0xff] %v209
      %297 = vst [vmem:[%s268 + $0x151] sm:$0xff] %v210
      %298 = vst [vmem:[%s268 + $0x159] sm:$0xff] %v211
      %299 = vst [vmem:[%s268 + $0x169] sm:$0xff] %v212
      %300 = vst [vmem:[%s268 + $0x171] sm:$0xff] %v213
      %v301 = vld [vmem:[#allocation2] sm:$0xff]
      %v302 = vld [vmem:[#allocation2 + $0x8] sm:$0xff]
      %v303 = vld [vmem:[#allocation2 + $0x18] sm:$0xff]
      %v304 = vld [vmem:[#allocation2 + $0x20] sm:$0xff]
      %v305 = vld [vmem:[#allocation2 + $0x30] sm:$0xff]
      %v306 = vld [vmem:[#allocation2 + $0x38] sm:$0xff]
      %v307 = vld [vmem:[#allocation2 + $0x48] sm:$0xff]
      %v308 = vld [vmem:[#allocation2 + $0x50] sm:$0xff]
      %v309 = vld [vmem:[#allocation2 + $0x60] sm:$0xff]
      %v310 = vld [vmem:[#allocation2 + $0x68] sm:$0xff]
      %v311 = vld [vmem:[#allocation2 + $0x78] sm:$0xff]
      %v312 = vld [vmem:[#allocation2 + $0x80] sm:$0xff]
      %v313 = vld [vmem:[#allocation2 + $0x90] sm:$0xff]
      %v314 = vld [vmem:[#allocation2 + $0x98] sm:$0xff]
      %v315 = vld [vmem:[#allocation2 + $0xa8] sm:$0xff]
      %v316 = vld [vmem:[#allocation2 + $0xb0] sm:$0xff]
      %v317 = vld [vmem:[#allocation2 + $0xc0] sm:$0xff]
      %v318 = vld [vmem:[#allocation2 + $0xc8] sm:$0xff]
      %v319 = vld [vmem:[#allocation2 + $0xd8] sm:$0xff]
      %v320 = vld [vmem:[#allocation2 + $0xe0] sm:$0xff]
      %v321 = vld [vmem:[#allocation2 + $0xf0] sm:$0xff]
      %v322 = vld [vmem:[#allocation2 + $0xf8] sm:$0xff]
      %v323 = vld [vmem:[#allocation2 + $0x108] sm:$0xff]
      %v324 = vld [vmem:[#allocation2 + $0x110] sm:$0xff]
      %v325 = vld [vmem:[#allocation2 + $0x120] sm:$0xff]
      %v326 = vld [vmem:[#allocation2 + $0x128] sm:$0xff]
      %v327 = vld [vmem:[#allocation2 + $0x138] sm:$0xff]
      %v328 = vld [vmem:[#allocation2 + $0x140] sm:$0xff]
      %v329 = vld [vmem:[#allocation2 + $0x150] sm:$0xff]
      %v330 = vld [vmem:[#allocation2 + $0x158] sm:$0xff]
      %v331 = vld [vmem:[#allocation2 + $0x168] sm:$0xff]
      %v332 = vld [vmem:[#allocation2 + $0x170] sm:$0xff]
      %v333 = vld [vmem:[%s1] sm:$0xff]
      %v334 = vld [vmem:[%s1 + $0x8] sm:$0xff]
      %v335 = vld [vmem:[%s1 + $0x10] sm:$0xff]
      %v336 = vld [vmem:[%s1 + $0x18] sm:$0xff]
      %v337 = vld [vmem:[%s1 + $0x20] sm:$0xff]
      %v338 = vld [vmem:[%s1 + $0x28] sm:$0xff]
      %v339 = vld [vmem:[%s1 + $0x30] sm:$0xff]
      %v340 = vld [vmem:[%s1 + $0x38] sm:$0xff]
      %v341 = vld [vmem:[%s1 + $0x40] sm:$0xff]
      %v342 = vld [vmem:[%s1 + $0x48] sm:$0xff]
      %v343 = vld [vmem:[%s1 + $0x50] sm:$0xff]
      %v344 = vld [vmem:[%s1 + $0x58] sm:$0xff]
      %v345 = vld [vmem:[%s1 + $0x60] sm:$0xff]
      %v346 = vld [vmem:[%s1 + $0x68] sm:$0xff]
      %v347 = vld [vmem:[%s1 + $0x70] sm:$0xff]
      %v348 = vld [vmem:[%s1 + $0x78] sm:$0xff]
      %349 = vmatpush.msra.mxu0 %v348
      %350 = vmatpush.msra.mxu0 %v347
      %351 = vmatpush.msra.mxu0 %v346
      %352 = vmatpush.msra.mxu0 %v345
      %353 = vmatpush.msra.mxu0 %v344
      %354 = vmatpush.msra.mxu0 %v343
      %355 = vmatpush.msra.mxu0 %v342
      %356 = vmatpush.msra.mxu0 %v341
      %357 = vmatpush.msra.mxu0 %v340
      %358 = vmatpush.msra.mxu0 %v339
      %359 = vmatpush.msra.mxu0 %v338
      %360 = vmatpush.msra.mxu0 %v337
      %361 = vmatpush.msra.mxu0 %v336
      %362 = vmatpush.msra.mxu0 %v335
      %363 = vmatpush.msra.mxu0 %v334
      %364 = vmatpush.msra.mxu0 %v333
      %365 = vmatmul.f32.gmra.mxu0 %v301
      %v366 = vpop.f32.mrf.mxu0
      %v367 = vadd.f32 0.0, %v366
      %368 = vmatmul.f32.gmra.mxu0 %v302
      %v369 = vpop.f32.mrf.mxu0
      %v370 = vadd.f32 0.0, %v369
      %371 = vmatmul.f32.gmra.mxu0 %v303
      %v372 = vpop.f32.mrf.mxu0
      %v373 = vadd.f32 0.0, %v372
      %374 = vmatmul.f32.gmra.mxu0 %v304
      %v375 = vpop.f32.mrf.mxu0
      %v376 = vadd.f32 0.0, %v375
      %377 = vmatmul.f32.gmra.mxu0 %v305
      %v378 = vpop.f32.mrf.mxu0
      %v379 = vadd.f32 0.0, %v378
      %380 = vmatmul.f32.gmra.mxu0 %v306
      %v381 = vpop.f32.mrf.mxu0
      %v382 = vadd.f32 0.0, %v381
      %383 = vmatmul.f32.gmra.mxu0 %v307
      %v384 = vpop.f32.mrf.mxu0
      %v385 = vadd.f32 0.0, %v384
      %386 = vmatmul.f32.gmra.mxu0 %v308
      %v387 = vpop.f32.mrf.mxu0
      %v388 = vadd.f32 0.0, %v387
      %389 = vmatmul.f32.gmra.mxu0 %v309
      %v390 = vpop.f32.mrf.mxu0
      %v391 = vadd.f32 0.0, %v390
      %392 = vmatmul.f32.gmra.mxu0 %v310
      %v393 = vpop.f32.mrf.mxu0
      %v394 = vadd.f32 0.0, %v393
      %395 = vmatmul.f32.gmra.mxu0 %v311
      %v396 = vpop.f32.mrf.mxu0
      %v397 = vadd.f32 0.0, %v396
      %398 = vmatmul.f32.gmra.mxu0 %v312
      %v399 = vpop.f32.mrf.mxu0
      %v400 = vadd.f32 0.0, %v399
      %401 = vmatmul.f32.gmra.mxu0 %v313
      %v402 = vpop.f32.mrf.mxu0
      %v403 = vadd.f32 0.0, %v402
      %404 = vmatmul.f32.gmra.mxu0 %v314
      %v405 = vpop.f32.mrf.mxu0
      %v406 = vadd.f32 0.0, %v405
      %407 = vmatmul.f32.gmra.mxu0 %v315
      %v408 = vpop.f32.mrf.mxu0
      %v409 = vadd.f32 0.0, %v408
      %410 = vmatmul.f32.gmra.mxu0 %v316
      %v411 = vpop.f32.mrf.mxu0
      %v412 = vadd.f32 0.0, %v411
      %413 = vmatmul.f32.gmra.mxu0 %v317
      %v414 = vpop.f32.mrf.mxu0
      %v415 = vadd.f32 0.0, %v414
      %416 = vmatmul.f32.gmra.mxu0 %v318
      %v417 = vpop.f32.mrf.mxu0
      %v418 = vadd.f32 0.0, %v417
      %419 = vmatmul.f32.gmra.mxu0 %v319
      %v420 = vpop.f32.mrf.mxu0
      %v421 = vadd.f32 0.0, %v420
      %422 = vmatmul.f32.gmra.mxu0 %v320
      %v423 = vpop.f32.mrf.mxu0
      %v424 = vadd.f32 0.0, %v423
      %425 = vmatmul.f32.gmra.mxu0 %v321
      %v426 = vpop.f32.mrf.mxu0
      %v427 = vadd.f32 0.0, %v426
      %428 = vmatmul.f32.gmra.mxu0 %v322
      %v429 = vpop.f32.mrf.mxu0
      %v430 = vadd.f32 0.0, %v429
      %431 = vmatmul.f32.gmra.mxu0 %v323
      %v432 = vpop.f32.mrf.mxu0
      %v433 = vadd.f32 0.0, %v432
      %434 = vmatmul.f32.gmra.mxu0 %v324
      %v435 = vpop.f32.mrf.mxu0
      %v436 = vadd.f32 0.0, %v435
      %437 = vmatmul.f32.gmra.mxu0 %v325
      %v438 = vpop.f32.mrf.mxu0
      %v439 = vadd.f32 0.0, %v438
      %440 = vmatmul.f32.gmra.mxu0 %v326
      %v441 = vpop.f32.mrf.mxu0
      %v442 = vadd.f32 0.0, %v441
      %443 = vmatmul.f32.gmra.mxu0 %v327
      %v444 = vpop.f32.mrf.mxu0
      %v445 = vadd.f32 0.0, %v444
      %446 = vmatmul.f32.gmra.mxu0 %v328
      %v447 = vpop.f32.mrf.mxu0
      %v448 = vadd.f32 0.0, %v447
      %449 = vmatmul.f32.gmra.mxu0 %v329
      %v450 = vpop.f32.mrf.mxu0
      %v451 = vadd.f32 0.0, %v450
      %452 = vmatmul.f32.gmra.mxu0 %v330
      %v453 = vpop.f32.mrf.mxu0
      %v454 = vadd.f32 0.0, %v453
      %455 = vmatmul.f32.gmra.mxu0 %v331
      %v456 = vpop.f32.mrf.mxu0
      %v457 = vadd.f32 0.0, %v456
      %458 = vmatmul.f32.gmra.mxu0 %v332
      %v459 = vpop.f32.mrf.mxu0
      %v460 = vadd.f32 0.0, %v459
      %461 = vdwg.mxu0
      %462 = vst [vmem:[%s177] sm:$0xff] %v367
      %463 = vst [vmem:[%s177 + $0x8] sm:$0xff] %v370
      %464 = vst [vmem:[%s177 + $0x10] sm:$0xff] %v373
      %465 = vst [vmem:[%s177 + $0x18] sm:$0xff] %v376
      %466 = vst [vmem:[%s177 + $0x20] sm:$0xff] %v379
      %467 = vst [vmem:[%s177 + $0x28] sm:$0xff] %v382
      %468 = vst [vmem:[%s177 + $0x30] sm:$0xff] %v385
      %469 = vst [vmem:[%s177 + $0x38] sm:$0xff] %v388
      %470 = vst [vmem:[%s177 + $0x40] sm:$0xff] %v391
      %471 = vst [vmem:[%s177 + $0x48] sm:$0xff] %v394
      %472 = vst [vmem:[%s177 + $0x50] sm:$0xff] %v397
      %473 = vst [vmem:[%s177 + $0x58] sm:$0xff] %v400
      %474 = vst [vmem:[%s177 + $0x60] sm:$0xff] %v403
      %475 = vst [vmem:[%s177 + $0x68] sm:$0xff] %v406
      %476 = vst [vmem:[%s177 + $0x70] sm:$0xff] %v409
      %477 = vst [vmem:[%s177 + $0x78] sm:$0xff] %v412
      %478 = vst [vmem:[%s177 + $0x80] sm:$0xff] %v415
      %479 = vst [vmem:[%s177 + $0x88] sm:$0xff] %v418
      %480 = vst [vmem:[%s177 + $0x90] sm:$0xff] %v421
      %481 = vst [vmem:[%s177 + $0x98] sm:$0xff] %v424
      %482 = vst [vmem:[%s177 + $0xa0] sm:$0xff] %v427
      %483 = vst [vmem:[%s177 + $0xa8] sm:$0xff] %v430
      %484 = vst [vmem:[%s177 + $0xb0] sm:$0xff] %v433
      %485 = vst [vmem:[%s177 + $0xb8] sm:$0xff] %v436
      %486 = vst [vmem:[%s177 + $0xc0] sm:$0xff] %v439
      %487 = vst [vmem:[%s177 + $0xc8] sm:$0xff] %v442
      %488 = vst [vmem:[%s177 + $0xd0] sm:$0xff] %v445
      %489 = vst [vmem:[%s177 + $0xd8] sm:$0xff] %v448
      %490 = vst [vmem:[%s177 + $0xe0] sm:$0xff] %v451
      %491 = vst [vmem:[%s177 + $0xe8] sm:$0xff] %v454
      %492 = vst [vmem:[%s177 + $0xf0] sm:$0xff] %v457
      %493 = vst [vmem:[%s177 + $0xf8] sm:$0xff] %v460
      %v494 = vld [vmem:[#allocation2 + $0x1] sm:$0xff]
      %v495 = vld [vmem:[#allocation2 + $0x9] sm:$0xff]
      %v496 = vld [vmem:[#allocation2 + $0x19] sm:$0xff]
      %v497 = vld [vmem:[#allocation2 + $0x21] sm:$0xff]
      %v498 = vld [vmem:[#allocation2 + $0x31] sm:$0xff]
      %v499 = vld [vmem:[#allocation2 + $0x39] sm:$0xff]
      %v500 = vld [vmem:[#allocation2 + $0x49] sm:$0xff]
      %v501 = vld [vmem:[#allocation2 + $0x51] sm:$0xff]
      %v502 = vld [vmem:[#allocation2 + $0x61] sm:$0xff]
      %v503 = vld [vmem:[#allocation2 + $0x69] sm:$0xff]
      %v504 = vld [vmem:[#allocation2 + $0x79] sm:$0xff]
      %v505 = vld [vmem:[#allocation2 + $0x81] sm:$0xff]
      %v506 = vld [vmem:[#allocation2 + $0x91] sm:$0xff]
      %v507 = vld [vmem:[#allocation2 + $0x99] sm:$0xff]
      %v508 = vld [vmem:[#allocation2 + $0xa9] sm:$0xff]
      %v509 = vld [vmem:[#allocation2 + $0xb1] sm:$0xff]
      %v510 = vld [vmem:[#allocation2 + $0xc1] sm:$0xff]
      %v511 = vld [vmem:[#allocation2 + $0xc9] sm:$0xff]
      %v512 = vld [vmem:[#allocation2 + $0xd9] sm:$0xff]
      %v513 = vld [vmem:[#allocation2 + $0xe1] sm:$0xff]
      %v514 = vld [vmem:[#allocation2 + $0xf1] sm:$0xff]
      %v515 = vld [vmem:[#allocation2 + $0xf9] sm:$0xff]
      %v516 = vld [vmem:[#allocation2 + $0x109] sm:$0xff]
      %v517 = vld [vmem:[#allocation2 + $0x111] sm:$0xff]
      %v518 = vld [vmem:[#allocation2 + $0x121] sm:$0xff]
      %v519 = vld [vmem:[#allocation2 + $0x129] sm:$0xff]
      %v520 = vld [vmem:[#allocation2 + $0x139] sm:$0xff]
      %v521 = vld [vmem:[#allocation2 + $0x141] sm:$0xff]
      %v522 = vld [vmem:[#allocation2 + $0x151] sm:$0xff]
      %v523 = vld [vmem:[#allocation2 + $0x159] sm:$0xff]
      %v524 = vld [vmem:[#allocation2 + $0x169] sm:$0xff]
      %v525 = vld [vmem:[#allocation2 + $0x171] sm:$0xff]
      %s526 = scalar_lea.vmem %s1, 128
      %v527 = vld [vmem:[%s526] sm:$0xff]
      %v528 = vld [vmem:[%s526 + $0x8] sm:$0xff]
      %v529 = vld [vmem:[%s526 + $0x10] sm:$0xff]
      %v530 = vld [vmem:[%s526 + $0x18] sm:$0xff]
      %v531 = vld [vmem:[%s526 + $0x20] sm:$0xff]
      %v532 = vld [vmem:[%s526 + $0x28] sm:$0xff]
      %v533 = vld [vmem:[%s526 + $0x30] sm:$0xff]
      %v534 = vld [vmem:[%s526 + $0x38] sm:$0xff]
      %v535 = vld [vmem:[%s526 + $0x40] sm:$0xff]
      %v536 = vld [vmem:[%s526 + $0x48] sm:$0xff]
      %v537 = vld [vmem:[%s526 + $0x50] sm:$0xff]
      %v538 = vld [vmem:[%s526 + $0x58] sm:$0xff]
      %v539 = vld [vmem:[%s526 + $0x60] sm:$0xff]
      %v540 = vld [vmem:[%s526 + $0x68] sm:$0xff]
      %v541 = vld [vmem:[%s526 + $0x70] sm:$0xff]
      %v542 = vld [vmem:[%s526 + $0x78] sm:$0xff]
      %543 = vmatpush.msra.mxu0 %v542
      %544 = vmatpush.msra.mxu0 %v541
      %545 = vmatpush.msra.mxu0 %v540
      %546 = vmatpush.msra.mxu0 %v539
      %547 = vmatpush.msra.mxu0 %v538
      %548 = vmatpush.msra.mxu0 %v537
      %549 = vmatpush.msra.mxu0 %v536
      %550 = vmatpush.msra.mxu0 %v535
      %551 = vmatpush.msra.mxu0 %v534
      %552 = vmatpush.msra.mxu0 %v533
      %553 = vmatpush.msra.mxu0 %v532
      %554 = vmatpush.msra.mxu0 %v531
      %555 = vmatpush.msra.mxu0 %v530
      %556 = vmatpush.msra.mxu0 %v529
      %557 = vmatpush.msra.mxu0 %v528
      %558 = vmatpush.msra.mxu0 %v527
      %559 = vmatmul.f32.gmra.mxu0 %v494
      %v560 = vpop.f32.mrf.mxu0
      %v561 = vadd.f32 0.0, %v560
      %562 = vmatmul.f32.gmra.mxu0 %v495
      %v563 = vpop.f32.mrf.mxu0
      %v564 = vadd.f32 0.0, %v563
      %565 = vmatmul.f32.gmra.mxu0 %v496
      %v566 = vpop.f32.mrf.mxu0
      %v567 = vadd.f32 0.0, %v566
      %568 = vmatmul.f32.gmra.mxu0 %v497
      %v569 = vpop.f32.mrf.mxu0
      %v570 = vadd.f32 0.0, %v569
      %571 = vmatmul.f32.gmra.mxu0 %v498
      %v572 = vpop.f32.mrf.mxu0
      %v573 = vadd.f32 0.0, %v572
      %574 = vmatmul.f32.gmra.mxu0 %v499
      %v575 = vpop.f32.mrf.mxu0
      %v576 = vadd.f32 0.0, %v575
      %577 = vmatmul.f32.gmra.mxu0 %v500
      %v578 = vpop.f32.mrf.mxu0
      %v579 = vadd.f32 0.0, %v578
      %580 = vmatmul.f32.gmra.mxu0 %v501
      %v581 = vpop.f32.mrf.mxu0
      %v582 = vadd.f32 0.0, %v581
      %583 = vmatmul.f32.gmra.mxu0 %v502
      %v584 = vpop.f32.mrf.mxu0
      %v585 = vadd.f32 0.0, %v584
      %586 = vmatmul.f32.gmra.mxu0 %v503
      %v587 = vpop.f32.mrf.mxu0
      %v588 = vadd.f32 0.0, %v587
      %589 = vmatmul.f32.gmra.mxu0 %v504
      %v590 = vpop.f32.mrf.mxu0
      %v591 = vadd.f32 0.0, %v590
      %592 = vmatmul.f32.gmra.mxu0 %v505
      %v593 = vpop.f32.mrf.mxu0
      %v594 = vadd.f32 0.0, %v593
      %595 = vmatmul.f32.gmra.mxu0 %v506
      %v596 = vpop.f32.mrf.mxu0
      %v597 = vadd.f32 0.0, %v596
      %598 = vmatmul.f32.gmra.mxu0 %v507
      %v599 = vpop.f32.mrf.mxu0
      %v600 = vadd.f32 0.0, %v599
      %601 = vmatmul.f32.gmra.mxu0 %v508
      %v602 = vpop.f32.mrf.mxu0
      %v603 = vadd.f32 0.0, %v602
      %604 = vmatmul.f32.gmra.mxu0 %v509
      %v605 = vpop.f32.mrf.mxu0
      %v606 = vadd.f32 0.0, %v605
      %607 = vmatmul.f32.gmra.mxu0 %v510
      %v608 = vpop.f32.mrf.mxu0
      %v609 = vadd.f32 0.0, %v608
      %610 = vmatmul.f32.gmra.mxu0 %v511
      %v611 = vpop.f32.mrf.mxu0
      %v612 = vadd.f32 0.0, %v611
      %613 = vmatmul.f32.gmra.mxu0 %v512
      %v614 = vpop.f32.mrf.mxu0
      %v615 = vadd.f32 0.0, %v614
      %616 = vmatmul.f32.gmra.mxu0 %v513
      %v617 = vpop.f32.mrf.mxu0
      %v618 = vadd.f32 0.0, %v617
      %619 = vmatmul.f32.gmra.mxu0 %v514
      %v620 = vpop.f32.mrf.mxu0
      %v621 = vadd.f32 0.0, %v620
      %622 = vmatmul.f32.gmra.mxu0 %v515
      %v623 = vpop.f32.mrf.mxu0
      %v624 = vadd.f32 0.0, %v623
      %625 = vmatmul.f32.gmra.mxu0 %v516
      %v626 = vpop.f32.mrf.mxu0
      %v627 = vadd.f32 0.0, %v626
      %628 = vmatmul.f32.gmra.mxu0 %v517
      %v629 = vpop.f32.mrf.mxu0
      %v630 = vadd.f32 0.0, %v629
      %631 = vmatmul.f32.gmra.mxu0 %v518
      %v632 = vpop.f32.mrf.mxu0
      %v633 = vadd.f32 0.0, %v632
      %634 = vmatmul.f32.gmra.mxu0 %v519
      %v635 = vpop.f32.mrf.mxu0
      %v636 = vadd.f32 0.0, %v635
      %637 = vmatmul.f32.gmra.mxu0 %v520
      %v638 = vpop.f32.mrf.mxu0
      %v639 = vadd.f32 0.0, %v638
      %640 = vmatmul.f32.gmra.mxu0 %v521
      %v641 = vpop.f32.mrf.mxu0
      %v642 = vadd.f32 0.0, %v641
      %643 = vmatmul.f32.gmra.mxu0 %v522
      %v644 = vpop.f32.mrf.mxu0
      %v645 = vadd.f32 0.0, %v644
      %646 = vmatmul.f32.gmra.mxu0 %v523
      %v647 = vpop.f32.mrf.mxu0
      %v648 = vadd.f32 0.0, %v647
      %649 = vmatmul.f32.gmra.mxu0 %v524
      %v650 = vpop.f32.mrf.mxu0
      %v651 = vadd.f32 0.0, %v650
      %652 = vmatmul.f32.gmra.mxu0 %v525
      %v653 = vpop.f32.mrf.mxu0
      %v654 = vadd.f32 0.0, %v653
      %655 = vdwg.mxu0
      %v656 = vld [vmem:[%s177] sm:$0xff]
      %v657 = vld [vmem:[%s177 + $0x8] sm:$0xff]
      %v658 = vld [vmem:[%s177 + $0x10] sm:$0xff]
      %v659 = vld [vmem:[%s177 + $0x18] sm:$0xff]
      %v660 = vld [vmem:[%s177 + $0x20] sm:$0xff]
      %v661 = vld [vmem:[%s177 + $0x28] sm:$0xff]
      %v662 = vld [vmem:[%s177 + $0x30] sm:$0xff]
      %v663 = vld [vmem:[%s177 + $0x38] sm:$0xff]
      %v664 = vld [vmem:[%s177 + $0x40] sm:$0xff]
      %v665 = vld [vmem:[%s177 + $0x48] sm:$0xff]
      %v666 = vld [vmem:[%s177 + $0x50] sm:$0xff]
      %v667 = vld [vmem:[%s177 + $0x58] sm:$0xff]
      %v668 = vld [vmem:[%s177 + $0x60] sm:$0xff]
      %v669 = vld [vmem:[%s177 + $0x68] sm:$0xff]
      %v670 = vld [vmem:[%s177 + $0x70] sm:$0xff]
      %v671 = vld [vmem:[%s177 + $0x78] sm:$0xff]
      %v672 = vld [vmem:[%s177 + $0x80] sm:$0xff]
      %v673 = vld [vmem:[%s177 + $0x88] sm:$0xff]
      %v674 = vld [vmem:[%s177 + $0x90] sm:$0xff]
      %v675 = vld [vmem:[%s177 + $0x98] sm:$0xff]
      %v676 = vld [vmem:[%s177 + $0xa0] sm:$0xff]
      %v677 = vld [vmem:[%s177 + $0xa8] sm:$0xff]
      %v678 = vld [vmem:[%s177 + $0xb0] sm:$0xff]
      %v679 = vld [vmem:[%s177 + $0xb8] sm:$0xff]
      %v680 = vld [vmem:[%s177 + $0xc0] sm:$0xff]
      %v681 = vld [vmem:[%s177 + $0xc8] sm:$0xff]
      %v682 = vld [vmem:[%s177 + $0xd0] sm:$0xff]
      %v683 = vld [vmem:[%s177 + $0xd8] sm:$0xff]
      %v684 = vld [vmem:[%s177 + $0xe0] sm:$0xff]
      %v685 = vld [vmem:[%s177 + $0xe8] sm:$0xff]
      %v686 = vld [vmem:[%s177 + $0xf0] sm:$0xff]
      %v687 = vld [vmem:[%s177 + $0xf8] sm:$0xff]
      %v688 = vadd.f32 %v656, %v561
      %v689 = vadd.f32 %v657, %v564
      %v690 = vadd.f32 %v658, %v567
      %v691 = vadd.f32 %v659, %v570
      %v692 = vadd.f32 %v660, %v573
      %v693 = vadd.f32 %v661, %v576
      %v694 = vadd.f32 %v662, %v579
      %v695 = vadd.f32 %v663, %v582
      %v696 = vadd.f32 %v664, %v585
      %v697 = vadd.f32 %v665, %v588
      %v698 = vadd.f32 %v666, %v591
      %v699 = vadd.f32 %v667, %v594
      %v700 = vadd.f32 %v668, %v597
      %v701 = vadd.f32 %v669, %v600
      %v702 = vadd.f32 %v670, %v603
      %v703 = vadd.f32 %v671, %v606
      %v704 = vadd.f32 %v672, %v609
      %v705 = vadd.f32 %v673, %v612
      %v706 = vadd.f32 %v674, %v615
      %v707 = vadd.f32 %v675, %v618
      %v708 = vadd.f32 %v676, %v621
      %v709 = vadd.f32 %v677, %v624
      %v710 = vadd.f32 %v678, %v627
      %v711 = vadd.f32 %v679, %v630
      %v712 = vadd.f32 %v680, %v633
      %v713 = vadd.f32 %v681, %v636
      %v714 = vadd.f32 %v682, %v639
      %v715 = vadd.f32 %v683, %v642
      %v716 = vadd.f32 %v684, %v645
      %v717 = vadd.f32 %v685, %v648
      %v718 = vadd.f32 %v686, %v651
      %v719 = vadd.f32 %v687, %v654
      %720 = vst [vmem:[%s177] sm:$0xff] %v688
      %721 = vst [vmem:[%s177 + $0x8] sm:$0xff] %v689
      %722 = vst [vmem:[%s177 + $0x10] sm:$0xff] %v690
      %723 = vst [vmem:[%s177 + $0x18] sm:$0xff] %v691
      %724 = vst [vmem:[%s177 + $0x20] sm:$0xff] %v692
      %725 = vst [vmem:[%s177 + $0x28] sm:$0xff] %v693
      %726 = vst [vmem:[%s177 + $0x30] sm:$0xff] %v694
      %727 = vst [vmem:[%s177 + $0x38] sm:$0xff] %v695
      %728 = vst [vmem:[%s177 + $0x40] sm:$0xff] %v696
      %729 = vst [vmem:[%s177 + $0x48] sm:$0xff] %v697
      %730 = vst [vmem:[%s177 + $0x50] sm:$0xff] %v698
      %731 = vst [vmem:[%s177 + $0x58] sm:$0xff] %v699
      %732 = vst [vmem:[%s177 + $0x60] sm:$0xff] %v700
      %733 = vst [vmem:[%s177 + $0x68] sm:$0xff] %v701
      %734 = vst [vmem:[%s177 + $0x70] sm:$0xff] %v702
      %735 = vst [vmem:[%s177 + $0x78] sm:$0xff] %v703
      %736 = vst [vmem:[%s177 + $0x80] sm:$0xff] %v704
      %737 = vst [vmem:[%s177 + $0x88] sm:$0xff] %v705
      %738 = vst [vmem:[%s177 + $0x90] sm:$0xff] %v706
      %739 = vst [vmem:[%s177 + $0x98] sm:$0xff] %v707
      %740 = vst [vmem:[%s177 + $0xa0] sm:$0xff] %v708
      %741 = vst [vmem:[%s177 + $0xa8] sm:$0xff] %v709
      %742 = vst [vmem:[%s177 + $0xb0] sm:$0xff] %v710
      %743 = vst [vmem:[%s177 + $0xb8] sm:$0xff] %v711
      %744 = vst [vmem:[%s177 + $0xc0] sm:$0xff] %v712
      %745 = vst [vmem:[%s177 + $0xc8] sm:$0xff] %v713
      %746 = vst [vmem:[%s177 + $0xd0] sm:$0xff] %v714
      %747 = vst [vmem:[%s177 + $0xd8] sm:$0xff] %v715
      %748 = vst [vmem:[%s177 + $0xe0] sm:$0xff] %v716
      %749 = vst [vmem:[%s177 + $0xe8] sm:$0xff] %v717
      %750 = vst [vmem:[%s177 + $0xf0] sm:$0xff] %v718
      %751 = vst [vmem:[%s177 + $0xf8] sm:$0xff] %v719
      %v752 = vld [vmem:[#allocation2 + $0x2] sm:$0xff]
      %v753 = vld [vmem:[#allocation2 + $0xa] sm:$0xff]
      %v754 = vld [vmem:[#allocation2 + $0x1a] sm:$0xff]
      %v755 = vld [vmem:[#allocation2 + $0x22] sm:$0xff]
      %v756 = vld [vmem:[#allocation2 + $0x32] sm:$0xff]
      %v757 = vld [vmem:[#allocation2 + $0x3a] sm:$0xff]
      %v758 = vld [vmem:[#allocation2 + $0x4a] sm:$0xff]
      %v759 = vld [vmem:[#allocation2 + $0x52] sm:$0xff]
      %v760 = vld [vmem:[#allocation2 + $0x62] sm:$0xff]
      %v761 = vld [vmem:[#allocation2 + $0x6a] sm:$0xff]
      %v762 = vld [vmem:[#allocation2 + $0x7a] sm:$0xff]
      %v763 = vld [vmem:[#allocation2 + $0x82] sm:$0xff]
      %v764 = vld [vmem:[#allocation2 + $0x92] sm:$0xff]
      %v765 = vld [vmem:[#allocation2 + $0x9a] sm:$0xff]
      %v766 = vld [vmem:[#allocation2 + $0xaa] sm:$0xff]
      %v767 = vld [vmem:[#allocation2 + $0xb2] sm:$0xff]
      %v768 = vld [vmem:[#allocation2 + $0xc2] sm:$0xff]
      %v769 = vld [vmem:[#allocation2 + $0xca] sm:$0xff]
      %v770 = vld [vmem:[#allocation2 + $0xda] sm:$0xff]
      %v771 = vld [vmem:[#allocation2 + $0xe2] sm:$0xff]
      %v772 = vld [vmem:[#allocation2 + $0xf2] sm:$0xff]
      %v773 = vld [vmem:[#allocation2 + $0xfa] sm:$0xff]
      %v774 = vld [vmem:[#allocation2 + $0x10a] sm:$0xff]
      %v775 = vld [vmem:[#allocation2 + $0x112] sm:$0xff]
      %v776 = vld [vmem:[#allocation2 + $0x122] sm:$0xff]
      %v777 = vld [vmem:[#allocation2 + $0x12a] sm:$0xff]
      %v778 = vld [vmem:[#allocation2 + $0x13a] sm:$0xff]
      %v779 = vld [vmem:[#allocation2 + $0x142] sm:$0xff]
      %v780 = vld [vmem:[#allocation2 + $0x152] sm:$0xff]
      %v781 = vld [vmem:[#allocation2 + $0x15a] sm:$0xff]
      %v782 = vld [vmem:[#allocation2 + $0x16a] sm:$0xff]
      %v783 = vld [vmem:[#allocation2 + $0x172] sm:$0xff]
      %s784 = scalar_lea.vmem %s1, 256
      %v785 = vld [vmem:[%s784] sm:$0xff]
      %v786 = vld [vmem:[%s784 + $0x8] sm:$0xff]
      %v787 = vld [vmem:[%s784 + $0x10] sm:$0xff]
      %v788 = vld [vmem:[%s784 + $0x18] sm:$0xff]
      %v789 = vld [vmem:[%s784 + $0x20] sm:$0xff]
      %v790 = vld [vmem:[%s784 + $0x28] sm:$0xff]
      %v791 = vld [vmem:[%s784 + $0x30] sm:$0xff]
      %v792 = vld [vmem:[%s784 + $0x38] sm:$0xff]
      %v793 = vld [vmem:[%s784 + $0x40] sm:$0xff]
      %v794 = vld [vmem:[%s784 + $0x48] sm:$0xff]
      %v795 = vld [vmem:[%s784 + $0x50] sm:$0xff]
      %v796 = vld [vmem:[%s784 + $0x58] sm:$0xff]
      %v797 = vld [vmem:[%s784 + $0x60] sm:$0xff]
      %v798 = vld [vmem:[%s784 + $0x68] sm:$0xff]
      %v799 = vld [vmem:[%s784 + $0x70] sm:$0xff]
      %v800 = vld [vmem:[%s784 + $0x78] sm:$0xff]
      %801 = vmatpush.msra.mxu0 %v800
      %802 = vmatpush.msra.mxu0 %v799
      %803 = vmatpush.msra.mxu0 %v798
      %804 = vmatpush.msra.mxu0 %v797
      %805 = vmatpush.msra.mxu0 %v796
      %806 = vmatpush.msra.mxu0 %v795
      %807 = vmatpush.msra.mxu0 %v794
      %808 = vmatpush.msra.mxu0 %v793
      %809 = vmatpush.msra.mxu0 %v792
      %810 = vmatpush.msra.mxu0 %v791
      %811 = vmatpush.msra.mxu0 %v790
      %812 = vmatpush.msra.mxu0 %v789
      %813 = vmatpush.msra.mxu0 %v788
      %814 = vmatpush.msra.mxu0 %v787
      %815 = vmatpush.msra.mxu0 %v786
      %816 = vmatpush.msra.mxu0 %v785
      %817 = vmatmul.f32.gmra.mxu0 %v752
      %v818 = vpop.f32.mrf.mxu0
      %v819 = vadd.f32 0.0, %v818
      %820 = vmatmul.f32.gmra.mxu0 %v753
      %v821 = vpop.f32.mrf.mxu0
      %v822 = vadd.f32 0.0, %v821
      %823 = vmatmul.f32.gmra.mxu0 %v754
      %v824 = vpop.f32.mrf.mxu0
      %v825 = vadd.f32 0.0, %v824
      %826 = vmatmul.f32.gmra.mxu0 %v755
      %v827 = vpop.f32.mrf.mxu0
      %v828 = vadd.f32 0.0, %v827
      %829 = vmatmul.f32.gmra.mxu0 %v756
      %v830 = vpop.f32.mrf.mxu0
      %v831 = vadd.f32 0.0, %v830
      %832 = vmatmul.f32.gmra.mxu0 %v757
      %v833 = vpop.f32.mrf.mxu0
      %v834 = vadd.f32 0.0, %v833
      %835 = vmatmul.f32.gmra.mxu0 %v758
      %v836 = vpop.f32.mrf.mxu0
      %v837 = vadd.f32 0.0, %v836
      %838 = vmatmul.f32.gmra.mxu0 %v759
      %v839 = vpop.f32.mrf.mxu0
      %v840 = vadd.f32 0.0, %v839
      %841 = vmatmul.f32.gmra.mxu0 %v760
      %v842 = vpop.f32.mrf.mxu0
      %v843 = vadd.f32 0.0, %v842
      %844 = vmatmul.f32.gmra.mxu0 %v761
      %v845 = vpop.f32.mrf.mxu0
      %v846 = vadd.f32 0.0, %v845
      %847 = vmatmul.f32.gmra.mxu0 %v762
      %v848 = vpop.f32.mrf.mxu0
      %v849 = vadd.f32 0.0, %v848
      %850 = vmatmul.f32.gmra.mxu0 %v763
      %v851 = vpop.f32.mrf.mxu0
      %v852 = vadd.f32 0.0, %v851
      %853 = vmatmul.f32.gmra.mxu0 %v764
      %v854 = vpop.f32.mrf.mxu0
      %v855 = vadd.f32 0.0, %v854
      %856 = vmatmul.f32.gmra.mxu0 %v765
      %v857 = vpop.f32.mrf.mxu0
      %v858 = vadd.f32 0.0, %v857
      %859 = vmatmul.f32.gmra.mxu0 %v766
      %v860 = vpop.f32.mrf.mxu0
      %v861 = vadd.f32 0.0, %v860
      %862 = vmatmul.f32.gmra.mxu0 %v767
      %v863 = vpop.f32.mrf.mxu0
      %v864 = vadd.f32 0.0, %v863
      %865 = vmatmul.f32.gmra.mxu0 %v768
      %v866 = vpop.f32.mrf.mxu0
      %v867 = vadd.f32 0.0, %v866
      %868 = vmatmul.f32.gmra.mxu0 %v769
      %v869 = vpop.f32.mrf.mxu0
      %v870 = vadd.f32 0.0, %v869
      %871 = vmatmul.f32.gmra.mxu0 %v770
      %v872 = vpop.f32.mrf.mxu0
      %v873 = vadd.f32 0.0, %v872
      %874 = vmatmul.f32.gmra.mxu0 %v771
      %v875 = vpop.f32.mrf.mxu0
      %v876 = vadd.f32 0.0, %v875
      %877 = vmatmul.f32.gmra.mxu0 %v772
      %v878 = vpop.f32.mrf.mxu0
      %v879 = vadd.f32 0.0, %v878
      %880 = vmatmul.f32.gmra.mxu0 %v773
      %v881 = vpop.f32.mrf.mxu0
      %v882 = vadd.f32 0.0, %v881
      %883 = vmatmul.f32.gmra.mxu0 %v774
      %v884 = vpop.f32.mrf.mxu0
      %v885 = vadd.f32 0.0, %v884
      %886 = vmatmul.f32.gmra.mxu0 %v775
      %v887 = vpop.f32.mrf.mxu0
      %v888 = vadd.f32 0.0, %v887
      %889 = vmatmul.f32.gmra.mxu0 %v776
      %v890 = vpop.f32.mrf.mxu0
      %v891 = vadd.f32 0.0, %v890
      %892 = vmatmul.f32.gmra.mxu0 %v777
      %v893 = vpop.f32.mrf.mxu0
      %v894 = vadd.f32 0.0, %v893
      %895 = vmatmul.f32.gmra.mxu0 %v778
      %v896 = vpop.f32.mrf.mxu0
      %v897 = vadd.f32 0.0, %v896
      %898 = vmatmul.f32.gmra.mxu0 %v779
      %v899 = vpop.f32.mrf.mxu0
      %v900 = vadd.f32 0.0, %v899
      %901 = vmatmul.f32.gmra.mxu0 %v780
      %v902 = vpop.f32.mrf.mxu0
      %v903 = vadd.f32 0.0, %v902
      %904 = vmatmul.f32.gmra.mxu0 %v781
      %v905 = vpop.f32.mrf.mxu0
      %v906 = vadd.f32 0.0, %v905
      %907 = vmatmul.f32.gmra.mxu0 %v782
      %v908 = vpop.f32.mrf.mxu0
      %v909 = vadd.f32 0.0, %v908
      %910 = vmatmul.f32.gmra.mxu0 %v783
      %v911 = vpop.f32.mrf.mxu0
      %v912 = vadd.f32 0.0, %v911
      %913 = vdwg.mxu0
      %v914 = vld [vmem:[%s177] sm:$0xff]
      %v915 = vld [vmem:[%s177 + $0x8] sm:$0xff]
      %v916 = vld [vmem:[%s177 + $0x10] sm:$0xff]
      %v917 = vld [vmem:[%s177 + $0x18] sm:$0xff]
      %v918 = vld [vmem:[%s177 + $0x20] sm:$0xff]
      %v919 = vld [vmem:[%s177 + $0x28] sm:$0xff]
      %v920 = vld [vmem:[%s177 + $0x30] sm:$0xff]
      %v921 = vld [vmem:[%s177 + $0x38] sm:$0xff]
      %v922 = vld [vmem:[%s177 + $0x40] sm:$0xff]
      %v923 = vld [vmem:[%s177 + $0x48] sm:$0xff]
      %v924 = vld [vmem:[%s177 + $0x50] sm:$0xff]
      %v925 = vld [vmem:[%s177 + $0x58] sm:$0xff]
      %v926 = vld [vmem:[%s177 + $0x60] sm:$0xff]
      %v927 = vld [vmem:[%s177 + $0x68] sm:$0xff]
      %v928 = vld [vmem:[%s177 + $0x70] sm:$0xff]
      %v929 = vld [vmem:[%s177 + $0x78] sm:$0xff]
      %v930 = vld [vmem:[%s177 + $0x80] sm:$0xff]
      %v931 = vld [vmem:[%s177 + $0x88] sm:$0xff]
      %v932 = vld [vmem:[%s177 + $0x90] sm:$0xff]
      %v933 = vld [vmem:[%s177 + $0x98] sm:$0xff]
      %v934 = vld [vmem:[%s177 + $0xa0] sm:$0xff]
      %v935 = vld [vmem:[%s177 + $0xa8] sm:$0xff]
      %v936 = vld [vmem:[%s177 + $0xb0] sm:$0xff]
      %v937 = vld [vmem:[%s177 + $0xb8] sm:$0xff]
      %v938 = vld [vmem:[%s177 + $0xc0] sm:$0xff]
      %v939 = vld [vmem:[%s177 + $0xc8] sm:$0xff]
      %v940 = vld [vmem:[%s177 + $0xd0] sm:$0xff]
      %v941 = vld [vmem:[%s177 + $0xd8] sm:$0xff]
      %v942 = vld [vmem:[%s177 + $0xe0] sm:$0xff]
      %v943 = vld [vmem:[%s177 + $0xe8] sm:$0xff]
      %v944 = vld [vmem:[%s177 + $0xf0] sm:$0xff]
      %v945 = vld [vmem:[%s177 + $0xf8] sm:$0xff]
      %v946 = vadd.f32 %v914, %v819
      %v947 = vadd.f32 %v915, %v822
      %v948 = vadd.f32 %v916, %v825
      %v949 = vadd.f32 %v917, %v828
      %v950 = vadd.f32 %v918, %v831
      %v951 = vadd.f32 %v919, %v834
      %v952 = vadd.f32 %v920, %v837
      %v953 = vadd.f32 %v921, %v840
      %v954 = vadd.f32 %v922, %v843
      %v955 = vadd.f32 %v923, %v846
      %v956 = vadd.f32 %v924, %v849
      %v957 = vadd.f32 %v925, %v852
      %v958 = vadd.f32 %v926, %v855
      %v959 = vadd.f32 %v927, %v858
      %v960 = vadd.f32 %v928, %v861
      %v961 = vadd.f32 %v929, %v864
      %v962 = vadd.f32 %v930, %v867
      %v963 = vadd.f32 %v931, %v870
      %v964 = vadd.f32 %v932, %v873
      %v965 = vadd.f32 %v933, %v876
      %v966 = vadd.f32 %v934, %v879
      %v967 = vadd.f32 %v935, %v882
      %v968 = vadd.f32 %v936, %v885
      %v969 = vadd.f32 %v937, %v888
      %v970 = vadd.f32 %v938, %v891
      %v971 = vadd.f32 %v939, %v894
      %v972 = vadd.f32 %v940, %v897
      %v973 = vadd.f32 %v941, %v900
      %v974 = vadd.f32 %v942, %v903
      %v975 = vadd.f32 %v943, %v906
      %v976 = vadd.f32 %v944, %v909
      %v977 = vadd.f32 %v945, %v912
      %978 = vst [vmem:[%s177] sm:$0xff] %v946
      %979 = vst [vmem:[%s177 + $0x8] sm:$0xff] %v947
      %980 = vst [vmem:[%s177 + $0x10] sm:$0xff] %v948
      %981 = vst [vmem:[%s177 + $0x18] sm:$0xff] %v949
      %982 = vst [vmem:[%s177 + $0x20] sm:$0xff] %v950
      %983 = vst [vmem:[%s177 + $0x28] sm:$0xff] %v951
      %984 = vst [vmem:[%s177 + $0x30] sm:$0xff] %v952
      %985 = vst [vmem:[%s177 + $0x38] sm:$0xff] %v953
      %986 = vst [vmem:[%s177 + $0x40] sm:$0xff] %v954
      %987 = vst [vmem:[%s177 + $0x48] sm:$0xff] %v955
      %988 = vst [vmem:[%s177 + $0x50] sm:$0xff] %v956
      %989 = vst [vmem:[%s177 + $0x58] sm:$0xff] %v957
      %990 = vst [vmem:[%s177 + $0x60] sm:$0xff] %v958
      %991 = vst [vmem:[%s177 + $0x68] sm:$0xff] %v959
      %992 = vst [vmem:[%s177 + $0x70] sm:$0xff] %v960
      %993 = vst [vmem:[%s177 + $0x78] sm:$0xff] %v961
      %994 = vst [vmem:[%s177 + $0x80] sm:$0xff] %v962
      %995 = vst [vmem:[%s177 + $0x88] sm:$0xff] %v963
      %996 = vst [vmem:[%s177 + $0x90] sm:$0xff] %v964
      %997 = vst [vmem:[%s177 + $0x98] sm:$0xff] %v965
      %998 = vst [vmem:[%s177 + $0xa0] sm:$0xff] %v966
      %999 = vst [vmem:[%s177 + $0xa8] sm:$0xff] %v967
      %1000 = vst [vmem:[%s177 + $0xb0] sm:$0xff] %v968
      %1001 = vst [vmem:[%s177 + $0xb8] sm:$0xff] %v969
      %1002 = vst [vmem:[%s177 + $0xc0] sm:$0xff] %v970
      %1003 = vst [vmem:[%s177 + $0xc8] sm:$0xff] %v971
      %1004 = vst [vmem:[%s177 + $0xd0] sm:$0xff] %v972
      %1005 = vst [vmem:[%s177 + $0xd8] sm:$0xff] %v973
      %1006 = vst [vmem:[%s177 + $0xe0] sm:$0xff] %v974
      %1007 = vst [vmem:[%s177 + $0xe8] sm:$0xff] %v975
      %1008 = vst [vmem:[%s177 + $0xf0] sm:$0xff] %v976
      %1009 = vst [vmem:[%s177 + $0xf8] sm:$0xff] %v977
      %v1010 = vld [vmem:[%s268] sm:$0xff]
      %v1011 = vld [vmem:[%s268 + $0x8] sm:$0xff]
      %v1012 = vld [vmem:[%s268 + $0x18] sm:$0xff]
      %v1013 = vld [vmem:[%s268 + $0x20] sm:$0xff]
      %v1014 = vld [vmem:[%s268 + $0x30] sm:$0xff]
      %v1015 = vld [vmem:[%s268 + $0x38] sm:$0xff]
      %v1016 = vld [vmem:[%s268 + $0x48] sm:$0xff]
      %v1017 = vld [vmem:[%s268 + $0x50] sm:$0xff]
      %v1018 = vld [vmem:[%s268 + $0x60] sm:$0xff]
      %v1019 = vld [vmem:[%s268 + $0x68] sm:$0xff]
      %v1020 = vld [vmem:[%s268 + $0x78] sm:$0xff]
      %v1021 = vld [vmem:[%s268 + $0x80] sm:$0xff]
      %v1022 = vld [vmem:[%s268 + $0x90] sm:$0xff]
      %v1023 = vld [vmem:[%s268 + $0x98] sm:$0xff]
      %v1024 = vld [vmem:[%s268 + $0xa8] sm:$0xff]
      %v1025 = vld [vmem:[%s268 + $0xb0] sm:$0xff]
      %v1026 = vld [vmem:[%s268 + $0xc0] sm:$0xff]
      %v1027 = vld [vmem:[%s268 + $0xc8] sm:$0xff]
      %v1028 = vld [vmem:[%s268 + $0xd8] sm:$0xff]
      %v1029 = vld [vmem:[%s268 + $0xe0] sm:$0xff]
      %v1030 = vld [vmem:[%s268 + $0xf0] sm:$0xff]
      %v1031 = vld [vmem:[%s268 + $0xf8] sm:$0xff]
      %v1032 = vld [vmem:[%s268 + $0x108] sm:$0xff]
      %v1033 = vld [vmem:[%s268 + $0x110] sm:$0xff]
      %v1034 = vld [vmem:[%s268 + $0x120] sm:$0xff]
      %v1035 = vld [vmem:[%s268 + $0x128] sm:$0xff]
      %v1036 = vld [vmem:[%s268 + $0x138] sm:$0xff]
      %v1037 = vld [vmem:[%s268 + $0x140] sm:$0xff]
      %v1038 = vld [vmem:[%s268 + $0x150] sm:$0xff]
      %v1039 = vld [vmem:[%s268 + $0x158] sm:$0xff]
      %v1040 = vld [vmem:[%s268 + $0x168] sm:$0xff]
      %v1041 = vld [vmem:[%s268 + $0x170] sm:$0xff]
      %s1042 = scalar_lea.vmem %s1, 384
      %v1043 = vld [vmem:[%s1042] sm:$0xff]
      %v1044 = vld [vmem:[%s1042 + $0x8] sm:$0xff]
      %v1045 = vld [vmem:[%s1042 + $0x10] sm:$0xff]
      %v1046 = vld [vmem:[%s1042 + $0x18] sm:$0xff]
      %v1047 = vld [vmem:[%s1042 + $0x20] sm:$0xff]
      %v1048 = vld [vmem:[%s1042 + $0x28] sm:$0xff]
      %v1049 = vld [vmem:[%s1042 + $0x30] sm:$0xff]
      %v1050 = vld [vmem:[%s1042 + $0x38] sm:$0xff]
      %v1051 = vld [vmem:[%s1042 + $0x40] sm:$0xff]
      %v1052 = vld [vmem:[%s1042 + $0x48] sm:$0xff]
      %v1053 = vld [vmem:[%s1042 + $0x50] sm:$0xff]
      %v1054 = vld [vmem:[%s1042 + $0x58] sm:$0xff]
      %v1055 = vld [vmem:[%s1042 + $0x60] sm:$0xff]
      %v1056 = vld [vmem:[%s1042 + $0x68] sm:$0xff]
      %v1057 = vld [vmem:[%s1042 + $0x70] sm:$0xff]
      %v1058 = vld [vmem:[%s1042 + $0x78] sm:$0xff]
      %1059 = vmatpush.msra.mxu0 %v1058
      %1060 = vmatpush.msra.mxu0 %v1057
      %1061 = vmatpush.msra.mxu0 %v1056
      %1062 = vmatpush.msra.mxu0 %v1055
      %1063 = vmatpush.msra.mxu0 %v1054
      %1064 = vmatpush.msra.mxu0 %v1053
      %1065 = vmatpush.msra.mxu0 %v1052
      %1066 = vmatpush.msra.mxu0 %v1051
      %1067 = vmatpush.msra.mxu0 %v1050
      %1068 = vmatpush.msra.mxu0 %v1049
      %1069 = vmatpush.msra.mxu0 %v1048
      %1070 = vmatpush.msra.mxu0 %v1047
      %1071 = vmatpush.msra.mxu0 %v1046
      %1072 = vmatpush.msra.mxu0 %v1045
      %1073 = vmatpush.msra.mxu0 %v1044
      %1074 = vmatpush.msra.mxu0 %v1043
      %1075 = vmatmul.f32.gmra.mxu0 %v1010
      %v1076 = vpop.f32.mrf.mxu0
      %v1077 = vadd.f32 0.0, %v1076
      %1078 = vmatmul.f32.gmra.mxu0 %v1011
      %v1079 = vpop.f32.mrf.mxu0
      %v1080 = vadd.f32 0.0, %v1079
      %1081 = vmatmul.f32.gmra.mxu0 %v1012
      %v1082 = vpop.f32.mrf.mxu0
      %v1083 = vadd.f32 0.0, %v1082
      %1084 = vmatmul.f32.gmra.mxu0 %v1013
      %v1085 = vpop.f32.mrf.mxu0
      %v1086 = vadd.f32 0.0, %v1085
      %1087 = vmatmul.f32.gmra.mxu0 %v1014
      %v1088 = vpop.f32.mrf.mxu0
      %v1089 = vadd.f32 0.0, %v1088
      %1090 = vmatmul.f32.gmra.mxu0 %v1015
      %v1091 = vpop.f32.mrf.mxu0
      %v1092 = vadd.f32 0.0, %v1091
      %1093 = vmatmul.f32.gmra.mxu0 %v1016
      %v1094 = vpop.f32.mrf.mxu0
      %v1095 = vadd.f32 0.0, %v1094
      %1096 = vmatmul.f32.gmra.mxu0 %v1017
      %v1097 = vpop.f32.mrf.mxu0
      %v1098 = vadd.f32 0.0, %v1097
      %1099 = vmatmul.f32.gmra.mxu0 %v1018
      %v1100 = vpop.f32.mrf.mxu0
      %v1101 = vadd.f32 0.0, %v1100
      %1102 = vmatmul.f32.gmra.mxu0 %v1019
      %v1103 = vpop.f32.mrf.mxu0
      %v1104 = vadd.f32 0.0, %v1103
      %1105 = vmatmul.f32.gmra.mxu0 %v1020
      %v1106 = vpop.f32.mrf.mxu0
      %v1107 = vadd.f32 0.0, %v1106
      %1108 = vmatmul.f32.gmra.mxu0 %v1021
      %v1109 = vpop.f32.mrf.mxu0
      %v1110 = vadd.f32 0.0, %v1109
      %1111 = vmatmul.f32.gmra.mxu0 %v1022
      %v1112 = vpop.f32.mrf.mxu0
      %v1113 = vadd.f32 0.0, %v1112
      %1114 = vmatmul.f32.gmra.mxu0 %v1023
      %v1115 = vpop.f32.mrf.mxu0
      %v1116 = vadd.f32 0.0, %v1115
      %1117 = vmatmul.f32.gmra.mxu0 %v1024
      %v1118 = vpop.f32.mrf.mxu0
      %v1119 = vadd.f32 0.0, %v1118
      %1120 = vmatmul.f32.gmra.mxu0 %v1025
      %v1121 = vpop.f32.mrf.mxu0
      %v1122 = vadd.f32 0.0, %v1121
      %1123 = vmatmul.f32.gmra.mxu0 %v1026
      %v1124 = vpop.f32.mrf.mxu0
      %v1125 = vadd.f32 0.0, %v1124
      %1126 = vmatmul.f32.gmra.mxu0 %v1027
      %v1127 = vpop.f32.mrf.mxu0
      %v1128 = vadd.f32 0.0, %v1127
      %1129 = vmatmul.f32.gmra.mxu0 %v1028
      %v1130 = vpop.f32.mrf.mxu0
      %v1131 = vadd.f32 0.0, %v1130
      %1132 = vmatmul.f32.gmra.mxu0 %v1029
      %v1133 = vpop.f32.mrf.mxu0
      %v1134 = vadd.f32 0.0, %v1133
      %1135 = vmatmul.f32.gmra.mxu0 %v1030
      %v1136 = vpop.f32.mrf.mxu0
      %v1137 = vadd.f32 0.0, %v1136
      %1138 = vmatmul.f32.gmra.mxu0 %v1031
      %v1139 = vpop.f32.mrf.mxu0
      %v1140 = vadd.f32 0.0, %v1139
      %1141 = vmatmul.f32.gmra.mxu0 %v1032
      %v1142 = vpop.f32.mrf.mxu0
      %v1143 = vadd.f32 0.0, %v1142
      %1144 = vmatmul.f32.gmra.mxu0 %v1033
      %v1145 = vpop.f32.mrf.mxu0
      %v1146 = vadd.f32 0.0, %v1145
      %1147 = vmatmul.f32.gmra.mxu0 %v1034
      %v1148 = vpop.f32.mrf.mxu0
      %v1149 = vadd.f32 0.0, %v1148
      %1150 = vmatmul.f32.gmra.mxu0 %v1035
      %v1151 = vpop.f32.mrf.mxu0
      %v1152 = vadd.f32 0.0, %v1151
      %1153 = vmatmul.f32.gmra.mxu0 %v1036
      %v1154 = vpop.f32.mrf.mxu0
      %v1155 = vadd.f32 0.0, %v1154
      %1156 = vmatmul.f32.gmra.mxu0 %v1037
      %v1157 = vpop.f32.mrf.mxu0
      %v1158 = vadd.f32 0.0, %v1157
      %1159 = vmatmul.f32.gmra.mxu0 %v1038
      %v1160 = vpop.f32.mrf.mxu0
      %v1161 = vadd.f32 0.0, %v1160
      %1162 = vmatmul.f32.gmra.mxu0 %v1039
      %v1163 = vpop.f32.mrf.mxu0
      %v1164 = vadd.f32 0.0, %v1163
      %1165 = vmatmul.f32.gmra.mxu0 %v1040
      %v1166 = vpop.f32.mrf.mxu0
      %v1167 = vadd.f32 0.0, %v1166
      %1168 = vmatmul.f32.gmra.mxu0 %v1041
      %v1169 = vpop.f32.mrf.mxu0
      %v1170 = vadd.f32 0.0, %v1169
      %1171 = vdwg.mxu0
      %v1172 = vld [vmem:[%s177] sm:$0xff]
      %v1173 = vld [vmem:[%s177 + $0x8] sm:$0xff]
      %v1174 = vld [vmem:[%s177 + $0x10] sm:$0xff]
      %v1175 = vld [vmem:[%s177 + $0x18] sm:$0xff]
      %v1176 = vld [vmem:[%s177 + $0x20] sm:$0xff]
      %v1177 = vld [vmem:[%s177 + $0x28] sm:$0xff]
      %v1178 = vld [vmem:[%s177 + $0x30] sm:$0xff]
      %v1179 = vld [vmem:[%s177 + $0x38] sm:$0xff]
      %v1180 = vld [vmem:[%s177 + $0x40] sm:$0xff]
      %v1181 = vld [vmem:[%s177 + $0x48] sm:$0xff]
      %v1182 = vld [vmem:[%s177 + $0x50] sm:$0xff]
      %v1183 = vld [vmem:[%s177 + $0x58] sm:$0xff]
      %v1184 = vld [vmem:[%s177 + $0x60] sm:$0xff]
      %v1185 = vld [vmem:[%s177 + $0x68] sm:$0xff]
      %v1186 = vld [vmem:[%s177 + $0x70] sm:$0xff]
      %v1187 = vld [vmem:[%s177 + $0x78] sm:$0xff]
      %v1188 = vld [vmem:[%s177 + $0x80] sm:$0xff]
      %v1189 = vld [vmem:[%s177 + $0x88] sm:$0xff]
      %v1190 = vld [vmem:[%s177 + $0x90] sm:$0xff]
      %v1191 = vld [vmem:[%s177 + $0x98] sm:$0xff]
      %v1192 = vld [vmem:[%s177 + $0xa0] sm:$0xff]
      %v1193 = vld [vmem:[%s177 + $0xa8] sm:$0xff]
      %v1194 = vld [vmem:[%s177 + $0xb0] sm:$0xff]
      %v1195 = vld [vmem:[%s177 + $0xb8] sm:$0xff]
      %v1196 = vld [vmem:[%s177 + $0xc0] sm:$0xff]
      %v1197 = vld [vmem:[%s177 + $0xc8] sm:$0xff]
      %v1198 = vld [vmem:[%s177 + $0xd0] sm:$0xff]
      %v1199 = vld [vmem:[%s177 + $0xd8] sm:$0xff]
      %v1200 = vld [vmem:[%s177 + $0xe0] sm:$0xff]
      %v1201 = vld [vmem:[%s177 + $0xe8] sm:$0xff]
      %v1202 = vld [vmem:[%s177 + $0xf0] sm:$0xff]
      %v1203 = vld [vmem:[%s177 + $0xf8] sm:$0xff]
      %v1204 = vadd.f32 %v1172, %v1077
      %v1205 = vadd.f32 %v1173, %v1080
      %v1206 = vadd.f32 %v1174, %v1083
      %v1207 = vadd.f32 %v1175, %v1086
      %v1208 = vadd.f32 %v1176, %v1089
      %v1209 = vadd.f32 %v1177, %v1092
      %v1210 = vadd.f32 %v1178, %v1095
      %v1211 = vadd.f32 %v1179, %v1098
      %v1212 = vadd.f32 %v1180, %v1101
      %v1213 = vadd.f32 %v1181, %v1104
      %v1214 = vadd.f32 %v1182, %v1107
      %v1215 = vadd.f32 %v1183, %v1110
      %v1216 = vadd.f32 %v1184, %v1113
      %v1217 = vadd.f32 %v1185, %v1116
      %v1218 = vadd.f32 %v1186, %v1119
      %v1219 = vadd.f32 %v1187, %v1122
      %v1220 = vadd.f32 %v1188, %v1125
      %v1221 = vadd.f32 %v1189, %v1128
      %v1222 = vadd.f32 %v1190, %v1131
      %v1223 = vadd.f32 %v1191, %v1134
      %v1224 = vadd.f32 %v1192, %v1137
      %v1225 = vadd.f32 %v1193, %v1140
      %v1226 = vadd.f32 %v1194, %v1143
      %v1227 = vadd.f32 %v1195, %v1146
      %v1228 = vadd.f32 %v1196, %v1149
      %v1229 = vadd.f32 %v1197, %v1152
      %v1230 = vadd.f32 %v1198, %v1155
      %v1231 = vadd.f32 %v1199, %v1158
      %v1232 = vadd.f32 %v1200, %v1161
      %v1233 = vadd.f32 %v1201, %v1164
      %v1234 = vadd.f32 %v1202, %v1167
      %v1235 = vadd.f32 %v1203, %v1170
      %1236 = vst [vmem:[%s177] sm:$0xff] %v1204
      %1237 = vst [vmem:[%s177 + $0x8] sm:$0xff] %v1205
      %1238 = vst [vmem:[%s177 + $0x10] sm:$0xff] %v1206
      %1239 = vst [vmem:[%s177 + $0x18] sm:$0xff] %v1207
      %1240 = vst [vmem:[%s177 + $0x20] sm:$0xff] %v1208
      %1241 = vst [vmem:[%s177 + $0x28] sm:$0xff] %v1209
      %1242 = vst [vmem:[%s177 + $0x30] sm:$0xff] %v1210
      %1243 = vst [vmem:[%s177 + $0x38] sm:$0xff] %v1211
      %1244 = vst [vmem:[%s177 + $0x40] sm:$0xff] %v1212
      %1245 = vst [vmem:[%s177 + $0x48] sm:$0xff] %v1213
      %1246 = vst [vmem:[%s177 + $0x50] sm:$0xff] %v1214
      %1247 = vst [vmem:[%s177 + $0x58] sm:$0xff] %v1215
      %1248 = vst [vmem:[%s177 + $0x60] sm:$0xff] %v1216
      %1249 = vst [vmem:[%s177 + $0x68] sm:$0xff] %v1217
      %1250 = vst [vmem:[%s177 + $0x70] sm:$0xff] %v1218
      %1251 = vst [vmem:[%s177 + $0x78] sm:$0xff] %v1219
      %1252 = vst [vmem:[%s177 + $0x80] sm:$0xff] %v1220
      %1253 = vst [vmem:[%s177 + $0x88] sm:$0xff] %v1221
      %1254 = vst [vmem:[%s177 + $0x90] sm:$0xff] %v1222
      %1255 = vst [vmem:[%s177 + $0x98] sm:$0xff] %v1223
      %1256 = vst [vmem:[%s177 + $0xa0] sm:$0xff] %v1224
      %1257 = vst [vmem:[%s177 + $0xa8] sm:$0xff] %v1225
      %1258 = vst [vmem:[%s177 + $0xb0] sm:$0xff] %v1226
      %1259 = vst [vmem:[%s177 + $0xb8] sm:$0xff] %v1227
      %1260 = vst [vmem:[%s177 + $0xc0] sm:$0xff] %v1228
      %1261 = vst [vmem:[%s177 + $0xc8] sm:$0xff] %v1229
      %1262 = vst [vmem:[%s177 + $0xd0] sm:$0xff] %v1230
      %1263 = vst [vmem:[%s177 + $0xd8] sm:$0xff] %v1231
      %1264 = vst [vmem:[%s177 + $0xe0] sm:$0xff] %v1232
      %1265 = vst [vmem:[%s177 + $0xe8] sm:$0xff] %v1233
      %1266 = vst [vmem:[%s177 + $0xf0] sm:$0xff] %v1234
      %1267 = vst [vmem:[%s177 + $0xf8] sm:$0xff] %v1235
      %v1268 = vld [vmem:[%s268 + $0x1] sm:$0xff]
      %v1269 = vld [vmem:[%s268 + $0x9] sm:$0xff]
      %v1270 = vld [vmem:[%s268 + $0x19] sm:$0xff]
      %v1271 = vld [vmem:[%s268 + $0x21] sm:$0xff]
      %v1272 = vld [vmem:[%s268 + $0x31] sm:$0xff]
      %v1273 = vld [vmem:[%s268 + $0x39] sm:$0xff]
      %v1274 = vld [vmem:[%s268 + $0x49] sm:$0xff]
      %v1275 = vld [vmem:[%s268 + $0x51] sm:$0xff]
      %v1276 = vld [vmem:[%s268 + $0x61] sm:$0xff]
      %v1277 = vld [vmem:[%s268 + $0x69] sm:$0xff]
      %v1278 = vld [vmem:[%s268 + $0x79] sm:$0xff]
      %v1279 = vld [vmem:[%s268 + $0x81] sm:$0xff]
      %v1280 = vld [vmem:[%s268 + $0x91] sm:$0xff]
      %v1281 = vld [vmem:[%s268 + $0x99] sm:$0xff]
      %v1282 = vld [vmem:[%s268 + $0xa9] sm:$0xff]
      %v1283 = vld [vmem:[%s268 + $0xb1] sm:$0xff]
      %v1284 = vld [vmem:[%s268 + $0xc1] sm:$0xff]
      %v1285 = vld [vmem:[%s268 + $0xc9] sm:$0xff]
      %v1286 = vld [vmem:[%s268 + $0xd9] sm:$0xff]
      %v1287 = vld [vmem:[%s268 + $0xe1] sm:$0xff]
      %v1288 = vld [vmem:[%s268 + $0xf1] sm:$0xff]
      %v1289 = vld [vmem:[%s268 + $0xf9] sm:$0xff]
      %v1290 = vld [vmem:[%s268 + $0x109] sm:$0xff]
      %v1291 = vld [vmem:[%s268 + $0x111] sm:$0xff]
      %v1292 = vld [vmem:[%s268 + $0x121] sm:$0xff]
      %v1293 = vld [vmem:[%s268 + $0x129] sm:$0xff]
      %v1294 = vld [vmem:[%s268 + $0x139] sm:$0xff]
      %v1295 = vld [vmem:[%s268 + $0x141] sm:$0xff]
      %v1296 = vld [vmem:[%s268 + $0x151] sm:$0xff]
      %v1297 = vld [vmem:[%s268 + $0x159] sm:$0xff]
      %v1298 = vld [vmem:[%s268 + $0x169] sm:$0xff]
      %v1299 = vld [vmem:[%s268 + $0x171] sm:$0xff]
      %s1300 = scalar_lea.vmem %s1, 512
      %v1301 = vld [vmem:[%s1300] sm:$0xff]
      %v1302 = vld [vmem:[%s1300 + $0x8] sm:$0xff]
      %v1303 = vld [vmem:[%s1300 + $0x10] sm:$0xff]
      %v1304 = vld [vmem:[%s1300 + $0x18] sm:$0xff]
      %v1305 = vld [vmem:[%s1300 + $0x20] sm:$0xff]
      %v1306 = vld [vmem:[%s1300 + $0x28] sm:$0xff]
      %v1307 = vld [vmem:[%s1300 + $0x30] sm:$0xff]
      %v1308 = vld [vmem:[%s1300 + $0x38] sm:$0xff]
      %v1309 = vld [vmem:[%s1300 + $0x40] sm:$0xff]
      %v1310 = vld [vmem:[%s1300 + $0x48] sm:$0xff]
      %v1311 = vld [vmem:[%s1300 + $0x50] sm:$0xff]
      %v1312 = vld [vmem:[%s1300 + $0x58] sm:$0xff]
      %v1313 = vld [vmem:[%s1300 + $0x60] sm:$0xff]
      %v1314 = vld [vmem:[%s1300 + $0x68] sm:$0xff]
      %v1315 = vld [vmem:[%s1300 + $0x70] sm:$0xff]
      %v1316 = vld [vmem:[%s1300 + $0x78] sm:$0xff]
      %1317 = vmatpush.msra.mxu0 %v1316
      %1318 = vmatpush.msra.mxu0 %v1315
      %1319 = vmatpush.msra.mxu0 %v1314
      %1320 = vmatpush.msra.mxu0 %v1313
      %1321 = vmatpush.msra.mxu0 %v1312
      %1322 = vmatpush.msra.mxu0 %v1311
      %1323 = vmatpush.msra.mxu0 %v1310
      %1324 = vmatpush.msra.mxu0 %v1309
      %1325 = vmatpush.msra.mxu0 %v1308
      %1326 = vmatpush.msra.mxu0 %v1307
      %1327 = vmatpush.msra.mxu0 %v1306
      %1328 = vmatpush.msra.mxu0 %v1305
      %1329 = vmatpush.msra.mxu0 %v1304
      %1330 = vmatpush.msra.mxu0 %v1303
      %1331 = vmatpush.msra.mxu0 %v1302
      %1332 = vmatpush.msra.mxu0 %v1301
      %1333 = vmatmul.f32.gmra.mxu0 %v1268
      %v1334 = vpop.f32.mrf.mxu0
      %v1335 = vadd.f32 0.0, %v1334
      %1336 = vmatmul.f32.gmra.mxu0 %v1269
      %v1337 = vpop.f32.mrf.mxu0
      %v1338 = vadd.f32 0.0, %v1337
      %1339 = vmatmul.f32.gmra.mxu0 %v1270
      %v1340 = vpop.f32.mrf.mxu0
      %v1341 = vadd.f32 0.0, %v1340
      %1342 = vmatmul.f32.gmra.mxu0 %v1271
      %v1343 = vpop.f32.mrf.mxu0
      %v1344 = vadd.f32 0.0, %v1343
      %1345 = vmatmul.f32.gmra.mxu0 %v1272
      %v1346 = vpop.f32.mrf.mxu0
      %v1347 = vadd.f32 0.0, %v1346
      %1348 = vmatmul.f32.gmra.mxu0 %v1273
      %v1349 = vpop.f32.mrf.mxu0
      %v1350 = vadd.f32 0.0, %v1349
      %1351 = vmatmul.f32.gmra.mxu0 %v1274
      %v1352 = vpop.f32.mrf.mxu0
      %v1353 = vadd.f32 0.0, %v1352
      %1354 = vmatmul.f32.gmra.mxu0 %v1275
      %v1355 = vpop.f32.mrf.mxu0
      %v1356 = vadd.f32 0.0, %v1355
      %1357 = vmatmul.f32.gmra.mxu0 %v1276
      %v1358 = vpop.f32.mrf.mxu0
      %v1359 = vadd.f32 0.0, %v1358
      %1360 = vmatmul.f32.gmra.mxu0 %v1277
      %v1361 = vpop.f32.mrf.mxu0
      %v1362 = vadd.f32 0.0, %v1361
      %1363 = vmatmul.f32.gmra.mxu0 %v1278
      %v1364 = vpop.f32.mrf.mxu0
      %v1365 = vadd.f32 0.0, %v1364
      %1366 = vmatmul.f32.gmra.mxu0 %v1279
      %v1367 = vpop.f32.mrf.mxu0
      %v1368 = vadd.f32 0.0, %v1367
      %1369 = vmatmul.f32.gmra.mxu0 %v1280
      %v1370 = vpop.f32.mrf.mxu0
      %v1371 = vadd.f32 0.0, %v1370
      %1372 = vmatmul.f32.gmra.mxu0 %v1281
      %v1373 = vpop.f32.mrf.mxu0
      %v1374 = vadd.f32 0.0, %v1373
      %1375 = vmatmul.f32.gmra.mxu0 %v1282
      %v1376 = vpop.f32.mrf.mxu0
      %v1377 = vadd.f32 0.0, %v1376
      %1378 = vmatmul.f32.gmra.mxu0 %v1283
      %v1379 = vpop.f32.mrf.mxu0
      %v1380 = vadd.f32 0.0, %v1379
      %1381 = vmatmul.f32.gmra.mxu0 %v1284
      %v1382 = vpop.f32.mrf.mxu0
      %v1383 = vadd.f32 0.0, %v1382
      %1384 = vmatmul.f32.gmra.mxu0 %v1285
      %v1385 = vpop.f32.mrf.mxu0
      %v1386 = vadd.f32 0.0, %v1385
      %1387 = vmatmul.f32.gmra.mxu0 %v1286
      %v1388 = vpop.f32.mrf.mxu0
      %v1389 = vadd.f32 0.0, %v1388
      %1390 = vmatmul.f32.gmra.mxu0 %v1287
      %v1391 = vpop.f32.mrf.mxu0
      %v1392 = vadd.f32 0.0, %v1391
      %1393 = vmatmul.f32.gmra.mxu0 %v1288
      %v1394 = vpop.f32.mrf.mxu0
      %v1395 = vadd.f32 0.0, %v1394
      %1396 = vmatmul.f32.gmra.mxu0 %v1289
      %v1397 = vpop.f32.mrf.mxu0
      %v1398 = vadd.f32 0.0, %v1397
      %1399 = vmatmul.f32.gmra.mxu0 %v1290
      %v1400 = vpop.f32.mrf.mxu0
      %v1401 = vadd.f32 0.0, %v1400
      %1402 = vmatmul.f32.gmra.mxu0 %v1291
      %v1403 = vpop.f32.mrf.mxu0
      %v1404 = vadd.f32 0.0, %v1403
      %1405 = vmatmul.f32.gmra.mxu0 %v1292
      %v1406 = vpop.f32.mrf.mxu0
      %v1407 = vadd.f32 0.0, %v1406
      %1408 = vmatmul.f32.gmra.mxu0 %v1293
      %v1409 = vpop.f32.mrf.mxu0
      %v1410 = vadd.f32 0.0, %v1409
      %1411 = vmatmul.f32.gmra.mxu0 %v1294
      %v1412 = vpop.f32.mrf.mxu0
      %v1413 = vadd.f32 0.0, %v1412
      %1414 = vmatmul.f32.gmra.mxu0 %v1295
      %v1415 = vpop.f32.mrf.mxu0
      %v1416 = vadd.f32 0.0, %v1415
      %1417 = vmatmul.f32.gmra.mxu0 %v1296
      %v1418 = vpop.f32.mrf.mxu0
      %v1419 = vadd.f32 0.0, %v1418
      %1420 = vmatmul.f32.gmra.mxu0 %v1297
      %v1421 = vpop.f32.mrf.mxu0
      %v1422 = vadd.f32 0.0, %v1421
      %1423 = vmatmul.f32.gmra.mxu0 %v1298
      %v1424 = vpop.f32.mrf.mxu0
      %v1425 = vadd.f32 0.0, %v1424
      %1426 = vmatmul.f32.gmra.mxu0 %v1299
      %v1427 = vpop.f32.mrf.mxu0
      %v1428 = vadd.f32 0.0, %v1427
      %1429 = vdwg.mxu0
      %v1430 = vld [vmem:[%s177] sm:$0xff]
      %v1431 = vld [vmem:[%s177 + $0x8] sm:$0xff]
      %v1432 = vld [vmem:[%s177 + $0x10] sm:$0xff]
      %v1433 = vld [vmem:[%s177 + $0x18] sm:$0xff]
      %v1434 = vld [vmem:[%s177 + $0x20] sm:$0xff]
      %v1435 = vld [vmem:[%s177 + $0x28] sm:$0xff]
      %v1436 = vld [vmem:[%s177 + $0x30] sm:$0xff]
      %v1437 = vld [vmem:[%s177 + $0x38] sm:$0xff]
      %v1438 = vld [vmem:[%s177 + $0x40] sm:$0xff]
      %v1439 = vld [vmem:[%s177 + $0x48] sm:$0xff]
      %v1440 = vld [vmem:[%s177 + $0x50] sm:$0xff]
      %v1441 = vld [vmem:[%s177 + $0x58] sm:$0xff]
      %v1442 = vld [vmem:[%s177 + $0x60] sm:$0xff]
      %v1443 = vld [vmem:[%s177 + $0x68] sm:$0xff]
      %v1444 = vld [vmem:[%s177 + $0x70] sm:$0xff]
      %v1445 = vld [vmem:[%s177 + $0x78] sm:$0xff]
      %v1446 = vld [vmem:[%s177 + $0x80] sm:$0xff]
      %v1447 = vld [vmem:[%s177 + $0x88] sm:$0xff]
      %v1448 = vld [vmem:[%s177 + $0x90] sm:$0xff]
      %v1449 = vld [vmem:[%s177 + $0x98] sm:$0xff]
      %v1450 = vld [vmem:[%s177 + $0xa0] sm:$0xff]
      %v1451 = vld [vmem:[%s177 + $0xa8] sm:$0xff]
      %v1452 = vld [vmem:[%s177 + $0xb0] sm:$0xff]
      %v1453 = vld [vmem:[%s177 + $0xb8] sm:$0xff]
      %v1454 = vld [vmem:[%s177 + $0xc0] sm:$0xff]
      %v1455 = vld [vmem:[%s177 + $0xc8] sm:$0xff]
      %v1456 = vld [vmem:[%s177 + $0xd0] sm:$0xff]
      %v1457 = vld [vmem:[%s177 + $0xd8] sm:$0xff]
      %v1458 = vld [vmem:[%s177 + $0xe0] sm:$0xff]
      %v1459 = vld [vmem:[%s177 + $0xe8] sm:$0xff]
      %v1460 = vld [vmem:[%s177 + $0xf0] sm:$0xff]
      %v1461 = vld [vmem:[%s177 + $0xf8] sm:$0xff]
      %v1462 = vadd.f32 %v1430, %v1335
      %v1463 = vadd.f32 %v1431, %v1338
      %v1464 = vadd.f32 %v1432, %v1341
      %v1465 = vadd.f32 %v1433, %v1344
      %v1466 = vadd.f32 %v1434, %v1347
      %v1467 = vadd.f32 %v1435, %v1350
      %v1468 = vadd.f32 %v1436, %v1353
      %v1469 = vadd.f32 %v1437, %v1356
      %v1470 = vadd.f32 %v1438, %v1359
      %v1471 = vadd.f32 %v1439, %v1362
      %v1472 = vadd.f32 %v1440, %v1365
      %v1473 = vadd.f32 %v1441, %v1368
      %v1474 = vadd.f32 %v1442, %v1371
      %v1475 = vadd.f32 %v1443, %v1374
      %v1476 = vadd.f32 %v1444, %v1377
      %v1477 = vadd.f32 %v1445, %v1380
      %v1478 = vadd.f32 %v1446, %v1383
      %v1479 = vadd.f32 %v1447, %v1386
      %v1480 = vadd.f32 %v1448, %v1389
      %v1481 = vadd.f32 %v1449, %v1392
      %v1482 = vadd.f32 %v1450, %v1395
      %v1483 = vadd.f32 %v1451, %v1398
      %v1484 = vadd.f32 %v1452, %v1401
      %v1485 = vadd.f32 %v1453, %v1404
      %v1486 = vadd.f32 %v1454, %v1407
      %v1487 = vadd.f32 %v1455, %v1410
      %v1488 = vadd.f32 %v1456, %v1413
      %v1489 = vadd.f32 %v1457, %v1416
      %v1490 = vadd.f32 %v1458, %v1419
      %v1491 = vadd.f32 %v1459, %v1422
      %v1492 = vadd.f32 %v1460, %v1425
      %v1493 = vadd.f32 %v1461, %v1428
      %1494 = vst [vmem:[%s177] sm:$0xff] %v1462
      %1495 = vst [vmem:[%s177 + $0x8] sm:$0xff] %v1463
      %1496 = vst [vmem:[%s177 + $0x10] sm:$0xff] %v1464
      %1497 = vst [vmem:[%s177 + $0x18] sm:$0xff] %v1465
      %1498 = vst [vmem:[%s177 + $0x20] sm:$0xff] %v1466
      %1499 = vst [vmem:[%s177 + $0x28] sm:$0xff] %v1467
      %1500 = vst [vmem:[%s177 + $0x30] sm:$0xff] %v1468
      %1501 = vst [vmem:[%s177 + $0x38] sm:$0xff] %v1469
      %1502 = vst [vmem:[%s177 + $0x40] sm:$0xff] %v1470
      %1503 = vst [vmem:[%s177 + $0x48] sm:$0xff] %v1471
      %1504 = vst [vmem:[%s177 + $0x50] sm:$0xff] %v1472
      %1505 = vst [vmem:[%s177 + $0x58] sm:$0xff] %v1473
      %1506 = vst [vmem:[%s177 + $0x60] sm:$0xff] %v1474
      %1507 = vst [vmem:[%s177 + $0x68] sm:$0xff] %v1475
      %1508 = vst [vmem:[%s177 + $0x70] sm:$0xff] %v1476
      %1509 = vst [vmem:[%s177 + $0x78] sm:$0xff] %v1477
      %1510 = vst [vmem:[%s177 + $0x80] sm:$0xff] %v1478
      %1511 = vst [vmem:[%s177 + $0x88] sm:$0xff] %v1479
      %1512 = vst [vmem:[%s177 + $0x90] sm:$0xff] %v1480
      %1513 = vst [vmem:[%s177 + $0x98] sm:$0xff] %v1481
      %1514 = vst [vmem:[%s177 + $0xa0] sm:$0xff] %v1482
      %1515 = vst [vmem:[%s177 + $0xa8] sm:$0xff] %v1483
      %1516 = vst [vmem:[%s177 + $0xb0] sm:$0xff] %v1484
      %1517 = vst [vmem:[%s177 + $0xb8] sm:$0xff] %v1485
      %1518 = vst [vmem:[%s177 + $0xc0] sm:$0xff] %v1486
      %1519 = vst [vmem:[%s177 + $0xc8] sm:$0xff] %v1487
      %1520 = vst [vmem:[%s177 + $0xd0] sm:$0xff] %v1488
      %1521 = vst [vmem:[%s177 + $0xd8] sm:$0xff] %v1489
      %1522 = vst [vmem:[%s177 + $0xe0] sm:$0xff] %v1490
      %1523 = vst [vmem:[%s177 + $0xe8] sm:$0xff] %v1491
      %1524 = vst [vmem:[%s177 + $0xf0] sm:$0xff] %v1492
      %1525 = vst [vmem:[%s177 + $0xf8] sm:$0xff] %v1493
      %v1526 = vld [vmem:[%s268 + $0x2] sm:$0xff]
      %v1527 = vld [vmem:[%s268 + $0xa] sm:$0xff]
      %v1528 = vld [vmem:[%s268 + $0x1a] sm:$0xff]
      %v1529 = vld [vmem:[%s268 + $0x22] sm:$0xff]
      %v1530 = vld [vmem:[%s268 + $0x32] sm:$0xff]
      %v1531 = vld [vmem:[%s268 + $0x3a] sm:$0xff]
      %v1532 = vld [vmem:[%s268 + $0x4a] sm:$0xff]
      %v1533 = vld [vmem:[%s268 + $0x52] sm:$0xff]
      %v1534 = vld [vmem:[%s268 + $0x62] sm:$0xff]
      %v1535 = vld [vmem:[%s268 + $0x6a] sm:$0xff]
      %v1536 = vld [vmem:[%s268 + $0x7a] sm:$0xff]
      %v1537 = vld [vmem:[%s268 + $0x82] sm:$0xff]
      %v1538 = vld [vmem:[%s268 + $0x92] sm:$0xff]
      %v1539 = vld [vmem:[%s268 + $0x9a] sm:$0xff]
      %v1540 = vld [vmem:[%s268 + $0xaa] sm:$0xff]
      %v1541 = vld [vmem:[%s268 + $0xb2] sm:$0xff]
      %v1542 = vld [vmem:[%s268 + $0xc2] sm:$0xff]
      %v1543 = vld [vmem:[%s268 + $0xca] sm:$0xff]
      %v1544 = vld [vmem:[%s268 + $0xda] sm:$0xff]
      %v1545 = vld [vmem:[%s268 + $0xe2] sm:$0xff]
      %v1546 = vld [vmem:[%s268 + $0xf2] sm:$0xff]
      %v1547 = vld [vmem:[%s268 + $0xfa] sm:$0xff]
      %v1548 = vld [vmem:[%s268 + $0x10a] sm:$0xff]
      %v1549 = vld [vmem:[%s268 + $0x112] sm:$0xff]
      %v1550 = vld [vmem:[%s268 + $0x122] sm:$0xff]
      %v1551 = vld [vmem:[%s268 + $0x12a] sm:$0xff]
      %v1552 = vld [vmem:[%s268 + $0x13a] sm:$0xff]
      %v1553 = vld [vmem:[%s268 + $0x142] sm:$0xff]
      %v1554 = vld [vmem:[%s268 + $0x152] sm:$0xff]
      %v1555 = vld [vmem:[%s268 + $0x15a] sm:$0xff]
      %v1556 = vld [vmem:[%s268 + $0x16a] sm:$0xff]
      %v1557 = vld [vmem:[%s268 + $0x172] sm:$0xff]
      %s1558 = scalar_lea.vmem %s1, 640
      %v1559 = vld [vmem:[%s1558] sm:$0xff]
      %v1560 = vld [vmem:[%s1558 + $0x8] sm:$0xff]
      %v1561 = vld [vmem:[%s1558 + $0x10] sm:$0xff]
      %v1562 = vld [vmem:[%s1558 + $0x18] sm:$0xff]
      %v1563 = vld [vmem:[%s1558 + $0x20] sm:$0xff]
      %v1564 = vld [vmem:[%s1558 + $0x28] sm:$0xff]
      %v1565 = vld [vmem:[%s1558 + $0x30] sm:$0xff]
      %v1566 = vld [vmem:[%s1558 + $0x38] sm:$0xff]
      %v1567 = vld [vmem:[%s1558 + $0x40] sm:$0xff]
      %v1568 = vld [vmem:[%s1558 + $0x48] sm:$0xff]
      %v1569 = vld [vmem:[%s1558 + $0x50] sm:$0xff]
      %v1570 = vld [vmem:[%s1558 + $0x58] sm:$0xff]
      %v1571 = vld [vmem:[%s1558 + $0x60] sm:$0xff]
      %v1572 = vld [vmem:[%s1558 + $0x68] sm:$0xff]
      %v1573 = vld [vmem:[%s1558 + $0x70] sm:$0xff]
      %v1574 = vld [vmem:[%s1558 + $0x78] sm:$0xff]
      %1575 = vmatpush.msra.mxu0 %v1574
      %1576 = vmatpush.msra.mxu0 %v1573
      %1577 = vmatpush.msra.mxu0 %v1572
      %1578 = vmatpush.msra.mxu0 %v1571
      %1579 = vmatpush.msra.mxu0 %v1570
      %1580 = vmatpush.msra.mxu0 %v1569
      %1581 = vmatpush.msra.mxu0 %v1568
      %1582 = vmatpush.msra.mxu0 %v1567
      %1583 = vmatpush.msra.mxu0 %v1566
      %1584 = vmatpush.msra.mxu0 %v1565
      %1585 = vmatpush.msra.mxu0 %v1564
      %1586 = vmatpush.msra.mxu0 %v1563
      %1587 = vmatpush.msra.mxu0 %v1562
      %1588 = vmatpush.msra.mxu0 %v1561
      %1589 = vmatpush.msra.mxu0 %v1560
      %1590 = vmatpush.msra.mxu0 %v1559
      %1591 = vmatmul.f32.gmra.mxu0 %v1526
      %v1592 = vpop.f32.mrf.mxu0
      %v1593 = vadd.f32 0.0, %v1592
      %1594 = vmatmul.f32.gmra.mxu0 %v1527
      %v1595 = vpop.f32.mrf.mxu0
      %v1596 = vadd.f32 0.0, %v1595
      %1597 = vmatmul.f32.gmra.mxu0 %v1528
      %v1598 = vpop.f32.mrf.mxu0
      %v1599 = vadd.f32 0.0, %v1598
      %1600 = vmatmul.f32.gmra.mxu0 %v1529
      %v1601 = vpop.f32.mrf.mxu0
      %v1602 = vadd.f32 0.0, %v1601
      %1603 = vmatmul.f32.gmra.mxu0 %v1530
      %v1604 = vpop.f32.mrf.mxu0
      %v1605 = vadd.f32 0.0, %v1604
      %1606 = vmatmul.f32.gmra.mxu0 %v1531
      %v1607 = vpop.f32.mrf.mxu0
      %v1608 = vadd.f32 0.0, %v1607
      %1609 = vmatmul.f32.gmra.mxu0 %v1532
      %v1610 = vpop.f32.mrf.mxu0
      %v1611 = vadd.f32 0.0, %v1610
      %1612 = vmatmul.f32.gmra.mxu0 %v1533
      %v1613 = vpop.f32.mrf.mxu0
      %v1614 = vadd.f32 0.0, %v1613
      %1615 = vmatmul.f32.gmra.mxu0 %v1534
      %v1616 = vpop.f32.mrf.mxu0
      %v1617 = vadd.f32 0.0, %v1616
      %1618 = vmatmul.f32.gmra.mxu0 %v1535
      %v1619 = vpop.f32.mrf.mxu0
      %v1620 = vadd.f32 0.0, %v1619
      %1621 = vmatmul.f32.gmra.mxu0 %v1536
      %v1622 = vpop.f32.mrf.mxu0
      %v1623 = vadd.f32 0.0, %v1622
      %1624 = vmatmul.f32.gmra.mxu0 %v1537
      %v1625 = vpop.f32.mrf.mxu0
      %v1626 = vadd.f32 0.0, %v1625
      %1627 = vmatmul.f32.gmra.mxu0 %v1538
      %v1628 = vpop.f32.mrf.mxu0
      %v1629 = vadd.f32 0.0, %v1628
      %1630 = vmatmul.f32.gmra.mxu0 %v1539
      %v1631 = vpop.f32.mrf.mxu0
      %v1632 = vadd.f32 0.0, %v1631
      %1633 = vmatmul.f32.gmra.mxu0 %v1540
      %v1634 = vpop.f32.mrf.mxu0
      %v1635 = vadd.f32 0.0, %v1634
      %1636 = vmatmul.f32.gmra.mxu0 %v1541
      %v1637 = vpop.f32.mrf.mxu0
      %v1638 = vadd.f32 0.0, %v1637
      %1639 = vmatmul.f32.gmra.mxu0 %v1542
      %v1640 = vpop.f32.mrf.mxu0
      %v1641 = vadd.f32 0.0, %v1640
      %1642 = vmatmul.f32.gmra.mxu0 %v1543
      %v1643 = vpop.f32.mrf.mxu0
      %v1644 = vadd.f32 0.0, %v1643
      %1645 = vmatmul.f32.gmra.mxu0 %v1544
      %v1646 = vpop.f32.mrf.mxu0
      %v1647 = vadd.f32 0.0, %v1646
      %1648 = vmatmul.f32.gmra.mxu0 %v1545
      %v1649 = vpop.f32.mrf.mxu0
      %v1650 = vadd.f32 0.0, %v1649
      %1651 = vmatmul.f32.gmra.mxu0 %v1546
      %v1652 = vpop.f32.mrf.mxu0
      %v1653 = vadd.f32 0.0, %v1652
      %1654 = vmatmul.f32.gmra.mxu0 %v1547
      %v1655 = vpop.f32.mrf.mxu0
      %v1656 = vadd.f32 0.0, %v1655
      %1657 = vmatmul.f32.gmra.mxu0 %v1548
      %v1658 = vpop.f32.mrf.mxu0
      %v1659 = vadd.f32 0.0, %v1658
      %1660 = vmatmul.f32.gmra.mxu0 %v1549
      %v1661 = vpop.f32.mrf.mxu0
      %v1662 = vadd.f32 0.0, %v1661
      %1663 = vmatmul.f32.gmra.mxu0 %v1550
      %v1664 = vpop.f32.mrf.mxu0
      %v1665 = vadd.f32 0.0, %v1664
      %1666 = vmatmul.f32.gmra.mxu0 %v1551
      %v1667 = vpop.f32.mrf.mxu0
      %v1668 = vadd.f32 0.0, %v1667
      %1669 = vmatmul.f32.gmra.mxu0 %v1552
      %v1670 = vpop.f32.mrf.mxu0
      %v1671 = vadd.f32 0.0, %v1670
      %1672 = vmatmul.f32.gmra.mxu0 %v1553
      %v1673 = vpop.f32.mrf.mxu0
      %v1674 = vadd.f32 0.0, %v1673
      %1675 = vmatmul.f32.gmra.mxu0 %v1554
      %v1676 = vpop.f32.mrf.mxu0
      %v1677 = vadd.f32 0.0, %v1676
      %1678 = vmatmul.f32.gmra.mxu0 %v1555
      %v1679 = vpop.f32.mrf.mxu0
      %v1680 = vadd.f32 0.0, %v1679
      %1681 = vmatmul.f32.gmra.mxu0 %v1556
      %v1682 = vpop.f32.mrf.mxu0
      %v1683 = vadd.f32 0.0, %v1682
      %1684 = vmatmul.f32.gmra.mxu0 %v1557
      %v1685 = vpop.f32.mrf.mxu0
      %v1686 = vadd.f32 0.0, %v1685
      %1687 = vdwg.mxu0
      %v1688 = vld [vmem:[%s177] sm:$0xff]
      %v1689 = vld [vmem:[%s177 + $0x8] sm:$0xff]
      %v1690 = vld [vmem:[%s177 + $0x10] sm:$0xff]
      %v1691 = vld [vmem:[%s177 + $0x18] sm:$0xff]
      %v1692 = vld [vmem:[%s177 + $0x20] sm:$0xff]
      %v1693 = vld [vmem:[%s177 + $0x28] sm:$0xff]
      %v1694 = vld [vmem:[%s177 + $0x30] sm:$0xff]
      %v1695 = vld [vmem:[%s177 + $0x38] sm:$0xff]
      %v1696 = vld [vmem:[%s177 + $0x40] sm:$0xff]
      %v1697 = vld [vmem:[%s177 + $0x48] sm:$0xff]
      %v1698 = vld [vmem:[%s177 + $0x50] sm:$0xff]
      %v1699 = vld [vmem:[%s177 + $0x58] sm:$0xff]
      %v1700 = vld [vmem:[%s177 + $0x60] sm:$0xff]
      %v1701 = vld [vmem:[%s177 + $0x68] sm:$0xff]
      %v1702 = vld [vmem:[%s177 + $0x70] sm:$0xff]
      %v1703 = vld [vmem:[%s177 + $0x78] sm:$0xff]
      %v1704 = vld [vmem:[%s177 + $0x80] sm:$0xff]
      %v1705 = vld [vmem:[%s177 + $0x88] sm:$0xff]
      %v1706 = vld [vmem:[%s177 + $0x90] sm:$0xff]
      %v1707 = vld [vmem:[%s177 + $0x98] sm:$0xff]
      %v1708 = vld [vmem:[%s177 + $0xa0] sm:$0xff]
      %v1709 = vld [vmem:[%s177 + $0xa8] sm:$0xff]
      %v1710 = vld [vmem:[%s177 + $0xb0] sm:$0xff]
      %v1711 = vld [vmem:[%s177 + $0xb8] sm:$0xff]
      %v1712 = vld [vmem:[%s177 + $0xc0] sm:$0xff]
      %v1713 = vld [vmem:[%s177 + $0xc8] sm:$0xff]
      %v1714 = vld [vmem:[%s177 + $0xd0] sm:$0xff]
      %v1715 = vld [vmem:[%s177 + $0xd8] sm:$0xff]
      %v1716 = vld [vmem:[%s177 + $0xe0] sm:$0xff]
      %v1717 = vld [vmem:[%s177 + $0xe8] sm:$0xff]
      %v1718 = vld [vmem:[%s177 + $0xf0] sm:$0xff]
      %v1719 = vld [vmem:[%s177 + $0xf8] sm:$0xff]
      %v1720 = vadd.f32 %v1688, %v1593
      %v1721 = vadd.f32 %v1689, %v1596
      %v1722 = vadd.f32 %v1690, %v1599
      %v1723 = vadd.f32 %v1691, %v1602
      %v1724 = vadd.f32 %v1692, %v1605
      %v1725 = vadd.f32 %v1693, %v1608
      %v1726 = vadd.f32 %v1694, %v1611
      %v1727 = vadd.f32 %v1695, %v1614
      %v1728 = vadd.f32 %v1696, %v1617
      %v1729 = vadd.f32 %v1697, %v1620
      %v1730 = vadd.f32 %v1698, %v1623
      %v1731 = vadd.f32 %v1699, %v1626
      %v1732 = vadd.f32 %v1700, %v1629
      %v1733 = vadd.f32 %v1701, %v1632
      %v1734 = vadd.f32 %v1702, %v1635
      %v1735 = vadd.f32 %v1703, %v1638
      %v1736 = vadd.f32 %v1704, %v1641
      %v1737 = vadd.f32 %v1705, %v1644
      %v1738 = vadd.f32 %v1706, %v1647
      %v1739 = vadd.f32 %v1707, %v1650
      %v1740 = vadd.f32 %v1708, %v1653
      %v1741 = vadd.f32 %v1709, %v1656
      %v1742 = vadd.f32 %v1710, %v1659
      %v1743 = vadd.f32 %v1711, %v1662
      %v1744 = vadd.f32 %v1712, %v1665
      %v1745 = vadd.f32 %v1713, %v1668
      %v1746 = vadd.f32 %v1714, %v1671
      %v1747 = vadd.f32 %v1715, %v1674
      %v1748 = vadd.f32 %v1716, %v1677
      %v1749 = vadd.f32 %v1717, %v1680
      %v1750 = vadd.f32 %v1718, %v1683
      %v1751 = vadd.f32 %v1719, %v1686
      %1752 = vst [vmem:[%s177] sm:$0xff] %v1720
      %1753 = vst [vmem:[%s177 + $0x8] sm:$0xff] %v1721
      %1754 = vst [vmem:[%s177 + $0x10] sm:$0xff] %v1722
      %1755 = vst [vmem:[%s177 + $0x18] sm:$0xff] %v1723
      %1756 = vst [vmem:[%s177 + $0x20] sm:$0xff] %v1724
      %1757 = vst [vmem:[%s177 + $0x28] sm:$0xff] %v1725
      %1758 = vst [vmem:[%s177 + $0x30] sm:$0xff] %v1726
      %1759 = vst [vmem:[%s177 + $0x38] sm:$0xff] %v1727
      %1760 = vst [vmem:[%s177 + $0x40] sm:$0xff] %v1728
      %1761 = vst [vmem:[%s177 + $0x48] sm:$0xff] %v1729
      %1762 = vst [vmem:[%s177 + $0x50] sm:$0xff] %v1730
      %1763 = vst [vmem:[%s177 + $0x58] sm:$0xff] %v1731
      %1764 = vst [vmem:[%s177 + $0x60] sm:$0xff] %v1732
      %1765 = vst [vmem:[%s177 + $0x68] sm:$0xff] %v1733
      %1766 = vst [vmem:[%s177 + $0x70] sm:$0xff] %v1734
      %1767 = vst [vmem:[%s177 + $0x78] sm:$0xff] %v1735
      %1768 = vst [vmem:[%s177 + $0x80] sm:$0xff] %v1736
      %1769 = vst [vmem:[%s177 + $0x88] sm:$0xff] %v1737
      %1770 = vst [vmem:[%s177 + $0x90] sm:$0xff] %v1738
      %1771 = vst [vmem:[%s177 + $0x98] sm:$0xff] %v1739
      %1772 = vst [vmem:[%s177 + $0xa0] sm:$0xff] %v1740
      %1773 = vst [vmem:[%s177 + $0xa8] sm:$0xff] %v1741
      %1774 = vst [vmem:[%s177 + $0xb0] sm:$0xff] %v1742
      %1775 = vst [vmem:[%s177 + $0xb8] sm:$0xff] %v1743
      %1776 = vst [vmem:[%s177 + $0xc0] sm:$0xff] %v1744
      %1777 = vst [vmem:[%s177 + $0xc8] sm:$0xff] %v1745
      %1778 = vst [vmem:[%s177 + $0xd0] sm:$0xff] %v1746
      %1779 = vst [vmem:[%s177 + $0xd8] sm:$0xff] %v1747
      %1780 = vst [vmem:[%s177 + $0xe0] sm:$0xff] %v1748
      %1781 = vst [vmem:[%s177 + $0xe8] sm:$0xff] %v1749
      %1782 = vst [vmem:[%s177 + $0xf0] sm:$0xff] %v1750
      %1783 = vst [vmem:[%s177 + $0xf8] sm:$0xff] %v1751
      %s1784 = scalar_lea.vmem [#allocation2], 48
      %v1785 = vld [vmem:[%s1784] sm:$0xff]
      %v1786 = vld [vmem:[%s1784 + $0x8] sm:$0xff]
      %v1787 = vld [vmem:[%s1784 + $0x18] sm:$0xff]
      %v1788 = vld [vmem:[%s1784 + $0x20] sm:$0xff]
      %v1789 = vld [vmem:[%s1784 + $0x30] sm:$0xff]
      %v1790 = vld [vmem:[%s1784 + $0x38] sm:$0xff]
      %v1791 = vld [vmem:[%s1784 + $0x48] sm:$0xff]
      %v1792 = vld [vmem:[%s1784 + $0x50] sm:$0xff]
      %v1793 = vld [vmem:[%s1784 + $0x60] sm:$0xff]
      %v1794 = vld [vmem:[%s1784 + $0x68] sm:$0xff]
      %v1795 = vld [vmem:[%s1784 + $0x78] sm:$0xff]
      %v1796 = vld [vmem:[%s1784 + $0x80] sm:$0xff]
      %v1797 = vld [vmem:[%s1784 + $0x90] sm:$0xff]
      %v1798 = vld [vmem:[%s1784 + $0x98] sm:$0xff]
      %v1799 = vld [vmem:[%s1784 + $0xa8] sm:$0xff]
      %v1800 = vld [vmem:[%s1784 + $0xb0] sm:$0xff]
      %v1801 = vld [vmem:[%s1784 + $0xc0] sm:$0xff]
      %v1802 = vld [vmem:[%s1784 + $0xc8] sm:$0xff]
      %v1803 = vld [vmem:[%s1784 + $0xd8] sm:$0xff]
      %v1804 = vld [vmem:[%s1784 + $0xe0] sm:$0xff]
      %v1805 = vld [vmem:[%s1784 + $0xf0] sm:$0xff]
      %v1806 = vld [vmem:[%s1784 + $0xf8] sm:$0xff]
      %v1807 = vld [vmem:[%s1784 + $0x108] sm:$0xff]
      %v1808 = vld [vmem:[%s1784 + $0x110] sm:$0xff]
      %v1809 = vld [vmem:[%s1784 + $0x120] sm:$0xff]
      %v1810 = vld [vmem:[%s1784 + $0x128] sm:$0xff]
      %v1811 = vld [vmem:[%s1784 + $0x138] sm:$0xff]
      %v1812 = vld [vmem:[%s1784 + $0x140] sm:$0xff]
      %v1813 = vld [vmem:[%s1784 + $0x150] sm:$0xff]
      %v1814 = vld [vmem:[%s1784 + $0x158] sm:$0xff]
      %v1815 = vld [vmem:[%s1784 + $0x168] sm:$0xff]
      %v1816 = vld [vmem:[%s1784 + $0x170] sm:$0xff]
      %s1817 = scalar_lea.vmem %s1, 768
      %v1818 = vld [vmem:[%s1817] sm:$0xff]
      %v1819 = vld [vmem:[%s1817 + $0x8] sm:$0xff]
      %v1820 = vld [vmem:[%s1817 + $0x10] sm:$0xff]
      %v1821 = vld [vmem:[%s1817 + $0x18] sm:$0xff]
      %v1822 = vld [vmem:[%s1817 + $0x20] sm:$0xff]
      %v1823 = vld [vmem:[%s1817 + $0x28] sm:$0xff]
      %v1824 = vld [vmem:[%s1817 + $0x30] sm:$0xff]
      %v1825 = vld [vmem:[%s1817 + $0x38] sm:$0xff]
      %v1826 = vld [vmem:[%s1817 + $0x40] sm:$0xff]
      %v1827 = vld [vmem:[%s1817 + $0x48] sm:$0xff]
      %v1828 = vld [vmem:[%s1817 + $0x50] sm:$0xff]
      %v1829 = vld [vmem:[%s1817 + $0x58] sm:$0xff]
      %v1830 = vld [vmem:[%s1817 + $0x60] sm:$0xff]
      %v1831 = vld [vmem:[%s1817 + $0x68] sm:$0xff]
      %v1832 = vld [vmem:[%s1817 + $0x70] sm:$0xff]
      %v1833 = vld [vmem:[%s1817 + $0x78] sm:$0xff]
      %1834 = vmatpush.msra.mxu0 %v1833
      %1835 = vmatpush.msra.mxu0 %v1832
      %1836 = vmatpush.msra.mxu0 %v1831
      %1837 = vmatpush.msra.mxu0 %v1830
      %1838 = vmatpush.msra.mxu0 %v1829
      %1839 = vmatpush.msra.mxu0 %v1828
      %1840 = vmatpush.msra.mxu0 %v1827
      %1841 = vmatpush.msra.mxu0 %v1826
      %1842 = vmatpush.msra.mxu0 %v1825
      %1843 = vmatpush.msra.mxu0 %v1824
      %1844 = vmatpush.msra.mxu0 %v1823
      %1845 = vmatpush.msra.mxu0 %v1822
      %1846 = vmatpush.msra.mxu0 %v1821
      %1847 = vmatpush.msra.mxu0 %v1820
      %1848 = vmatpush.msra.mxu0 %v1819
      %1849 = vmatpush.msra.mxu0 %v1818
      %1850 = vmatmul.f32.gmra.mxu0 %v1785
      %v1851 = vpop.f32.mrf.mxu0
      %v1852 = vadd.f32 0.0, %v1851
      %1853 = vmatmul.f32.gmra.mxu0 %v1786
      %v1854 = vpop.f32.mrf.mxu0
      %v1855 = vadd.f32 0.0, %v1854
      %1856 = vmatmul.f32.gmra.mxu0 %v1787
      %v1857 = vpop.f32.mrf.mxu0
      %v1858 = vadd.f32 0.0, %v1857
      %1859 = vmatmul.f32.gmra.mxu0 %v1788
      %v1860 = vpop.f32.mrf.mxu0
      %v1861 = vadd.f32 0.0, %v1860
      %1862 = vmatmul.f32.gmra.mxu0 %v1789
      %v1863 = vpop.f32.mrf.mxu0
      %v1864 = vadd.f32 0.0, %v1863
      %1865 = vmatmul.f32.gmra.mxu0 %v1790
      %v1866 = vpop.f32.mrf.mxu0
      %v1867 = vadd.f32 0.0, %v1866
      %1868 = vmatmul.f32.gmra.mxu0 %v1791
      %v1869 = vpop.f32.mrf.mxu0
      %v1870 = vadd.f32 0.0, %v1869
      %1871 = vmatmul.f32.gmra.mxu0 %v1792
      %v1872 = vpop.f32.mrf.mxu0
      %v1873 = vadd.f32 0.0, %v1872
      %1874 = vmatmul.f32.gmra.mxu0 %v1793
      %v1875 = vpop.f32.mrf.mxu0
      %v1876 = vadd.f32 0.0, %v1875
      %1877 = vmatmul.f32.gmra.mxu0 %v1794
      %v1878 = vpop.f32.mrf.mxu0
      %v1879 = vadd.f32 0.0, %v1878
      %1880 = vmatmul.f32.gmra.mxu0 %v1795
      %v1881 = vpop.f32.mrf.mxu0
      %v1882 = vadd.f32 0.0, %v1881
      %1883 = vmatmul.f32.gmra.mxu0 %v1796
      %v1884 = vpop.f32.mrf.mxu0
      %v1885 = vadd.f32 0.0, %v1884
      %1886 = vmatmul.f32.gmra.mxu0 %v1797
      %v1887 = vpop.f32.mrf.mxu0
      %v1888 = vadd.f32 0.0, %v1887
      %1889 = vmatmul.f32.gmra.mxu0 %v1798
      %v1890 = vpop.f32.mrf.mxu0
      %v1891 = vadd.f32 0.0, %v1890
      %1892 = vmatmul.f32.gmra.mxu0 %v1799
      %v1893 = vpop.f32.mrf.mxu0
      %v1894 = vadd.f32 0.0, %v1893
      %1895 = vmatmul.f32.gmra.mxu0 %v1800
      %v1896 = vpop.f32.mrf.mxu0
      %v1897 = vadd.f32 0.0, %v1896
      %1898 = vmatmul.f32.gmra.mxu0 %v1801
      %v1899 = vpop.f32.mrf.mxu0
      %v1900 = vadd.f32 0.0, %v1899
      %1901 = vmatmul.f32.gmra.mxu0 %v1802
      %v1902 = vpop.f32.mrf.mxu0
      %v1903 = vadd.f32 0.0, %v1902
      %1904 = vmatmul.f32.gmra.mxu0 %v1803
      %v1905 = vpop.f32.mrf.mxu0
      %v1906 = vadd.f32 0.0, %v1905
      %1907 = vmatmul.f32.gmra.mxu0 %v1804
      %v1908 = vpop.f32.mrf.mxu0
      %v1909 = vadd.f32 0.0, %v1908
      %1910 = vmatmul.f32.gmra.mxu0 %v1805
      %v1911 = vpop.f32.mrf.mxu0
      %v1912 = vadd.f32 0.0, %v1911
      %1913 = vmatmul.f32.gmra.mxu0 %v1806
      %v1914 = vpop.f32.mrf.mxu0
      %v1915 = vadd.f32 0.0, %v1914
      %1916 = vmatmul.f32.gmra.mxu0 %v1807
      %v1917 = vpop.f32.mrf.mxu0
      %v1918 = vadd.f32 0.0, %v1917
      %1919 = vmatmul.f32.gmra.mxu0 %v1808
      %v1920 = vpop.f32.mrf.mxu0
      %v1921 = vadd.f32 0.0, %v1920
      %1922 = vmatmul.f32.gmra.mxu0 %v1809
      %v1923 = vpop.f32.mrf.mxu0
      %v1924 = vadd.f32 0.0, %v1923
      %1925 = vmatmul.f32.gmra.mxu0 %v1810
      %v1926 = vpop.f32.mrf.mxu0
      %v1927 = vadd.f32 0.0, %v1926
      %1928 = vmatmul.f32.gmra.mxu0 %v1811
      %v1929 = vpop.f32.mrf.mxu0
      %v1930 = vadd.f32 0.0, %v1929
      %1931 = vmatmul.f32.gmra.mxu0 %v1812
      %v1932 = vpop.f32.mrf.mxu0
      %v1933 = vadd.f32 0.0, %v1932
      %1934 = vmatmul.f32.gmra.mxu0 %v1813
      %v1935 = vpop.f32.mrf.mxu0
      %v1936 = vadd.f32 0.0, %v1935
      %1937 = vmatmul.f32.gmra.mxu0 %v1814
      %v1938 = vpop.f32.mrf.mxu0
      %v1939 = vadd.f32 0.0, %v1938
      %1940 = vmatmul.f32.gmra.mxu0 %v1815
      %v1941 = vpop.f32.mrf.mxu0
      %v1942 = vadd.f32 0.0, %v1941
      %1943 = vmatmul.f32.gmra.mxu0 %v1816
      %v1944 = vpop.f32.mrf.mxu0
      %v1945 = vadd.f32 0.0, %v1944
      %1946 = vdwg.mxu0
      %v1947 = vld [vmem:[%s177] sm:$0xff]
      %v1948 = vld [vmem:[%s177 + $0x8] sm:$0xff]
      %v1949 = vld [vmem:[%s177 + $0x10] sm:$0xff]
      %v1950 = vld [vmem:[%s177 + $0x18] sm:$0xff]
      %v1951 = vld [vmem:[%s177 + $0x20] sm:$0xff]
      %v1952 = vld [vmem:[%s177 + $0x28] sm:$0xff]
      %v1953 = vld [vmem:[%s177 + $0x30] sm:$0xff]
      %v1954 = vld [vmem:[%s177 + $0x38] sm:$0xff]
      %v1955 = vld [vmem:[%s177 + $0x40] sm:$0xff]
      %v1956 = vld [vmem:[%s177 + $0x48] sm:$0xff]
      %v1957 = vld [vmem:[%s177 + $0x50] sm:$0xff]
      %v1958 = vld [vmem:[%s177 + $0x58] sm:$0xff]
      %v1959 = vld [vmem:[%s177 + $0x60] sm:$0xff]
      %v1960 = vld [vmem:[%s177 + $0x68] sm:$0xff]
      %v1961 = vld [vmem:[%s177 + $0x70] sm:$0xff]
      %v1962 = vld [vmem:[%s177 + $0x78] sm:$0xff]
      %v1963 = vld [vmem:[%s177 + $0x80] sm:$0xff]
      %v1964 = vld [vmem:[%s177 + $0x88] sm:$0xff]
      %v1965 = vld [vmem:[%s177 + $0x90] sm:$0xff]
      %v1966 = vld [vmem:[%s177 + $0x98] sm:$0xff]
      %v1967 = vld [vmem:[%s177 + $0xa0] sm:$0xff]
      %v1968 = vld [vmem:[%s177 + $0xa8] sm:$0xff]
      %v1969 = vld [vmem:[%s177 + $0xb0] sm:$0xff]
      %v1970 = vld [vmem:[%s177 + $0xb8] sm:$0xff]
      %v1971 = vld [vmem:[%s177 + $0xc0] sm:$0xff]
      %v1972 = vld [vmem:[%s177 + $0xc8] sm:$0xff]
      %v1973 = vld [vmem:[%s177 + $0xd0] sm:$0xff]
      %v1974 = vld [vmem:[%s177 + $0xd8] sm:$0xff]
      %v1975 = vld [vmem:[%s177 + $0xe0] sm:$0xff]
      %v1976 = vld [vmem:[%s177 + $0xe8] sm:$0xff]
      %v1977 = vld [vmem:[%s177 + $0xf0] sm:$0xff]
      %v1978 = vld [vmem:[%s177 + $0xf8] sm:$0xff]
      %v1979 = vadd.f32 %v1947, %v1852
      %v1980 = vadd.f32 %v1948, %v1855
      %v1981 = vadd.f32 %v1949, %v1858
      %v1982 = vadd.f32 %v1950, %v1861
      %v1983 = vadd.f32 %v1951, %v1864
      %v1984 = vadd.f32 %v1952, %v1867
      %v1985 = vadd.f32 %v1953, %v1870
      %v1986 = vadd.f32 %v1954, %v1873
      %v1987 = vadd.f32 %v1955, %v1876
      %v1988 = vadd.f32 %v1956, %v1879
      %v1989 = vadd.f32 %v1957, %v1882
      %v1990 = vadd.f32 %v1958, %v1885
      %v1991 = vadd.f32 %v1959, %v1888
      %v1992 = vadd.f32 %v1960, %v1891
      %v1993 = vadd.f32 %v1961, %v1894
      %v1994 = vadd.f32 %v1962, %v1897
      %v1995 = vadd.f32 %v1963, %v1900
      %v1996 = vadd.f32 %v1964, %v1903
      %v1997 = vadd.f32 %v1965, %v1906
      %v1998 = vadd.f32 %v1966, %v1909
      %v1999 = vadd.f32 %v1967, %v1912
      %v2000 = vadd.f32 %v1968, %v1915
      %v2001 = vadd.f32 %v1969, %v1918
      %v2002 = vadd.f32 %v1970, %v1921
      %v2003 = vadd.f32 %v1971, %v1924
      %v2004 = vadd.f32 %v1972, %v1927
      %v2005 = vadd.f32 %v1973, %v1930
      %v2006 = vadd.f32 %v1974, %v1933
      %v2007 = vadd.f32 %v1975, %v1936
      %v2008 = vadd.f32 %v1976, %v1939
      %v2009 = vadd.f32 %v1977, %v1942
      %v2010 = vadd.f32 %v1978, %v1945
      %2011 = vst [vmem:[%s177] sm:$0xff] %v1979
      %2012 = vst [vmem:[%s177 + $0x8] sm:$0xff] %v1980
      %2013 = vst [vmem:[%s177 + $0x10] sm:$0xff] %v1981
      %2014 = vst [vmem:[%s177 + $0x18] sm:$0xff] %v1982
      %2015 = vst [vmem:[%s177 + $0x20] sm:$0xff] %v1983
      %2016 = vst [vmem:[%s177 + $0x28] sm:$0xff] %v1984
      %2017 = vst [vmem:[%s177 + $0x30] sm:$0xff] %v1985
      %2018 = vst [vmem:[%s177 + $0x38] sm:$0xff] %v1986
      %2019 = vst [vmem:[%s177 + $0x40] sm:$0xff] %v1987
      %2020 = vst [vmem:[%s177 + $0x48] sm:$0xff] %v1988
      %2021 = vst [vmem:[%s177 + $0x50] sm:$0xff] %v1989
      %2022 = vst [vmem:[%s177 + $0x58] sm:$0xff] %v1990
      %2023 = vst [vmem:[%s177 + $0x60] sm:$0xff] %v1991
      %2024 = vst [vmem:[%s177 + $0x68] sm:$0xff] %v1992
      %2025 = vst [vmem:[%s177 + $0x70] sm:$0xff] %v1993
      %2026 = vst [vmem:[%s177 + $0x78] sm:$0xff] %v1994
      %2027 = vst [vmem:[%s177 + $0x80] sm:$0xff] %v1995
      %2028 = vst [vmem:[%s177 + $0x88] sm:$0xff] %v1996
      %2029 = vst [vmem:[%s177 + $0x90] sm:$0xff] %v1997
      %2030 = vst [vmem:[%s177 + $0x98] sm:$0xff] %v1998
      %2031 = vst [vmem:[%s177 + $0xa0] sm:$0xff] %v1999
      %2032 = vst [vmem:[%s177 + $0xa8] sm:$0xff] %v2000
      %2033 = vst [vmem:[%s177 + $0xb0] sm:$0xff] %v2001
      %2034 = vst [vmem:[%s177 + $0xb8] sm:$0xff] %v2002
      %2035 = vst [vmem:[%s177 + $0xc0] sm:$0xff] %v2003
      %2036 = vst [vmem:[%s177 + $0xc8] sm:$0xff] %v2004
      %2037 = vst [vmem:[%s177 + $0xd0] sm:$0xff] %v2005
      %2038 = vst [vmem:[%s177 + $0xd8] sm:$0xff] %v2006
      %2039 = vst [vmem:[%s177 + $0xe0] sm:$0xff] %v2007
      %2040 = vst [vmem:[%s177 + $0xe8] sm:$0xff] %v2008
      %2041 = vst [vmem:[%s177 + $0xf0] sm:$0xff] %v2009
      %2042 = vst [vmem:[%s177 + $0xf8] sm:$0xff] %v2010
      %v2043 = vld [vmem:[%s1784 + $0x1] sm:$0xff]
      %v2044 = vld [vmem:[%s1784 + $0x9] sm:$0xff]
      %v2045 = vld [vmem:[%s1784 + $0x19] sm:$0xff]
      %v2046 = vld [vmem:[%s1784 + $0x21] sm:$0xff]
      %v2047 = vld [vmem:[%s1784 + $0x31] sm:$0xff]
      %v2048 = vld [vmem:[%s1784 + $0x39] sm:$0xff]
      %v2049 = vld [vmem:[%s1784 + $0x49] sm:$0xff]
      %v2050 = vld [vmem:[%s1784 + $0x51] sm:$0xff]
      %v2051 = vld [vmem:[%s1784 + $0x61] sm:$0xff]
      %v2052 = vld [vmem:[%s1784 + $0x69] sm:$0xff]
      %v2053 = vld [vmem:[%s1784 + $0x79] sm:$0xff]
      %v2054 = vld [vmem:[%s1784 + $0x81] sm:$0xff]
      %v2055 = vld [vmem:[%s1784 + $0x91] sm:$0xff]
      %v2056 = vld [vmem:[%s1784 + $0x99] sm:$0xff]
      %v2057 = vld [vmem:[%s1784 + $0xa9] sm:$0xff]
      %v2058 = vld [vmem:[%s1784 + $0xb1] sm:$0xff]
      %v2059 = vld [vmem:[%s1784 + $0xc1] sm:$0xff]
      %v2060 = vld [vmem:[%s1784 + $0xc9] sm:$0xff]
      %v2061 = vld [vmem:[%s1784 + $0xd9] sm:$0xff]
      %v2062 = vld [vmem:[%s1784 + $0xe1] sm:$0xff]
      %v2063 = vld [vmem:[%s1784 + $0xf1] sm:$0xff]
      %v2064 = vld [vmem:[%s1784 + $0xf9] sm:$0xff]
      %v2065 = vld [vmem:[%s1784 + $0x109] sm:$0xff]
      %v2066 = vld [vmem:[%s1784 + $0x111] sm:$0xff]
      %v2067 = vld [vmem:[%s1784 + $0x121] sm:$0xff]
      %v2068 = vld [vmem:[%s1784 + $0x129] sm:$0xff]
      %v2069 = vld [vmem:[%s1784 + $0x139] sm:$0xff]
      %v2070 = vld [vmem:[%s1784 + $0x141] sm:$0xff]
      %v2071 = vld [vmem:[%s1784 + $0x151] sm:$0xff]
      %v2072 = vld [vmem:[%s1784 + $0x159] sm:$0xff]
      %v2073 = vld [vmem:[%s1784 + $0x169] sm:$0xff]
      %v2074 = vld [vmem:[%s1784 + $0x171] sm:$0xff]
      %s2075 = scalar_lea.vmem %s1, 896
      %v2076 = vld [vmem:[%s2075] sm:$0xff]
      %v2077 = vld [vmem:[%s2075 + $0x8] sm:$0xff]
      %v2078 = vld [vmem:[%s2075 + $0x10] sm:$0xff]
      %v2079 = vld [vmem:[%s2075 + $0x18] sm:$0xff]
      %v2080 = vld [vmem:[%s2075 + $0x20] sm:$0xff]
      %v2081 = vld [vmem:[%s2075 + $0x28] sm:$0xff]
      %v2082 = vld [vmem:[%s2075 + $0x30] sm:$0xff]
      %v2083 = vld [vmem:[%s2075 + $0x38] sm:$0xff]
      %v2084 = vld [vmem:[%s2075 + $0x40] sm:$0xff]
      %v2085 = vld [vmem:[%s2075 + $0x48] sm:$0xff]
      %v2086 = vld [vmem:[%s2075 + $0x50] sm:$0xff]
      %v2087 = vld [vmem:[%s2075 + $0x58] sm:$0xff]
      %v2088 = vld [vmem:[%s2075 + $0x60] sm:$0xff]
      %v2089 = vld [vmem:[%s2075 + $0x68] sm:$0xff]
      %v2090 = vld [vmem:[%s2075 + $0x70] sm:$0xff]
      %v2091 = vld [vmem:[%s2075 + $0x78] sm:$0xff]
      %2092 = vmatpush.msra.mxu0 %v2091
      %2093 = vmatpush.msra.mxu0 %v2090
      %2094 = vmatpush.msra.mxu0 %v2089
      %2095 = vmatpush.msra.mxu0 %v2088
      %2096 = vmatpush.msra.mxu0 %v2087
      %2097 = vmatpush.msra.mxu0 %v2086
      %2098 = vmatpush.msra.mxu0 %v2085
      %2099 = vmatpush.msra.mxu0 %v2084
      %2100 = vmatpush.msra.mxu0 %v2083
      %2101 = vmatpush.msra.mxu0 %v2082
      %2102 = vmatpush.msra.mxu0 %v2081
      %2103 = vmatpush.msra.mxu0 %v2080
      %2104 = vmatpush.msra.mxu0 %v2079
      %2105 = vmatpush.msra.mxu0 %v2078
      %2106 = vmatpush.msra.mxu0 %v2077
      %2107 = vmatpush.msra.mxu0 %v2076
      %2108 = vmatmul.f32.gmra.mxu0 %v2043
      %v2109 = vpop.f32.mrf.mxu0
      %v2110 = vadd.f32 0.0, %v2109
      %2111 = vmatmul.f32.gmra.mxu0 %v2044
      %v2112 = vpop.f32.mrf.mxu0
      %v2113 = vadd.f32 0.0, %v2112
      %2114 = vmatmul.f32.gmra.mxu0 %v2045
      %v2115 = vpop.f32.mrf.mxu0
      %v2116 = vadd.f32 0.0, %v2115
      %2117 = vmatmul.f32.gmra.mxu0 %v2046
      %v2118 = vpop.f32.mrf.mxu0
      %v2119 = vadd.f32 0.0, %v2118
      %2120 = vmatmul.f32.gmra.mxu0 %v2047
      %v2121 = vpop.f32.mrf.mxu0
      %v2122 = vadd.f32 0.0, %v2121
      %2123 = vmatmul.f32.gmra.mxu0 %v2048
      %v2124 = vpop.f32.mrf.mxu0
      %v2125 = vadd.f32 0.0, %v2124
      %2126 = vmatmul.f32.gmra.mxu0 %v2049
      %v2127 = vpop.f32.mrf.mxu0
      %v2128 = vadd.f32 0.0, %v2127
      %2129 = vmatmul.f32.gmra.mxu0 %v2050
      %v2130 = vpop.f32.mrf.mxu0
      %v2131 = vadd.f32 0.0, %v2130
      %2132 = vmatmul.f32.gmra.mxu0 %v2051
      %v2133 = vpop.f32.mrf.mxu0
      %v2134 = vadd.f32 0.0, %v2133
      %2135 = vmatmul.f32.gmra.mxu0 %v2052
      %v2136 = vpop.f32.mrf.mxu0
      %v2137 = vadd.f32 0.0, %v2136
      %2138 = vmatmul.f32.gmra.mxu0 %v2053
      %v2139 = vpop.f32.mrf.mxu0
      %v2140 = vadd.f32 0.0, %v2139
      %2141 = vmatmul.f32.gmra.mxu0 %v2054
      %v2142 = vpop.f32.mrf.mxu0
      %v2143 = vadd.f32 0.0, %v2142
      %2144 = vmatmul.f32.gmra.mxu0 %v2055
      %v2145 = vpop.f32.mrf.mxu0
      %v2146 = vadd.f32 0.0, %v2145
      %2147 = vmatmul.f32.gmra.mxu0 %v2056
      %v2148 = vpop.f32.mrf.mxu0
      %v2149 = vadd.f32 0.0, %v2148
      %2150 = vmatmul.f32.gmra.mxu0 %v2057
      %v2151 = vpop.f32.mrf.mxu0
      %v2152 = vadd.f32 0.0, %v2151
      %2153 = vmatmul.f32.gmra.mxu0 %v2058
      %v2154 = vpop.f32.mrf.mxu0
      %v2155 = vadd.f32 0.0, %v2154
      %2156 = vmatmul.f32.gmra.mxu0 %v2059
      %v2157 = vpop.f32.mrf.mxu0
      %v2158 = vadd.f32 0.0, %v2157
      %2159 = vmatmul.f32.gmra.mxu0 %v2060
      %v2160 = vpop.f32.mrf.mxu0
      %v2161 = vadd.f32 0.0, %v2160
      %2162 = vmatmul.f32.gmra.mxu0 %v2061
      %v2163 = vpop.f32.mrf.mxu0
      %v2164 = vadd.f32 0.0, %v2163
      %2165 = vmatmul.f32.gmra.mxu0 %v2062
      %v2166 = vpop.f32.mrf.mxu0
      %v2167 = vadd.f32 0.0, %v2166
      %2168 = vmatmul.f32.gmra.mxu0 %v2063
      %v2169 = vpop.f32.mrf.mxu0
      %v2170 = vadd.f32 0.0, %v2169
      %2171 = vmatmul.f32.gmra.mxu0 %v2064
      %v2172 = vpop.f32.mrf.mxu0
      %v2173 = vadd.f32 0.0, %v2172
      %2174 = vmatmul.f32.gmra.mxu0 %v2065
      %v2175 = vpop.f32.mrf.mxu0
      %v2176 = vadd.f32 0.0, %v2175
      %2177 = vmatmul.f32.gmra.mxu0 %v2066
      %v2178 = vpop.f32.mrf.mxu0
      %v2179 = vadd.f32 0.0, %v2178
      %2180 = vmatmul.f32.gmra.mxu0 %v2067
      %v2181 = vpop.f32.mrf.mxu0
      %v2182 = vadd.f32 0.0, %v2181
      %2183 = vmatmul.f32.gmra.mxu0 %v2068
      %v2184 = vpop.f32.mrf.mxu0
      %v2185 = vadd.f32 0.0, %v2184
      %2186 = vmatmul.f32.gmra.mxu0 %v2069
      %v2187 = vpop.f32.mrf.mxu0
      %v2188 = vadd.f32 0.0, %v2187
      %2189 = vmatmul.f32.gmra.mxu0 %v2070
      %v2190 = vpop.f32.mrf.mxu0
      %v2191 = vadd.f32 0.0, %v2190
      %2192 = vmatmul.f32.gmra.mxu0 %v2071
      %v2193 = vpop.f32.mrf.mxu0
      %v2194 = vadd.f32 0.0, %v2193
      %2195 = vmatmul.f32.gmra.mxu0 %v2072
      %v2196 = vpop.f32.mrf.mxu0
      %v2197 = vadd.f32 0.0, %v2196
      %2198 = vmatmul.f32.gmra.mxu0 %v2073
      %v2199 = vpop.f32.mrf.mxu0
      %v2200 = vadd.f32 0.0, %v2199
      %2201 = vmatmul.f32.gmra.mxu0 %v2074
      %v2202 = vpop.f32.mrf.mxu0
      %v2203 = vadd.f32 0.0, %v2202
      %2204 = vdwg.mxu0
      %v2205 = vld [vmem:[%s177] sm:$0xff]
      %v2206 = vld [vmem:[%s177 + $0x8] sm:$0xff]
      %v2207 = vld [vmem:[%s177 + $0x10] sm:$0xff]
      %v2208 = vld [vmem:[%s177 + $0x18] sm:$0xff]
      %v2209 = vld [vmem:[%s177 + $0x20] sm:$0xff]
      %v2210 = vld [vmem:[%s177 + $0x28] sm:$0xff]
      %v2211 = vld [vmem:[%s177 + $0x30] sm:$0xff]
      %v2212 = vld [vmem:[%s177 + $0x38] sm:$0xff]
      %v2213 = vld [vmem:[%s177 + $0x40] sm:$0xff]
      %v2214 = vld [vmem:[%s177 + $0x48] sm:$0xff]
      %v2215 = vld [vmem:[%s177 + $0x50] sm:$0xff]
      %v2216 = vld [vmem:[%s177 + $0x58] sm:$0xff]
      %v2217 = vld [vmem:[%s177 + $0x60] sm:$0xff]
      %v2218 = vld [vmem:[%s177 + $0x68] sm:$0xff]
      %v2219 = vld [vmem:[%s177 + $0x70] sm:$0xff]
      %v2220 = vld [vmem:[%s177 + $0x78] sm:$0xff]
      %v2221 = vld [vmem:[%s177 + $0x80] sm:$0xff]
      %v2222 = vld [vmem:[%s177 + $0x88] sm:$0xff]
      %v2223 = vld [vmem:[%s177 + $0x90] sm:$0xff]
      %v2224 = vld [vmem:[%s177 + $0x98] sm:$0xff]
      %v2225 = vld [vmem:[%s177 + $0xa0] sm:$0xff]
      %v2226 = vld [vmem:[%s177 + $0xa8] sm:$0xff]
      %v2227 = vld [vmem:[%s177 + $0xb0] sm:$0xff]
      %v2228 = vld [vmem:[%s177 + $0xb8] sm:$0xff]
      %v2229 = vld [vmem:[%s177 + $0xc0] sm:$0xff]
      %v2230 = vld [vmem:[%s177 + $0xc8] sm:$0xff]
      %v2231 = vld [vmem:[%s177 + $0xd0] sm:$0xff]
      %v2232 = vld [vmem:[%s177 + $0xd8] sm:$0xff]
      %v2233 = vld [vmem:[%s177 + $0xe0] sm:$0xff]
      %v2234 = vld [vmem:[%s177 + $0xe8] sm:$0xff]
      %v2235 = vld [vmem:[%s177 + $0xf0] sm:$0xff]
      %v2236 = vld [vmem:[%s177 + $0xf8] sm:$0xff]
      %v2237 = vadd.f32 %v2205, %v2110
      %v2238 = vadd.f32 %v2206, %v2113
      %v2239 = vadd.f32 %v2207, %v2116
      %v2240 = vadd.f32 %v2208, %v2119
      %v2241 = vadd.f32 %v2209, %v2122
      %v2242 = vadd.f32 %v2210, %v2125
      %v2243 = vadd.f32 %v2211, %v2128
      %v2244 = vadd.f32 %v2212, %v2131
      %v2245 = vadd.f32 %v2213, %v2134
      %v2246 = vadd.f32 %v2214, %v2137
      %v2247 = vadd.f32 %v2215, %v2140
      %v2248 = vadd.f32 %v2216, %v2143
      %v2249 = vadd.f32 %v2217, %v2146
      %v2250 = vadd.f32 %v2218, %v2149
      %v2251 = vadd.f32 %v2219, %v2152
      %v2252 = vadd.f32 %v2220, %v2155
      %v2253 = vadd.f32 %v2221, %v2158
      %v2254 = vadd.f32 %v2222, %v2161
      %v2255 = vadd.f32 %v2223, %v2164
      %v2256 = vadd.f32 %v2224, %v2167
      %v2257 = vadd.f32 %v2225, %v2170
      %v2258 = vadd.f32 %v2226, %v2173
      %v2259 = vadd.f32 %v2227, %v2176
      %v2260 = vadd.f32 %v2228, %v2179
      %v2261 = vadd.f32 %v2229, %v2182
      %v2262 = vadd.f32 %v2230, %v2185
      %v2263 = vadd.f32 %v2231, %v2188
      %v2264 = vadd.f32 %v2232, %v2191
      %v2265 = vadd.f32 %v2233, %v2194
      %v2266 = vadd.f32 %v2234, %v2197
      %v2267 = vadd.f32 %v2235, %v2200
      %v2268 = vadd.f32 %v2236, %v2203
      %2269 = vst [vmem:[%s177] sm:$0xff] %v2237
      %2270 = vst [vmem:[%s177 + $0x8] sm:$0xff] %v2238
      %2271 = vst [vmem:[%s177 + $0x10] sm:$0xff] %v2239
      %2272 = vst [vmem:[%s177 + $0x18] sm:$0xff] %v2240
      %2273 = vst [vmem:[%s177 + $0x20] sm:$0xff] %v2241
      %2274 = vst [vmem:[%s177 + $0x28] sm:$0xff] %v2242
      %2275 = vst [vmem:[%s177 + $0x30] sm:$0xff] %v2243
      %2276 = vst [vmem:[%s177 + $0x38] sm:$0xff] %v2244
      %2277 = vst [vmem:[%s177 + $0x40] sm:$0xff] %v2245
      %2278 = vst [vmem:[%s177 + $0x48] sm:$0xff] %v2246
      %2279 = vst [vmem:[%s177 + $0x50] sm:$0xff] %v2247
      %2280 = vst [vmem:[%s177 + $0x58] sm:$0xff] %v2248
      %2281 = vst [vmem:[%s177 + $0x60] sm:$0xff] %v2249
      %2282 = vst [vmem:[%s177 + $0x68] sm:$0xff] %v2250
      %2283 = vst [vmem:[%s177 + $0x70] sm:$0xff] %v2251
      %2284 = vst [vmem:[%s177 + $0x78] sm:$0xff] %v2252
      %2285 = vst [vmem:[%s177 + $0x80] sm:$0xff] %v2253
      %2286 = vst [vmem:[%s177 + $0x88] sm:$0xff] %v2254
      %2287 = vst [vmem:[%s177 + $0x90] sm:$0xff] %v2255
      %2288 = vst [vmem:[%s177 + $0x98] sm:$0xff] %v2256
      %2289 = vst [vmem:[%s177 + $0xa0] sm:$0xff] %v2257
      %2290 = vst [vmem:[%s177 + $0xa8] sm:$0xff] %v2258
      %2291 = vst [vmem:[%s177 + $0xb0] sm:$0xff] %v2259
      %2292 = vst [vmem:[%s177 + $0xb8] sm:$0xff] %v2260
      %2293 = vst [vmem:[%s177 + $0xc0] sm:$0xff] %v2261
      %2294 = vst [vmem:[%s177 + $0xc8] sm:$0xff] %v2262
      %2295 = vst [vmem:[%s177 + $0xd0] sm:$0xff] %v2263
      %2296 = vst [vmem:[%s177 + $0xd8] sm:$0xff] %v2264
      %2297 = vst [vmem:[%s177 + $0xe0] sm:$0xff] %v2265
      %2298 = vst [vmem:[%s177 + $0xe8] sm:$0xff] %v2266
      %2299 = vst [vmem:[%s177 + $0xf0] sm:$0xff] %v2267
      %2300 = vst [vmem:[%s177 + $0xf8] sm:$0xff] %v2268
      %v2301 = vld [vmem:[%s1784 + $0x2] sm:$0xff]
      %v2302 = vld [vmem:[%s1784 + $0xa] sm:$0xff]
      %v2303 = vld [vmem:[%s1784 + $0x1a] sm:$0xff]
      %v2304 = vld [vmem:[%s1784 + $0x22] sm:$0xff]
      %v2305 = vld [vmem:[%s1784 + $0x32] sm:$0xff]
      %v2306 = vld [vmem:[%s1784 + $0x3a] sm:$0xff]
      %v2307 = vld [vmem:[%s1784 + $0x4a] sm:$0xff]
      %v2308 = vld [vmem:[%s1784 + $0x52] sm:$0xff]
      %v2309 = vld [vmem:[%s1784 + $0x62] sm:$0xff]
      %v2310 = vld [vmem:[%s1784 + $0x6a] sm:$0xff]
      %v2311 = vld [vmem:[%s1784 + $0x7a] sm:$0xff]
      %v2312 = vld [vmem:[%s1784 + $0x82] sm:$0xff]
      %v2313 = vld [vmem:[%s1784 + $0x92] sm:$0xff]
      %v2314 = vld [vmem:[%s1784 + $0x9a] sm:$0xff]
      %v2315 = vld [vmem:[%s1784 + $0xaa] sm:$0xff]
      %v2316 = vld [vmem:[%s1784 + $0xb2] sm:$0xff]
      %v2317 = vld [vmem:[%s1784 + $0xc2] sm:$0xff]
      %v2318 = vld [vmem:[%s1784 + $0xca] sm:$0xff]
      %v2319 = vld [vmem:[%s1784 + $0xda] sm:$0xff]
      %v2320 = vld [vmem:[%s1784 + $0xe2] sm:$0xff]
      %v2321 = vld [vmem:[%s1784 + $0xf2] sm:$0xff]
      %v2322 = vld [vmem:[%s1784 + $0xfa] sm:$0xff]
      %v2323 = vld [vmem:[%s1784 + $0x10a] sm:$0xff]
      %v2324 = vld [vmem:[%s1784 + $0x112] sm:$0xff]
      %v2325 = vld [vmem:[%s1784 + $0x122] sm:$0xff]
      %v2326 = vld [vmem:[%s1784 + $0x12a] sm:$0xff]
      %v2327 = vld [vmem:[%s1784 + $0x13a] sm:$0xff]
      %v2328 = vld [vmem:[%s1784 + $0x142] sm:$0xff]
      %v2329 = vld [vmem:[%s1784 + $0x152] sm:$0xff]
      %v2330 = vld [vmem:[%s1784 + $0x15a] sm:$0xff]
      %v2331 = vld [vmem:[%s1784 + $0x16a] sm:$0xff]
      %v2332 = vld [vmem:[%s1784 + $0x172] sm:$0xff]
      %s2333 = scalar_lea.vmem %s1, 1024
      %v2334 = vld [vmem:[%s2333] sm:$0xff]
      %v2335 = vld [vmem:[%s2333 + $0x8] sm:$0xff]
      %v2336 = vld [vmem:[%s2333 + $0x10] sm:$0xff]
      %v2337 = vld [vmem:[%s2333 + $0x18] sm:$0xff]
      %v2338 = vld [vmem:[%s2333 + $0x20] sm:$0xff]
      %v2339 = vld [vmem:[%s2333 + $0x28] sm:$0xff]
      %v2340 = vld [vmem:[%s2333 + $0x30] sm:$0xff]
      %v2341 = vld [vmem:[%s2333 + $0x38] sm:$0xff]
      %v2342 = vld [vmem:[%s2333 + $0x40] sm:$0xff]
      %v2343 = vld [vmem:[%s2333 + $0x48] sm:$0xff]
      %v2344 = vld [vmem:[%s2333 + $0x50] sm:$0xff]
      %v2345 = vld [vmem:[%s2333 + $0x58] sm:$0xff]
      %v2346 = vld [vmem:[%s2333 + $0x60] sm:$0xff]
      %v2347 = vld [vmem:[%s2333 + $0x68] sm:$0xff]
      %v2348 = vld [vmem:[%s2333 + $0x70] sm:$0xff]
      %v2349 = vld [vmem:[%s2333 + $0x78] sm:$0xff]
      %2350 = vmatpush.msra.mxu0 %v2349
      %2351 = vmatpush.msra.mxu0 %v2348
      %2352 = vmatpush.msra.mxu0 %v2347
      %2353 = vmatpush.msra.mxu0 %v2346
      %2354 = vmatpush.msra.mxu0 %v2345
      %2355 = vmatpush.msra.mxu0 %v2344
      %2356 = vmatpush.msra.mxu0 %v2343
      %2357 = vmatpush.msra.mxu0 %v2342
      %2358 = vmatpush.msra.mxu0 %v2341
      %2359 = vmatpush.msra.mxu0 %v2340
      %2360 = vmatpush.msra.mxu0 %v2339
      %2361 = vmatpush.msra.mxu0 %v2338
      %2362 = vmatpush.msra.mxu0 %v2337
      %2363 = vmatpush.msra.mxu0 %v2336
      %2364 = vmatpush.msra.mxu0 %v2335
      %2365 = vmatpush.msra.mxu0 %v2334
      %2366 = vmatmul.f32.gmra.mxu0 %v2301
      %v2367 = vpop.f32.mrf.mxu0
      %v2368 = vadd.f32 0.0, %v2367
      %2369 = vmatmul.f32.gmra.mxu0 %v2302
      %v2370 = vpop.f32.mrf.mxu0
      %v2371 = vadd.f32 0.0, %v2370
      %2372 = vmatmul.f32.gmra.mxu0 %v2303
      %v2373 = vpop.f32.mrf.mxu0
      %v2374 = vadd.f32 0.0, %v2373
      %2375 = vmatmul.f32.gmra.mxu0 %v2304
      %v2376 = vpop.f32.mrf.mxu0
      %v2377 = vadd.f32 0.0, %v2376
      %2378 = vmatmul.f32.gmra.mxu0 %v2305
      %v2379 = vpop.f32.mrf.mxu0
      %v2380 = vadd.f32 0.0, %v2379
      %2381 = vmatmul.f32.gmra.mxu0 %v2306
      %v2382 = vpop.f32.mrf.mxu0
      %v2383 = vadd.f32 0.0, %v2382
      %2384 = vmatmul.f32.gmra.mxu0 %v2307
      %v2385 = vpop.f32.mrf.mxu0
      %v2386 = vadd.f32 0.0, %v2385
      %2387 = vmatmul.f32.gmra.mxu0 %v2308
      %v2388 = vpop.f32.mrf.mxu0
      %v2389 = vadd.f32 0.0, %v2388
      %2390 = vmatmul.f32.gmra.mxu0 %v2309
      %v2391 = vpop.f32.mrf.mxu0
      %v2392 = vadd.f32 0.0, %v2391
      %2393 = vmatmul.f32.gmra.mxu0 %v2310
      %v2394 = vpop.f32.mrf.mxu0
      %v2395 = vadd.f32 0.0, %v2394
      %2396 = vmatmul.f32.gmra.mxu0 %v2311
      %v2397 = vpop.f32.mrf.mxu0
      %v2398 = vadd.f32 0.0, %v2397
      %2399 = vmatmul.f32.gmra.mxu0 %v2312
      %v2400 = vpop.f32.mrf.mxu0
      %v2401 = vadd.f32 0.0, %v2400
      %2402 = vmatmul.f32.gmra.mxu0 %v2313
      %v2403 = vpop.f32.mrf.mxu0
      %v2404 = vadd.f32 0.0, %v2403
      %2405 = vmatmul.f32.gmra.mxu0 %v2314
      %v2406 = vpop.f32.mrf.mxu0
      %v2407 = vadd.f32 0.0, %v2406
      %2408 = vmatmul.f32.gmra.mxu0 %v2315
      %v2409 = vpop.f32.mrf.mxu0
      %v2410 = vadd.f32 0.0, %v2409
      %2411 = vmatmul.f32.gmra.mxu0 %v2316
      %v2412 = vpop.f32.mrf.mxu0
      %v2413 = vadd.f32 0.0, %v2412
      %2414 = vmatmul.f32.gmra.mxu0 %v2317
      %v2415 = vpop.f32.mrf.mxu0
      %v2416 = vadd.f32 0.0, %v2415
      %2417 = vmatmul.f32.gmra.mxu0 %v2318
      %v2418 = vpop.f32.mrf.mxu0
      %v2419 = vadd.f32 0.0, %v2418
      %2420 = vmatmul.f32.gmra.mxu0 %v2319
      %v2421 = vpop.f32.mrf.mxu0
      %v2422 = vadd.f32 0.0, %v2421
      %2423 = vmatmul.f32.gmra.mxu0 %v2320
      %v2424 = vpop.f32.mrf.mxu0
      %v2425 = vadd.f32 0.0, %v2424
      %2426 = vmatmul.f32.gmra.mxu0 %v2321
      %v2427 = vpop.f32.mrf.mxu0
      %v2428 = vadd.f32 0.0, %v2427
      %2429 = vmatmul.f32.gmra.mxu0 %v2322
      %v2430 = vpop.f32.mrf.mxu0
      %v2431 = vadd.f32 0.0, %v2430
      %2432 = vmatmul.f32.gmra.mxu0 %v2323
      %v2433 = vpop.f32.mrf.mxu0
      %v2434 = vadd.f32 0.0, %v2433
      %2435 = vmatmul.f32.gmra.mxu0 %v2324
      %v2436 = vpop.f32.mrf.mxu0
      %v2437 = vadd.f32 0.0, %v2436
      %2438 = vmatmul.f32.gmra.mxu0 %v2325
      %v2439 = vpop.f32.mrf.mxu0
      %v2440 = vadd.f32 0.0, %v2439
      %2441 = vmatmul.f32.gmra.mxu0 %v2326
      %v2442 = vpop.f32.mrf.mxu0
      %v2443 = vadd.f32 0.0, %v2442
      %2444 = vmatmul.f32.gmra.mxu0 %v2327
      %v2445 = vpop.f32.mrf.mxu0
      %v2446 = vadd.f32 0.0, %v2445
      %2447 = vmatmul.f32.gmra.mxu0 %v2328
      %v2448 = vpop.f32.mrf.mxu0
      %v2449 = vadd.f32 0.0, %v2448
      %2450 = vmatmul.f32.gmra.mxu0 %v2329
      %v2451 = vpop.f32.mrf.mxu0
      %v2452 = vadd.f32 0.0, %v2451
      %2453 = vmatmul.f32.gmra.mxu0 %v2330
      %v2454 = vpop.f32.mrf.mxu0
      %v2455 = vadd.f32 0.0, %v2454
      %2456 = vmatmul.f32.gmra.mxu0 %v2331
      %v2457 = vpop.f32.mrf.mxu0
      %v2458 = vadd.f32 0.0, %v2457
      %2459 = vmatmul.f32.gmra.mxu0 %v2332
      %v2460 = vpop.f32.mrf.mxu0
      %v2461 = vadd.f32 0.0, %v2460
      %2462 = vdwg.mxu0
      %v2463 = vld [vmem:[%s177] sm:$0xff]
      %v2464 = vld [vmem:[%s177 + $0x8] sm:$0xff]
      %v2465 = vld [vmem:[%s177 + $0x10] sm:$0xff]
      %v2466 = vld [vmem:[%s177 + $0x18] sm:$0xff]
      %v2467 = vld [vmem:[%s177 + $0x20] sm:$0xff]
      %v2468 = vld [vmem:[%s177 + $0x28] sm:$0xff]
      %v2469 = vld [vmem:[%s177 + $0x30] sm:$0xff]
      %v2470 = vld [vmem:[%s177 + $0x38] sm:$0xff]
      %v2471 = vld [vmem:[%s177 + $0x40] sm:$0xff]
      %v2472 = vld [vmem:[%s177 + $0x48] sm:$0xff]
      %v2473 = vld [vmem:[%s177 + $0x50] sm:$0xff]
      %v2474 = vld [vmem:[%s177 + $0x58] sm:$0xff]
      %v2475 = vld [vmem:[%s177 + $0x60] sm:$0xff]
      %v2476 = vld [vmem:[%s177 + $0x68] sm:$0xff]
      %v2477 = vld [vmem:[%s177 + $0x70] sm:$0xff]
      %v2478 = vld [vmem:[%s177 + $0x78] sm:$0xff]
      %v2479 = vld [vmem:[%s177 + $0x80] sm:$0xff]
      %v2480 = vld [vmem:[%s177 + $0x88] sm:$0xff]
      %v2481 = vld [vmem:[%s177 + $0x90] sm:$0xff]
      %v2482 = vld [vmem:[%s177 + $0x98] sm:$0xff]
      %v2483 = vld [vmem:[%s177 + $0xa0] sm:$0xff]
      %v2484 = vld [vmem:[%s177 + $0xa8] sm:$0xff]
      %v2485 = vld [vmem:[%s177 + $0xb0] sm:$0xff]
      %v2486 = vld [vmem:[%s177 + $0xb8] sm:$0xff]
      %v2487 = vld [vmem:[%s177 + $0xc0] sm:$0xff]
      %v2488 = vld [vmem:[%s177 + $0xc8] sm:$0xff]
      %v2489 = vld [vmem:[%s177 + $0xd0] sm:$0xff]
      %v2490 = vld [vmem:[%s177 + $0xd8] sm:$0xff]
      %v2491 = vld [vmem:[%s177 + $0xe0] sm:$0xff]
      %v2492 = vld [vmem:[%s177 + $0xe8] sm:$0xff]
      %v2493 = vld [vmem:[%s177 + $0xf0] sm:$0xff]
      %v2494 = vld [vmem:[%s177 + $0xf8] sm:$0xff]
      %v2495 = vadd.f32 %v2463, %v2368
      %v2496 = vadd.f32 %v2464, %v2371
      %v2497 = vadd.f32 %v2465, %v2374
      %v2498 = vadd.f32 %v2466, %v2377
      %v2499 = vadd.f32 %v2467, %v2380
      %v2500 = vadd.f32 %v2468, %v2383
      %v2501 = vadd.f32 %v2469, %v2386
      %v2502 = vadd.f32 %v2470, %v2389
      %v2503 = vadd.f32 %v2471, %v2392
      %v2504 = vadd.f32 %v2472, %v2395
      %v2505 = vadd.f32 %v2473, %v2398
      %v2506 = vadd.f32 %v2474, %v2401
      %v2507 = vadd.f32 %v2475, %v2404
      %v2508 = vadd.f32 %v2476, %v2407
      %v2509 = vadd.f32 %v2477, %v2410
      %v2510 = vadd.f32 %v2478, %v2413
      %v2511 = vadd.f32 %v2479, %v2416
      %v2512 = vadd.f32 %v2480, %v2419
      %v2513 = vadd.f32 %v2481, %v2422
      %v2514 = vadd.f32 %v2482, %v2425
      %v2515 = vadd.f32 %v2483, %v2428
      %v2516 = vadd.f32 %v2484, %v2431
      %v2517 = vadd.f32 %v2485, %v2434
      %v2518 = vadd.f32 %v2486, %v2437
      %v2519 = vadd.f32 %v2487, %v2440
      %v2520 = vadd.f32 %v2488, %v2443
      %v2521 = vadd.f32 %v2489, %v2446
      %v2522 = vadd.f32 %v2490, %v2449
      %v2523 = vadd.f32 %v2491, %v2452
      %v2524 = vadd.f32 %v2492, %v2455
      %v2525 = vadd.f32 %v2493, %v2458
      %v2526 = vadd.f32 %v2494, %v2461
      %2527 = vst [vmem:[%s177] sm:$0xff] %v2495
      %2528 = vst [vmem:[%s177 + $0x8] sm:$0xff] %v2496
      %2529 = vst [vmem:[%s177 + $0x10] sm:$0xff] %v2497
      %2530 = vst [vmem:[%s177 + $0x18] sm:$0xff] %v2498
      %2531 = vst [vmem:[%s177 + $0x20] sm:$0xff] %v2499
      %2532 = vst [vmem:[%s177 + $0x28] sm:$0xff] %v2500
      %2533 = vst [vmem:[%s177 + $0x30] sm:$0xff] %v2501
      %2534 = vst [vmem:[%s177 + $0x38] sm:$0xff] %v2502
      %2535 = vst [vmem:[%s177 + $0x40] sm:$0xff] %v2503
      %2536 = vst [vmem:[%s177 + $0x48] sm:$0xff] %v2504
      %2537 = vst [vmem:[%s177 + $0x50] sm:$0xff] %v2505
      %2538 = vst [vmem:[%s177 + $0x58] sm:$0xff] %v2506
      %2539 = vst [vmem:[%s177 + $0x60] sm:$0xff] %v2507
      %2540 = vst [vmem:[%s177 + $0x68] sm:$0xff] %v2508
      %2541 = vst [vmem:[%s177 + $0x70] sm:$0xff] %v2509
      %2542 = vst [vmem:[%s177 + $0x78] sm:$0xff] %v2510
      %2543 = vst [vmem:[%s177 + $0x80] sm:$0xff] %v2511
      %2544 = vst [vmem:[%s177 + $0x88] sm:$0xff] %v2512
      %2545 = vst [vmem:[%s177 + $0x90] sm:$0xff] %v2513
      %2546 = vst [vmem:[%s177 + $0x98] sm:$0xff] %v2514
      %2547 = vst [vmem:[%s177 + $0xa0] sm:$0xff] %v2515
      %2548 = vst [vmem:[%s177 + $0xa8] sm:$0xff] %v2516
      %2549 = vst [vmem:[%s177 + $0xb0] sm:$0xff] %v2517
      %2550 = vst [vmem:[%s177 + $0xb8] sm:$0xff] %v2518
      %2551 = vst [vmem:[%s177 + $0xc0] sm:$0xff] %v2519
      %2552 = vst [vmem:[%s177 + $0xc8] sm:$0xff] %v2520
      %2553 = vst [vmem:[%s177 + $0xd0] sm:$0xff] %v2521
      %2554 = vst [vmem:[%s177 + $0xd8] sm:$0xff] %v2522
      %2555 = vst [vmem:[%s177 + $0xe0] sm:$0xff] %v2523
      %2556 = vst [vmem:[%s177 + $0xe8] sm:$0xff] %v2524
      %2557 = vst [vmem:[%s177 + $0xf0] sm:$0xff] %v2525
      %2558 = vst [vmem:[%s177 + $0xf8] sm:$0xff] %v2526
      %v2559 = vld [vmem:[%s177] sm:$0xff]
      %v2560 = vld [vmem:[%s177 + $0x8] sm:$0xff]
      %v2561 = vld [vmem:[%s177 + $0x10] sm:$0xff]
      %v2562 = vld [vmem:[%s177 + $0x18] sm:$0xff]
      %v2563 = vld [vmem:[%s177 + $0x20] sm:$0xff]
      %v2564 = vld [vmem:[%s177 + $0x28] sm:$0xff]
      %v2565 = vld [vmem:[%s177 + $0x30] sm:$0xff]
      %v2566 = vld [vmem:[%s177 + $0x38] sm:$0xff]
      %v2567 = vld [vmem:[%s177 + $0x40] sm:$0xff]
      %v2568 = vld [vmem:[%s177 + $0x48] sm:$0xff]
      %v2569 = vld [vmem:[%s177 + $0x50] sm:$0xff]
      %v2570 = vld [vmem:[%s177 + $0x58] sm:$0xff]
      %v2571 = vld [vmem:[%s177 + $0x60] sm:$0xff]
      %v2572 = vld [vmem:[%s177 + $0x68] sm:$0xff]
      %v2573 = vld [vmem:[%s177 + $0x70] sm:$0xff]
      %v2574 = vld [vmem:[%s177 + $0x78] sm:$0xff]
      %v2575 = vld [vmem:[%s177 + $0x80] sm:$0xff]
      %v2576 = vld [vmem:[%s177 + $0x88] sm:$0xff]
      %v2577 = vld [vmem:[%s177 + $0x90] sm:$0xff]
      %v2578 = vld [vmem:[%s177 + $0x98] sm:$0xff]
      %v2579 = vld [vmem:[%s177 + $0xa0] sm:$0xff]
      %v2580 = vld [vmem:[%s177 + $0xa8] sm:$0xff]
      %v2581 = vld [vmem:[%s177 + $0xb0] sm:$0xff]
      %v2582 = vld [vmem:[%s177 + $0xb8] sm:$0xff]
      %v2583 = vld [vmem:[%s177 + $0xc0] sm:$0xff]
      %v2584 = vld [vmem:[%s177 + $0xc8] sm:$0xff]
      %v2585 = vld [vmem:[%s177 + $0xd0] sm:$0xff]
      %v2586 = vld [vmem:[%s177 + $0xd8] sm:$0xff]
      %v2587 = vld [vmem:[%s177 + $0xe0] sm:$0xff]
      %v2588 = vld [vmem:[%s177 + $0xe8] sm:$0xff]
      %v2589 = vld [vmem:[%s177 + $0xf0] sm:$0xff]
      %v2590 = vld [vmem:[%s177 + $0xf8] sm:$0xff]
      %v2591 = vadd.f32 %v2559, %v2560
      %v2592 = vadd.f32 %v2591, %v2561
      %v2593 = vadd.f32 %v2592, %v2562
      %v2594 = vadd.f32 %v2593, %v2563
      %v2595 = vadd.f32 %v2594, %v2564
      %v2596 = vadd.f32 %v2595, %v2565
      %v2597 = vadd.f32 %v2596, %v2566
      %v2598 = vadd.f32 %v2597, %v2567
      %v2599 = vadd.f32 %v2598, %v2568
      %v2600 = vadd.f32 %v2599, %v2569
      %v2601 = vadd.f32 %v2600, %v2570
      %v2602 = vadd.f32 %v2601, %v2571
      %v2603 = vadd.f32 %v2602, %v2572
      %v2604 = vadd.f32 %v2603, %v2573
      %v2605 = vadd.f32 %v2604, %v2574
      %v2606 = vadd.f32 %v2605, %v2575
      %v2607 = vadd.f32 %v2606, %v2576
      %v2608 = vadd.f32 %v2607, %v2577
      %v2609 = vadd.f32 %v2608, %v2578
      %v2610 = vadd.f32 %v2609, %v2579
      %v2611 = vadd.f32 %v2610, %v2580
      %v2612 = vadd.f32 %v2611, %v2581
      %v2613 = vadd.f32 %v2612, %v2582
      %v2614 = vadd.f32 %v2613, %v2583
      %v2615 = vadd.f32 %v2614, %v2584
      %v2616 = vadd.f32 %v2615, %v2585
      %v2617 = vadd.f32 %v2616, %v2586
      %v2618 = vadd.f32 %v2617, %v2587
      %v2619 = vadd.f32 %v2618, %v2588
      %v2620 = vadd.f32 %v2619, %v2589
      %v2621 = vadd.f32 %v2620, %v2590
      %v2622 = vrot.slane %v2621, 4
      %v2623 = vadd.f32 %v2621, %v2622
      %v2624 = vrot.slane %v2623, 2
      %v2625 = vadd.f32 %v2623, %v2624
      %v2626 = vrot.slane %v2625, 1
      %v2627 = vadd.f32 %v2625, %v2626
      %2628 = vst [vmem:[%s181] sm:$0x1] %v2627
      %v2629 = vmul.f32 %v2559, %v2559
      %v2630 = vmul.f32 %v2560, %v2560
      %v2631 = vmul.f32 %v2561, %v2561
      %v2632 = vmul.f32 %v2562, %v2562
      %v2633 = vmul.f32 %v2563, %v2563
      %v2634 = vmul.f32 %v2564, %v2564
      %v2635 = vmul.f32 %v2565, %v2565
      %v2636 = vmul.f32 %v2566, %v2566
      %v2637 = vmul.f32 %v2567, %v2567
      %v2638 = vmul.f32 %v2568, %v2568
      %v2639 = vmul.f32 %v2569, %v2569
      %v2640 = vmul.f32 %v2570, %v2570
      %v2641 = vmul.f32 %v2571, %v2571
      %v2642 = vmul.f32 %v2572, %v2572
      %v2643 = vmul.f32 %v2573, %v2573
      %v2644 = vmul.f32 %v2574, %v2574
      %v2645 = vmul.f32 %v2575, %v2575
      %v2646 = vmul.f32 %v2576, %v2576
      %v2647 = vmul.f32 %v2577, %v2577
      %v2648 = vmul.f32 %v2578, %v2578
      %v2649 = vmul.f32 %v2579, %v2579
      %v2650 = vmul.f32 %v2580, %v2580
      %v2651 = vmul.f32 %v2581, %v2581
      %v2652 = vmul.f32 %v2582, %v2582
      %v2653 = vmul.f32 %v2583, %v2583
      %v2654 = vmul.f32 %v2584, %v2584
      %v2655 = vmul.f32 %v2585, %v2585
      %v2656 = vmul.f32 %v2586, %v2586
      %v2657 = vmul.f32 %v2587, %v2587
      %v2658 = vmul.f32 %v2588, %v2588
      %v2659 = vmul.f32 %v2589, %v2589
      %v2660 = vmul.f32 %v2590, %v2590
      %v2661 = vadd.f32 %v2629, %v2630
      %v2662 = vadd.f32 %v2661, %v2631
      %v2663 = vadd.f32 %v2662, %v2632
      %v2664 = vadd.f32 %v2663, %v2633
      %v2665 = vadd.f32 %v2664, %v2634
      %v2666 = vadd.f32 %v2665, %v2635
      %v2667 = vadd.f32 %v2666, %v2636
      %v2668 = vadd.f32 %v2667, %v2637
      %v2669 = vadd.f32 %v2668, %v2638
      %v2670 = vadd.f32 %v2669, %v2639
      %v2671 = vadd.f32 %v2670, %v2640
      %v2672 = vadd.f32 %v2671, %v2641
      %v2673 = vadd.f32 %v2672, %v2642
      %v2674 = vadd.f32 %v2673, %v2643
      %v2675 = vadd.f32 %v2674, %v2644
      %v2676 = vadd.f32 %v2675, %v2645
      %v2677 = vadd.f32 %v2676, %v2646
      %v2678 = vadd.f32 %v2677, %v2647
      %v2679 = vadd.f32 %v2678, %v2648
      %v2680 = vadd.f32 %v2679, %v2649
      %v2681 = vadd.f32 %v2680, %v2650
      %v2682 = vadd.f32 %v2681, %v2651
      %v2683 = vadd.f32 %v2682, %v2652
      %v2684 = vadd.f32 %v2683, %v2653
      %v2685 = vadd.f32 %v2684, %v2654
      %v2686 = vadd.f32 %v2685, %v2655
      %v2687 = vadd.f32 %v2686, %v2656
      %v2688 = vadd.f32 %v2687, %v2657
      %v2689 = vadd.f32 %v2688, %v2658
      %v2690 = vadd.f32 %v2689, %v2659
      %v2691 = vadd.f32 %v2690, %v2660
      %v2692 = vrot.slane %v2691, 4
      %v2693 = vadd.f32 %v2691, %v2692
      %v2694 = vrot.slane %v2693, 2
      %v2695 = vadd.f32 %v2693, %v2694
      %v2696 = vrot.slane %v2695, 1
      %v2697 = vadd.f32 %v2695, %v2696
      %2698 = vst [vmem:[%s181 + $0x1] sm:$0x1] %v2697
      %p2699 = scmp.lt.s32.totalorder %s15, 1
      %s2700 = scalar_select %p2699, %s15, 1
      %s2701 = smul.addr %s2700, 32
      %s2702 = smul.addr %s2701, 8
      %s2703 = scalar_lea.vmem %s2, %s2702
      %p2704 = scmp.lt.s32.totalorder %s15, 1
      %s2705 = scalar_select %p2704, %s15, 1
      %s2706 = smul.addr %s2705, 2
      %s2707 = scalar_lea.vmem %s3, %s2706
      // Predicated region
      $region29: #{basic_block_forward.3} parent=27 // pred_check
        %p2708 = pneg %p80
      $region30: #{basic_block_forward.3} parent=27 // pred_check_branch
        %2710 = sbr.rel (%p2708) target = $region32
      $region31: #{basic_block_forward.3} parent=27 // pred_region
        _
      $region32: #{basic_block_forward.3} parent=27 // pred_fallthru
        _
      // Predicated region
      $region33: #{basic_block_forward.3} parent=27 // pred_check
        %p2711 = pneg %p106
      $region34: #{basic_block_forward.3} parent=27 // pred_check_branch
        %2713 = sbr.rel (%p2711) target = $region36
      $region35: #{basic_block_forward.3} parent=27 // pred_region
        _
      $region36: #{basic_block_forward.3} parent=27 // pred_fallthru
        _
    $region28: #{basic_block_forward.3} parent=5 // pred_fallthru
      _
    %p2714 = scmp.le.s32.totalorder 2, %s10
    // Predicated region
    $region37: #{basic_block_forward.3} parent=5 // pred_check
      %p2715 = pneg %p2714
    $region38: #{basic_block_forward.3} parent=5 // pred_check_branch
      %2717 = sbr.rel (%p2715) target = $region40
    $region39: #{basic_block_forward.3} parent=5 // pred_region
      %s2718 = ssub.s32 %s10, 2
      // Predicated region
      $region41: #{basic_block_forward.3} parent=39 // pred_check
        %p2719 = pneg %p86
      $region42: #{basic_block_forward.3} parent=39 // pred_check_branch
        %2721 = sbr.rel (%p2719) target = $region44
      $region43: #{basic_block_forward.3} parent=39 // pred_region
        %p2722 = scmp.lt.s32.totalorder %s16, 1
        %s2723 = scalar_select %p2722, %s16, 1
        %s2724 = smul.addr %s2723, 32
        %s2725 = smul.addr %s2724, 8
        %s2726 = scalar_lea.vmem %s2, %s2725
      $region44: #{basic_block_forward.3} parent=39 // pred_fallthru
        _
      // Predicated region
      $region45: #{basic_block_forward.3} parent=39 // pred_check
        %p2727 = pneg %p112
      $region46: #{basic_block_forward.3} parent=39 // pred_check_branch
        %2729 = sbr.rel (%p2727) target = $region48
      $region47: #{basic_block_forward.3} parent=39 // pred_region
        %p2730 = scmp.lt.s32.totalorder %s16, 1
        %s2731 = scalar_select %p2730, %s16, 1
        %s2732 = smul.addr %s2731, 2
        %s2733 = scalar_lea.vmem %s3, %s2732
      $region48: #{basic_block_forward.3} parent=39 // pred_fallthru
        _
    $region40: #{basic_block_forward.3} parent=5 // pred_fallthru
      _
  $region6: #{basic_block_forward.3} parent=0 // loop_footer
    %s14 = sadd.s32 1, %s10
  $region7: #{basic_block_forward.3} parent=0 // loop_footer_branch
    %9 = sbr.rel target = $region3
  $region8: #{basic_block_forward.3} parent=0 // loop_exit
    _

// kernel: basic_block_forward.4
$region0: #{basic_block_forward.4}
  #allocation0 [shape = 'u32[]', space=smem, size = 0x4, offset = 0x4, fixed_abs, tag = 'smem constant byte address 0x4 - core index']
  #allocation1 [shape = 'u32[72,128]{1,0:T(1,128)}', space=vmem, size = 0x9000, scoped, tag = 'internal scratch']
  #allocation2 [shape = 'f32[18,18,128]{2,1,0:T(8,128)}', space=vmem, size = 0x36000, scoped, tag = 'scratch operand']
  %s0 = inlined_call_operand.vmem [shape: f32[2,256,128], index: 0, kind: input, shape index: {}]
  %s1 = inlined_call_operand.vmem [shape: f32[1,128], index: 1, kind: input, shape index: {}]
  %s2 = inlined_call_operand.vmem [shape: f32[1,128], index: 2, kind: input, shape index: {}]
  %s3 = inlined_call_operand.vmem [shape: f32[9,128,128], index: 3, kind: input, shape index: {}]
  %s4 = inlined_call_operand.vmem [shape: f32[2,256,128], index: 4, kind: output, shape index: {0}]
  %s5 = inlined_call_operand.vmem [shape: f32[2,2,128], index: 5, kind: output, shape index: {1}]
  %6 = xla_tuple %s4, %s5
  %s7 = sld [smem:[#allocation0]]
  $region57: #{basic_block_forward.4} parent=0
    _
  %s9 = ssub.s32 1, %s7
  %s10 = scalar_select 0, %s9, %s7
  loop: start=0, step=1, limit=4
  $region2: #{basic_block_forward.4} parent=0 // loop_pre_header
    _
  $region3: #{basic_block_forward.4} parent=0 // loop_header
    %s12 = sphi 0, %s16
    %p13 = scmp.ge.s32.totalorder %s12, 4
    %s22 = sphi 0, %s24
    %s25 = sphi 0, %s22
    %s26 = sphi 0, %s25
    %s42 = sphi 0, %s26
    %s46 = sphi 0, %s46
    %s48 = sphi 0, %s46
    %s49 = sphi 0, %s48
    %s63 = sphi 0, %s49
    %s67 = sphi 0, %s67
    %s69 = sphi 0, %s67
    %s70 = sphi 0, %s69
    %s84 = sphi 0, %s70
    %s88 = sphi 0, %s88
    %s90 = sphi 0, %s88
    %s91 = sphi 0, %s90
    %s105 = sphi 0, %s91
    %s111 = sphi 0, %s113
    %s114 = sphi 0, %s111
    %s115 = sphi 0, %s114
    %s131 = sphi 0, %s115
    %s137 = sphi 0, %s139
    %s140 = sphi 0, %s137
    %s141 = sphi 0, %s140
    %s157 = sphi 0, %s141
  $region4: #{basic_block_forward.4} parent=0 // loop_header_branch
    %15 = sbr.rel (%p13) target = $region8
  $region5: #{basic_block_forward.4} parent=0 // loop_body
    %s17 = ssub.s32 %s12, 1
    %s18 = ssub.s32 %s12, 2
    %s19 = sadd.s32 %s12, 1
    %s20 = ssub.s32 %s12, %s19
    %p21 = scmp.eq.s32.totalorder %s20, 0
    %s23 = sadd.s32 %s22, 1
    %s24 = scalar_select %p21, %s22, %s23
    %p27 = pneg %p21
    %p28 = scmp.eq.s32.totalorder %s12, 1
    %p29 = por %p27, %p28
    %p30 = scmp.ne.s32.totalorder %s22, %s25
    %p31 = scmp.eq.s32.totalorder %s12, 0
    %p32 = por %p30, %p31
    %p33 = scmp.ne.s32.totalorder %s22, %s25
    %p34 = scmp.eq.s32.totalorder %s17, 1
    %p35 = por %p33, %p34
    %p36 = scmp.ne.s32.totalorder %s25, %s26
    %p37 = scmp.eq.s32.totalorder %s17, 0
    %p38 = por %p36, %p37
    %p39 = scmp.ne.s32.totalorder %s25, %s26
    %p40 = scmp.eq.s32.totalorder %s18, 1
    %p41 = por %p39, %p40
    %p43 = scmp.ne.s32.totalorder %s26, %s42
    %p44 = scmp.eq.s32.totalorder %s18, 0
    %p45 = por %p43, %p44
    %s47 = sadd.s32 %s46, 1
    %p50 = scmp.eq.s32.totalorder %s12, 1
    %p51 = scmp.ne.s32.totalorder %s46, %s48
    %p52 = scmp.eq.s32.totalorder %s12, 0
    %p53 = por %p51, %p52
    %p54 = scmp.ne.s32.totalorder %s46, %s48
    %p55 = scmp.eq.s32.totalorder %s17, 1
    %p56 = por %p54, %p55
    %p57 = scmp.ne.s32.totalorder %s48, %s49
    %p58 = scmp.eq.s32.totalorder %s17, 0
    %p59 = por %p57, %p58
    %p60 = scmp.ne.s32.totalorder %s48, %s49
    %p61 = scmp.eq.s32.totalorder %s18, 1
    %p62 = por %p60, %p61
    %p64 = scmp.ne.s32.totalorder %s49, %s63
    %p65 = scmp.eq.s32.totalorder %s18, 0
    %p66 = por %p64, %p65
    %s68 = sadd.s32 %s67, 1
    %p71 = scmp.eq.s32.totalorder %s12, 1
    %p72 = scmp.ne.s32.totalorder %s67, %s69
    %p73 = scmp.eq.s32.totalorder %s12, 0
    %p74 = por %p72, %p73
    %p75 = scmp.ne.s32.totalorder %s67, %s69
    %p76 = scmp.eq.s32.totalorder %s17, 1
    %p77 = por %p75, %p76
    %p78 = scmp.ne.s32.totalorder %s69, %s70
    %p79 = scmp.eq.s32.totalorder %s17, 0
    %p80 = por %p78, %p79
    %p81 = scmp.ne.s32.totalorder %s69, %s70
    %p82 = scmp.eq.s32.totalorder %s18, 1
    %p83 = por %p81, %p82
    %p85 = scmp.ne.s32.totalorder %s70, %s84
    %p86 = scmp.eq.s32.totalorder %s18, 0
    %p87 = por %p85, %p86
    %s89 = sadd.s32 %s88, 1
    %p92 = scmp.eq.s32.totalorder %s12, 1
    %p93 = scmp.ne.s32.totalorder %s88, %s90
    %p94 = scmp.eq.s32.totalorder %s12, 0
    %p95 = por %p93, %p94
    %p96 = scmp.ne.s32.totalorder %s88, %s90
    %p97 = scmp.eq.s32.totalorder %s17, 1
    %p98 = por %p96, %p97
    %p99 = scmp.ne.s32.totalorder %s90, %s91
    %p100 = scmp.eq.s32.totalorder %s17, 0
    %p101 = por %p99, %p100
    %p102 = scmp.ne.s32.totalorder %s90, %s91
    %p103 = scmp.eq.s32.totalorder %s18, 1
    %p104 = por %p102, %p103
    %p106 = scmp.ne.s32.totalorder %s91, %s105
    %p107 = scmp.eq.s32.totalorder %s18, 0
    %p108 = por %p106, %p107
    %s109 = ssub.s32 %s12, %s19
    %p110 = scmp.eq.s32.totalorder %s109, 0
    %s112 = sadd.s32 %s111, 1
    %s113 = scalar_select %p110, %s111, %s112
    %p116 = pneg %p110
    %p117 = scmp.eq.s32.totalorder %s12, 1
    %p118 = por %p116, %p117
    %p119 = scmp.ne.s32.totalorder %s111, %s114
    %p120 = scmp.eq.s32.totalorder %s12, 0
    %p121 = por %p119, %p120
    %p122 = scmp.ne.s32.totalorder %s111, %s114
    %p123 = scmp.eq.s32.totalorder %s17, 1
    %p124 = por %p122, %p123
    %p125 = scmp.ne.s32.totalorder %s114, %s115
    %p126 = scmp.eq.s32.totalorder %s17, 0
    %p127 = por %p125, %p126
    %p128 = scmp.ne.s32.totalorder %s114, %s115
    %p129 = scmp.eq.s32.totalorder %s18, 1
    %p130 = por %p128, %p129
    %p132 = scmp.ne.s32.totalorder %s115, %s131
    %p133 = scmp.eq.s32.totalorder %s18, 0
    %p134 = por %p132, %p133
    %s135 = ssub.s32 %s12, %s19
    %p136 = scmp.eq.s32.totalorder %s135, 0
    %s138 = sadd.s32 %s137, 1
    %s139 = scalar_select %p136, %s137, %s138
    %p142 = pneg %p136
    %p143 = scmp.eq.s32.totalorder %s12, 1
    %p144 = por %p142, %p143
    %p145 = scmp.ne.s32.totalorder %s137, %s140
    %p146 = scmp.eq.s32.totalorder %s12, 0
    %p147 = por %p145, %p146
    %p148 = scmp.ne.s32.totalorder %s137, %s140
    %p149 = scmp.eq.s32.totalorder %s17, 1
    %p150 = por %p148, %p149
    %p151 = scmp.ne.s32.totalorder %s140, %s141
    %p152 = scmp.eq.s32.totalorder %s17, 0
    %p153 = por %p151, %p152
    %p154 = scmp.ne.s32.totalorder %s140, %s141
    %p155 = scmp.eq.s32.totalorder %s18, 1
    %p156 = por %p154, %p155
    %p158 = scmp.ne.s32.totalorder %s141, %s157
    %p159 = scmp.eq.s32.totalorder %s18, 0
    %p160 = por %p158, %p159
    %p161 = scmp.le.s32.totalorder 1, %s12
    %p162 = scmp.lt.s32.totalorder %s12, 3
    %p163 = pnand %p161, %p162
    %p164 = pneg %p163
    // Predicated region
    $region9: #{basic_block_forward.4} parent=5 // pred_check
      _
    $region10: #{basic_block_forward.4} parent=5 // pred_check_branch
      %166 = sbr.rel (%p163) target = $region12
    $region11: #{basic_block_forward.4} parent=5 // pred_region
      %s167 = ssub.s32 %s12, 1
      // Predicated region
      $region13: #{basic_block_forward.4} parent=11 // pred_check
        %p168 = pneg %p59
      $region14: #{basic_block_forward.4} parent=11 // pred_check_branch
        %170 = sbr.rel (%p168) target = $region16
      $region15: #{basic_block_forward.4} parent=11 // pred_region
        _
      $region16: #{basic_block_forward.4} parent=11 // pred_fallthru
        _
      // Predicated region
      $region17: #{basic_block_forward.4} parent=11 // pred_check
        %p171 = pneg %p80
      $region18: #{basic_block_forward.4} parent=11 // pred_check_branch
        %173 = sbr.rel (%p171) target = $region20
      $region19: #{basic_block_forward.4} parent=11 // pred_region
        _
      $region20: #{basic_block_forward.4} parent=11 // pred_fallthru
        _
      // Predicated region
      $region21: #{basic_block_forward.4} parent=11 // pred_check
        %p174 = pneg %p101
      $region22: #{basic_block_forward.4} parent=11 // pred_check_branch
        %176 = sbr.rel (%p174) target = $region24
      $region23: #{basic_block_forward.4} parent=11 // pred_region
        _
      $region24: #{basic_block_forward.4} parent=11 // pred_fallthru
        _
    $region12: #{basic_block_forward.4} parent=5 // pred_fallthru
      _
    %p177 = scmp.lt.s32.totalorder %s12, 2
    // Predicated region
    $region25: #{basic_block_forward.4} parent=5 // pred_check
      %p178 = pneg %p177
    $region26: #{basic_block_forward.4} parent=5 // pred_check_branch
      %180 = sbr.rel (%p178) target = $region28
    $region27: #{basic_block_forward.4} parent=5 // pred_region
      // Predicated region
      $region29: #{basic_block_forward.4} parent=27 // pred_check
        %p181 = pneg %p32
      $region30: #{basic_block_forward.4} parent=27 // pred_check_branch
        %183 = sbr.rel (%p181) target = $region32
      $region31: #{basic_block_forward.4} parent=27 // pred_region
        %p184 = scmp.lt.s32.totalorder %s12, 1
        %s185 = scalar_select %p184, %s12, 1
        %s186 = smul.addr %s185, 32
        %s187 = smul.addr %s186, 8
        %s188 = scalar_lea.vmem %s0, %s187
      $region32: #{basic_block_forward.4} parent=27 // pred_fallthru
        _
    $region28: #{basic_block_forward.4} parent=5 // pred_fallthru
      _
    %p189 = scmp.le.s32.totalorder 1, %s12
    %p190 = scmp.lt.s32.totalorder %s12, 3
    %p191 = pnand %p189, %p190
    %p192 = pneg %p191
    // Predicated region
    $region33: #{basic_block_forward.4} parent=5 // pred_check
      _
    $region34: #{basic_block_forward.4} parent=5 // pred_check_branch
      %194 = sbr.rel (%p191) target = $region36
    $region35: #{basic_block_forward.4} parent=5 // pred_region
      %s195 = ssub.s32 %s12, 1
      %p196 = scmp.lt.s32.totalorder %s17, 1
      %s197 = scalar_select %p196, %s17, 1
      %s198 = smul.addr %s197, 32
      %s199 = smul.addr %s198, 8
      %s200 = scalar_lea.vmem %s0, %s199
      %p201 = pneg %p38
      %p202 = pneg %p35
      %p203 = pneg %p59
      %p204 = pneg %p56
      %p205 = pneg %p80
      %p206 = pneg %p77
      %p207 = pneg %p101
      %p208 = pneg %p98
      %p209 = pneg %p127
      %p210 = pneg %p124
      %p211 = scmp.lt.s32.totalorder %s17, 1
      %s212 = scalar_select %p211, %s17, 1
      %s213 = smul.addr %s212, 32
      %s214 = smul.addr %s213, 8
      %s215 = scalar_lea.vmem %s4, %s214
      %p216 = pneg %p153
      %p217 = pneg %p150
      %p218 = scmp.lt.s32.totalorder %s17, 1
      %s219 = scalar_select %p218, %s17, 1
      %s220 = smul.addr %s219, 2
      %s221 = scalar_lea.vmem %s5, %s220
      %p222 = scmp.lt.s32.totalorder %s17, 1
      %s223 = scalar_select %p222, %s17, 1
      %s224 = smul.addr %s223, 32
      %s225 = smul.addr %s224, 8
      %s226 = scalar_lea.vmem %s0, %s225
      %p227 = scmp.lt.s32.totalorder %s17, 1
      %s228 = scalar_select %p227, %s17, 1
      %s229 = smul.addr %s228, 32
      %s230 = smul.addr %s229, 8
      %s231 = scalar_lea.vmem %s4, %s230
      %p232 = scmp.lt.s32.totalorder %s17, 1
      %s233 = scalar_select %p232, %s17, 1
      %s234 = smul.addr %s233, 2
      %s235 = scalar_lea.vmem %s5, %s234
      %v236 = vld [vmem:[%s226] sm:$0xff]
      %v237 = vld [vmem:[%s226 + $0x8] sm:$0xff]
      %v238 = vld [vmem:[%s226 + $0x10] sm:$0xff]
      %v239 = vld [vmem:[%s226 + $0x18] sm:$0xff]
      %v240 = vld [vmem:[%s226 + $0x20] sm:$0xff]
      %v241 = vld [vmem:[%s226 + $0x28] sm:$0xff]
      %v242 = vld [vmem:[%s226 + $0x30] sm:$0xff]
      %v243 = vld [vmem:[%s226 + $0x38] sm:$0xff]
      %v244 = vld [vmem:[%s226 + $0x40] sm:$0xff]
      %v245 = vld [vmem:[%s226 + $0x48] sm:$0xff]
      %v246 = vld [vmem:[%s226 + $0x50] sm:$0xff]
      %v247 = vld [vmem:[%s226 + $0x58] sm:$0xff]
      %v248 = vld [vmem:[%s226 + $0x60] sm:$0xff]
      %v249 = vld [vmem:[%s226 + $0x68] sm:$0xff]
      %v250 = vld [vmem:[%s226 + $0x70] sm:$0xff]
      %v251 = vld [vmem:[%s226 + $0x78] sm:$0xff]
      %v252 = vld [vmem:[%s226 + $0x80] sm:$0xff]
      %v253 = vld [vmem:[%s226 + $0x88] sm:$0xff]
      %v254 = vld [vmem:[%s226 + $0x90] sm:$0xff]
      %v255 = vld [vmem:[%s226 + $0x98] sm:$0xff]
      %v256 = vld [vmem:[%s226 + $0xa0] sm:$0xff]
      %v257 = vld [vmem:[%s226 + $0xa8] sm:$0xff]
      %v258 = vld [vmem:[%s226 + $0xb0] sm:$0xff]
      %v259 = vld [vmem:[%s226 + $0xb8] sm:$0xff]
      %v260 = vld [vmem:[%s226 + $0xc0] sm:$0xff]
      %v261 = vld [vmem:[%s226 + $0xc8] sm:$0xff]
      %v262 = vld [vmem:[%s226 + $0xd0] sm:$0xff]
      %v263 = vld [vmem:[%s226 + $0xd8] sm:$0xff]
      %v264 = vld [vmem:[%s226 + $0xe0] sm:$0xff]
      %v265 = vld [vmem:[%s226 + $0xe8] sm:$0xff]
      %v266 = vld [vmem:[%s226 + $0xf0] sm:$0xff]
      %v267 = vld [vmem:[%s226 + $0xf8] sm:$0xff]
      %v268 = vld [vmem:[%s1] sm:$0x1]
      %v270 = vperm.slane %v268, 0
      %v272 = vmul.f32 %v236, %v270
      %v273 = vmul.f32 %v237, %v270
      %v274 = vmul.f32 %v238, %v270
      %v275 = vmul.f32 %v239, %v270
      %v276 = vmul.f32 %v240, %v270
      %v277 = vmul.f32 %v241, %v270
      %v278 = vmul.f32 %v242, %v270
      %v279 = vmul.f32 %v243, %v270
      %v280 = vmul.f32 %v244, %v270
      %v281 = vmul.f32 %v245, %v270
      %v282 = vmul.f32 %v246, %v270
      %v283 = vmul.f32 %v247, %v270
      %v284 = vmul.f32 %v248, %v270
      %v285 = vmul.f32 %v249, %v270
      %v286 = vmul.f32 %v250, %v270
      %v287 = vmul.f32 %v251, %v270
      %v288 = vmul.f32 %v252, %v270
      %v289 = vmul.f32 %v253, %v270
      %v290 = vmul.f32 %v254, %v270
      %v291 = vmul.f32 %v255, %v270
      %v292 = vmul.f32 %v256, %v270
      %v293 = vmul.f32 %v257, %v270
      %v294 = vmul.f32 %v258, %v270
      %v295 = vmul.f32 %v259, %v270
      %v296 = vmul.f32 %v260, %v270
      %v297 = vmul.f32 %v261, %v270
      %v298 = vmul.f32 %v262, %v270
      %v299 = vmul.f32 %v263, %v270
      %v300 = vmul.f32 %v264, %v270
      %v301 = vmul.f32 %v265, %v270
      %v302 = vmul.f32 %v266, %v270
      %v303 = vmul.f32 %v267, %v270
      %v304 = vld [vmem:[%s2] sm:$0x1]
      %v306 = vperm.slane %v304, 0
      %v308 = vadd.f32 %v272, %v306
      %v309 = vadd.f32 %v273, %v306
      %v310 = vadd.f32 %v274, %v306
      %v311 = vadd.f32 %v275, %v306
      %v312 = vadd.f32 %v276, %v306
      %v313 = vadd.f32 %v277, %v306
      %v314 = vadd.f32 %v278, %v306
      %v315 = vadd.f32 %v279, %v306
      %v316 = vadd.f32 %v280, %v306
      %v317 = vadd.f32 %v281, %v306
      %v318 = vadd.f32 %v282, %v306
      %v319 = vadd.f32 %v283, %v306
      %v320 = vadd.f32 %v284, %v306
      %v321 = vadd.f32 %v285, %v306
      %v322 = vadd.f32 %v286, %v306
      %v323 = vadd.f32 %v287, %v306
      %v324 = vadd.f32 %v288, %v306
      %v325 = vadd.f32 %v289, %v306
      %v326 = vadd.f32 %v290, %v306
      %v327 = vadd.f32 %v291, %v306
      %v328 = vadd.f32 %v292, %v306
      %v329 = vadd.f32 %v293, %v306
      %v330 = vadd.f32 %v294, %v306
      %v331 = vadd.f32 %v295, %v306
      %v332 = vadd.f32 %v296, %v306
      %v333 = vadd.f32 %v297, %v306
      %v334 = vadd.f32 %v298, %v306
      %v335 = vadd.f32 %v299, %v306
      %v336 = vadd.f32 %v300, %v306
      %v337 = vadd.f32 %v301, %v306
      %v338 = vadd.f32 %v302, %v306
      %v339 = vadd.f32 %v303, %v306
      %v340 = vmax.f32 %v308, 0.0
      %v341 = vmax.f32 %v309, 0.0
      %v342 = vmax.f32 %v310, 0.0
      %v343 = vmax.f32 %v311, 0.0
      %v344 = vmax.f32 %v312, 0.0
      %v345 = vmax.f32 %v313, 0.0
      %v346 = vmax.f32 %v314, 0.0
      %v347 = vmax.f32 %v315, 0.0
      %v348 = vmax.f32 %v316, 0.0
      %v349 = vmax.f32 %v317, 0.0
      %v350 = vmax.f32 %v318, 0.0
      %v351 = vmax.f32 %v319, 0.0
      %v352 = vmax.f32 %v320, 0.0
      %v353 = vmax.f32 %v321, 0.0
      %v354 = vmax.f32 %v322, 0.0
      %v355 = vmax.f32 %v323, 0.0
      %v356 = vmax.f32 %v324, 0.0
      %v357 = vmax.f32 %v325, 0.0
      %v358 = vmax.f32 %v326, 0.0
      %v359 = vmax.f32 %v327, 0.0
      %v360 = vmax.f32 %v328, 0.0
      %v361 = vmax.f32 %v329, 0.0
      %v362 = vmax.f32 %v330, 0.0
      %v363 = vmax.f32 %v331, 0.0
      %v364 = vmax.f32 %v332, 0.0
      %v365 = vmax.f32 %v333, 0.0
      %v366 = vmax.f32 %v334, 0.0
      %v367 = vmax.f32 %v335, 0.0
      %v368 = vmax.f32 %v336, 0.0
      %v369 = vmax.f32 %v337, 0.0
      %v370 = vmax.f32 %v338, 0.0
      %v371 = vmax.f32 %v339, 0.0
      %372 = vst [vmem:[#allocation2] sm:$0xff] 0.0
      %373 = vst [vmem:[#allocation2 + $0x8] sm:$0xff] 0.0
      %374 = vst [vmem:[#allocation2 + $0x10] sm:$0x3] 0.0
      %375 = vst [vmem:[#allocation2 + $0x18] sm:$0xff] 0.0
      %376 = vst [vmem:[#allocation2 + $0x20] sm:$0xff] 0.0
      %377 = vst [vmem:[#allocation2 + $0x28] sm:$0x3] 0.0
      %378 = vst [vmem:[#allocation2 + $0x30] sm:$0xff] 0.0
      %379 = vst [vmem:[#allocation2 + $0x38] sm:$0xff] 0.0
      %380 = vst [vmem:[#allocation2 + $0x40] sm:$0x3] 0.0
      %381 = vst [vmem:[#allocation2 + $0x48] sm:$0xff] 0.0
      %382 = vst [vmem:[#allocation2 + $0x50] sm:$0xff] 0.0
      %383 = vst [vmem:[#allocation2 + $0x58] sm:$0x3] 0.0
      %384 = vst [vmem:[#allocation2 + $0x60] sm:$0xff] 0.0
      %385 = vst [vmem:[#allocation2 + $0x68] sm:$0xff] 0.0
      %386 = vst [vmem:[#allocation2 + $0x70] sm:$0x3] 0.0
      %387 = vst [vmem:[#allocation2 + $0x78] sm:$0xff] 0.0
      %388 = vst [vmem:[#allocation2 + $0x80] sm:$0xff] 0.0
      %389 = vst [vmem:[#allocation2 + $0x88] sm:$0x3] 0.0
      %390 = vst [vmem:[#allocation2 + $0x90] sm:$0xff] 0.0
      %391 = vst [vmem:[#allocation2 + $0x98] sm:$0xff] 0.0
      %392 = vst [vmem:[#allocation2 + $0xa0] sm:$0x3] 0.0
      %393 = vst [vmem:[#allocation2 + $0xa8] sm:$0xff] 0.0
      %394 = vst [vmem:[#allocation2 + $0xb0] sm:$0xff] 0.0
      %395 = vst [vmem:[#allocation2 + $0xb8] sm:$0x3] 0.0
      %396 = vst [vmem:[#allocation2 + $0xc0] sm:$0xff] 0.0
      %397 = vst [vmem:[#allocation2 + $0xc8] sm:$0xff] 0.0
      %398 = vst [vmem:[#allocation2 + $0xd0] sm:$0x3] 0.0
      %399 = vst [vmem:[#allocation2 + $0xd8] sm:$0xff] 0.0
      %400 = vst [vmem:[#allocation2 + $0xe0] sm:$0xff] 0.0
      %401 = vst [vmem:[#allocation2 + $0xe8] sm:$0x3] 0.0
      %402 = vst [vmem:[#allocation2 + $0xf0] sm:$0xff] 0.0
      %403 = vst [vmem:[#allocation2 + $0xf8] sm:$0xff] 0.0
      %404 = vst [vmem:[#allocation2 + $0x100] sm:$0x3] 0.0
      %405 = vst [vmem:[#allocation2 + $0x108] sm:$0xff] 0.0
      %406 = vst [vmem:[#allocation2 + $0x110] sm:$0xff] 0.0
      %407 = vst [vmem:[#allocation2 + $0x118] sm:$0x3] 0.0
      %408 = vst [vmem:[#allocation2 + $0x120] sm:$0xff] 0.0
      %409 = vst [vmem:[#allocation2 + $0x128] sm:$0xff] 0.0
      %410 = vst [vmem:[#allocation2 + $0x130] sm:$0x3] 0.0
      %411 = vst [vmem:[#allocation2 + $0x138] sm:$0xff] 0.0
      %412 = vst [vmem:[#allocation2 + $0x140] sm:$0xff] 0.0
      %413 = vst [vmem:[#allocation2 + $0x148] sm:$0x3] 0.0
      %414 = vst [vmem:[#allocation2 + $0x150] sm:$0xff] 0.0
      %415 = vst [vmem:[#allocation2 + $0x158] sm:$0xff] 0.0
      %416 = vst [vmem:[#allocation2 + $0x160] sm:$0x3] 0.0
      %417 = vst [vmem:[#allocation2 + $0x168] sm:$0xff] 0.0
      %418 = vst [vmem:[#allocation2 + $0x170] sm:$0xff] 0.0
      %419 = vst [vmem:[#allocation2 + $0x178] sm:$0x3] 0.0
      %420 = vst [vmem:[#allocation2 + $0x180] sm:$0xff] 0.0
      %421 = vst [vmem:[#allocation2 + $0x188] sm:$0xff] 0.0
      %422 = vst [vmem:[#allocation2 + $0x190] sm:$0x3] 0.0
      %423 = vst [vmem:[#allocation2 + $0x198] sm:$0xff] 0.0
      %424 = vst [vmem:[#allocation2 + $0x1a0] sm:$0xff] 0.0
      %425 = vst [vmem:[#allocation2 + $0x1a8] sm:$0x3] 0.0
      %s426 = scalar_lea.vmem [#allocation2], 24
      %427 = vst [vmem:[%s426 + $0x1] sm:$0xff] %v340
      %428 = vst [vmem:[%s426 + $0x9] sm:$0xff] %v341
      %429 = vst [vmem:[%s426 + $0x19] sm:$0xff] %v342
      %430 = vst [vmem:[%s426 + $0x21] sm:$0xff] %v343
      %431 = vst [vmem:[%s426 + $0x31] sm:$0xff] %v344
      %432 = vst [vmem:[%s426 + $0x39] sm:$0xff] %v345
      %433 = vst [vmem:[%s426 + $0x49] sm:$0xff] %v346
      %434 = vst [vmem:[%s426 + $0x51] sm:$0xff] %v347
      %435 = vst [vmem:[%s426 + $0x61] sm:$0xff] %v348
      %436 = vst [vmem:[%s426 + $0x69] sm:$0xff] %v349
      %437 = vst [vmem:[%s426 + $0x79] sm:$0xff] %v350
      %438 = vst [vmem:[%s426 + $0x81] sm:$0xff] %v351
      %439 = vst [vmem:[%s426 + $0x91] sm:$0xff] %v352
      %440 = vst [vmem:[%s426 + $0x99] sm:$0xff] %v353
      %441 = vst [vmem:[%s426 + $0xa9] sm:$0xff] %v354
      %442 = vst [vmem:[%s426 + $0xb1] sm:$0xff] %v355
      %443 = vst [vmem:[%s426 + $0xc1] sm:$0xff] %v356
      %444 = vst [vmem:[%s426 + $0xc9] sm:$0xff] %v357
      %445 = vst [vmem:[%s426 + $0xd9] sm:$0xff] %v358
      %446 = vst [vmem:[%s426 + $0xe1] sm:$0xff] %v359
      %447 = vst [vmem:[%s426 + $0xf1] sm:$0xff] %v360
      %448 = vst [vmem:[%s426 + $0xf9] sm:$0xff] %v361
      %449 = vst [vmem:[%s426 + $0x109] sm:$0xff] %v362
      %450 = vst [vmem:[%s426 + $0x111] sm:$0xff] %v363
      %451 = vst [vmem:[%s426 + $0x121] sm:$0xff] %v364
      %452 = vst [vmem:[%s426 + $0x129] sm:$0xff] %v365
      %453 = vst [vmem:[%s426 + $0x139] sm:$0xff] %v366
      %454 = vst [vmem:[%s426 + $0x141] sm:$0xff] %v367
      %455 = vst [vmem:[%s426 + $0x151] sm:$0xff] %v368
      %456 = vst [vmem:[%s426 + $0x159] sm:$0xff] %v369
      %457 = vst [vmem:[%s426 + $0x169] sm:$0xff] %v370
      %458 = vst [vmem:[%s426 + $0x171] sm:$0xff] %v371
      %v459 = vld [vmem:[#allocation2] sm:$0xff]
      %v460 = vld [vmem:[#allocation2 + $0x8] sm:$0xff]
      %v461 = vld [vmem:[#allocation2 + $0x18] sm:$0xff]
      %v462 = vld [vmem:[#allocation2 + $0x20] sm:$0xff]
      %v463 = vld [vmem:[#allocation2 + $0x30] sm:$0xff]
      %v464 = vld [vmem:[#allocation2 + $0x38] sm:$0xff]
      %v465 = vld [vmem:[#allocation2 + $0x48] sm:$0xff]
      %v466 = vld [vmem:[#allocation2 + $0x50] sm:$0xff]
      %v467 = vld [vmem:[#allocation2 + $0x60] sm:$0xff]
      %v468 = vld [vmem:[#allocation2 + $0x68] sm:$0xff]
      %v469 = vld [vmem:[#allocation2 + $0x78] sm:$0xff]
      %v470 = vld [vmem:[#allocation2 + $0x80] sm:$0xff]
      %v471 = vld [vmem:[#allocation2 + $0x90] sm:$0xff]
      %v472 = vld [vmem:[#allocation2 + $0x98] sm:$0xff]
      %v473 = vld [vmem:[#allocation2 + $0xa8] sm:$0xff]
      %v474 = vld [vmem:[#allocation2 + $0xb0] sm:$0xff]
      %v475 = vld [vmem:[#allocation2 + $0xc0] sm:$0xff]
      %v476 = vld [vmem:[#allocation2 + $0xc8] sm:$0xff]
      %v477 = vld [vmem:[#allocation2 + $0xd8] sm:$0xff]
      %v478 = vld [vmem:[#allocation2 + $0xe0] sm:$0xff]
      %v479 = vld [vmem:[#allocation2 + $0xf0] sm:$0xff]
      %v480 = vld [vmem:[#allocation2 + $0xf8] sm:$0xff]
      %v481 = vld [vmem:[#allocation2 + $0x108] sm:$0xff]
      %v482 = vld [vmem:[#allocation2 + $0x110] sm:$0xff]
      %v483 = vld [vmem:[#allocation2 + $0x120] sm:$0xff]
      %v484 = vld [vmem:[#allocation2 + $0x128] sm:$0xff]
      %v485 = vld [vmem:[#allocation2 + $0x138] sm:$0xff]
      %v486 = vld [vmem:[#allocation2 + $0x140] sm:$0xff]
      %v487 = vld [vmem:[#allocation2 + $0x150] sm:$0xff]
      %v488 = vld [vmem:[#allocation2 + $0x158] sm:$0xff]
      %v489 = vld [vmem:[#allocation2 + $0x168] sm:$0xff]
      %v490 = vld [vmem:[#allocation2 + $0x170] sm:$0xff]
      %v491 = vld [vmem:[%s3] sm:$0xff]
      %v492 = vld [vmem:[%s3 + $0x8] sm:$0xff]
      %v493 = vld [vmem:[%s3 + $0x10] sm:$0xff]
      %v494 = vld [vmem:[%s3 + $0x18] sm:$0xff]
      %v495 = vld [vmem:[%s3 + $0x20] sm:$0xff]
      %v496 = vld [vmem:[%s3 + $0x28] sm:$0xff]
      %v497 = vld [vmem:[%s3 + $0x30] sm:$0xff]
      %v498 = vld [vmem:[%s3 + $0x38] sm:$0xff]
      %v499 = vld [vmem:[%s3 + $0x40] sm:$0xff]
      %v500 = vld [vmem:[%s3 + $0x48] sm:$0xff]
      %v501 = vld [vmem:[%s3 + $0x50] sm:$0xff]
      %v502 = vld [vmem:[%s3 + $0x58] sm:$0xff]
      %v503 = vld [vmem:[%s3 + $0x60] sm:$0xff]
      %v504 = vld [vmem:[%s3 + $0x68] sm:$0xff]
      %v505 = vld [vmem:[%s3 + $0x70] sm:$0xff]
      %v506 = vld [vmem:[%s3 + $0x78] sm:$0xff]
      %507 = vmatpush.msra.mxu0 %v506
      %508 = vmatpush.msra.mxu0 %v505
      %509 = vmatpush.msra.mxu0 %v504
      %510 = vmatpush.msra.mxu0 %v503
      %511 = vmatpush.msra.mxu0 %v502
      %512 = vmatpush.msra.mxu0 %v501
      %513 = vmatpush.msra.mxu0 %v500
      %514 = vmatpush.msra.mxu0 %v499
      %515 = vmatpush.msra.mxu0 %v498
      %516 = vmatpush.msra.mxu0 %v497
      %517 = vmatpush.msra.mxu0 %v496
      %518 = vmatpush.msra.mxu0 %v495
      %519 = vmatpush.msra.mxu0 %v494
      %520 = vmatpush.msra.mxu0 %v493
      %521 = vmatpush.msra.mxu0 %v492
      %522 = vmatpush.msra.mxu0 %v491
      %523 = vmatmul.f32.gmra.mxu0 %v459
      %v524 = vpop.f32.mrf.mxu0
      %v525 = vadd.f32 0.0, %v524
      %526 = vmatmul.f32.gmra.mxu0 %v460
      %v527 = vpop.f32.mrf.mxu0
      %v528 = vadd.f32 0.0, %v527
      %529 = vmatmul.f32.gmra.mxu0 %v461
      %v530 = vpop.f32.mrf.mxu0
      %v531 = vadd.f32 0.0, %v530
      %532 = vmatmul.f32.gmra.mxu0 %v462
      %v533 = vpop.f32.mrf.mxu0
      %v534 = vadd.f32 0.0, %v533
      %535 = vmatmul.f32.gmra.mxu0 %v463
      %v536 = vpop.f32.mrf.mxu0
      %v537 = vadd.f32 0.0, %v536
      %538 = vmatmul.f32.gmra.mxu0 %v464
      %v539 = vpop.f32.mrf.mxu0
      %v540 = vadd.f32 0.0, %v539
      %541 = vmatmul.f32.gmra.mxu0 %v465
      %v542 = vpop.f32.mrf.mxu0
      %v543 = vadd.f32 0.0, %v542
      %544 = vmatmul.f32.gmra.mxu0 %v466
      %v545 = vpop.f32.mrf.mxu0
      %v546 = vadd.f32 0.0, %v545
      %547 = vmatmul.f32.gmra.mxu0 %v467
      %v548 = vpop.f32.mrf.mxu0
      %v549 = vadd.f32 0.0, %v548
      %550 = vmatmul.f32.gmra.mxu0 %v468
      %v551 = vpop.f32.mrf.mxu0
      %v552 = vadd.f32 0.0, %v551
      %553 = vmatmul.f32.gmra.mxu0 %v469
      %v554 = vpop.f32.mrf.mxu0
      %v555 = vadd.f32 0.0, %v554
      %556 = vmatmul.f32.gmra.mxu0 %v470
      %v557 = vpop.f32.mrf.mxu0
      %v558 = vadd.f32 0.0, %v557
      %559 = vmatmul.f32.gmra.mxu0 %v471
      %v560 = vpop.f32.mrf.mxu0
      %v561 = vadd.f32 0.0, %v560
      %562 = vmatmul.f32.gmra.mxu0 %v472
      %v563 = vpop.f32.mrf.mxu0
      %v564 = vadd.f32 0.0, %v563
      %565 = vmatmul.f32.gmra.mxu0 %v473
      %v566 = vpop.f32.mrf.mxu0
      %v567 = vadd.f32 0.0, %v566
      %568 = vmatmul.f32.gmra.mxu0 %v474
      %v569 = vpop.f32.mrf.mxu0
      %v570 = vadd.f32 0.0, %v569
      %571 = vmatmul.f32.gmra.mxu0 %v475
      %v572 = vpop.f32.mrf.mxu0
      %v573 = vadd.f32 0.0, %v572
      %574 = vmatmul.f32.gmra.mxu0 %v476
      %v575 = vpop.f32.mrf.mxu0
      %v576 = vadd.f32 0.0, %v575
      %577 = vmatmul.f32.gmra.mxu0 %v477
      %v578 = vpop.f32.mrf.mxu0
      %v579 = vadd.f32 0.0, %v578
      %580 = vmatmul.f32.gmra.mxu0 %v478
      %v581 = vpop.f32.mrf.mxu0
      %v582 = vadd.f32 0.0, %v581
      %583 = vmatmul.f32.gmra.mxu0 %v479
      %v584 = vpop.f32.mrf.mxu0
      %v585 = vadd.f32 0.0, %v584
      %586 = vmatmul.f32.gmra.mxu0 %v480
      %v587 = vpop.f32.mrf.mxu0
      %v588 = vadd.f32 0.0, %v587
      %589 = vmatmul.f32.gmra.mxu0 %v481
      %v590 = vpop.f32.mrf.mxu0
      %v591 = vadd.f32 0.0, %v590
      %592 = vmatmul.f32.gmra.mxu0 %v482
      %v593 = vpop.f32.mrf.mxu0
      %v594 = vadd.f32 0.0, %v593
      %595 = vmatmul.f32.gmra.mxu0 %v483
      %v596 = vpop.f32.mrf.mxu0
      %v597 = vadd.f32 0.0, %v596
      %598 = vmatmul.f32.gmra.mxu0 %v484
      %v599 = vpop.f32.mrf.mxu0
      %v600 = vadd.f32 0.0, %v599
      %601 = vmatmul.f32.gmra.mxu0 %v485
      %v602 = vpop.f32.mrf.mxu0
      %v603 = vadd.f32 0.0, %v602
      %604 = vmatmul.f32.gmra.mxu0 %v486
      %v605 = vpop.f32.mrf.mxu0
      %v606 = vadd.f32 0.0, %v605
      %607 = vmatmul.f32.gmra.mxu0 %v487
      %v608 = vpop.f32.mrf.mxu0
      %v609 = vadd.f32 0.0, %v608
      %610 = vmatmul.f32.gmra.mxu0 %v488
      %v611 = vpop.f32.mrf.mxu0
      %v612 = vadd.f32 0.0, %v611
      %613 = vmatmul.f32.gmra.mxu0 %v489
      %v614 = vpop.f32.mrf.mxu0
      %v615 = vadd.f32 0.0, %v614
      %616 = vmatmul.f32.gmra.mxu0 %v490
      %v617 = vpop.f32.mrf.mxu0
      %v618 = vadd.f32 0.0, %v617
      %619 = vdwg.mxu0
      %620 = vst [vmem:[%s231] sm:$0xff] %v525
      %621 = vst [vmem:[%s231 + $0x8] sm:$0xff] %v528
      %622 = vst [vmem:[%s231 + $0x10] sm:$0xff] %v531
      %623 = vst [vmem:[%s231 + $0x18] sm:$0xff] %v534
      %624 = vst [vmem:[%s231 + $0x20] sm:$0xff] %v537
      %625 = vst [vmem:[%s231 + $0x28] sm:$0xff] %v540
      %626 = vst [vmem:[%s231 + $0x30] sm:$0xff] %v543
      %627 = vst [vmem:[%s231 + $0x38] sm:$0xff] %v546
      %628 = vst [vmem:[%s231 + $0x40] sm:$0xff] %v549
      %629 = vst [vmem:[%s231 + $0x48] sm:$0xff] %v552
      %630 = vst [vmem:[%s231 + $0x50] sm:$0xff] %v555
      %631 = vst [vmem:[%s231 + $0x58] sm:$0xff] %v558
      %632 = vst [vmem:[%s231 + $0x60] sm:$0xff] %v561
      %633 = vst [vmem:[%s231 + $0x68] sm:$0xff] %v564
      %634 = vst [vmem:[%s231 + $0x70] sm:$0xff] %v567
      %635 = vst [vmem:[%s231 + $0x78] sm:$0xff] %v570
      %636 = vst [vmem:[%s231 + $0x80] sm:$0xff] %v573
      %637 = vst [vmem:[%s231 + $0x88] sm:$0xff] %v576
      %638 = vst [vmem:[%s231 + $0x90] sm:$0xff] %v579
      %639 = vst [vmem:[%s231 + $0x98] sm:$0xff] %v582
      %640 = vst [vmem:[%s231 + $0xa0] sm:$0xff] %v585
      %641 = vst [vmem:[%s231 + $0xa8] sm:$0xff] %v588
      %642 = vst [vmem:[%s231 + $0xb0] sm:$0xff] %v591
      %643 = vst [vmem:[%s231 + $0xb8] sm:$0xff] %v594
      %644 = vst [vmem:[%s231 + $0xc0] sm:$0xff] %v597
      %645 = vst [vmem:[%s231 + $0xc8] sm:$0xff] %v600
      %646 = vst [vmem:[%s231 + $0xd0] sm:$0xff] %v603
      %647 = vst [vmem:[%s231 + $0xd8] sm:$0xff] %v606
      %648 = vst [vmem:[%s231 + $0xe0] sm:$0xff] %v609
      %649 = vst [vmem:[%s231 + $0xe8] sm:$0xff] %v612
      %650 = vst [vmem:[%s231 + $0xf0] sm:$0xff] %v615
      %651 = vst [vmem:[%s231 + $0xf8] sm:$0xff] %v618
      %v652 = vld [vmem:[#allocation2 + $0x1] sm:$0xff]
      %v653 = vld [vmem:[#allocation2 + $0x9] sm:$0xff]
      %v654 = vld [vmem:[#allocation2 + $0x19] sm:$0xff]
      %v655 = vld [vmem:[#allocation2 + $0x21] sm:$0xff]
      %v656 = vld [vmem:[#allocation2 + $0x31] sm:$0xff]
      %v657 = vld [vmem:[#allocation2 + $0x39] sm:$0xff]
      %v658 = vld [vmem:[#allocation2 + $0x49] sm:$0xff]
      %v659 = vld [vmem:[#allocation2 + $0x51] sm:$0xff]
      %v660 = vld [vmem:[#allocation2 + $0x61] sm:$0xff]
      %v661 = vld [vmem:[#allocation2 + $0x69] sm:$0xff]
      %v662 = vld [vmem:[#allocation2 + $0x79] sm:$0xff]
      %v663 = vld [vmem:[#allocation2 + $0x81] sm:$0xff]
      %v664 = vld [vmem:[#allocation2 + $0x91] sm:$0xff]
      %v665 = vld [vmem:[#allocation2 + $0x99] sm:$0xff]
      %v666 = vld [vmem:[#allocation2 + $0xa9] sm:$0xff]
      %v667 = vld [vmem:[#allocation2 + $0xb1] sm:$0xff]
      %v668 = vld [vmem:[#allocation2 + $0xc1] sm:$0xff]
      %v669 = vld [vmem:[#allocation2 + $0xc9] sm:$0xff]
      %v670 = vld [vmem:[#allocation2 + $0xd9] sm:$0xff]
      %v671 = vld [vmem:[#allocation2 + $0xe1] sm:$0xff]
      %v672 = vld [vmem:[#allocation2 + $0xf1] sm:$0xff]
      %v673 = vld [vmem:[#allocation2 + $0xf9] sm:$0xff]
      %v674 = vld [vmem:[#allocation2 + $0x109] sm:$0xff]
      %v675 = vld [vmem:[#allocation2 + $0x111] sm:$0xff]
      %v676 = vld [vmem:[#allocation2 + $0x121] sm:$0xff]
      %v677 = vld [vmem:[#allocation2 + $0x129] sm:$0xff]
      %v678 = vld [vmem:[#allocation2 + $0x139] sm:$0xff]
      %v679 = vld [vmem:[#allocation2 + $0x141] sm:$0xff]
      %v680 = vld [vmem:[#allocation2 + $0x151] sm:$0xff]
      %v681 = vld [vmem:[#allocation2 + $0x159] sm:$0xff]
      %v682 = vld [vmem:[#allocation2 + $0x169] sm:$0xff]
      %v683 = vld [vmem:[#allocation2 + $0x171] sm:$0xff]
      %s684 = scalar_lea.vmem %s3, 128
      %v685 = vld [vmem:[%s684] sm:$0xff]
      %v686 = vld [vmem:[%s684 + $0x8] sm:$0xff]
      %v687 = vld [vmem:[%s684 + $0x10] sm:$0xff]
      %v688 = vld [vmem:[%s684 + $0x18] sm:$0xff]
      %v689 = vld [vmem:[%s684 + $0x20] sm:$0xff]
      %v690 = vld [vmem:[%s684 + $0x28] sm:$0xff]
      %v691 = vld [vmem:[%s684 + $0x30] sm:$0xff]
      %v692 = vld [vmem:[%s684 + $0x38] sm:$0xff]
      %v693 = vld [vmem:[%s684 + $0x40] sm:$0xff]
      %v694 = vld [vmem:[%s684 + $0x48] sm:$0xff]
      %v695 = vld [vmem:[%s684 + $0x50] sm:$0xff]
      %v696 = vld [vmem:[%s684 + $0x58] sm:$0xff]
      %v697 = vld [vmem:[%s684 + $0x60] sm:$0xff]
      %v698 = vld [vmem:[%s684 + $0x68] sm:$0xff]
      %v699 = vld [vmem:[%s684 + $0x70] sm:$0xff]
      %v700 = vld [vmem:[%s684 + $0x78] sm:$0xff]
      %701 = vmatpush.msra.mxu0 %v700
      %702 = vmatpush.msra.mxu0 %v699
      %703 = vmatpush.msra.mxu0 %v698
      %704 = vmatpush.msra.mxu0 %v697
      %705 = vmatpush.msra.mxu0 %v696
      %706 = vmatpush.msra.mxu0 %v695
      %707 = vmatpush.msra.mxu0 %v694
      %708 = vmatpush.msra.mxu0 %v693
      %709 = vmatpush.msra.mxu0 %v692
      %710 = vmatpush.msra.mxu0 %v691
      %711 = vmatpush.msra.mxu0 %v690
      %712 = vmatpush.msra.mxu0 %v689
      %713 = vmatpush.msra.mxu0 %v688
      %714 = vmatpush.msra.mxu0 %v687
      %715 = vmatpush.msra.mxu0 %v686
      %716 = vmatpush.msra.mxu0 %v685
      %717 = vmatmul.f32.gmra.mxu0 %v652
      %v718 = vpop.f32.mrf.mxu0
      %v719 = vadd.f32 0.0, %v718
      %720 = vmatmul.f32.gmra.mxu0 %v653
      %v721 = vpop.f32.mrf.mxu0
      %v722 = vadd.f32 0.0, %v721
      %723 = vmatmul.f32.gmra.mxu0 %v654
      %v724 = vpop.f32.mrf.mxu0
      %v725 = vadd.f32 0.0, %v724
      %726 = vmatmul.f32.gmra.mxu0 %v655
      %v727 = vpop.f32.mrf.mxu0
      %v728 = vadd.f32 0.0, %v727
      %729 = vmatmul.f32.gmra.mxu0 %v656
      %v730 = vpop.f32.mrf.mxu0
      %v731 = vadd.f32 0.0, %v730
      %732 = vmatmul.f32.gmra.mxu0 %v657
      %v733 = vpop.f32.mrf.mxu0
      %v734 = vadd.f32 0.0, %v733
      %735 = vmatmul.f32.gmra.mxu0 %v658
      %v736 = vpop.f32.mrf.mxu0
      %v737 = vadd.f32 0.0, %v736
      %738 = vmatmul.f32.gmra.mxu0 %v659
      %v739 = vpop.f32.mrf.mxu0
      %v740 = vadd.f32 0.0, %v739
      %741 = vmatmul.f32.gmra.mxu0 %v660
      %v742 = vpop.f32.mrf.mxu0
      %v743 = vadd.f32 0.0, %v742
      %744 = vmatmul.f32.gmra.mxu0 %v661
      %v745 = vpop.f32.mrf.mxu0
      %v746 = vadd.f32 0.0, %v745
      %747 = vmatmul.f32.gmra.mxu0 %v662
      %v748 = vpop.f32.mrf.mxu0
      %v749 = vadd.f32 0.0, %v748
      %750 = vmatmul.f32.gmra.mxu0 %v663
      %v751 = vpop.f32.mrf.mxu0
      %v752 = vadd.f32 0.0, %v751
      %753 = vmatmul.f32.gmra.mxu0 %v664
      %v754 = vpop.f32.mrf.mxu0
      %v755 = vadd.f32 0.0, %v754
      %756 = vmatmul.f32.gmra.mxu0 %v665
      %v757 = vpop.f32.mrf.mxu0
      %v758 = vadd.f32 0.0, %v757
      %759 = vmatmul.f32.gmra.mxu0 %v666
      %v760 = vpop.f32.mrf.mxu0
      %v761 = vadd.f32 0.0, %v760
      %762 = vmatmul.f32.gmra.mxu0 %v667
      %v763 = vpop.f32.mrf.mxu0
      %v764 = vadd.f32 0.0, %v763
      %765 = vmatmul.f32.gmra.mxu0 %v668
      %v766 = vpop.f32.mrf.mxu0
      %v767 = vadd.f32 0.0, %v766
      %768 = vmatmul.f32.gmra.mxu0 %v669
      %v769 = vpop.f32.mrf.mxu0
      %v770 = vadd.f32 0.0, %v769
      %771 = vmatmul.f32.gmra.mxu0 %v670
      %v772 = vpop.f32.mrf.mxu0
      %v773 = vadd.f32 0.0, %v772
      %774 = vmatmul.f32.gmra.mxu0 %v671
      %v775 = vpop.f32.mrf.mxu0
      %v776 = vadd.f32 0.0, %v775
      %777 = vmatmul.f32.gmra.mxu0 %v672
      %v778 = vpop.f32.mrf.mxu0
      %v779 = vadd.f32 0.0, %v778
      %780 = vmatmul.f32.gmra.mxu0 %v673
      %v781 = vpop.f32.mrf.mxu0
      %v782 = vadd.f32 0.0, %v781
      %783 = vmatmul.f32.gmra.mxu0 %v674
      %v784 = vpop.f32.mrf.mxu0
      %v785 = vadd.f32 0.0, %v784
      %786 = vmatmul.f32.gmra.mxu0 %v675
      %v787 = vpop.f32.mrf.mxu0
      %v788 = vadd.f32 0.0, %v787
      %789 = vmatmul.f32.gmra.mxu0 %v676
      %v790 = vpop.f32.mrf.mxu0
      %v791 = vadd.f32 0.0, %v790
      %792 = vmatmul.f32.gmra.mxu0 %v677
      %v793 = vpop.f32.mrf.mxu0
      %v794 = vadd.f32 0.0, %v793
      %795 = vmatmul.f32.gmra.mxu0 %v678
      %v796 = vpop.f32.mrf.mxu0
      %v797 = vadd.f32 0.0, %v796
      %798 = vmatmul.f32.gmra.mxu0 %v679
      %v799 = vpop.f32.mrf.mxu0
      %v800 = vadd.f32 0.0, %v799
      %801 = vmatmul.f32.gmra.mxu0 %v680
      %v802 = vpop.f32.mrf.mxu0
      %v803 = vadd.f32 0.0, %v802
      %804 = vmatmul.f32.gmra.mxu0 %v681
      %v805 = vpop.f32.mrf.mxu0
      %v806 = vadd.f32 0.0, %v805
      %807 = vmatmul.f32.gmra.mxu0 %v682
      %v808 = vpop.f32.mrf.mxu0
      %v809 = vadd.f32 0.0, %v808
      %810 = vmatmul.f32.gmra.mxu0 %v683
      %v811 = vpop.f32.mrf.mxu0
      %v812 = vadd.f32 0.0, %v811
      %813 = vdwg.mxu0
      %v814 = vld [vmem:[%s231] sm:$0xff]
      %v815 = vld [vmem:[%s231 + $0x8] sm:$0xff]
      %v816 = vld [vmem:[%s231 + $0x10] sm:$0xff]
      %v817 = vld [vmem:[%s231 + $0x18] sm:$0xff]
      %v818 = vld [vmem:[%s231 + $0x20] sm:$0xff]
      %v819 = vld [vmem:[%s231 + $0x28] sm:$0xff]
      %v820 = vld [vmem:[%s231 + $0x30] sm:$0xff]
      %v821 = vld [vmem:[%s231 + $0x38] sm:$0xff]
      %v822 = vld [vmem:[%s231 + $0x40] sm:$0xff]
      %v823 = vld [vmem:[%s231 + $0x48] sm:$0xff]
      %v824 = vld [vmem:[%s231 + $0x50] sm:$0xff]
      %v825 = vld [vmem:[%s231 + $0x58] sm:$0xff]
      %v826 = vld [vmem:[%s231 + $0x60] sm:$0xff]
      %v827 = vld [vmem:[%s231 + $0x68] sm:$0xff]
      %v828 = vld [vmem:[%s231 + $0x70] sm:$0xff]
      %v829 = vld [vmem:[%s231 + $0x78] sm:$0xff]
      %v830 = vld [vmem:[%s231 + $0x80] sm:$0xff]
      %v831 = vld [vmem:[%s231 + $0x88] sm:$0xff]
      %v832 = vld [vmem:[%s231 + $0x90] sm:$0xff]
      %v833 = vld [vmem:[%s231 + $0x98] sm:$0xff]
      %v834 = vld [vmem:[%s231 + $0xa0] sm:$0xff]
      %v835 = vld [vmem:[%s231 + $0xa8] sm:$0xff]
      %v836 = vld [vmem:[%s231 + $0xb0] sm:$0xff]
      %v837 = vld [vmem:[%s231 + $0xb8] sm:$0xff]
      %v838 = vld [vmem:[%s231 + $0xc0] sm:$0xff]
      %v839 = vld [vmem:[%s231 + $0xc8] sm:$0xff]
      %v840 = vld [vmem:[%s231 + $0xd0] sm:$0xff]
      %v841 = vld [vmem:[%s231 + $0xd8] sm:$0xff]
      %v842 = vld [vmem:[%s231 + $0xe0] sm:$0xff]
      %v843 = vld [vmem:[%s231 + $0xe8] sm:$0xff]
      %v844 = vld [vmem:[%s231 + $0xf0] sm:$0xff]
      %v845 = vld [vmem:[%s231 + $0xf8] sm:$0xff]
      %v846 = vadd.f32 %v814, %v719
      %v847 = vadd.f32 %v815, %v722
      %v848 = vadd.f32 %v816, %v725
      %v849 = vadd.f32 %v817, %v728
      %v850 = vadd.f32 %v818, %v731
      %v851 = vadd.f32 %v819, %v734
      %v852 = vadd.f32 %v820, %v737
      %v853 = vadd.f32 %v821, %v740
      %v854 = vadd.f32 %v822, %v743
      %v855 = vadd.f32 %v823, %v746
      %v856 = vadd.f32 %v824, %v749
      %v857 = vadd.f32 %v825, %v752
      %v858 = vadd.f32 %v826, %v755
      %v859 = vadd.f32 %v827, %v758
      %v860 = vadd.f32 %v828, %v761
      %v861 = vadd.f32 %v829, %v764
      %v862 = vadd.f32 %v830, %v767
      %v863 = vadd.f32 %v831, %v770
      %v864 = vadd.f32 %v832, %v773
      %v865 = vadd.f32 %v833, %v776
      %v866 = vadd.f32 %v834, %v779
      %v867 = vadd.f32 %v835, %v782
      %v868 = vadd.f32 %v836, %v785
      %v869 = vadd.f32 %v837, %v788
      %v870 = vadd.f32 %v838, %v791
      %v871 = vadd.f32 %v839, %v794
      %v872 = vadd.f32 %v840, %v797
      %v873 = vadd.f32 %v841, %v800
      %v874 = vadd.f32 %v842, %v803
      %v875 = vadd.f32 %v843, %v806
      %v876 = vadd.f32 %v844, %v809
      %v877 = vadd.f32 %v845, %v812
      %878 = vst [vmem:[%s231] sm:$0xff] %v846
      %879 = vst [vmem:[%s231 + $0x8] sm:$0xff] %v847
      %880 = vst [vmem:[%s231 + $0x10] sm:$0xff] %v848
      %881 = vst [vmem:[%s231 + $0x18] sm:$0xff] %v849
      %882 = vst [vmem:[%s231 + $0x20] sm:$0xff] %v850
      %883 = vst [vmem:[%s231 + $0x28] sm:$0xff] %v851
      %884 = vst [vmem:[%s231 + $0x30] sm:$0xff] %v852
      %885 = vst [vmem:[%s231 + $0x38] sm:$0xff] %v853
      %886 = vst [vmem:[%s231 + $0x40] sm:$0xff] %v854
      %887 = vst [vmem:[%s231 + $0x48] sm:$0xff] %v855
      %888 = vst [vmem:[%s231 + $0x50] sm:$0xff] %v856
      %889 = vst [vmem:[%s231 + $0x58] sm:$0xff] %v857
      %890 = vst [vmem:[%s231 + $0x60] sm:$0xff] %v858
      %891 = vst [vmem:[%s231 + $0x68] sm:$0xff] %v859
      %892 = vst [vmem:[%s231 + $0x70] sm:$0xff] %v860
      %893 = vst [vmem:[%s231 + $0x78] sm:$0xff] %v861
      %894 = vst [vmem:[%s231 + $0x80] sm:$0xff] %v862
      %895 = vst [vmem:[%s231 + $0x88] sm:$0xff] %v863
      %896 = vst [vmem:[%s231 + $0x90] sm:$0xff] %v864
      %897 = vst [vmem:[%s231 + $0x98] sm:$0xff] %v865
      %898 = vst [vmem:[%s231 + $0xa0] sm:$0xff] %v866
      %899 = vst [vmem:[%s231 + $0xa8] sm:$0xff] %v867
      %900 = vst [vmem:[%s231 + $0xb0] sm:$0xff] %v868
      %901 = vst [vmem:[%s231 + $0xb8] sm:$0xff] %v869
      %902 = vst [vmem:[%s231 + $0xc0] sm:$0xff] %v870
      %903 = vst [vmem:[%s231 + $0xc8] sm:$0xff] %v871
      %904 = vst [vmem:[%s231 + $0xd0] sm:$0xff] %v872
      %905 = vst [vmem:[%s231 + $0xd8] sm:$0xff] %v873
      %906 = vst [vmem:[%s231 + $0xe0] sm:$0xff] %v874
      %907 = vst [vmem:[%s231 + $0xe8] sm:$0xff] %v875
      %908 = vst [vmem:[%s231 + $0xf0] sm:$0xff] %v876
      %909 = vst [vmem:[%s231 + $0xf8] sm:$0xff] %v877
      %v910 = vld [vmem:[#allocation2 + $0x2] sm:$0xff]
      %v911 = vld [vmem:[#allocation2 + $0xa] sm:$0xff]
      %v912 = vld [vmem:[#allocation2 + $0x1a] sm:$0xff]
      %v913 = vld [vmem:[#allocation2 + $0x22] sm:$0xff]
      %v914 = vld [vmem:[#allocation2 + $0x32] sm:$0xff]
      %v915 = vld [vmem:[#allocation2 + $0x3a] sm:$0xff]
      %v916 = vld [vmem:[#allocation2 + $0x4a] sm:$0xff]
      %v917 = vld [vmem:[#allocation2 + $0x52] sm:$0xff]
      %v918 = vld [vmem:[#allocation2 + $0x62] sm:$0xff]
      %v919 = vld [vmem:[#allocation2 + $0x6a] sm:$0xff]
      %v920 = vld [vmem:[#allocation2 + $0x7a] sm:$0xff]
      %v921 = vld [vmem:[#allocation2 + $0x82] sm:$0xff]
      %v922 = vld [vmem:[#allocation2 + $0x92] sm:$0xff]
      %v923 = vld [vmem:[#allocation2 + $0x9a] sm:$0xff]
      %v924 = vld [vmem:[#allocation2 + $0xaa] sm:$0xff]
      %v925 = vld [vmem:[#allocation2 + $0xb2] sm:$0xff]
      %v926 = vld [vmem:[#allocation2 + $0xc2] sm:$0xff]
      %v927 = vld [vmem:[#allocation2 + $0xca] sm:$0xff]
      %v928 = vld [vmem:[#allocation2 + $0xda] sm:$0xff]
      %v929 = vld [vmem:[#allocation2 + $0xe2] sm:$0xff]
      %v930 = vld [vmem:[#allocation2 + $0xf2] sm:$0xff]
      %v931 = vld [vmem:[#allocation2 + $0xfa] sm:$0xff]
      %v932 = vld [vmem:[#allocation2 + $0x10a] sm:$0xff]
      %v933 = vld [vmem:[#allocation2 + $0x112] sm:$0xff]
      %v934 = vld [vmem:[#allocation2 + $0x122] sm:$0xff]
      %v935 = vld [vmem:[#allocation2 + $0x12a] sm:$0xff]
      %v936 = vld [vmem:[#allocation2 + $0x13a] sm:$0xff]
      %v937 = vld [vmem:[#allocation2 + $0x142] sm:$0xff]
      %v938 = vld [vmem:[#allocation2 + $0x152] sm:$0xff]
      %v939 = vld [vmem:[#allocation2 + $0x15a] sm:$0xff]
      %v940 = vld [vmem:[#allocation2 + $0x16a] sm:$0xff]
      %v941 = vld [vmem:[#allocation2 + $0x172] sm:$0xff]
      %s942 = scalar_lea.vmem %s3, 256
      %v943 = vld [vmem:[%s942] sm:$0xff]
      %v944 = vld [vmem:[%s942 + $0x8] sm:$0xff]
      %v945 = vld [vmem:[%s942 + $0x10] sm:$0xff]
      %v946 = vld [vmem:[%s942 + $0x18] sm:$0xff]
      %v947 = vld [vmem:[%s942 + $0x20] sm:$0xff]
      %v948 = vld [vmem:[%s942 + $0x28] sm:$0xff]
      %v949 = vld [vmem:[%s942 + $0x30] sm:$0xff]
      %v950 = vld [vmem:[%s942 + $0x38] sm:$0xff]
      %v951 = vld [vmem:[%s942 + $0x40] sm:$0xff]
      %v952 = vld [vmem:[%s942 + $0x48] sm:$0xff]
      %v953 = vld [vmem:[%s942 + $0x50] sm:$0xff]
      %v954 = vld [vmem:[%s942 + $0x58] sm:$0xff]
      %v955 = vld [vmem:[%s942 + $0x60] sm:$0xff]
      %v956 = vld [vmem:[%s942 + $0x68] sm:$0xff]
      %v957 = vld [vmem:[%s942 + $0x70] sm:$0xff]
      %v958 = vld [vmem:[%s942 + $0x78] sm:$0xff]
      %959 = vmatpush.msra.mxu0 %v958
      %960 = vmatpush.msra.mxu0 %v957
      %961 = vmatpush.msra.mxu0 %v956
      %962 = vmatpush.msra.mxu0 %v955
      %963 = vmatpush.msra.mxu0 %v954
      %964 = vmatpush.msra.mxu0 %v953
      %965 = vmatpush.msra.mxu0 %v952
      %966 = vmatpush.msra.mxu0 %v951
      %967 = vmatpush.msra.mxu0 %v950
      %968 = vmatpush.msra.mxu0 %v949
      %969 = vmatpush.msra.mxu0 %v948
      %970 = vmatpush.msra.mxu0 %v947
      %971 = vmatpush.msra.mxu0 %v946
      %972 = vmatpush.msra.mxu0 %v945
      %973 = vmatpush.msra.mxu0 %v944
      %974 = vmatpush.msra.mxu0 %v943
      %975 = vmatmul.f32.gmra.mxu0 %v910
      %v976 = vpop.f32.mrf.mxu0
      %v977 = vadd.f32 0.0, %v976
      %978 = vmatmul.f32.gmra.mxu0 %v911
      %v979 = vpop.f32.mrf.mxu0
      %v980 = vadd.f32 0.0, %v979
      %981 = vmatmul.f32.gmra.mxu0 %v912
      %v982 = vpop.f32.mrf.mxu0
      %v983 = vadd.f32 0.0, %v982
      %984 = vmatmul.f32.gmra.mxu0 %v913
      %v985 = vpop.f32.mrf.mxu0
      %v986 = vadd.f32 0.0, %v985
      %987 = vmatmul.f32.gmra.mxu0 %v914
      %v988 = vpop.f32.mrf.mxu0
      %v989 = vadd.f32 0.0, %v988
      %990 = vmatmul.f32.gmra.mxu0 %v915
      %v991 = vpop.f32.mrf.mxu0
      %v992 = vadd.f32 0.0, %v991
      %993 = vmatmul.f32.gmra.mxu0 %v916
      %v994 = vpop.f32.mrf.mxu0
      %v995 = vadd.f32 0.0, %v994
      %996 = vmatmul.f32.gmra.mxu0 %v917
      %v997 = vpop.f32.mrf.mxu0
      %v998 = vadd.f32 0.0, %v997
      %999 = vmatmul.f32.gmra.mxu0 %v918
      %v1000 = vpop.f32.mrf.mxu0
      %v1001 = vadd.f32 0.0, %v1000
      %1002 = vmatmul.f32.gmra.mxu0 %v919
      %v1003 = vpop.f32.mrf.mxu0
      %v1004 = vadd.f32 0.0, %v1003
      %1005 = vmatmul.f32.gmra.mxu0 %v920
      %v1006 = vpop.f32.mrf.mxu0
      %v1007 = vadd.f32 0.0, %v1006
      %1008 = vmatmul.f32.gmra.mxu0 %v921
      %v1009 = vpop.f32.mrf.mxu0
      %v1010 = vadd.f32 0.0, %v1009
      %1011 = vmatmul.f32.gmra.mxu0 %v922
      %v1012 = vpop.f32.mrf.mxu0
      %v1013 = vadd.f32 0.0, %v1012
      %1014 = vmatmul.f32.gmra.mxu0 %v923
      %v1015 = vpop.f32.mrf.mxu0
      %v1016 = vadd.f32 0.0, %v1015
      %1017 = vmatmul.f32.gmra.mxu0 %v924
      %v1018 = vpop.f32.mrf.mxu0
      %v1019 = vadd.f32 0.0, %v1018
      %1020 = vmatmul.f32.gmra.mxu0 %v925
      %v1021 = vpop.f32.mrf.mxu0
      %v1022 = vadd.f32 0.0, %v1021
      %1023 = vmatmul.f32.gmra.mxu0 %v926
      %v1024 = vpop.f32.mrf.mxu0
      %v1025 = vadd.f32 0.0, %v1024
      %1026 = vmatmul.f32.gmra.mxu0 %v927
      %v1027 = vpop.f32.mrf.mxu0
      %v1028 = vadd.f32 0.0, %v1027
      %1029 = vmatmul.f32.gmra.mxu0 %v928
      %v1030 = vpop.f32.mrf.mxu0
      %v1031 = vadd.f32 0.0, %v1030
      %1032 = vmatmul.f32.gmra.mxu0 %v929
      %v1033 = vpop.f32.mrf.mxu0
      %v1034 = vadd.f32 0.0, %v1033
      %1035 = vmatmul.f32.gmra.mxu0 %v930
      %v1036 = vpop.f32.mrf.mxu0
      %v1037 = vadd.f32 0.0, %v1036
      %1038 = vmatmul.f32.gmra.mxu0 %v931
      %v1039 = vpop.f32.mrf.mxu0
      %v1040 = vadd.f32 0.0, %v1039
      %1041 = vmatmul.f32.gmra.mxu0 %v932
      %v1042 = vpop.f32.mrf.mxu0
      %v1043 = vadd.f32 0.0, %v1042
      %1044 = vmatmul.f32.gmra.mxu0 %v933
      %v1045 = vpop.f32.mrf.mxu0
      %v1046 = vadd.f32 0.0, %v1045
      %1047 = vmatmul.f32.gmra.mxu0 %v934
      %v1048 = vpop.f32.mrf.mxu0
      %v1049 = vadd.f32 0.0, %v1048
      %1050 = vmatmul.f32.gmra.mxu0 %v935
      %v1051 = vpop.f32.mrf.mxu0
      %v1052 = vadd.f32 0.0, %v1051
      %1053 = vmatmul.f32.gmra.mxu0 %v936
      %v1054 = vpop.f32.mrf.mxu0
      %v1055 = vadd.f32 0.0, %v1054
      %1056 = vmatmul.f32.gmra.mxu0 %v937
      %v1057 = vpop.f32.mrf.mxu0
      %v1058 = vadd.f32 0.0, %v1057
      %1059 = vmatmul.f32.gmra.mxu0 %v938
      %v1060 = vpop.f32.mrf.mxu0
      %v1061 = vadd.f32 0.0, %v1060
      %1062 = vmatmul.f32.gmra.mxu0 %v939
      %v1063 = vpop.f32.mrf.mxu0
      %v1064 = vadd.f32 0.0, %v1063
      %1065 = vmatmul.f32.gmra.mxu0 %v940
      %v1066 = vpop.f32.mrf.mxu0
      %v1067 = vadd.f32 0.0, %v1066
      %1068 = vmatmul.f32.gmra.mxu0 %v941
      %v1069 = vpop.f32.mrf.mxu0
      %v1070 = vadd.f32 0.0, %v1069
      %1071 = vdwg.mxu0
      %v1072 = vld [vmem:[%s231] sm:$0xff]
      %v1073 = vld [vmem:[%s231 + $0x8] sm:$0xff]
      %v1074 = vld [vmem:[%s231 + $0x10] sm:$0xff]
      %v1075 = vld [vmem:[%s231 + $0x18] sm:$0xff]
      %v1076 = vld [vmem:[%s231 + $0x20] sm:$0xff]
      %v1077 = vld [vmem:[%s231 + $0x28] sm:$0xff]
      %v1078 = vld [vmem:[%s231 + $0x30] sm:$0xff]
      %v1079 = vld [vmem:[%s231 + $0x38] sm:$0xff]
      %v1080 = vld [vmem:[%s231 + $0x40] sm:$0xff]
      %v1081 = vld [vmem:[%s231 + $0x48] sm:$0xff]
      %v1082 = vld [vmem:[%s231 + $0x50] sm:$0xff]
      %v1083 = vld [vmem:[%s231 + $0x58] sm:$0xff]
      %v1084 = vld [vmem:[%s231 + $0x60] sm:$0xff]
      %v1085 = vld [vmem:[%s231 + $0x68] sm:$0xff]
      %v1086 = vld [vmem:[%s231 + $0x70] sm:$0xff]
      %v1087 = vld [vmem:[%s231 + $0x78] sm:$0xff]
      %v1088 = vld [vmem:[%s231 + $0x80] sm:$0xff]
      %v1089 = vld [vmem:[%s231 + $0x88] sm:$0xff]
      %v1090 = vld [vmem:[%s231 + $0x90] sm:$0xff]
      %v1091 = vld [vmem:[%s231 + $0x98] sm:$0xff]
      %v1092 = vld [vmem:[%s231 + $0xa0] sm:$0xff]
      %v1093 = vld [vmem:[%s231 + $0xa8] sm:$0xff]
      %v1094 = vld [vmem:[%s231 + $0xb0] sm:$0xff]
      %v1095 = vld [vmem:[%s231 + $0xb8] sm:$0xff]
      %v1096 = vld [vmem:[%s231 + $0xc0] sm:$0xff]
      %v1097 = vld [vmem:[%s231 + $0xc8] sm:$0xff]
      %v1098 = vld [vmem:[%s231 + $0xd0] sm:$0xff]
      %v1099 = vld [vmem:[%s231 + $0xd8] sm:$0xff]
      %v1100 = vld [vmem:[%s231 + $0xe0] sm:$0xff]
      %v1101 = vld [vmem:[%s231 + $0xe8] sm:$0xff]
      %v1102 = vld [vmem:[%s231 + $0xf0] sm:$0xff]
      %v1103 = vld [vmem:[%s231 + $0xf8] sm:$0xff]
      %v1104 = vadd.f32 %v1072, %v977
      %v1105 = vadd.f32 %v1073, %v980
      %v1106 = vadd.f32 %v1074, %v983
      %v1107 = vadd.f32 %v1075, %v986
      %v1108 = vadd.f32 %v1076, %v989
      %v1109 = vadd.f32 %v1077, %v992
      %v1110 = vadd.f32 %v1078, %v995
      %v1111 = vadd.f32 %v1079, %v998
      %v1112 = vadd.f32 %v1080, %v1001
      %v1113 = vadd.f32 %v1081, %v1004
      %v1114 = vadd.f32 %v1082, %v1007
      %v1115 = vadd.f32 %v1083, %v1010
      %v1116 = vadd.f32 %v1084, %v1013
      %v1117 = vadd.f32 %v1085, %v1016
      %v1118 = vadd.f32 %v1086, %v1019
      %v1119 = vadd.f32 %v1087, %v1022
      %v1120 = vadd.f32 %v1088, %v1025
      %v1121 = vadd.f32 %v1089, %v1028
      %v1122 = vadd.f32 %v1090, %v1031
      %v1123 = vadd.f32 %v1091, %v1034
      %v1124 = vadd.f32 %v1092, %v1037
      %v1125 = vadd.f32 %v1093, %v1040
      %v1126 = vadd.f32 %v1094, %v1043
      %v1127 = vadd.f32 %v1095, %v1046
      %v1128 = vadd.f32 %v1096, %v1049
      %v1129 = vadd.f32 %v1097, %v1052
      %v1130 = vadd.f32 %v1098, %v1055
      %v1131 = vadd.f32 %v1099, %v1058
      %v1132 = vadd.f32 %v1100, %v1061
      %v1133 = vadd.f32 %v1101, %v1064
      %v1134 = vadd.f32 %v1102, %v1067
      %v1135 = vadd.f32 %v1103, %v1070
      %1136 = vst [vmem:[%s231] sm:$0xff] %v1104
      %1137 = vst [vmem:[%s231 + $0x8] sm:$0xff] %v1105
      %1138 = vst [vmem:[%s231 + $0x10] sm:$0xff] %v1106
      %1139 = vst [vmem:[%s231 + $0x18] sm:$0xff] %v1107
      %1140 = vst [vmem:[%s231 + $0x20] sm:$0xff] %v1108
      %1141 = vst [vmem:[%s231 + $0x28] sm:$0xff] %v1109
      %1142 = vst [vmem:[%s231 + $0x30] sm:$0xff] %v1110
      %1143 = vst [vmem:[%s231 + $0x38] sm:$0xff] %v1111
      %1144 = vst [vmem:[%s231 + $0x40] sm:$0xff] %v1112
      %1145 = vst [vmem:[%s231 + $0x48] sm:$0xff] %v1113
      %1146 = vst [vmem:[%s231 + $0x50] sm:$0xff] %v1114
      %1147 = vst [vmem:[%s231 + $0x58] sm:$0xff] %v1115
      %1148 = vst [vmem:[%s231 + $0x60] sm:$0xff] %v1116
      %1149 = vst [vmem:[%s231 + $0x68] sm:$0xff] %v1117
      %1150 = vst [vmem:[%s231 + $0x70] sm:$0xff] %v1118
      %1151 = vst [vmem:[%s231 + $0x78] sm:$0xff] %v1119
      %1152 = vst [vmem:[%s231 + $0x80] sm:$0xff] %v1120
      %1153 = vst [vmem:[%s231 + $0x88] sm:$0xff] %v1121
      %1154 = vst [vmem:[%s231 + $0x90] sm:$0xff] %v1122
      %1155 = vst [vmem:[%s231 + $0x98] sm:$0xff] %v1123
      %1156 = vst [vmem:[%s231 + $0xa0] sm:$0xff] %v1124
      %1157 = vst [vmem:[%s231 + $0xa8] sm:$0xff] %v1125
      %1158 = vst [vmem:[%s231 + $0xb0] sm:$0xff] %v1126
      %1159 = vst [vmem:[%s231 + $0xb8] sm:$0xff] %v1127
      %1160 = vst [vmem:[%s231 + $0xc0] sm:$0xff] %v1128
      %1161 = vst [vmem:[%s231 + $0xc8] sm:$0xff] %v1129
      %1162 = vst [vmem:[%s231 + $0xd0] sm:$0xff] %v1130
      %1163 = vst [vmem:[%s231 + $0xd8] sm:$0xff] %v1131
      %1164 = vst [vmem:[%s231 + $0xe0] sm:$0xff] %v1132
      %1165 = vst [vmem:[%s231 + $0xe8] sm:$0xff] %v1133
      %1166 = vst [vmem:[%s231 + $0xf0] sm:$0xff] %v1134
      %1167 = vst [vmem:[%s231 + $0xf8] sm:$0xff] %v1135
      %v1168 = vld [vmem:[%s426] sm:$0xff]
      %v1169 = vld [vmem:[%s426 + $0x8] sm:$0xff]
      %v1170 = vld [vmem:[%s426 + $0x18] sm:$0xff]
      %v1171 = vld [vmem:[%s426 + $0x20] sm:$0xff]
      %v1172 = vld [vmem:[%s426 + $0x30] sm:$0xff]
      %v1173 = vld [vmem:[%s426 + $0x38] sm:$0xff]
      %v1174 = vld [vmem:[%s426 + $0x48] sm:$0xff]
      %v1175 = vld [vmem:[%s426 + $0x50] sm:$0xff]
      %v1176 = vld [vmem:[%s426 + $0x60] sm:$0xff]
      %v1177 = vld [vmem:[%s426 + $0x68] sm:$0xff]
      %v1178 = vld [vmem:[%s426 + $0x78] sm:$0xff]
      %v1179 = vld [vmem:[%s426 + $0x80] sm:$0xff]
      %v1180 = vld [vmem:[%s426 + $0x90] sm:$0xff]
      %v1181 = vld [vmem:[%s426 + $0x98] sm:$0xff]
      %v1182 = vld [vmem:[%s426 + $0xa8] sm:$0xff]
      %v1183 = vld [vmem:[%s426 + $0xb0] sm:$0xff]
      %v1184 = vld [vmem:[%s426 + $0xc0] sm:$0xff]
      %v1185 = vld [vmem:[%s426 + $0xc8] sm:$0xff]
      %v1186 = vld [vmem:[%s426 + $0xd8] sm:$0xff]
      %v1187 = vld [vmem:[%s426 + $0xe0] sm:$0xff]
      %v1188 = vld [vmem:[%s426 + $0xf0] sm:$0xff]
      %v1189 = vld [vmem:[%s426 + $0xf8] sm:$0xff]
      %v1190 = vld [vmem:[%s426 + $0x108] sm:$0xff]
      %v1191 = vld [vmem:[%s426 + $0x110] sm:$0xff]
      %v1192 = vld [vmem:[%s426 + $0x120] sm:$0xff]
      %v1193 = vld [vmem:[%s426 + $0x128] sm:$0xff]
      %v1194 = vld [vmem:[%s426 + $0x138] sm:$0xff]
      %v1195 = vld [vmem:[%s426 + $0x140] sm:$0xff]
      %v1196 = vld [vmem:[%s426 + $0x150] sm:$0xff]
      %v1197 = vld [vmem:[%s426 + $0x158] sm:$0xff]
      %v1198 = vld [vmem:[%s426 + $0x168] sm:$0xff]
      %v1199 = vld [vmem:[%s426 + $0x170] sm:$0xff]
      %s1200 = scalar_lea.vmem %s3, 384
      %v1201 = vld [vmem:[%s1200] sm:$0xff]
      %v1202 = vld [vmem:[%s1200 + $0x8] sm:$0xff]
      %v1203 = vld [vmem:[%s1200 + $0x10] sm:$0xff]
      %v1204 = vld [vmem:[%s1200 + $0x18] sm:$0xff]
      %v1205 = vld [vmem:[%s1200 + $0x20] sm:$0xff]
      %v1206 = vld [vmem:[%s1200 + $0x28] sm:$0xff]
      %v1207 = vld [vmem:[%s1200 + $0x30] sm:$0xff]
      %v1208 = vld [vmem:[%s1200 + $0x38] sm:$0xff]
      %v1209 = vld [vmem:[%s1200 + $0x40] sm:$0xff]
      %v1210 = vld [vmem:[%s1200 + $0x48] sm:$0xff]
      %v1211 = vld [vmem:[%s1200 + $0x50] sm:$0xff]
      %v1212 = vld [vmem:[%s1200 + $0x58] sm:$0xff]
      %v1213 = vld [vmem:[%s1200 + $0x60] sm:$0xff]
      %v1214 = vld [vmem:[%s1200 + $0x68] sm:$0xff]
      %v1215 = vld [vmem:[%s1200 + $0x70] sm:$0xff]
      %v1216 = vld [vmem:[%s1200 + $0x78] sm:$0xff]
      %1217 = vmatpush.msra.mxu0 %v1216
      %1218 = vmatpush.msra.mxu0 %v1215
      %1219 = vmatpush.msra.mxu0 %v1214
      %1220 = vmatpush.msra.mxu0 %v1213
      %1221 = vmatpush.msra.mxu0 %v1212
      %1222 = vmatpush.msra.mxu0 %v1211
      %1223 = vmatpush.msra.mxu0 %v1210
      %1224 = vmatpush.msra.mxu0 %v1209
      %1225 = vmatpush.msra.mxu0 %v1208
      %1226 = vmatpush.msra.mxu0 %v1207
      %1227 = vmatpush.msra.mxu0 %v1206
      %1228 = vmatpush.msra.mxu0 %v1205
      %1229 = vmatpush.msra.mxu0 %v1204
      %1230 = vmatpush.msra.mxu0 %v1203
      %1231 = vmatpush.msra.mxu0 %v1202
      %1232 = vmatpush.msra.mxu0 %v1201
      %1233 = vmatmul.f32.gmra.mxu0 %v1168
      %v1234 = vpop.f32.mrf.mxu0
      %v1235 = vadd.f32 0.0, %v1234
      %1236 = vmatmul.f32.gmra.mxu0 %v1169
      %v1237 = vpop.f32.mrf.mxu0
      %v1238 = vadd.f32 0.0, %v1237
      %1239 = vmatmul.f32.gmra.mxu0 %v1170
      %v1240 = vpop.f32.mrf.mxu0
      %v1241 = vadd.f32 0.0, %v1240
      %1242 = vmatmul.f32.gmra.mxu0 %v1171
      %v1243 = vpop.f32.mrf.mxu0
      %v1244 = vadd.f32 0.0, %v1243
      %1245 = vmatmul.f32.gmra.mxu0 %v1172
      %v1246 = vpop.f32.mrf.mxu0
      %v1247 = vadd.f32 0.0, %v1246
      %1248 = vmatmul.f32.gmra.mxu0 %v1173
      %v1249 = vpop.f32.mrf.mxu0
      %v1250 = vadd.f32 0.0, %v1249
      %1251 = vmatmul.f32.gmra.mxu0 %v1174
      %v1252 = vpop.f32.mrf.mxu0
      %v1253 = vadd.f32 0.0, %v1252
      %1254 = vmatmul.f32.gmra.mxu0 %v1175
      %v1255 = vpop.f32.mrf.mxu0
      %v1256 = vadd.f32 0.0, %v1255
      %1257 = vmatmul.f32.gmra.mxu0 %v1176
      %v1258 = vpop.f32.mrf.mxu0
      %v1259 = vadd.f32 0.0, %v1258
      %1260 = vmatmul.f32.gmra.mxu0 %v1177
      %v1261 = vpop.f32.mrf.mxu0
      %v1262 = vadd.f32 0.0, %v1261
      %1263 = vmatmul.f32.gmra.mxu0 %v1178
      %v1264 = vpop.f32.mrf.mxu0
      %v1265 = vadd.f32 0.0, %v1264
      %1266 = vmatmul.f32.gmra.mxu0 %v1179
      %v1267 = vpop.f32.mrf.mxu0
      %v1268 = vadd.f32 0.0, %v1267
      %1269 = vmatmul.f32.gmra.mxu0 %v1180
      %v1270 = vpop.f32.mrf.mxu0
      %v1271 = vadd.f32 0.0, %v1270
      %1272 = vmatmul.f32.gmra.mxu0 %v1181
      %v1273 = vpop.f32.mrf.mxu0
      %v1274 = vadd.f32 0.0, %v1273
      %1275 = vmatmul.f32.gmra.mxu0 %v1182
      %v1276 = vpop.f32.mrf.mxu0
      %v1277 = vadd.f32 0.0, %v1276
      %1278 = vmatmul.f32.gmra.mxu0 %v1183
      %v1279 = vpop.f32.mrf.mxu0
      %v1280 = vadd.f32 0.0, %v1279
      %1281 = vmatmul.f32.gmra.mxu0 %v1184
      %v1282 = vpop.f32.mrf.mxu0
      %v1283 = vadd.f32 0.0, %v1282
      %1284 = vmatmul.f32.gmra.mxu0 %v1185
      %v1285 = vpop.f32.mrf.mxu0
      %v1286 = vadd.f32 0.0, %v1285
      %1287 = vmatmul.f32.gmra.mxu0 %v1186
      %v1288 = vpop.f32.mrf.mxu0
      %v1289 = vadd.f32 0.0, %v1288
      %1290 = vmatmul.f32.gmra.mxu0 %v1187
      %v1291 = vpop.f32.mrf.mxu0
      %v1292 = vadd.f32 0.0, %v1291
      %1293 = vmatmul.f32.gmra.mxu0 %v1188
      %v1294 = vpop.f32.mrf.mxu0
      %v1295 = vadd.f32 0.0, %v1294
      %1296 = vmatmul.f32.gmra.mxu0 %v1189
      %v1297 = vpop.f32.mrf.mxu0
      %v1298 = vadd.f32 0.0, %v1297
      %1299 = vmatmul.f32.gmra.mxu0 %v1190
      %v1300 = vpop.f32.mrf.mxu0
      %v1301 = vadd.f32 0.0, %v1300
      %1302 = vmatmul.f32.gmra.mxu0 %v1191
      %v1303 = vpop.f32.mrf.mxu0
      %v1304 = vadd.f32 0.0, %v1303
      %1305 = vmatmul.f32.gmra.mxu0 %v1192
      %v1306 = vpop.f32.mrf.mxu0
      %v1307 = vadd.f32 0.0, %v1306
      %1308 = vmatmul.f32.gmra.mxu0 %v1193
      %v1309 = vpop.f32.mrf.mxu0
      %v1310 = vadd.f32 0.0, %v1309
      %1311 = vmatmul.f32.gmra.mxu0 %v1194
      %v1312 = vpop.f32.mrf.mxu0
      %v1313 = vadd.f32 0.0, %v1312
      %1314 = vmatmul.f32.gmra.mxu0 %v1195
      %v1315 = vpop.f32.mrf.mxu0
      %v1316 = vadd.f32 0.0, %v1315
      %1317 = vmatmul.f32.gmra.mxu0 %v1196
      %v1318 = vpop.f32.mrf.mxu0
      %v1319 = vadd.f32 0.0, %v1318
      %1320 = vmatmul.f32.gmra.mxu0 %v1197
      %v1321 = vpop.f32.mrf.mxu0
      %v1322 = vadd.f32 0.0, %v1321
      %1323 = vmatmul.f32.gmra.mxu0 %v1198
      %v1324 = vpop.f32.mrf.mxu0
      %v1325 = vadd.f32 0.0, %v1324
      %1326 = vmatmul.f32.gmra.mxu0 %v1199
      %v1327 = vpop.f32.mrf.mxu0
      %v1328 = vadd.f32 0.0, %v1327
      %1329 = vdwg.mxu0
      %v1330 = vld [vmem:[%s231] sm:$0xff]
      %v1331 = vld [vmem:[%s231 + $0x8] sm:$0xff]
      %v1332 = vld [vmem:[%s231 + $0x10] sm:$0xff]
      %v1333 = vld [vmem:[%s231 + $0x18] sm:$0xff]
      %v1334 = vld [vmem:[%s231 + $0x20] sm:$0xff]
      %v1335 = vld [vmem:[%s231 + $0x28] sm:$0xff]
      %v1336 = vld [vmem:[%s231 + $0x30] sm:$0xff]
      %v1337 = vld [vmem:[%s231 + $0x38] sm:$0xff]
      %v1338 = vld [vmem:[%s231 + $0x40] sm:$0xff]
      %v1339 = vld [vmem:[%s231 + $0x48] sm:$0xff]
      %v1340 = vld [vmem:[%s231 + $0x50] sm:$0xff]
      %v1341 = vld [vmem:[%s231 + $0x58] sm:$0xff]
      %v1342 = vld [vmem:[%s231 + $0x60] sm:$0xff]
      %v1343 = vld [vmem:[%s231 + $0x68] sm:$0xff]
      %v1344 = vld [vmem:[%s231 + $0x70] sm:$0xff]
      %v1345 = vld [vmem:[%s231 + $0x78] sm:$0xff]
      %v1346 = vld [vmem:[%s231 + $0x80] sm:$0xff]
      %v1347 = vld [vmem:[%s231 + $0x88] sm:$0xff]
      %v1348 = vld [vmem:[%s231 + $0x90] sm:$0xff]
      %v1349 = vld [vmem:[%s231 + $0x98] sm:$0xff]
      %v1350 = vld [vmem:[%s231 + $0xa0] sm:$0xff]
      %v1351 = vld [vmem:[%s231 + $0xa8] sm:$0xff]
      %v1352 = vld [vmem:[%s231 + $0xb0] sm:$0xff]
      %v1353 = vld [vmem:[%s231 + $0xb8] sm:$0xff]
      %v1354 = vld [vmem:[%s231 + $0xc0] sm:$0xff]
      %v1355 = vld [vmem:[%s231 + $0xc8] sm:$0xff]
      %v1356 = vld [vmem:[%s231 + $0xd0] sm:$0xff]
      %v1357 = vld [vmem:[%s231 + $0xd8] sm:$0xff]
      %v1358 = vld [vmem:[%s231 + $0xe0] sm:$0xff]
      %v1359 = vld [vmem:[%s231 + $0xe8] sm:$0xff]
      %v1360 = vld [vmem:[%s231 + $0xf0] sm:$0xff]
      %v1361 = vld [vmem:[%s231 + $0xf8] sm:$0xff]
      %v1362 = vadd.f32 %v1330, %v1235
      %v1363 = vadd.f32 %v1331, %v1238
      %v1364 = vadd.f32 %v1332, %v1241
      %v1365 = vadd.f32 %v1333, %v1244
      %v1366 = vadd.f32 %v1334, %v1247
      %v1367 = vadd.f32 %v1335, %v1250
      %v1368 = vadd.f32 %v1336, %v1253
      %v1369 = vadd.f32 %v1337, %v1256
      %v1370 = vadd.f32 %v1338, %v1259
      %v1371 = vadd.f32 %v1339, %v1262
      %v1372 = vadd.f32 %v1340, %v1265
      %v1373 = vadd.f32 %v1341, %v1268
      %v1374 = vadd.f32 %v1342, %v1271
      %v1375 = vadd.f32 %v1343, %v1274
      %v1376 = vadd.f32 %v1344, %v1277
      %v1377 = vadd.f32 %v1345, %v1280
      %v1378 = vadd.f32 %v1346, %v1283
      %v1379 = vadd.f32 %v1347, %v1286
      %v1380 = vadd.f32 %v1348, %v1289
      %v1381 = vadd.f32 %v1349, %v1292
      %v1382 = vadd.f32 %v1350, %v1295
      %v1383 = vadd.f32 %v1351, %v1298
      %v1384 = vadd.f32 %v1352, %v1301
      %v1385 = vadd.f32 %v1353, %v1304
      %v1386 = vadd.f32 %v1354, %v1307
      %v1387 = vadd.f32 %v1355, %v1310
      %v1388 = vadd.f32 %v1356, %v1313
      %v1389 = vadd.f32 %v1357, %v1316
      %v1390 = vadd.f32 %v1358, %v1319
      %v1391 = vadd.f32 %v1359, %v1322
      %v1392 = vadd.f32 %v1360, %v1325
      %v1393 = vadd.f32 %v1361, %v1328
      %1394 = vst [vmem:[%s231] sm:$0xff] %v1362
      %1395 = vst [vmem:[%s231 + $0x8] sm:$0xff] %v1363
      %1396 = vst [vmem:[%s231 + $0x10] sm:$0xff] %v1364
      %1397 = vst [vmem:[%s231 + $0x18] sm:$0xff] %v1365
      %1398 = vst [vmem:[%s231 + $0x20] sm:$0xff] %v1366
      %1399 = vst [vmem:[%s231 + $0x28] sm:$0xff] %v1367
      %1400 = vst [vmem:[%s231 + $0x30] sm:$0xff] %v1368
      %1401 = vst [vmem:[%s231 + $0x38] sm:$0xff] %v1369
      %1402 = vst [vmem:[%s231 + $0x40] sm:$0xff] %v1370
      %1403 = vst [vmem:[%s231 + $0x48] sm:$0xff] %v1371
      %1404 = vst [vmem:[%s231 + $0x50] sm:$0xff] %v1372
      %1405 = vst [vmem:[%s231 + $0x58] sm:$0xff] %v1373
      %1406 = vst [vmem:[%s231 + $0x60] sm:$0xff] %v1374
      %1407 = vst [vmem:[%s231 + $0x68] sm:$0xff] %v1375
      %1408 = vst [vmem:[%s231 + $0x70] sm:$0xff] %v1376
      %1409 = vst [vmem:[%s231 + $0x78] sm:$0xff] %v1377
      %1410 = vst [vmem:[%s231 + $0x80] sm:$0xff] %v1378
      %1411 = vst [vmem:[%s231 + $0x88] sm:$0xff] %v1379
      %1412 = vst [vmem:[%s231 + $0x90] sm:$0xff] %v1380
      %1413 = vst [vmem:[%s231 + $0x98] sm:$0xff] %v1381
      %1414 = vst [vmem:[%s231 + $0xa0] sm:$0xff] %v1382
      %1415 = vst [vmem:[%s231 + $0xa8] sm:$0xff] %v1383
      %1416 = vst [vmem:[%s231 + $0xb0] sm:$0xff] %v1384
      %1417 = vst [vmem:[%s231 + $0xb8] sm:$0xff] %v1385
      %1418 = vst [vmem:[%s231 + $0xc0] sm:$0xff] %v1386
      %1419 = vst [vmem:[%s231 + $0xc8] sm:$0xff] %v1387
      %1420 = vst [vmem:[%s231 + $0xd0] sm:$0xff] %v1388
      %1421 = vst [vmem:[%s231 + $0xd8] sm:$0xff] %v1389
      %1422 = vst [vmem:[%s231 + $0xe0] sm:$0xff] %v1390
      %1423 = vst [vmem:[%s231 + $0xe8] sm:$0xff] %v1391
      %1424 = vst [vmem:[%s231 + $0xf0] sm:$0xff] %v1392
      %1425 = vst [vmem:[%s231 + $0xf8] sm:$0xff] %v1393
      %v1426 = vld [vmem:[%s426 + $0x1] sm:$0xff]
      %v1427 = vld [vmem:[%s426 + $0x9] sm:$0xff]
      %v1428 = vld [vmem:[%s426 + $0x19] sm:$0xff]
      %v1429 = vld [vmem:[%s426 + $0x21] sm:$0xff]
      %v1430 = vld [vmem:[%s426 + $0x31] sm:$0xff]
      %v1431 = vld [vmem:[%s426 + $0x39] sm:$0xff]
      %v1432 = vld [vmem:[%s426 + $0x49] sm:$0xff]
      %v1433 = vld [vmem:[%s426 + $0x51] sm:$0xff]
      %v1434 = vld [vmem:[%s426 + $0x61] sm:$0xff]
      %v1435 = vld [vmem:[%s426 + $0x69] sm:$0xff]
      %v1436 = vld [vmem:[%s426 + $0x79] sm:$0xff]
      %v1437 = vld [vmem:[%s426 + $0x81] sm:$0xff]
      %v1438 = vld [vmem:[%s426 + $0x91] sm:$0xff]
      %v1439 = vld [vmem:[%s426 + $0x99] sm:$0xff]
      %v1440 = vld [vmem:[%s426 + $0xa9] sm:$0xff]
      %v1441 = vld [vmem:[%s426 + $0xb1] sm:$0xff]
      %v1442 = vld [vmem:[%s426 + $0xc1] sm:$0xff]
      %v1443 = vld [vmem:[%s426 + $0xc9] sm:$0xff]
      %v1444 = vld [vmem:[%s426 + $0xd9] sm:$0xff]
      %v1445 = vld [vmem:[%s426 + $0xe1] sm:$0xff]
      %v1446 = vld [vmem:[%s426 + $0xf1] sm:$0xff]
      %v1447 = vld [vmem:[%s426 + $0xf9] sm:$0xff]
      %v1448 = vld [vmem:[%s426 + $0x109] sm:$0xff]
      %v1449 = vld [vmem:[%s426 + $0x111] sm:$0xff]
      %v1450 = vld [vmem:[%s426 + $0x121] sm:$0xff]
      %v1451 = vld [vmem:[%s426 + $0x129] sm:$0xff]
      %v1452 = vld [vmem:[%s426 + $0x139] sm:$0xff]
      %v1453 = vld [vmem:[%s426 + $0x141] sm:$0xff]
      %v1454 = vld [vmem:[%s426 + $0x151] sm:$0xff]
      %v1455 = vld [vmem:[%s426 + $0x159] sm:$0xff]
      %v1456 = vld [vmem:[%s426 + $0x169] sm:$0xff]
      %v1457 = vld [vmem:[%s426 + $0x171] sm:$0xff]
      %s1458 = scalar_lea.vmem %s3, 512
      %v1459 = vld [vmem:[%s1458] sm:$0xff]
      %v1460 = vld [vmem:[%s1458 + $0x8] sm:$0xff]
      %v1461 = vld [vmem:[%s1458 + $0x10] sm:$0xff]
      %v1462 = vld [vmem:[%s1458 + $0x18] sm:$0xff]
      %v1463 = vld [vmem:[%s1458 + $0x20] sm:$0xff]
      %v1464 = vld [vmem:[%s1458 + $0x28] sm:$0xff]
      %v1465 = vld [vmem:[%s1458 + $0x30] sm:$0xff]
      %v1466 = vld [vmem:[%s1458 + $0x38] sm:$0xff]
      %v1467 = vld [vmem:[%s1458 + $0x40] sm:$0xff]
      %v1468 = vld [vmem:[%s1458 + $0x48] sm:$0xff]
      %v1469 = vld [vmem:[%s1458 + $0x50] sm:$0xff]
      %v1470 = vld [vmem:[%s1458 + $0x58] sm:$0xff]
      %v1471 = vld [vmem:[%s1458 + $0x60] sm:$0xff]
      %v1472 = vld [vmem:[%s1458 + $0x68] sm:$0xff]
      %v1473 = vld [vmem:[%s1458 + $0x70] sm:$0xff]
      %v1474 = vld [vmem:[%s1458 + $0x78] sm:$0xff]
      %1475 = vmatpush.msra.mxu0 %v1474
      %1476 = vmatpush.msra.mxu0 %v1473
      %1477 = vmatpush.msra.mxu0 %v1472
      %1478 = vmatpush.msra.mxu0 %v1471
      %1479 = vmatpush.msra.mxu0 %v1470
      %1480 = vmatpush.msra.mxu0 %v1469
      %1481 = vmatpush.msra.mxu0 %v1468
      %1482 = vmatpush.msra.mxu0 %v1467
      %1483 = vmatpush.msra.mxu0 %v1466
      %1484 = vmatpush.msra.mxu0 %v1465
      %1485 = vmatpush.msra.mxu0 %v1464
      %1486 = vmatpush.msra.mxu0 %v1463
      %1487 = vmatpush.msra.mxu0 %v1462
      %1488 = vmatpush.msra.mxu0 %v1461
      %1489 = vmatpush.msra.mxu0 %v1460
      %1490 = vmatpush.msra.mxu0 %v1459
      %1491 = vmatmul.f32.gmra.mxu0 %v1426
      %v1492 = vpop.f32.mrf.mxu0
      %v1493 = vadd.f32 0.0, %v1492
      %1494 = vmatmul.f32.gmra.mxu0 %v1427
      %v1495 = vpop.f32.mrf.mxu0
      %v1496 = vadd.f32 0.0, %v1495
      %1497 = vmatmul.f32.gmra.mxu0 %v1428
      %v1498 = vpop.f32.mrf.mxu0
      %v1499 = vadd.f32 0.0, %v1498
      %1500 = vmatmul.f32.gmra.mxu0 %v1429
      %v1501 = vpop.f32.mrf.mxu0
      %v1502 = vadd.f32 0.0, %v1501
      %1503 = vmatmul.f32.gmra.mxu0 %v1430
      %v1504 = vpop.f32.mrf.mxu0
      %v1505 = vadd.f32 0.0, %v1504
      %1506 = vmatmul.f32.gmra.mxu0 %v1431
      %v1507 = vpop.f32.mrf.mxu0
      %v1508 = vadd.f32 0.0, %v1507
      %1509 = vmatmul.f32.gmra.mxu0 %v1432
      %v1510 = vpop.f32.mrf.mxu0
      %v1511 = vadd.f32 0.0, %v1510
      %1512 = vmatmul.f32.gmra.mxu0 %v1433
      %v1513 = vpop.f32.mrf.mxu0
      %v1514 = vadd.f32 0.0, %v1513
      %1515 = vmatmul.f32.gmra.mxu0 %v1434
      %v1516 = vpop.f32.mrf.mxu0
      %v1517 = vadd.f32 0.0, %v1516
      %1518 = vmatmul.f32.gmra.mxu0 %v1435
      %v1519 = vpop.f32.mrf.mxu0
      %v1520 = vadd.f32 0.0, %v1519
      %1521 = vmatmul.f32.gmra.mxu0 %v1436
      %v1522 = vpop.f32.mrf.mxu0
      %v1523 = vadd.f32 0.0, %v1522
      %1524 = vmatmul.f32.gmra.mxu0 %v1437
      %v1525 = vpop.f32.mrf.mxu0
      %v1526 = vadd.f32 0.0, %v1525
      %1527 = vmatmul.f32.gmra.mxu0 %v1438
      %v1528 = vpop.f32.mrf.mxu0
      %v1529 = vadd.f32 0.0, %v1528
      %1530 = vmatmul.f32.gmra.mxu0 %v1439
      %v1531 = vpop.f32.mrf.mxu0
      %v1532 = vadd.f32 0.0, %v1531
      %1533 = vmatmul.f32.gmra.mxu0 %v1440
      %v1534 = vpop.f32.mrf.mxu0
      %v1535 = vadd.f32 0.0, %v1534
      %1536 = vmatmul.f32.gmra.mxu0 %v1441
      %v1537 = vpop.f32.mrf.mxu0
      %v1538 = vadd.f32 0.0, %v1537
      %1539 = vmatmul.f32.gmra.mxu0 %v1442
      %v1540 = vpop.f32.mrf.mxu0
      %v1541 = vadd.f32 0.0, %v1540
      %1542 = vmatmul.f32.gmra.mxu0 %v1443
      %v1543 = vpop.f32.mrf.mxu0
      %v1544 = vadd.f32 0.0, %v1543
      %1545 = vmatmul.f32.gmra.mxu0 %v1444
      %v1546 = vpop.f32.mrf.mxu0
      %v1547 = vadd.f32 0.0, %v1546
      %1548 = vmatmul.f32.gmra.mxu0 %v1445
      %v1549 = vpop.f32.mrf.mxu0
      %v1550 = vadd.f32 0.0, %v1549
      %1551 = vmatmul.f32.gmra.mxu0 %v1446
      %v1552 = vpop.f32.mrf.mxu0
      %v1553 = vadd.f32 0.0, %v1552
      %1554 = vmatmul.f32.gmra.mxu0 %v1447
      %v1555 = vpop.f32.mrf.mxu0
      %v1556 = vadd.f32 0.0, %v1555
      %1557 = vmatmul.f32.gmra.mxu0 %v1448
      %v1558 = vpop.f32.mrf.mxu0
      %v1559 = vadd.f32 0.0, %v1558
      %1560 = vmatmul.f32.gmra.mxu0 %v1449
      %v1561 = vpop.f32.mrf.mxu0
      %v1562 = vadd.f32 0.0, %v1561
      %1563 = vmatmul.f32.gmra.mxu0 %v1450
      %v1564 = vpop.f32.mrf.mxu0
      %v1565 = vadd.f32 0.0, %v1564
      %1566 = vmatmul.f32.gmra.mxu0 %v1451
      %v1567 = vpop.f32.mrf.mxu0
      %v1568 = vadd.f32 0.0, %v1567
      %1569 = vmatmul.f32.gmra.mxu0 %v1452
      %v1570 = vpop.f32.mrf.mxu0
      %v1571 = vadd.f32 0.0, %v1570
      %1572 = vmatmul.f32.gmra.mxu0 %v1453
      %v1573 = vpop.f32.mrf.mxu0
      %v1574 = vadd.f32 0.0, %v1573
      %1575 = vmatmul.f32.gmra.mxu0 %v1454
      %v1576 = vpop.f32.mrf.mxu0
      %v1577 = vadd.f32 0.0, %v1576
      %1578 = vmatmul.f32.gmra.mxu0 %v1455
      %v1579 = vpop.f32.mrf.mxu0
      %v1580 = vadd.f32 0.0, %v1579
      %1581 = vmatmul.f32.gmra.mxu0 %v1456
      %v1582 = vpop.f32.mrf.mxu0
      %v1583 = vadd.f32 0.0, %v1582
      %1584 = vmatmul.f32.gmra.mxu0 %v1457
      %v1585 = vpop.f32.mrf.mxu0
      %v1586 = vadd.f32 0.0, %v1585
      %1587 = vdwg.mxu0
      %v1588 = vld [vmem:[%s231] sm:$0xff]
      %v1589 = vld [vmem:[%s231 + $0x8] sm:$0xff]
      %v1590 = vld [vmem:[%s231 + $0x10] sm:$0xff]
      %v1591 = vld [vmem:[%s231 + $0x18] sm:$0xff]
      %v1592 = vld [vmem:[%s231 + $0x20] sm:$0xff]
      %v1593 = vld [vmem:[%s231 + $0x28] sm:$0xff]
      %v1594 = vld [vmem:[%s231 + $0x30] sm:$0xff]
      %v1595 = vld [vmem:[%s231 + $0x38] sm:$0xff]
      %v1596 = vld [vmem:[%s231 + $0x40] sm:$0xff]
      %v1597 = vld [vmem:[%s231 + $0x48] sm:$0xff]
      %v1598 = vld [vmem:[%s231 + $0x50] sm:$0xff]
      %v1599 = vld [vmem:[%s231 + $0x58] sm:$0xff]
      %v1600 = vld [vmem:[%s231 + $0x60] sm:$0xff]
      %v1601 = vld [vmem:[%s231 + $0x68] sm:$0xff]
      %v1602 = vld [vmem:[%s231 + $0x70] sm:$0xff]
      %v1603 = vld [vmem:[%s231 + $0x78] sm:$0xff]
      %v1604 = vld [vmem:[%s231 + $0x80] sm:$0xff]
      %v1605 = vld [vmem:[%s231 + $0x88] sm:$0xff]
      %v1606 = vld [vmem:[%s231 + $0x90] sm:$0xff]
      %v1607 = vld [vmem:[%s231 + $0x98] sm:$0xff]
      %v1608 = vld [vmem:[%s231 + $0xa0] sm:$0xff]
      %v1609 = vld [vmem:[%s231 + $0xa8] sm:$0xff]
      %v1610 = vld [vmem:[%s231 + $0xb0] sm:$0xff]
      %v1611 = vld [vmem:[%s231 + $0xb8] sm:$0xff]
      %v1612 = vld [vmem:[%s231 + $0xc0] sm:$0xff]
      %v1613 = vld [vmem:[%s231 + $0xc8] sm:$0xff]
      %v1614 = vld [vmem:[%s231 + $0xd0] sm:$0xff]
      %v1615 = vld [vmem:[%s231 + $0xd8] sm:$0xff]
      %v1616 = vld [vmem:[%s231 + $0xe0] sm:$0xff]
      %v1617 = vld [vmem:[%s231 + $0xe8] sm:$0xff]
      %v1618 = vld [vmem:[%s231 + $0xf0] sm:$0xff]
      %v1619 = vld [vmem:[%s231 + $0xf8] sm:$0xff]
      %v1620 = vadd.f32 %v1588, %v1493
      %v1621 = vadd.f32 %v1589, %v1496
      %v1622 = vadd.f32 %v1590, %v1499
      %v1623 = vadd.f32 %v1591, %v1502
      %v1624 = vadd.f32 %v1592, %v1505
      %v1625 = vadd.f32 %v1593, %v1508
      %v1626 = vadd.f32 %v1594, %v1511
      %v1627 = vadd.f32 %v1595, %v1514
      %v1628 = vadd.f32 %v1596, %v1517
      %v1629 = vadd.f32 %v1597, %v1520
      %v1630 = vadd.f32 %v1598, %v1523
      %v1631 = vadd.f32 %v1599, %v1526
      %v1632 = vadd.f32 %v1600, %v1529
      %v1633 = vadd.f32 %v1601, %v1532
      %v1634 = vadd.f32 %v1602, %v1535
      %v1635 = vadd.f32 %v1603, %v1538
      %v1636 = vadd.f32 %v1604, %v1541
      %v1637 = vadd.f32 %v1605, %v1544
      %v1638 = vadd.f32 %v1606, %v1547
      %v1639 = vadd.f32 %v1607, %v1550
      %v1640 = vadd.f32 %v1608, %v1553
      %v1641 = vadd.f32 %v1609, %v1556
      %v1642 = vadd.f32 %v1610, %v1559
      %v1643 = vadd.f32 %v1611, %v1562
      %v1644 = vadd.f32 %v1612, %v1565
      %v1645 = vadd.f32 %v1613, %v1568
      %v1646 = vadd.f32 %v1614, %v1571
      %v1647 = vadd.f32 %v1615, %v1574
      %v1648 = vadd.f32 %v1616, %v1577
      %v1649 = vadd.f32 %v1617, %v1580
      %v1650 = vadd.f32 %v1618, %v1583
      %v1651 = vadd.f32 %v1619, %v1586
      %1652 = vst [vmem:[%s231] sm:$0xff] %v1620
      %1653 = vst [vmem:[%s231 + $0x8] sm:$0xff] %v1621
      %1654 = vst [vmem:[%s231 + $0x10] sm:$0xff] %v1622
      %1655 = vst [vmem:[%s231 + $0x18] sm:$0xff] %v1623
      %1656 = vst [vmem:[%s231 + $0x20] sm:$0xff] %v1624
      %1657 = vst [vmem:[%s231 + $0x28] sm:$0xff] %v1625
      %1658 = vst [vmem:[%s231 + $0x30] sm:$0xff] %v1626
      %1659 = vst [vmem:[%s231 + $0x38] sm:$0xff] %v1627
      %1660 = vst [vmem:[%s231 + $0x40] sm:$0xff] %v1628
      %1661 = vst [vmem:[%s231 + $0x48] sm:$0xff] %v1629
      %1662 = vst [vmem:[%s231 + $0x50] sm:$0xff] %v1630
      %1663 = vst [vmem:[%s231 + $0x58] sm:$0xff] %v1631
      %1664 = vst [vmem:[%s231 + $0x60] sm:$0xff] %v1632
      %1665 = vst [vmem:[%s231 + $0x68] sm:$0xff] %v1633
      %1666 = vst [vmem:[%s231 + $0x70] sm:$0xff] %v1634
      %1667 = vst [vmem:[%s231 + $0x78] sm:$0xff] %v1635
      %1668 = vst [vmem:[%s231 + $0x80] sm:$0xff] %v1636
      %1669 = vst [vmem:[%s231 + $0x88] sm:$0xff] %v1637
      %1670 = vst [vmem:[%s231 + $0x90] sm:$0xff] %v1638
      %1671 = vst [vmem:[%s231 + $0x98] sm:$0xff] %v1639
      %1672 = vst [vmem:[%s231 + $0xa0] sm:$0xff] %v1640
      %1673 = vst [vmem:[%s231 + $0xa8] sm:$0xff] %v1641
      %1674 = vst [vmem:[%s231 + $0xb0] sm:$0xff] %v1642
      %1675 = vst [vmem:[%s231 + $0xb8] sm:$0xff] %v1643
      %1676 = vst [vmem:[%s231 + $0xc0] sm:$0xff] %v1644
      %1677 = vst [vmem:[%s231 + $0xc8] sm:$0xff] %v1645
      %1678 = vst [vmem:[%s231 + $0xd0] sm:$0xff] %v1646
      %1679 = vst [vmem:[%s231 + $0xd8] sm:$0xff] %v1647
      %1680 = vst [vmem:[%s231 + $0xe0] sm:$0xff] %v1648
      %1681 = vst [vmem:[%s231 + $0xe8] sm:$0xff] %v1649
      %1682 = vst [vmem:[%s231 + $0xf0] sm:$0xff] %v1650
      %1683 = vst [vmem:[%s231 + $0xf8] sm:$0xff] %v1651
      %v1684 = vld [vmem:[%s426 + $0x2] sm:$0xff]
      %v1685 = vld [vmem:[%s426 + $0xa] sm:$0xff]
      %v1686 = vld [vmem:[%s426 + $0x1a] sm:$0xff]
      %v1687 = vld [vmem:[%s426 + $0x22] sm:$0xff]
      %v1688 = vld [vmem:[%s426 + $0x32] sm:$0xff]
      %v1689 = vld [vmem:[%s426 + $0x3a] sm:$0xff]
      %v1690 = vld [vmem:[%s426 + $0x4a] sm:$0xff]
      %v1691 = vld [vmem:[%s426 + $0x52] sm:$0xff]
      %v1692 = vld [vmem:[%s426 + $0x62] sm:$0xff]
      %v1693 = vld [vmem:[%s426 + $0x6a] sm:$0xff]
      %v1694 = vld [vmem:[%s426 + $0x7a] sm:$0xff]
      %v1695 = vld [vmem:[%s426 + $0x82] sm:$0xff]
      %v1696 = vld [vmem:[%s426 + $0x92] sm:$0xff]
      %v1697 = vld [vmem:[%s426 + $0x9a] sm:$0xff]
      %v1698 = vld [vmem:[%s426 + $0xaa] sm:$0xff]
      %v1699 = vld [vmem:[%s426 + $0xb2] sm:$0xff]
      %v1700 = vld [vmem:[%s426 + $0xc2] sm:$0xff]
      %v1701 = vld [vmem:[%s426 + $0xca] sm:$0xff]
      %v1702 = vld [vmem:[%s426 + $0xda] sm:$0xff]
      %v1703 = vld [vmem:[%s426 + $0xe2] sm:$0xff]
      %v1704 = vld [vmem:[%s426 + $0xf2] sm:$0xff]
      %v1705 = vld [vmem:[%s426 + $0xfa] sm:$0xff]
      %v1706 = vld [vmem:[%s426 + $0x10a] sm:$0xff]
      %v1707 = vld [vmem:[%s426 + $0x112] sm:$0xff]
      %v1708 = vld [vmem:[%s426 + $0x122] sm:$0xff]
      %v1709 = vld [vmem:[%s426 + $0x12a] sm:$0xff]
      %v1710 = vld [vmem:[%s426 + $0x13a] sm:$0xff]
      %v1711 = vld [vmem:[%s426 + $0x142] sm:$0xff]
      %v1712 = vld [vmem:[%s426 + $0x152] sm:$0xff]
      %v1713 = vld [vmem:[%s426 + $0x15a] sm:$0xff]
      %v1714 = vld [vmem:[%s426 + $0x16a] sm:$0xff]
      %v1715 = vld [vmem:[%s426 + $0x172] sm:$0xff]
      %s1716 = scalar_lea.vmem %s3, 640
      %v1717 = vld [vmem:[%s1716] sm:$0xff]
      %v1718 = vld [vmem:[%s1716 + $0x8] sm:$0xff]
      %v1719 = vld [vmem:[%s1716 + $0x10] sm:$0xff]
      %v1720 = vld [vmem:[%s1716 + $0x18] sm:$0xff]
      %v1721 = vld [vmem:[%s1716 + $0x20] sm:$0xff]
      %v1722 = vld [vmem:[%s1716 + $0x28] sm:$0xff]
      %v1723 = vld [vmem:[%s1716 + $0x30] sm:$0xff]
      %v1724 = vld [vmem:[%s1716 + $0x38] sm:$0xff]
      %v1725 = vld [vmem:[%s1716 + $0x40] sm:$0xff]
      %v1726 = vld [vmem:[%s1716 + $0x48] sm:$0xff]
      %v1727 = vld [vmem:[%s1716 + $0x50] sm:$0xff]
      %v1728 = vld [vmem:[%s1716 + $0x58] sm:$0xff]
      %v1729 = vld [vmem:[%s1716 + $0x60] sm:$0xff]
      %v1730 = vld [vmem:[%s1716 + $0x68] sm:$0xff]
      %v1731 = vld [vmem:[%s1716 + $0x70] sm:$0xff]
      %v1732 = vld [vmem:[%s1716 + $0x78] sm:$0xff]
      %1733 = vmatpush.msra.mxu0 %v1732
      %1734 = vmatpush.msra.mxu0 %v1731
      %1735 = vmatpush.msra.mxu0 %v1730
      %1736 = vmatpush.msra.mxu0 %v1729
      %1737 = vmatpush.msra.mxu0 %v1728
      %1738 = vmatpush.msra.mxu0 %v1727
      %1739 = vmatpush.msra.mxu0 %v1726
      %1740 = vmatpush.msra.mxu0 %v1725
      %1741 = vmatpush.msra.mxu0 %v1724
      %1742 = vmatpush.msra.mxu0 %v1723
      %1743 = vmatpush.msra.mxu0 %v1722
      %1744 = vmatpush.msra.mxu0 %v1721
      %1745 = vmatpush.msra.mxu0 %v1720
      %1746 = vmatpush.msra.mxu0 %v1719
      %1747 = vmatpush.msra.mxu0 %v1718
      %1748 = vmatpush.msra.mxu0 %v1717
      %1749 = vmatmul.f32.gmra.mxu0 %v1684
      %v1750 = vpop.f32.mrf.mxu0
      %v1751 = vadd.f32 0.0, %v1750
      %1752 = vmatmul.f32.gmra.mxu0 %v1685
      %v1753 = vpop.f32.mrf.mxu0
      %v1754 = vadd.f32 0.0, %v1753
      %1755 = vmatmul.f32.gmra.mxu0 %v1686
      %v1756 = vpop.f32.mrf.mxu0
      %v1757 = vadd.f32 0.0, %v1756
      %1758 = vmatmul.f32.gmra.mxu0 %v1687
      %v1759 = vpop.f32.mrf.mxu0
      %v1760 = vadd.f32 0.0, %v1759
      %1761 = vmatmul.f32.gmra.mxu0 %v1688
      %v1762 = vpop.f32.mrf.mxu0
      %v1763 = vadd.f32 0.0, %v1762
      %1764 = vmatmul.f32.gmra.mxu0 %v1689
      %v1765 = vpop.f32.mrf.mxu0
      %v1766 = vadd.f32 0.0, %v1765
      %1767 = vmatmul.f32.gmra.mxu0 %v1690
      %v1768 = vpop.f32.mrf.mxu0
      %v1769 = vadd.f32 0.0, %v1768
      %1770 = vmatmul.f32.gmra.mxu0 %v1691
      %v1771 = vpop.f32.mrf.mxu0
      %v1772 = vadd.f32 0.0, %v1771
      %1773 = vmatmul.f32.gmra.mxu0 %v1692
      %v1774 = vpop.f32.mrf.mxu0
      %v1775 = vadd.f32 0.0, %v1774
      %1776 = vmatmul.f32.gmra.mxu0 %v1693
      %v1777 = vpop.f32.mrf.mxu0
      %v1778 = vadd.f32 0.0, %v1777
      %1779 = vmatmul.f32.gmra.mxu0 %v1694
      %v1780 = vpop.f32.mrf.mxu0
      %v1781 = vadd.f32 0.0, %v1780
      %1782 = vmatmul.f32.gmra.mxu0 %v1695
      %v1783 = vpop.f32.mrf.mxu0
      %v1784 = vadd.f32 0.0, %v1783
      %1785 = vmatmul.f32.gmra.mxu0 %v1696
      %v1786 = vpop.f32.mrf.mxu0
      %v1787 = vadd.f32 0.0, %v1786
      %1788 = vmatmul.f32.gmra.mxu0 %v1697
      %v1789 = vpop.f32.mrf.mxu0
      %v1790 = vadd.f32 0.0, %v1789
      %1791 = vmatmul.f32.gmra.mxu0 %v1698
      %v1792 = vpop.f32.mrf.mxu0
      %v1793 = vadd.f32 0.0, %v1792
      %1794 = vmatmul.f32.gmra.mxu0 %v1699
      %v1795 = vpop.f32.mrf.mxu0
      %v1796 = vadd.f32 0.0, %v1795
      %1797 = vmatmul.f32.gmra.mxu0 %v1700
      %v1798 = vpop.f32.mrf.mxu0
      %v1799 = vadd.f32 0.0, %v1798
      %1800 = vmatmul.f32.gmra.mxu0 %v1701
      %v1801 = vpop.f32.mrf.mxu0
      %v1802 = vadd.f32 0.0, %v1801
      %1803 = vmatmul.f32.gmra.mxu0 %v1702
      %v1804 = vpop.f32.mrf.mxu0
      %v1805 = vadd.f32 0.0, %v1804
      %1806 = vmatmul.f32.gmra.mxu0 %v1703
      %v1807 = vpop.f32.mrf.mxu0
      %v1808 = vadd.f32 0.0, %v1807
      %1809 = vmatmul.f32.gmra.mxu0 %v1704
      %v1810 = vpop.f32.mrf.mxu0
      %v1811 = vadd.f32 0.0, %v1810
      %1812 = vmatmul.f32.gmra.mxu0 %v1705
      %v1813 = vpop.f32.mrf.mxu0
      %v1814 = vadd.f32 0.0, %v1813
      %1815 = vmatmul.f32.gmra.mxu0 %v1706
      %v1816 = vpop.f32.mrf.mxu0
      %v1817 = vadd.f32 0.0, %v1816
      %1818 = vmatmul.f32.gmra.mxu0 %v1707
      %v1819 = vpop.f32.mrf.mxu0
      %v1820 = vadd.f32 0.0, %v1819
      %1821 = vmatmul.f32.gmra.mxu0 %v1708
      %v1822 = vpop.f32.mrf.mxu0
      %v1823 = vadd.f32 0.0, %v1822
      %1824 = vmatmul.f32.gmra.mxu0 %v1709
      %v1825 = vpop.f32.mrf.mxu0
      %v1826 = vadd.f32 0.0, %v1825
      %1827 = vmatmul.f32.gmra.mxu0 %v1710
      %v1828 = vpop.f32.mrf.mxu0
      %v1829 = vadd.f32 0.0, %v1828
      %1830 = vmatmul.f32.gmra.mxu0 %v1711
      %v1831 = vpop.f32.mrf.mxu0
      %v1832 = vadd.f32 0.0, %v1831
      %1833 = vmatmul.f32.gmra.mxu0 %v1712
      %v1834 = vpop.f32.mrf.mxu0
      %v1835 = vadd.f32 0.0, %v1834
      %1836 = vmatmul.f32.gmra.mxu0 %v1713
      %v1837 = vpop.f32.mrf.mxu0
      %v1838 = vadd.f32 0.0, %v1837
      %1839 = vmatmul.f32.gmra.mxu0 %v1714
      %v1840 = vpop.f32.mrf.mxu0
      %v1841 = vadd.f32 0.0, %v1840
      %1842 = vmatmul.f32.gmra.mxu0 %v1715
      %v1843 = vpop.f32.mrf.mxu0
      %v1844 = vadd.f32 0.0, %v1843
      %1845 = vdwg.mxu0
      %v1846 = vld [vmem:[%s231] sm:$0xff]
      %v1847 = vld [vmem:[%s231 + $0x8] sm:$0xff]
      %v1848 = vld [vmem:[%s231 + $0x10] sm:$0xff]
      %v1849 = vld [vmem:[%s231 + $0x18] sm:$0xff]
      %v1850 = vld [vmem:[%s231 + $0x20] sm:$0xff]
      %v1851 = vld [vmem:[%s231 + $0x28] sm:$0xff]
      %v1852 = vld [vmem:[%s231 + $0x30] sm:$0xff]
      %v1853 = vld [vmem:[%s231 + $0x38] sm:$0xff]
      %v1854 = vld [vmem:[%s231 + $0x40] sm:$0xff]
      %v1855 = vld [vmem:[%s231 + $0x48] sm:$0xff]
      %v1856 = vld [vmem:[%s231 + $0x50] sm:$0xff]
      %v1857 = vld [vmem:[%s231 + $0x58] sm:$0xff]
      %v1858 = vld [vmem:[%s231 + $0x60] sm:$0xff]
      %v1859 = vld [vmem:[%s231 + $0x68] sm:$0xff]
      %v1860 = vld [vmem:[%s231 + $0x70] sm:$0xff]
      %v1861 = vld [vmem:[%s231 + $0x78] sm:$0xff]
      %v1862 = vld [vmem:[%s231 + $0x80] sm:$0xff]
      %v1863 = vld [vmem:[%s231 + $0x88] sm:$0xff]
      %v1864 = vld [vmem:[%s231 + $0x90] sm:$0xff]
      %v1865 = vld [vmem:[%s231 + $0x98] sm:$0xff]
      %v1866 = vld [vmem:[%s231 + $0xa0] sm:$0xff]
      %v1867 = vld [vmem:[%s231 + $0xa8] sm:$0xff]
      %v1868 = vld [vmem:[%s231 + $0xb0] sm:$0xff]
      %v1869 = vld [vmem:[%s231 + $0xb8] sm:$0xff]
      %v1870 = vld [vmem:[%s231 + $0xc0] sm:$0xff]
      %v1871 = vld [vmem:[%s231 + $0xc8] sm:$0xff]
      %v1872 = vld [vmem:[%s231 + $0xd0] sm:$0xff]
      %v1873 = vld [vmem:[%s231 + $0xd8] sm:$0xff]
      %v1874 = vld [vmem:[%s231 + $0xe0] sm:$0xff]
      %v1875 = vld [vmem:[%s231 + $0xe8] sm:$0xff]
      %v1876 = vld [vmem:[%s231 + $0xf0] sm:$0xff]
      %v1877 = vld [vmem:[%s231 + $0xf8] sm:$0xff]
      %v1878 = vadd.f32 %v1846, %v1751
      %v1879 = vadd.f32 %v1847, %v1754
      %v1880 = vadd.f32 %v1848, %v1757
      %v1881 = vadd.f32 %v1849, %v1760
      %v1882 = vadd.f32 %v1850, %v1763
      %v1883 = vadd.f32 %v1851, %v1766
      %v1884 = vadd.f32 %v1852, %v1769
      %v1885 = vadd.f32 %v1853, %v1772
      %v1886 = vadd.f32 %v1854, %v1775
      %v1887 = vadd.f32 %v1855, %v1778
      %v1888 = vadd.f32 %v1856, %v1781
      %v1889 = vadd.f32 %v1857, %v1784
      %v1890 = vadd.f32 %v1858, %v1787
      %v1891 = vadd.f32 %v1859, %v1790
      %v1892 = vadd.f32 %v1860, %v1793
      %v1893 = vadd.f32 %v1861, %v1796
      %v1894 = vadd.f32 %v1862, %v1799
      %v1895 = vadd.f32 %v1863, %v1802
      %v1896 = vadd.f32 %v1864, %v1805
      %v1897 = vadd.f32 %v1865, %v1808
      %v1898 = vadd.f32 %v1866, %v1811
      %v1899 = vadd.f32 %v1867, %v1814
      %v1900 = vadd.f32 %v1868, %v1817
      %v1901 = vadd.f32 %v1869, %v1820
      %v1902 = vadd.f32 %v1870, %v1823
      %v1903 = vadd.f32 %v1871, %v1826
      %v1904 = vadd.f32 %v1872, %v1829
      %v1905 = vadd.f32 %v1873, %v1832
      %v1906 = vadd.f32 %v1874, %v1835
      %v1907 = vadd.f32 %v1875, %v1838
      %v1908 = vadd.f32 %v1876, %v1841
      %v1909 = vadd.f32 %v1877, %v1844
      %1910 = vst [vmem:[%s231] sm:$0xff] %v1878
      %1911 = vst [vmem:[%s231 + $0x8] sm:$0xff] %v1879
      %1912 = vst [vmem:[%s231 + $0x10] sm:$0xff] %v1880
      %1913 = vst [vmem:[%s231 + $0x18] sm:$0xff] %v1881
      %1914 = vst [vmem:[%s231 + $0x20] sm:$0xff] %v1882
      %1915 = vst [vmem:[%s231 + $0x28] sm:$0xff] %v1883
      %1916 = vst [vmem:[%s231 + $0x30] sm:$0xff] %v1884
      %1917 = vst [vmem:[%s231 + $0x38] sm:$0xff] %v1885
      %1918 = vst [vmem:[%s231 + $0x40] sm:$0xff] %v1886
      %1919 = vst [vmem:[%s231 + $0x48] sm:$0xff] %v1887
      %1920 = vst [vmem:[%s231 + $0x50] sm:$0xff] %v1888
      %1921 = vst [vmem:[%s231 + $0x58] sm:$0xff] %v1889
      %1922 = vst [vmem:[%s231 + $0x60] sm:$0xff] %v1890
      %1923 = vst [vmem:[%s231 + $0x68] sm:$0xff] %v1891
      %1924 = vst [vmem:[%s231 + $0x70] sm:$0xff] %v1892
      %1925 = vst [vmem:[%s231 + $0x78] sm:$0xff] %v1893
      %1926 = vst [vmem:[%s231 + $0x80] sm:$0xff] %v1894
      %1927 = vst [vmem:[%s231 + $0x88] sm:$0xff] %v1895
      %1928 = vst [vmem:[%s231 + $0x90] sm:$0xff] %v1896
      %1929 = vst [vmem:[%s231 + $0x98] sm:$0xff] %v1897
      %1930 = vst [vmem:[%s231 + $0xa0] sm:$0xff] %v1898
      %1931 = vst [vmem:[%s231 + $0xa8] sm:$0xff] %v1899
      %1932 = vst [vmem:[%s231 + $0xb0] sm:$0xff] %v1900
      %1933 = vst [vmem:[%s231 + $0xb8] sm:$0xff] %v1901
      %1934 = vst [vmem:[%s231 + $0xc0] sm:$0xff] %v1902
      %1935 = vst [vmem:[%s231 + $0xc8] sm:$0xff] %v1903
      %1936 = vst [vmem:[%s231 + $0xd0] sm:$0xff] %v1904
      %1937 = vst [vmem:[%s231 + $0xd8] sm:$0xff] %v1905
      %1938 = vst [vmem:[%s231 + $0xe0] sm:$0xff] %v1906
      %1939 = vst [vmem:[%s231 + $0xe8] sm:$0xff] %v1907
      %1940 = vst [vmem:[%s231 + $0xf0] sm:$0xff] %v1908
      %1941 = vst [vmem:[%s231 + $0xf8] sm:$0xff] %v1909
      %s1942 = scalar_lea.vmem [#allocation2], 48
      %v1943 = vld [vmem:[%s1942] sm:$0xff]
      %v1944 = vld [vmem:[%s1942 + $0x8] sm:$0xff]
      %v1945 = vld [vmem:[%s1942 + $0x18] sm:$0xff]
      %v1946 = vld [vmem:[%s1942 + $0x20] sm:$0xff]
      %v1947 = vld [vmem:[%s1942 + $0x30] sm:$0xff]
      %v1948 = vld [vmem:[%s1942 + $0x38] sm:$0xff]
      %v1949 = vld [vmem:[%s1942 + $0x48] sm:$0xff]
      %v1950 = vld [vmem:[%s1942 + $0x50] sm:$0xff]
      %v1951 = vld [vmem:[%s1942 + $0x60] sm:$0xff]
      %v1952 = vld [vmem:[%s1942 + $0x68] sm:$0xff]
      %v1953 = vld [vmem:[%s1942 + $0x78] sm:$0xff]
      %v1954 = vld [vmem:[%s1942 + $0x80] sm:$0xff]
      %v1955 = vld [vmem:[%s1942 + $0x90] sm:$0xff]
      %v1956 = vld [vmem:[%s1942 + $0x98] sm:$0xff]
      %v1957 = vld [vmem:[%s1942 + $0xa8] sm:$0xff]
      %v1958 = vld [vmem:[%s1942 + $0xb0] sm:$0xff]
      %v1959 = vld [vmem:[%s1942 + $0xc0] sm:$0xff]
      %v1960 = vld [vmem:[%s1942 + $0xc8] sm:$0xff]
      %v1961 = vld [vmem:[%s1942 + $0xd8] sm:$0xff]
      %v1962 = vld [vmem:[%s1942 + $0xe0] sm:$0xff]
      %v1963 = vld [vmem:[%s1942 + $0xf0] sm:$0xff]
      %v1964 = vld [vmem:[%s1942 + $0xf8] sm:$0xff]
      %v1965 = vld [vmem:[%s1942 + $0x108] sm:$0xff]
      %v1966 = vld [vmem:[%s1942 + $0x110] sm:$0xff]
      %v1967 = vld [vmem:[%s1942 + $0x120] sm:$0xff]
      %v1968 = vld [vmem:[%s1942 + $0x128] sm:$0xff]
      %v1969 = vld [vmem:[%s1942 + $0x138] sm:$0xff]
      %v1970 = vld [vmem:[%s1942 + $0x140] sm:$0xff]
      %v1971 = vld [vmem:[%s1942 + $0x150] sm:$0xff]
      %v1972 = vld [vmem:[%s1942 + $0x158] sm:$0xff]
      %v1973 = vld [vmem:[%s1942 + $0x168] sm:$0xff]
      %v1974 = vld [vmem:[%s1942 + $0x170] sm:$0xff]
      %s1975 = scalar_lea.vmem %s3, 768
      %v1976 = vld [vmem:[%s1975] sm:$0xff]
      %v1977 = vld [vmem:[%s1975 + $0x8] sm:$0xff]
      %v1978 = vld [vmem:[%s1975 + $0x10] sm:$0xff]
      %v1979 = vld [vmem:[%s1975 + $0x18] sm:$0xff]
      %v1980 = vld [vmem:[%s1975 + $0x20] sm:$0xff]
      %v1981 = vld [vmem:[%s1975 + $0x28] sm:$0xff]
      %v1982 = vld [vmem:[%s1975 + $0x30] sm:$0xff]
      %v1983 = vld [vmem:[%s1975 + $0x38] sm:$0xff]
      %v1984 = vld [vmem:[%s1975 + $0x40] sm:$0xff]
      %v1985 = vld [vmem:[%s1975 + $0x48] sm:$0xff]
      %v1986 = vld [vmem:[%s1975 + $0x50] sm:$0xff]
      %v1987 = vld [vmem:[%s1975 + $0x58] sm:$0xff]
      %v1988 = vld [vmem:[%s1975 + $0x60] sm:$0xff]
      %v1989 = vld [vmem:[%s1975 + $0x68] sm:$0xff]
      %v1990 = vld [vmem:[%s1975 + $0x70] sm:$0xff]
      %v1991 = vld [vmem:[%s1975 + $0x78] sm:$0xff]
      %1992 = vmatpush.msra.mxu0 %v1991
      %1993 = vmatpush.msra.mxu0 %v1990
      %1994 = vmatpush.msra.mxu0 %v1989
      %1995 = vmatpush.msra.mxu0 %v1988
      %1996 = vmatpush.msra.mxu0 %v1987
      %1997 = vmatpush.msra.mxu0 %v1986
      %1998 = vmatpush.msra.mxu0 %v1985
      %1999 = vmatpush.msra.mxu0 %v1984
      %2000 = vmatpush.msra.mxu0 %v1983
      %2001 = vmatpush.msra.mxu0 %v1982
      %2002 = vmatpush.msra.mxu0 %v1981
      %2003 = vmatpush.msra.mxu0 %v1980
      %2004 = vmatpush.msra.mxu0 %v1979
      %2005 = vmatpush.msra.mxu0 %v1978
      %2006 = vmatpush.msra.mxu0 %v1977
      %2007 = vmatpush.msra.mxu0 %v1976
      %2008 = vmatmul.f32.gmra.mxu0 %v1943
      %v2009 = vpop.f32.mrf.mxu0
      %v2010 = vadd.f32 0.0, %v2009
      %2011 = vmatmul.f32.gmra.mxu0 %v1944
      %v2012 = vpop.f32.mrf.mxu0
      %v2013 = vadd.f32 0.0, %v2012
      %2014 = vmatmul.f32.gmra.mxu0 %v1945
      %v2015 = vpop.f32.mrf.mxu0
      %v2016 = vadd.f32 0.0, %v2015
      %2017 = vmatmul.f32.gmra.mxu0 %v1946
      %v2018 = vpop.f32.mrf.mxu0
      %v2019 = vadd.f32 0.0, %v2018
      %2020 = vmatmul.f32.gmra.mxu0 %v1947
      %v2021 = vpop.f32.mrf.mxu0
      %v2022 = vadd.f32 0.0, %v2021
      %2023 = vmatmul.f32.gmra.mxu0 %v1948
      %v2024 = vpop.f32.mrf.mxu0
      %v2025 = vadd.f32 0.0, %v2024
      %2026 = vmatmul.f32.gmra.mxu0 %v1949
      %v2027 = vpop.f32.mrf.mxu0
      %v2028 = vadd.f32 0.0, %v2027
      %2029 = vmatmul.f32.gmra.mxu0 %v1950
      %v2030 = vpop.f32.mrf.mxu0
      %v2031 = vadd.f32 0.0, %v2030
      %2032 = vmatmul.f32.gmra.mxu0 %v1951
      %v2033 = vpop.f32.mrf.mxu0
      %v2034 = vadd.f32 0.0, %v2033
      %2035 = vmatmul.f32.gmra.mxu0 %v1952
      %v2036 = vpop.f32.mrf.mxu0
      %v2037 = vadd.f32 0.0, %v2036
      %2038 = vmatmul.f32.gmra.mxu0 %v1953
      %v2039 = vpop.f32.mrf.mxu0
      %v2040 = vadd.f32 0.0, %v2039
      %2041 = vmatmul.f32.gmra.mxu0 %v1954
      %v2042 = vpop.f32.mrf.mxu0
      %v2043 = vadd.f32 0.0, %v2042
      %2044 = vmatmul.f32.gmra.mxu0 %v1955
      %v2045 = vpop.f32.mrf.mxu0
      %v2046 = vadd.f32 0.0, %v2045
      %2047 = vmatmul.f32.gmra.mxu0 %v1956
      %v2048 = vpop.f32.mrf.mxu0
      %v2049 = vadd.f32 0.0, %v2048
      %2050 = vmatmul.f32.gmra.mxu0 %v1957
      %v2051 = vpop.f32.mrf.mxu0
      %v2052 = vadd.f32 0.0, %v2051
      %2053 = vmatmul.f32.gmra.mxu0 %v1958
      %v2054 = vpop.f32.mrf.mxu0
      %v2055 = vadd.f32 0.0, %v2054
      %2056 = vmatmul.f32.gmra.mxu0 %v1959
      %v2057 = vpop.f32.mrf.mxu0
      %v2058 = vadd.f32 0.0, %v2057
      %2059 = vmatmul.f32.gmra.mxu0 %v1960
      %v2060 = vpop.f32.mrf.mxu0
      %v2061 = vadd.f32 0.0, %v2060
      %2062 = vmatmul.f32.gmra.mxu0 %v1961
      %v2063 = vpop.f32.mrf.mxu0
      %v2064 = vadd.f32 0.0, %v2063
      %2065 = vmatmul.f32.gmra.mxu0 %v1962
      %v2066 = vpop.f32.mrf.mxu0
      %v2067 = vadd.f32 0.0, %v2066
      %2068 = vmatmul.f32.gmra.mxu0 %v1963
      %v2069 = vpop.f32.mrf.mxu0
      %v2070 = vadd.f32 0.0, %v2069
      %2071 = vmatmul.f32.gmra.mxu0 %v1964
      %v2072 = vpop.f32.mrf.mxu0
      %v2073 = vadd.f32 0.0, %v2072
      %2074 = vmatmul.f32.gmra.mxu0 %v1965
      %v2075 = vpop.f32.mrf.mxu0
      %v2076 = vadd.f32 0.0, %v2075
      %2077 = vmatmul.f32.gmra.mxu0 %v1966
      %v2078 = vpop.f32.mrf.mxu0
      %v2079 = vadd.f32 0.0, %v2078
      %2080 = vmatmul.f32.gmra.mxu0 %v1967
      %v2081 = vpop.f32.mrf.mxu0
      %v2082 = vadd.f32 0.0, %v2081
      %2083 = vmatmul.f32.gmra.mxu0 %v1968
      %v2084 = vpop.f32.mrf.mxu0
      %v2085 = vadd.f32 0.0, %v2084
      %2086 = vmatmul.f32.gmra.mxu0 %v1969
      %v2087 = vpop.f32.mrf.mxu0
      %v2088 = vadd.f32 0.0, %v2087
      %2089 = vmatmul.f32.gmra.mxu0 %v1970
      %v2090 = vpop.f32.mrf.mxu0
      %v2091 = vadd.f32 0.0, %v2090
      %2092 = vmatmul.f32.gmra.mxu0 %v1971
      %v2093 = vpop.f32.mrf.mxu0
      %v2094 = vadd.f32 0.0, %v2093
      %2095 = vmatmul.f32.gmra.mxu0 %v1972
      %v2096 = vpop.f32.mrf.mxu0
      %v2097 = vadd.f32 0.0, %v2096
      %2098 = vmatmul.f32.gmra.mxu0 %v1973
      %v2099 = vpop.f32.mrf.mxu0
      %v2100 = vadd.f32 0.0, %v2099
      %2101 = vmatmul.f32.gmra.mxu0 %v1974
      %v2102 = vpop.f32.mrf.mxu0
      %v2103 = vadd.f32 0.0, %v2102
      %2104 = vdwg.mxu0
      %v2105 = vld [vmem:[%s231] sm:$0xff]
      %v2106 = vld [vmem:[%s231 + $0x8] sm:$0xff]
      %v2107 = vld [vmem:[%s231 + $0x10] sm:$0xff]
      %v2108 = vld [vmem:[%s231 + $0x18] sm:$0xff]
      %v2109 = vld [vmem:[%s231 + $0x20] sm:$0xff]
      %v2110 = vld [vmem:[%s231 + $0x28] sm:$0xff]
      %v2111 = vld [vmem:[%s231 + $0x30] sm:$0xff]
      %v2112 = vld [vmem:[%s231 + $0x38] sm:$0xff]
      %v2113 = vld [vmem:[%s231 + $0x40] sm:$0xff]
      %v2114 = vld [vmem:[%s231 + $0x48] sm:$0xff]
      %v2115 = vld [vmem:[%s231 + $0x50] sm:$0xff]
      %v2116 = vld [vmem:[%s231 + $0x58] sm:$0xff]
      %v2117 = vld [vmem:[%s231 + $0x60] sm:$0xff]
      %v2118 = vld [vmem:[%s231 + $0x68] sm:$0xff]
      %v2119 = vld [vmem:[%s231 + $0x70] sm:$0xff]
      %v2120 = vld [vmem:[%s231 + $0x78] sm:$0xff]
      %v2121 = vld [vmem:[%s231 + $0x80] sm:$0xff]
      %v2122 = vld [vmem:[%s231 + $0x88] sm:$0xff]
      %v2123 = vld [vmem:[%s231 + $0x90] sm:$0xff]
      %v2124 = vld [vmem:[%s231 + $0x98] sm:$0xff]
      %v2125 = vld [vmem:[%s231 + $0xa0] sm:$0xff]
      %v2126 = vld [vmem:[%s231 + $0xa8] sm:$0xff]
      %v2127 = vld [vmem:[%s231 + $0xb0] sm:$0xff]
      %v2128 = vld [vmem:[%s231 + $0xb8] sm:$0xff]
      %v2129 = vld [vmem:[%s231 + $0xc0] sm:$0xff]
      %v2130 = vld [vmem:[%s231 + $0xc8] sm:$0xff]
      %v2131 = vld [vmem:[%s231 + $0xd0] sm:$0xff]
      %v2132 = vld [vmem:[%s231 + $0xd8] sm:$0xff]
      %v2133 = vld [vmem:[%s231 + $0xe0] sm:$0xff]
      %v2134 = vld [vmem:[%s231 + $0xe8] sm:$0xff]
      %v2135 = vld [vmem:[%s231 + $0xf0] sm:$0xff]
      %v2136 = vld [vmem:[%s231 + $0xf8] sm:$0xff]
      %v2137 = vadd.f32 %v2105, %v2010
      %v2138 = vadd.f32 %v2106, %v2013
      %v2139 = vadd.f32 %v2107, %v2016
      %v2140 = vadd.f32 %v2108, %v2019
      %v2141 = vadd.f32 %v2109, %v2022
      %v2142 = vadd.f32 %v2110, %v2025
      %v2143 = vadd.f32 %v2111, %v2028
      %v2144 = vadd.f32 %v2112, %v2031
      %v2145 = vadd.f32 %v2113, %v2034
      %v2146 = vadd.f32 %v2114, %v2037
      %v2147 = vadd.f32 %v2115, %v2040
      %v2148 = vadd.f32 %v2116, %v2043
      %v2149 = vadd.f32 %v2117, %v2046
      %v2150 = vadd.f32 %v2118, %v2049
      %v2151 = vadd.f32 %v2119, %v2052
      %v2152 = vadd.f32 %v2120, %v2055
      %v2153 = vadd.f32 %v2121, %v2058
      %v2154 = vadd.f32 %v2122, %v2061
      %v2155 = vadd.f32 %v2123, %v2064
      %v2156 = vadd.f32 %v2124, %v2067
      %v2157 = vadd.f32 %v2125, %v2070
      %v2158 = vadd.f32 %v2126, %v2073
      %v2159 = vadd.f32 %v2127, %v2076
      %v2160 = vadd.f32 %v2128, %v2079
      %v2161 = vadd.f32 %v2129, %v2082
      %v2162 = vadd.f32 %v2130, %v2085
      %v2163 = vadd.f32 %v2131, %v2088
      %v2164 = vadd.f32 %v2132, %v2091
      %v2165 = vadd.f32 %v2133, %v2094
      %v2166 = vadd.f32 %v2134, %v2097
      %v2167 = vadd.f32 %v2135, %v2100
      %v2168 = vadd.f32 %v2136, %v2103
      %2169 = vst [vmem:[%s231] sm:$0xff] %v2137
      %2170 = vst [vmem:[%s231 + $0x8] sm:$0xff] %v2138
      %2171 = vst [vmem:[%s231 + $0x10] sm:$0xff] %v2139
      %2172 = vst [vmem:[%s231 + $0x18] sm:$0xff] %v2140
      %2173 = vst [vmem:[%s231 + $0x20] sm:$0xff] %v2141
      %2174 = vst [vmem:[%s231 + $0x28] sm:$0xff] %v2142
      %2175 = vst [vmem:[%s231 + $0x30] sm:$0xff] %v2143
      %2176 = vst [vmem:[%s231 + $0x38] sm:$0xff] %v2144
      %2177 = vst [vmem:[%s231 + $0x40] sm:$0xff] %v2145
      %2178 = vst [vmem:[%s231 + $0x48] sm:$0xff] %v2146
      %2179 = vst [vmem:[%s231 + $0x50] sm:$0xff] %v2147
      %2180 = vst [vmem:[%s231 + $0x58] sm:$0xff] %v2148
      %2181 = vst [vmem:[%s231 + $0x60] sm:$0xff] %v2149
      %2182 = vst [vmem:[%s231 + $0x68] sm:$0xff] %v2150
      %2183 = vst [vmem:[%s231 + $0x70] sm:$0xff] %v2151
      %2184 = vst [vmem:[%s231 + $0x78] sm:$0xff] %v2152
      %2185 = vst [vmem:[%s231 + $0x80] sm:$0xff] %v2153
      %2186 = vst [vmem:[%s231 + $0x88] sm:$0xff] %v2154
      %2187 = vst [vmem:[%s231 + $0x90] sm:$0xff] %v2155
      %2188 = vst [vmem:[%s231 + $0x98] sm:$0xff] %v2156
      %2189 = vst [vmem:[%s231 + $0xa0] sm:$0xff] %v2157
      %2190 = vst [vmem:[%s231 + $0xa8] sm:$0xff] %v2158
      %2191 = vst [vmem:[%s231 + $0xb0] sm:$0xff] %v2159
      %2192 = vst [vmem:[%s231 + $0xb8] sm:$0xff] %v2160
      %2193 = vst [vmem:[%s231 + $0xc0] sm:$0xff] %v2161
      %2194 = vst [vmem:[%s231 + $0xc8] sm:$0xff] %v2162
      %2195 = vst [vmem:[%s231 + $0xd0] sm:$0xff] %v2163
      %2196 = vst [vmem:[%s231 + $0xd8] sm:$0xff] %v2164
      %2197 = vst [vmem:[%s231 + $0xe0] sm:$0xff] %v2165
      %2198 = vst [vmem:[%s231 + $0xe8] sm:$0xff] %v2166
      %2199 = vst [vmem:[%s231 + $0xf0] sm:$0xff] %v2167
      %2200 = vst [vmem:[%s231 + $0xf8] sm:$0xff] %v2168
      %v2201 = vld [vmem:[%s1942 + $0x1] sm:$0xff]
      %v2202 = vld [vmem:[%s1942 + $0x9] sm:$0xff]
      %v2203 = vld [vmem:[%s1942 + $0x19] sm:$0xff]
      %v2204 = vld [vmem:[%s1942 + $0x21] sm:$0xff]
      %v2205 = vld [vmem:[%s1942 + $0x31] sm:$0xff]
      %v2206 = vld [vmem:[%s1942 + $0x39] sm:$0xff]
      %v2207 = vld [vmem:[%s1942 + $0x49] sm:$0xff]
      %v2208 = vld [vmem:[%s1942 + $0x51] sm:$0xff]
      %v2209 = vld [vmem:[%s1942 + $0x61] sm:$0xff]
      %v2210 = vld [vmem:[%s1942 + $0x69] sm:$0xff]
      %v2211 = vld [vmem:[%s1942 + $0x79] sm:$0xff]
      %v2212 = vld [vmem:[%s1942 + $0x81] sm:$0xff]
      %v2213 = vld [vmem:[%s1942 + $0x91] sm:$0xff]
      %v2214 = vld [vmem:[%s1942 + $0x99] sm:$0xff]
      %v2215 = vld [vmem:[%s1942 + $0xa9] sm:$0xff]
      %v2216 = vld [vmem:[%s1942 + $0xb1] sm:$0xff]
      %v2217 = vld [vmem:[%s1942 + $0xc1] sm:$0xff]
      %v2218 = vld [vmem:[%s1942 + $0xc9] sm:$0xff]
      %v2219 = vld [vmem:[%s1942 + $0xd9] sm:$0xff]
      %v2220 = vld [vmem:[%s1942 + $0xe1] sm:$0xff]
      %v2221 = vld [vmem:[%s1942 + $0xf1] sm:$0xff]
      %v2222 = vld [vmem:[%s1942 + $0xf9] sm:$0xff]
      %v2223 = vld [vmem:[%s1942 + $0x109] sm:$0xff]
      %v2224 = vld [vmem:[%s1942 + $0x111] sm:$0xff]
      %v2225 = vld [vmem:[%s1942 + $0x121] sm:$0xff]
      %v2226 = vld [vmem:[%s1942 + $0x129] sm:$0xff]
      %v2227 = vld [vmem:[%s1942 + $0x139] sm:$0xff]
      %v2228 = vld [vmem:[%s1942 + $0x141] sm:$0xff]
      %v2229 = vld [vmem:[%s1942 + $0x151] sm:$0xff]
      %v2230 = vld [vmem:[%s1942 + $0x159] sm:$0xff]
      %v2231 = vld [vmem:[%s1942 + $0x169] sm:$0xff]
      %v2232 = vld [vmem:[%s1942 + $0x171] sm:$0xff]
      %s2233 = scalar_lea.vmem %s3, 896
      %v2234 = vld [vmem:[%s2233] sm:$0xff]
      %v2235 = vld [vmem:[%s2233 + $0x8] sm:$0xff]
      %v2236 = vld [vmem:[%s2233 + $0x10] sm:$0xff]
      %v2237 = vld [vmem:[%s2233 + $0x18] sm:$0xff]
      %v2238 = vld [vmem:[%s2233 + $0x20] sm:$0xff]
      %v2239 = vld [vmem:[%s2233 + $0x28] sm:$0xff]
      %v2240 = vld [vmem:[%s2233 + $0x30] sm:$0xff]
      %v2241 = vld [vmem:[%s2233 + $0x38] sm:$0xff]
      %v2242 = vld [vmem:[%s2233 + $0x40] sm:$0xff]
      %v2243 = vld [vmem:[%s2233 + $0x48] sm:$0xff]
      %v2244 = vld [vmem:[%s2233 + $0x50] sm:$0xff]
      %v2245 = vld [vmem:[%s2233 + $0x58] sm:$0xff]
      %v2246 = vld [vmem:[%s2233 + $0x60] sm:$0xff]
      %v2247 = vld [vmem:[%s2233 + $0x68] sm:$0xff]
      %v2248 = vld [vmem:[%s2233 + $0x70] sm:$0xff]
      %v2249 = vld [vmem:[%s2233 + $0x78] sm:$0xff]
      %2250 = vmatpush.msra.mxu0 %v2249
      %2251 = vmatpush.msra.mxu0 %v2248
      %2252 = vmatpush.msra.mxu0 %v2247
      %2253 = vmatpush.msra.mxu0 %v2246
      %2254 = vmatpush.msra.mxu0 %v2245
      %2255 = vmatpush.msra.mxu0 %v2244
      %2256 = vmatpush.msra.mxu0 %v2243
      %2257 = vmatpush.msra.mxu0 %v2242
      %2258 = vmatpush.msra.mxu0 %v2241
      %2259 = vmatpush.msra.mxu0 %v2240
      %2260 = vmatpush.msra.mxu0 %v2239
      %2261 = vmatpush.msra.mxu0 %v2238
      %2262 = vmatpush.msra.mxu0 %v2237
      %2263 = vmatpush.msra.mxu0 %v2236
      %2264 = vmatpush.msra.mxu0 %v2235
      %2265 = vmatpush.msra.mxu0 %v2234
      %2266 = vmatmul.f32.gmra.mxu0 %v2201
      %v2267 = vpop.f32.mrf.mxu0
      %v2268 = vadd.f32 0.0, %v2267
      %2269 = vmatmul.f32.gmra.mxu0 %v2202
      %v2270 = vpop.f32.mrf.mxu0
      %v2271 = vadd.f32 0.0, %v2270
      %2272 = vmatmul.f32.gmra.mxu0 %v2203
      %v2273 = vpop.f32.mrf.mxu0
      %v2274 = vadd.f32 0.0, %v2273
      %2275 = vmatmul.f32.gmra.mxu0 %v2204
      %v2276 = vpop.f32.mrf.mxu0
      %v2277 = vadd.f32 0.0, %v2276
      %2278 = vmatmul.f32.gmra.mxu0 %v2205
      %v2279 = vpop.f32.mrf.mxu0
      %v2280 = vadd.f32 0.0, %v2279
      %2281 = vmatmul.f32.gmra.mxu0 %v2206
      %v2282 = vpop.f32.mrf.mxu0
      %v2283 = vadd.f32 0.0, %v2282
      %2284 = vmatmul.f32.gmra.mxu0 %v2207
      %v2285 = vpop.f32.mrf.mxu0
      %v2286 = vadd.f32 0.0, %v2285
      %2287 = vmatmul.f32.gmra.mxu0 %v2208
      %v2288 = vpop.f32.mrf.mxu0
      %v2289 = vadd.f32 0.0, %v2288
      %2290 = vmatmul.f32.gmra.mxu0 %v2209
      %v2291 = vpop.f32.mrf.mxu0
      %v2292 = vadd.f32 0.0, %v2291
      %2293 = vmatmul.f32.gmra.mxu0 %v2210
      %v2294 = vpop.f32.mrf.mxu0
      %v2295 = vadd.f32 0.0, %v2294
      %2296 = vmatmul.f32.gmra.mxu0 %v2211
      %v2297 = vpop.f32.mrf.mxu0
      %v2298 = vadd.f32 0.0, %v2297
      %2299 = vmatmul.f32.gmra.mxu0 %v2212
      %v2300 = vpop.f32.mrf.mxu0
      %v2301 = vadd.f32 0.0, %v2300
      %2302 = vmatmul.f32.gmra.mxu0 %v2213
      %v2303 = vpop.f32.mrf.mxu0
      %v2304 = vadd.f32 0.0, %v2303
      %2305 = vmatmul.f32.gmra.mxu0 %v2214
      %v2306 = vpop.f32.mrf.mxu0
      %v2307 = vadd.f32 0.0, %v2306
      %2308 = vmatmul.f32.gmra.mxu0 %v2215
      %v2309 = vpop.f32.mrf.mxu0
      %v2310 = vadd.f32 0.0, %v2309
      %2311 = vmatmul.f32.gmra.mxu0 %v2216
      %v2312 = vpop.f32.mrf.mxu0
      %v2313 = vadd.f32 0.0, %v2312
      %2314 = vmatmul.f32.gmra.mxu0 %v2217
      %v2315 = vpop.f32.mrf.mxu0
      %v2316 = vadd.f32 0.0, %v2315
      %2317 = vmatmul.f32.gmra.mxu0 %v2218
      %v2318 = vpop.f32.mrf.mxu0
      %v2319 = vadd.f32 0.0, %v2318
      %2320 = vmatmul.f32.gmra.mxu0 %v2219
      %v2321 = vpop.f32.mrf.mxu0
      %v2322 = vadd.f32 0.0, %v2321
      %2323 = vmatmul.f32.gmra.mxu0 %v2220
      %v2324 = vpop.f32.mrf.mxu0
      %v2325 = vadd.f32 0.0, %v2324
      %2326 = vmatmul.f32.gmra.mxu0 %v2221
      %v2327 = vpop.f32.mrf.mxu0
      %v2328 = vadd.f32 0.0, %v2327
      %2329 = vmatmul.f32.gmra.mxu0 %v2222
      %v2330 = vpop.f32.mrf.mxu0
      %v2331 = vadd.f32 0.0, %v2330
      %2332 = vmatmul.f32.gmra.mxu0 %v2223
      %v2333 = vpop.f32.mrf.mxu0
      %v2334 = vadd.f32 0.0, %v2333
      %2335 = vmatmul.f32.gmra.mxu0 %v2224
      %v2336 = vpop.f32.mrf.mxu0
      %v2337 = vadd.f32 0.0, %v2336
      %2338 = vmatmul.f32.gmra.mxu0 %v2225
      %v2339 = vpop.f32.mrf.mxu0
      %v2340 = vadd.f32 0.0, %v2339
      %2341 = vmatmul.f32.gmra.mxu0 %v2226
      %v2342 = vpop.f32.mrf.mxu0
      %v2343 = vadd.f32 0.0, %v2342
      %2344 = vmatmul.f32.gmra.mxu0 %v2227
      %v2345 = vpop.f32.mrf.mxu0
      %v2346 = vadd.f32 0.0, %v2345
      %2347 = vmatmul.f32.gmra.mxu0 %v2228
      %v2348 = vpop.f32.mrf.mxu0
      %v2349 = vadd.f32 0.0, %v2348
      %2350 = vmatmul.f32.gmra.mxu0 %v2229
      %v2351 = vpop.f32.mrf.mxu0
      %v2352 = vadd.f32 0.0, %v2351
      %2353 = vmatmul.f32.gmra.mxu0 %v2230
      %v2354 = vpop.f32.mrf.mxu0
      %v2355 = vadd.f32 0.0, %v2354
      %2356 = vmatmul.f32.gmra.mxu0 %v2231
      %v2357 = vpop.f32.mrf.mxu0
      %v2358 = vadd.f32 0.0, %v2357
      %2359 = vmatmul.f32.gmra.mxu0 %v2232
      %v2360 = vpop.f32.mrf.mxu0
      %v2361 = vadd.f32 0.0, %v2360
      %2362 = vdwg.mxu0
      %v2363 = vld [vmem:[%s231] sm:$0xff]
      %v2364 = vld [vmem:[%s231 + $0x8] sm:$0xff]
      %v2365 = vld [vmem:[%s231 + $0x10] sm:$0xff]
      %v2366 = vld [vmem:[%s231 + $0x18] sm:$0xff]
      %v2367 = vld [vmem:[%s231 + $0x20] sm:$0xff]
      %v2368 = vld [vmem:[%s231 + $0x28] sm:$0xff]
      %v2369 = vld [vmem:[%s231 + $0x30] sm:$0xff]
      %v2370 = vld [vmem:[%s231 + $0x38] sm:$0xff]
      %v2371 = vld [vmem:[%s231 + $0x40] sm:$0xff]
      %v2372 = vld [vmem:[%s231 + $0x48] sm:$0xff]
      %v2373 = vld [vmem:[%s231 + $0x50] sm:$0xff]
      %v2374 = vld [vmem:[%s231 + $0x58] sm:$0xff]
      %v2375 = vld [vmem:[%s231 + $0x60] sm:$0xff]
      %v2376 = vld [vmem:[%s231 + $0x68] sm:$0xff]
      %v2377 = vld [vmem:[%s231 + $0x70] sm:$0xff]
      %v2378 = vld [vmem:[%s231 + $0x78] sm:$0xff]
      %v2379 = vld [vmem:[%s231 + $0x80] sm:$0xff]
      %v2380 = vld [vmem:[%s231 + $0x88] sm:$0xff]
      %v2381 = vld [vmem:[%s231 + $0x90] sm:$0xff]
      %v2382 = vld [vmem:[%s231 + $0x98] sm:$0xff]
      %v2383 = vld [vmem:[%s231 + $0xa0] sm:$0xff]
      %v2384 = vld [vmem:[%s231 + $0xa8] sm:$0xff]
      %v2385 = vld [vmem:[%s231 + $0xb0] sm:$0xff]
      %v2386 = vld [vmem:[%s231 + $0xb8] sm:$0xff]
      %v2387 = vld [vmem:[%s231 + $0xc0] sm:$0xff]
      %v2388 = vld [vmem:[%s231 + $0xc8] sm:$0xff]
      %v2389 = vld [vmem:[%s231 + $0xd0] sm:$0xff]
      %v2390 = vld [vmem:[%s231 + $0xd8] sm:$0xff]
      %v2391 = vld [vmem:[%s231 + $0xe0] sm:$0xff]
      %v2392 = vld [vmem:[%s231 + $0xe8] sm:$0xff]
      %v2393 = vld [vmem:[%s231 + $0xf0] sm:$0xff]
      %v2394 = vld [vmem:[%s231 + $0xf8] sm:$0xff]
      %v2395 = vadd.f32 %v2363, %v2268
      %v2396 = vadd.f32 %v2364, %v2271
      %v2397 = vadd.f32 %v2365, %v2274
      %v2398 = vadd.f32 %v2366, %v2277
      %v2399 = vadd.f32 %v2367, %v2280
      %v2400 = vadd.f32 %v2368, %v2283
      %v2401 = vadd.f32 %v2369, %v2286
      %v2402 = vadd.f32 %v2370, %v2289
      %v2403 = vadd.f32 %v2371, %v2292
      %v2404 = vadd.f32 %v2372, %v2295
      %v2405 = vadd.f32 %v2373, %v2298
      %v2406 = vadd.f32 %v2374, %v2301
      %v2407 = vadd.f32 %v2375, %v2304
      %v2408 = vadd.f32 %v2376, %v2307
      %v2409 = vadd.f32 %v2377, %v2310
      %v2410 = vadd.f32 %v2378, %v2313
      %v2411 = vadd.f32 %v2379, %v2316
      %v2412 = vadd.f32 %v2380, %v2319
      %v2413 = vadd.f32 %v2381, %v2322
      %v2414 = vadd.f32 %v2382, %v2325
      %v2415 = vadd.f32 %v2383, %v2328
      %v2416 = vadd.f32 %v2384, %v2331
      %v2417 = vadd.f32 %v2385, %v2334
      %v2418 = vadd.f32 %v2386, %v2337
      %v2419 = vadd.f32 %v2387, %v2340
      %v2420 = vadd.f32 %v2388, %v2343
      %v2421 = vadd.f32 %v2389, %v2346
      %v2422 = vadd.f32 %v2390, %v2349
      %v2423 = vadd.f32 %v2391, %v2352
      %v2424 = vadd.f32 %v2392, %v2355
      %v2425 = vadd.f32 %v2393, %v2358
      %v2426 = vadd.f32 %v2394, %v2361
      %2427 = vst [vmem:[%s231] sm:$0xff] %v2395
      %2428 = vst [vmem:[%s231 + $0x8] sm:$0xff] %v2396
      %2429 = vst [vmem:[%s231 + $0x10] sm:$0xff] %v2397
      %2430 = vst [vmem:[%s231 + $0x18] sm:$0xff] %v2398
      %2431 = vst [vmem:[%s231 + $0x20] sm:$0xff] %v2399
      %2432 = vst [vmem:[%s231 + $0x28] sm:$0xff] %v2400
      %2433 = vst [vmem:[%s231 + $0x30] sm:$0xff] %v2401
      %2434 = vst [vmem:[%s231 + $0x38] sm:$0xff] %v2402
      %2435 = vst [vmem:[%s231 + $0x40] sm:$0xff] %v2403
      %2436 = vst [vmem:[%s231 + $0x48] sm:$0xff] %v2404
      %2437 = vst [vmem:[%s231 + $0x50] sm:$0xff] %v2405
      %2438 = vst [vmem:[%s231 + $0x58] sm:$0xff] %v2406
      %2439 = vst [vmem:[%s231 + $0x60] sm:$0xff] %v2407
      %2440 = vst [vmem:[%s231 + $0x68] sm:$0xff] %v2408
      %2441 = vst [vmem:[%s231 + $0x70] sm:$0xff] %v2409
      %2442 = vst [vmem:[%s231 + $0x78] sm:$0xff] %v2410
      %2443 = vst [vmem:[%s231 + $0x80] sm:$0xff] %v2411
      %2444 = vst [vmem:[%s231 + $0x88] sm:$0xff] %v2412
      %2445 = vst [vmem:[%s231 + $0x90] sm:$0xff] %v2413
      %2446 = vst [vmem:[%s231 + $0x98] sm:$0xff] %v2414
      %2447 = vst [vmem:[%s231 + $0xa0] sm:$0xff] %v2415
      %2448 = vst [vmem:[%s231 + $0xa8] sm:$0xff] %v2416
      %2449 = vst [vmem:[%s231 + $0xb0] sm:$0xff] %v2417
      %2450 = vst [vmem:[%s231 + $0xb8] sm:$0xff] %v2418
      %2451 = vst [vmem:[%s231 + $0xc0] sm:$0xff] %v2419
      %2452 = vst [vmem:[%s231 + $0xc8] sm:$0xff] %v2420
      %2453 = vst [vmem:[%s231 + $0xd0] sm:$0xff] %v2421
      %2454 = vst [vmem:[%s231 + $0xd8] sm:$0xff] %v2422
      %2455 = vst [vmem:[%s231 + $0xe0] sm:$0xff] %v2423
      %2456 = vst [vmem:[%s231 + $0xe8] sm:$0xff] %v2424
      %2457 = vst [vmem:[%s231 + $0xf0] sm:$0xff] %v2425
      %2458 = vst [vmem:[%s231 + $0xf8] sm:$0xff] %v2426
      %v2459 = vld [vmem:[%s1942 + $0x2] sm:$0xff]
      %v2460 = vld [vmem:[%s1942 + $0xa] sm:$0xff]
      %v2461 = vld [vmem:[%s1942 + $0x1a] sm:$0xff]
      %v2462 = vld [vmem:[%s1942 + $0x22] sm:$0xff]
      %v2463 = vld [vmem:[%s1942 + $0x32] sm:$0xff]
      %v2464 = vld [vmem:[%s1942 + $0x3a] sm:$0xff]
      %v2465 = vld [vmem:[%s1942 + $0x4a] sm:$0xff]
      %v2466 = vld [vmem:[%s1942 + $0x52] sm:$0xff]
      %v2467 = vld [vmem:[%s1942 + $0x62] sm:$0xff]
      %v2468 = vld [vmem:[%s1942 + $0x6a] sm:$0xff]
      %v2469 = vld [vmem:[%s1942 + $0x7a] sm:$0xff]
      %v2470 = vld [vmem:[%s1942 + $0x82] sm:$0xff]
      %v2471 = vld [vmem:[%s1942 + $0x92] sm:$0xff]
      %v2472 = vld [vmem:[%s1942 + $0x9a] sm:$0xff]
      %v2473 = vld [vmem:[%s1942 + $0xaa] sm:$0xff]
      %v2474 = vld [vmem:[%s1942 + $0xb2] sm:$0xff]
      %v2475 = vld [vmem:[%s1942 + $0xc2] sm:$0xff]
      %v2476 = vld [vmem:[%s1942 + $0xca] sm:$0xff]
      %v2477 = vld [vmem:[%s1942 + $0xda] sm:$0xff]
      %v2478 = vld [vmem:[%s1942 + $0xe2] sm:$0xff]
      %v2479 = vld [vmem:[%s1942 + $0xf2] sm:$0xff]
      %v2480 = vld [vmem:[%s1942 + $0xfa] sm:$0xff]
      %v2481 = vld [vmem:[%s1942 + $0x10a] sm:$0xff]
      %v2482 = vld [vmem:[%s1942 + $0x112] sm:$0xff]
      %v2483 = vld [vmem:[%s1942 + $0x122] sm:$0xff]
      %v2484 = vld [vmem:[%s1942 + $0x12a] sm:$0xff]
      %v2485 = vld [vmem:[%s1942 + $0x13a] sm:$0xff]
      %v2486 = vld [vmem:[%s1942 + $0x142] sm:$0xff]
      %v2487 = vld [vmem:[%s1942 + $0x152] sm:$0xff]
      %v2488 = vld [vmem:[%s1942 + $0x15a] sm:$0xff]
      %v2489 = vld [vmem:[%s1942 + $0x16a] sm:$0xff]
      %v2490 = vld [vmem:[%s1942 + $0x172] sm:$0xff]
      %s2491 = scalar_lea.vmem %s3, 1024
      %v2492 = vld [vmem:[%s2491] sm:$0xff]
      %v2493 = vld [vmem:[%s2491 + $0x8] sm:$0xff]
      %v2494 = vld [vmem:[%s2491 + $0x10] sm:$0xff]
      %v2495 = vld [vmem:[%s2491 + $0x18] sm:$0xff]
      %v2496 = vld [vmem:[%s2491 + $0x20] sm:$0xff]
      %v2497 = vld [vmem:[%s2491 + $0x28] sm:$0xff]
      %v2498 = vld [vmem:[%s2491 + $0x30] sm:$0xff]
      %v2499 = vld [vmem:[%s2491 + $0x38] sm:$0xff]
      %v2500 = vld [vmem:[%s2491 + $0x40] sm:$0xff]
      %v2501 = vld [vmem:[%s2491 + $0x48] sm:$0xff]
      %v2502 = vld [vmem:[%s2491 + $0x50] sm:$0xff]
      %v2503 = vld [vmem:[%s2491 + $0x58] sm:$0xff]
      %v2504 = vld [vmem:[%s2491 + $0x60] sm:$0xff]
      %v2505 = vld [vmem:[%s2491 + $0x68] sm:$0xff]
      %v2506 = vld [vmem:[%s2491 + $0x70] sm:$0xff]
      %v2507 = vld [vmem:[%s2491 + $0x78] sm:$0xff]
      %2508 = vmatpush.msra.mxu0 %v2507
      %2509 = vmatpush.msra.mxu0 %v2506
      %2510 = vmatpush.msra.mxu0 %v2505
      %2511 = vmatpush.msra.mxu0 %v2504
      %2512 = vmatpush.msra.mxu0 %v2503
      %2513 = vmatpush.msra.mxu0 %v2502
      %2514 = vmatpush.msra.mxu0 %v2501
      %2515 = vmatpush.msra.mxu0 %v2500
      %2516 = vmatpush.msra.mxu0 %v2499
      %2517 = vmatpush.msra.mxu0 %v2498
      %2518 = vmatpush.msra.mxu0 %v2497
      %2519 = vmatpush.msra.mxu0 %v2496
      %2520 = vmatpush.msra.mxu0 %v2495
      %2521 = vmatpush.msra.mxu0 %v2494
      %2522 = vmatpush.msra.mxu0 %v2493
      %2523 = vmatpush.msra.mxu0 %v2492
      %2524 = vmatmul.f32.gmra.mxu0 %v2459
      %v2525 = vpop.f32.mrf.mxu0
      %v2526 = vadd.f32 0.0, %v2525
      %2527 = vmatmul.f32.gmra.mxu0 %v2460
      %v2528 = vpop.f32.mrf.mxu0
      %v2529 = vadd.f32 0.0, %v2528
      %2530 = vmatmul.f32.gmra.mxu0 %v2461
      %v2531 = vpop.f32.mrf.mxu0
      %v2532 = vadd.f32 0.0, %v2531
      %2533 = vmatmul.f32.gmra.mxu0 %v2462
      %v2534 = vpop.f32.mrf.mxu0
      %v2535 = vadd.f32 0.0, %v2534
      %2536 = vmatmul.f32.gmra.mxu0 %v2463
      %v2537 = vpop.f32.mrf.mxu0
      %v2538 = vadd.f32 0.0, %v2537
      %2539 = vmatmul.f32.gmra.mxu0 %v2464
      %v2540 = vpop.f32.mrf.mxu0
      %v2541 = vadd.f32 0.0, %v2540
      %2542 = vmatmul.f32.gmra.mxu0 %v2465
      %v2543 = vpop.f32.mrf.mxu0
      %v2544 = vadd.f32 0.0, %v2543
      %2545 = vmatmul.f32.gmra.mxu0 %v2466
      %v2546 = vpop.f32.mrf.mxu0
      %v2547 = vadd.f32 0.0, %v2546
      %2548 = vmatmul.f32.gmra.mxu0 %v2467
      %v2549 = vpop.f32.mrf.mxu0
      %v2550 = vadd.f32 0.0, %v2549
      %2551 = vmatmul.f32.gmra.mxu0 %v2468
      %v2552 = vpop.f32.mrf.mxu0
      %v2553 = vadd.f32 0.0, %v2552
      %2554 = vmatmul.f32.gmra.mxu0 %v2469
      %v2555 = vpop.f32.mrf.mxu0
      %v2556 = vadd.f32 0.0, %v2555
      %2557 = vmatmul.f32.gmra.mxu0 %v2470
      %v2558 = vpop.f32.mrf.mxu0
      %v2559 = vadd.f32 0.0, %v2558
      %2560 = vmatmul.f32.gmra.mxu0 %v2471
      %v2561 = vpop.f32.mrf.mxu0
      %v2562 = vadd.f32 0.0, %v2561
      %2563 = vmatmul.f32.gmra.mxu0 %v2472
      %v2564 = vpop.f32.mrf.mxu0
      %v2565 = vadd.f32 0.0, %v2564
      %2566 = vmatmul.f32.gmra.mxu0 %v2473
      %v2567 = vpop.f32.mrf.mxu0
      %v2568 = vadd.f32 0.0, %v2567
      %2569 = vmatmul.f32.gmra.mxu0 %v2474
      %v2570 = vpop.f32.mrf.mxu0
      %v2571 = vadd.f32 0.0, %v2570
      %2572 = vmatmul.f32.gmra.mxu0 %v2475
      %v2573 = vpop.f32.mrf.mxu0
      %v2574 = vadd.f32 0.0, %v2573
      %2575 = vmatmul.f32.gmra.mxu0 %v2476
      %v2576 = vpop.f32.mrf.mxu0
      %v2577 = vadd.f32 0.0, %v2576
      %2578 = vmatmul.f32.gmra.mxu0 %v2477
      %v2579 = vpop.f32.mrf.mxu0
      %v2580 = vadd.f32 0.0, %v2579
      %2581 = vmatmul.f32.gmra.mxu0 %v2478
      %v2582 = vpop.f32.mrf.mxu0
      %v2583 = vadd.f32 0.0, %v2582
      %2584 = vmatmul.f32.gmra.mxu0 %v2479
      %v2585 = vpop.f32.mrf.mxu0
      %v2586 = vadd.f32 0.0, %v2585
      %2587 = vmatmul.f32.gmra.mxu0 %v2480
      %v2588 = vpop.f32.mrf.mxu0
      %v2589 = vadd.f32 0.0, %v2588
      %2590 = vmatmul.f32.gmra.mxu0 %v2481
      %v2591 = vpop.f32.mrf.mxu0
      %v2592 = vadd.f32 0.0, %v2591
      %2593 = vmatmul.f32.gmra.mxu0 %v2482
      %v2594 = vpop.f32.mrf.mxu0
      %v2595 = vadd.f32 0.0, %v2594
      %2596 = vmatmul.f32.gmra.mxu0 %v2483
      %v2597 = vpop.f32.mrf.mxu0
      %v2598 = vadd.f32 0.0, %v2597
      %2599 = vmatmul.f32.gmra.mxu0 %v2484
      %v2600 = vpop.f32.mrf.mxu0
      %v2601 = vadd.f32 0.0, %v2600
      %2602 = vmatmul.f32.gmra.mxu0 %v2485
      %v2603 = vpop.f32.mrf.mxu0
      %v2604 = vadd.f32 0.0, %v2603
      %2605 = vmatmul.f32.gmra.mxu0 %v2486
      %v2606 = vpop.f32.mrf.mxu0
      %v2607 = vadd.f32 0.0, %v2606
      %2608 = vmatmul.f32.gmra.mxu0 %v2487
      %v2609 = vpop.f32.mrf.mxu0
      %v2610 = vadd.f32 0.0, %v2609
      %2611 = vmatmul.f32.gmra.mxu0 %v2488
      %v2612 = vpop.f32.mrf.mxu0
      %v2613 = vadd.f32 0.0, %v2612
      %2614 = vmatmul.f32.gmra.mxu0 %v2489
      %v2615 = vpop.f32.mrf.mxu0
      %v2616 = vadd.f32 0.0, %v2615
      %2617 = vmatmul.f32.gmra.mxu0 %v2490
      %v2618 = vpop.f32.mrf.mxu0
      %v2619 = vadd.f32 0.0, %v2618
      %2620 = vdwg.mxu0
      %v2621 = vld [vmem:[%s231] sm:$0xff]
      %v2622 = vld [vmem:[%s231 + $0x8] sm:$0xff]
      %v2623 = vld [vmem:[%s231 + $0x10] sm:$0xff]
      %v2624 = vld [vmem:[%s231 + $0x18] sm:$0xff]
      %v2625 = vld [vmem:[%s231 + $0x20] sm:$0xff]
      %v2626 = vld [vmem:[%s231 + $0x28] sm:$0xff]
      %v2627 = vld [vmem:[%s231 + $0x30] sm:$0xff]
      %v2628 = vld [vmem:[%s231 + $0x38] sm:$0xff]
      %v2629 = vld [vmem:[%s231 + $0x40] sm:$0xff]
      %v2630 = vld [vmem:[%s231 + $0x48] sm:$0xff]
      %v2631 = vld [vmem:[%s231 + $0x50] sm:$0xff]
      %v2632 = vld [vmem:[%s231 + $0x58] sm:$0xff]
      %v2633 = vld [vmem:[%s231 + $0x60] sm:$0xff]
      %v2634 = vld [vmem:[%s231 + $0x68] sm:$0xff]
      %v2635 = vld [vmem:[%s231 + $0x70] sm:$0xff]
      %v2636 = vld [vmem:[%s231 + $0x78] sm:$0xff]
      %v2637 = vld [vmem:[%s231 + $0x80] sm:$0xff]
      %v2638 = vld [vmem:[%s231 + $0x88] sm:$0xff]
      %v2639 = vld [vmem:[%s231 + $0x90] sm:$0xff]
      %v2640 = vld [vmem:[%s231 + $0x98] sm:$0xff]
      %v2641 = vld [vmem:[%s231 + $0xa0] sm:$0xff]
      %v2642 = vld [vmem:[%s231 + $0xa8] sm:$0xff]
      %v2643 = vld [vmem:[%s231 + $0xb0] sm:$0xff]
      %v2644 = vld [vmem:[%s231 + $0xb8] sm:$0xff]
      %v2645 = vld [vmem:[%s231 + $0xc0] sm:$0xff]
      %v2646 = vld [vmem:[%s231 + $0xc8] sm:$0xff]
      %v2647 = vld [vmem:[%s231 + $0xd0] sm:$0xff]
      %v2648 = vld [vmem:[%s231 + $0xd8] sm:$0xff]
      %v2649 = vld [vmem:[%s231 + $0xe0] sm:$0xff]
      %v2650 = vld [vmem:[%s231 + $0xe8] sm:$0xff]
      %v2651 = vld [vmem:[%s231 + $0xf0] sm:$0xff]
      %v2652 = vld [vmem:[%s231 + $0xf8] sm:$0xff]
      %v2653 = vadd.f32 %v2621, %v2526
      %v2654 = vadd.f32 %v2622, %v2529
      %v2655 = vadd.f32 %v2623, %v2532
      %v2656 = vadd.f32 %v2624, %v2535
      %v2657 = vadd.f32 %v2625, %v2538
      %v2658 = vadd.f32 %v2626, %v2541
      %v2659 = vadd.f32 %v2627, %v2544
      %v2660 = vadd.f32 %v2628, %v2547
      %v2661 = vadd.f32 %v2629, %v2550
      %v2662 = vadd.f32 %v2630, %v2553
      %v2663 = vadd.f32 %v2631, %v2556
      %v2664 = vadd.f32 %v2632, %v2559
      %v2665 = vadd.f32 %v2633, %v2562
      %v2666 = vadd.f32 %v2634, %v2565
      %v2667 = vadd.f32 %v2635, %v2568
      %v2668 = vadd.f32 %v2636, %v2571
      %v2669 = vadd.f32 %v2637, %v2574
      %v2670 = vadd.f32 %v2638, %v2577
      %v2671 = vadd.f32 %v2639, %v2580
      %v2672 = vadd.f32 %v2640, %v2583
      %v2673 = vadd.f32 %v2641, %v2586
      %v2674 = vadd.f32 %v2642, %v2589
      %v2675 = vadd.f32 %v2643, %v2592
      %v2676 = vadd.f32 %v2644, %v2595
      %v2677 = vadd.f32 %v2645, %v2598
      %v2678 = vadd.f32 %v2646, %v2601
      %v2679 = vadd.f32 %v2647, %v2604
      %v2680 = vadd.f32 %v2648, %v2607
      %v2681 = vadd.f32 %v2649, %v2610
      %v2682 = vadd.f32 %v2650, %v2613
      %v2683 = vadd.f32 %v2651, %v2616
      %v2684 = vadd.f32 %v2652, %v2619
      %2685 = vst [vmem:[%s231] sm:$0xff] %v2653
      %2686 = vst [vmem:[%s231 + $0x8] sm:$0xff] %v2654
      %2687 = vst [vmem:[%s231 + $0x10] sm:$0xff] %v2655
      %2688 = vst [vmem:[%s231 + $0x18] sm:$0xff] %v2656
      %2689 = vst [vmem:[%s231 + $0x20] sm:$0xff] %v2657
      %2690 = vst [vmem:[%s231 + $0x28] sm:$0xff] %v2658
      %2691 = vst [vmem:[%s231 + $0x30] sm:$0xff] %v2659
      %2692 = vst [vmem:[%s231 + $0x38] sm:$0xff] %v2660
      %2693 = vst [vmem:[%s231 + $0x40] sm:$0xff] %v2661
      %2694 = vst [vmem:[%s231 + $0x48] sm:$0xff] %v2662
      %2695 = vst [vmem:[%s231 + $0x50] sm:$0xff] %v2663
      %2696 = vst [vmem:[%s231 + $0x58] sm:$0xff] %v2664
      %2697 = vst [vmem:[%s231 + $0x60] sm:$0xff] %v2665
      %2698 = vst [vmem:[%s231 + $0x68] sm:$0xff] %v2666
      %2699 = vst [vmem:[%s231 + $0x70] sm:$0xff] %v2667
      %2700 = vst [vmem:[%s231 + $0x78] sm:$0xff] %v2668
      %2701 = vst [vmem:[%s231 + $0x80] sm:$0xff] %v2669
      %2702 = vst [vmem:[%s231 + $0x88] sm:$0xff] %v2670
      %2703 = vst [vmem:[%s231 + $0x90] sm:$0xff] %v2671
      %2704 = vst [vmem:[%s231 + $0x98] sm:$0xff] %v2672
      %2705 = vst [vmem:[%s231 + $0xa0] sm:$0xff] %v2673
      %2706 = vst [vmem:[%s231 + $0xa8] sm:$0xff] %v2674
      %2707 = vst [vmem:[%s231 + $0xb0] sm:$0xff] %v2675
      %2708 = vst [vmem:[%s231 + $0xb8] sm:$0xff] %v2676
      %2709 = vst [vmem:[%s231 + $0xc0] sm:$0xff] %v2677
      %2710 = vst [vmem:[%s231 + $0xc8] sm:$0xff] %v2678
      %2711 = vst [vmem:[%s231 + $0xd0] sm:$0xff] %v2679
      %2712 = vst [vmem:[%s231 + $0xd8] sm:$0xff] %v2680
      %2713 = vst [vmem:[%s231 + $0xe0] sm:$0xff] %v2681
      %2714 = vst [vmem:[%s231 + $0xe8] sm:$0xff] %v2682
      %2715 = vst [vmem:[%s231 + $0xf0] sm:$0xff] %v2683
      %2716 = vst [vmem:[%s231 + $0xf8] sm:$0xff] %v2684
      %v2717 = vld [vmem:[%s231] sm:$0xff]
      %v2718 = vld [vmem:[%s231 + $0x8] sm:$0xff]
      %v2719 = vld [vmem:[%s231 + $0x10] sm:$0xff]
      %v2720 = vld [vmem:[%s231 + $0x18] sm:$0xff]
      %v2721 = vld [vmem:[%s231 + $0x20] sm:$0xff]
      %v2722 = vld [vmem:[%s231 + $0x28] sm:$0xff]
      %v2723 = vld [vmem:[%s231 + $0x30] sm:$0xff]
      %v2724 = vld [vmem:[%s231 + $0x38] sm:$0xff]
      %v2725 = vld [vmem:[%s231 + $0x40] sm:$0xff]
      %v2726 = vld [vmem:[%s231 + $0x48] sm:$0xff]
      %v2727 = vld [vmem:[%s231 + $0x50] sm:$0xff]
      %v2728 = vld [vmem:[%s231 + $0x58] sm:$0xff]
      %v2729 = vld [vmem:[%s231 + $0x60] sm:$0xff]
      %v2730 = vld [vmem:[%s231 + $0x68] sm:$0xff]
      %v2731 = vld [vmem:[%s231 + $0x70] sm:$0xff]
      %v2732 = vld [vmem:[%s231 + $0x78] sm:$0xff]
      %v2733 = vld [vmem:[%s231 + $0x80] sm:$0xff]
      %v2734 = vld [vmem:[%s231 + $0x88] sm:$0xff]
      %v2735 = vld [vmem:[%s231 + $0x90] sm:$0xff]
      %v2736 = vld [vmem:[%s231 + $0x98] sm:$0xff]
      %v2737 = vld [vmem:[%s231 + $0xa0] sm:$0xff]
      %v2738 = vld [vmem:[%s231 + $0xa8] sm:$0xff]
      %v2739 = vld [vmem:[%s231 + $0xb0] sm:$0xff]
      %v2740 = vld [vmem:[%s231 + $0xb8] sm:$0xff]
      %v2741 = vld [vmem:[%s231 + $0xc0] sm:$0xff]
      %v2742 = vld [vmem:[%s231 + $0xc8] sm:$0xff]
      %v2743 = vld [vmem:[%s231 + $0xd0] sm:$0xff]
      %v2744 = vld [vmem:[%s231 + $0xd8] sm:$0xff]
      %v2745 = vld [vmem:[%s231 + $0xe0] sm:$0xff]
      %v2746 = vld [vmem:[%s231 + $0xe8] sm:$0xff]
      %v2747 = vld [vmem:[%s231 + $0xf0] sm:$0xff]
      %v2748 = vld [vmem:[%s231 + $0xf8] sm:$0xff]
      %v2749 = vadd.f32 %v2717, %v2718
      %v2750 = vadd.f32 %v2749, %v2719
      %v2751 = vadd.f32 %v2750, %v2720
      %v2752 = vadd.f32 %v2751, %v2721
      %v2753 = vadd.f32 %v2752, %v2722
      %v2754 = vadd.f32 %v2753, %v2723
      %v2755 = vadd.f32 %v2754, %v2724
      %v2756 = vadd.f32 %v2755, %v2725
      %v2757 = vadd.f32 %v2756, %v2726
      %v2758 = vadd.f32 %v2757, %v2727
      %v2759 = vadd.f32 %v2758, %v2728
      %v2760 = vadd.f32 %v2759, %v2729
      %v2761 = vadd.f32 %v2760, %v2730
      %v2762 = vadd.f32 %v2761, %v2731
      %v2763 = vadd.f32 %v2762, %v2732
      %v2764 = vadd.f32 %v2763, %v2733
      %v2765 = vadd.f32 %v2764, %v2734
      %v2766 = vadd.f32 %v2765, %v2735
      %v2767 = vadd.f32 %v2766, %v2736
      %v2768 = vadd.f32 %v2767, %v2737
      %v2769 = vadd.f32 %v2768, %v2738
      %v2770 = vadd.f32 %v2769, %v2739
      %v2771 = vadd.f32 %v2770, %v2740
      %v2772 = vadd.f32 %v2771, %v2741
      %v2773 = vadd.f32 %v2772, %v2742
      %v2774 = vadd.f32 %v2773, %v2743
      %v2775 = vadd.f32 %v2774, %v2744
      %v2776 = vadd.f32 %v2775, %v2745
      %v2777 = vadd.f32 %v2776, %v2746
      %v2778 = vadd.f32 %v2777, %v2747
      %v2779 = vadd.f32 %v2778, %v2748
      %v2780 = vrot.slane %v2779, 4
      %v2781 = vadd.f32 %v2779, %v2780
      %v2782 = vrot.slane %v2781, 2
      %v2783 = vadd.f32 %v2781, %v2782
      %v2784 = vrot.slane %v2783, 1
      %v2785 = vadd.f32 %v2783, %v2784
      %2786 = vst [vmem:[%s235] sm:$0x1] %v2785
      %v2787 = vmul.f32 %v2717, %v2717
      %v2788 = vmul.f32 %v2718, %v2718
      %v2789 = vmul.f32 %v2719, %v2719
      %v2790 = vmul.f32 %v2720, %v2720
      %v2791 = vmul.f32 %v2721, %v2721
      %v2792 = vmul.f32 %v2722, %v2722
      %v2793 = vmul.f32 %v2723, %v2723
      %v2794 = vmul.f32 %v2724, %v2724
      %v2795 = vmul.f32 %v2725, %v2725
      %v2796 = vmul.f32 %v2726, %v2726
      %v2797 = vmul.f32 %v2727, %v2727
      %v2798 = vmul.f32 %v2728, %v2728
      %v2799 = vmul.f32 %v2729, %v2729
      %v2800 = vmul.f32 %v2730, %v2730
      %v2801 = vmul.f32 %v2731, %v2731
      %v2802 = vmul.f32 %v2732, %v2732
      %v2803 = vmul.f32 %v2733, %v2733
      %v2804 = vmul.f32 %v2734, %v2734
      %v2805 = vmul.f32 %v2735, %v2735
      %v2806 = vmul.f32 %v2736, %v2736
      %v2807 = vmul.f32 %v2737, %v2737
      %v2808 = vmul.f32 %v2738, %v2738
      %v2809 = vmul.f32 %v2739, %v2739
      %v2810 = vmul.f32 %v2740, %v2740
      %v2811 = vmul.f32 %v2741, %v2741
      %v2812 = vmul.f32 %v2742, %v2742
      %v2813 = vmul.f32 %v2743, %v2743
      %v2814 = vmul.f32 %v2744, %v2744
      %v2815 = vmul.f32 %v2745, %v2745
      %v2816 = vmul.f32 %v2746, %v2746
      %v2817 = vmul.f32 %v2747, %v2747
      %v2818 = vmul.f32 %v2748, %v2748
      %v2819 = vadd.f32 %v2787, %v2788
      %v2820 = vadd.f32 %v2819, %v2789
      %v2821 = vadd.f32 %v2820, %v2790
      %v2822 = vadd.f32 %v2821, %v2791
      %v2823 = vadd.f32 %v2822, %v2792
      %v2824 = vadd.f32 %v2823, %v2793
      %v2825 = vadd.f32 %v2824, %v2794
      %v2826 = vadd.f32 %v2825, %v2795
      %v2827 = vadd.f32 %v2826, %v2796
      %v2828 = vadd.f32 %v2827, %v2797
      %v2829 = vadd.f32 %v2828, %v2798
      %v2830 = vadd.f32 %v2829, %v2799
      %v2831 = vadd.f32 %v2830, %v2800
      %v2832 = vadd.f32 %v2831, %v2801
      %v2833 = vadd.f32 %v2832, %v2802
      %v2834 = vadd.f32 %v2833, %v2803
      %v2835 = vadd.f32 %v2834, %v2804
      %v2836 = vadd.f32 %v2835, %v2805
      %v2837 = vadd.f32 %v2836, %v2806
      %v2838 = vadd.f32 %v2837, %v2807
      %v2839 = vadd.f32 %v2838, %v2808
      %v2840 = vadd.f32 %v2839, %v2809
      %v2841 = vadd.f32 %v2840, %v2810
      %v2842 = vadd.f32 %v2841, %v2811
      %v2843 = vadd.f32 %v2842, %v2812
      %v2844 = vadd.f32 %v2843, %v2813
      %v2845 = vadd.f32 %v2844, %v2814
      %v2846 = vadd.f32 %v2845, %v2815
      %v2847 = vadd.f32 %v2846, %v2816
      %v2848 = vadd.f32 %v2847, %v2817
      %v2849 = vadd.f32 %v2848, %v2818
      %v2850 = vrot.slane %v2849, 4
      %v2851 = vadd.f32 %v2849, %v2850
      %v2852 = vrot.slane %v2851, 2
      %v2853 = vadd.f32 %v2851, %v2852
      %v2854 = vrot.slane %v2853, 1
      %v2855 = vadd.f32 %v2853, %v2854
      %2856 = vst [vmem:[%s235 + $0x1] sm:$0x1] %v2855
      %p2857 = scmp.lt.s32.totalorder %s17, 1
      %s2858 = scalar_select %p2857, %s17, 1
      %s2859 = smul.addr %s2858, 32
      %s2860 = smul.addr %s2859, 8
      %s2861 = scalar_lea.vmem %s4, %s2860
      %p2862 = scmp.lt.s32.totalorder %s17, 1
      %s2863 = scalar_select %p2862, %s17, 1
      %s2864 = smul.addr %s2863, 2
      %s2865 = scalar_lea.vmem %s5, %s2864
      // Predicated region
      $region37: #{basic_block_forward.4} parent=35 // pred_check
        %p2866 = pneg %p124
      $region38: #{basic_block_forward.4} parent=35 // pred_check_branch
        %2868 = sbr.rel (%p2866) target = $region40
      $region39: #{basic_block_forward.4} parent=35 // pred_region
        _
      $region40: #{basic_block_forward.4} parent=35 // pred_fallthru
        _
      // Predicated region
      $region41: #{basic_block_forward.4} parent=35 // pred_check
        %p2869 = pneg %p150
      $region42: #{basic_block_forward.4} parent=35 // pred_check_branch
        %2871 = sbr.rel (%p2869) target = $region44
      $region43: #{basic_block_forward.4} parent=35 // pred_region
        _
      $region44: #{basic_block_forward.4} parent=35 // pred_fallthru
        _
    $region36: #{basic_block_forward.4} parent=5 // pred_fallthru
      _
    %p2872 = scmp.le.s32.totalorder 2, %s12
    // Predicated region
    $region45: #{basic_block_forward.4} parent=5 // pred_check
      %p2873 = pneg %p2872
    $region46: #{basic_block_forward.4} parent=5 // pred_check_branch
      %2875 = sbr.rel (%p2873) target = $region48
    $region47: #{basic_block_forward.4} parent=5 // pred_region
      %s2876 = ssub.s32 %s12, 2
      // Predicated region
      $region49: #{basic_block_forward.4} parent=47 // pred_check
        %p2877 = pneg %p130
      $region50: #{basic_block_forward.4} parent=47 // pred_check_branch
        %2879 = sbr.rel (%p2877) target = $region52
      $region51: #{basic_block_forward.4} parent=47 // pred_region
        %p2880 = scmp.lt.s32.totalorder %s18, 1
        %s2881 = scalar_select %p2880, %s18, 1
        %s2882 = smul.addr %s2881, 32
        %s2883 = smul.addr %s2882, 8
        %s2884 = scalar_lea.vmem %s4, %s2883
      $region52: #{basic_block_forward.4} parent=47 // pred_fallthru
        _
      // Predicated region
      $region53: #{basic_block_forward.4} parent=47 // pred_check
        %p2885 = pneg %p156
      $region54: #{basic_block_forward.4} parent=47 // pred_check_branch
        %2887 = sbr.rel (%p2885) target = $region56
      $region55: #{basic_block_forward.4} parent=47 // pred_region
        %p2888 = scmp.lt.s32.totalorder %s18, 1
        %s2889 = scalar_select %p2888, %s18, 1
        %s2890 = smul.addr %s2889, 2
        %s2891 = scalar_lea.vmem %s5, %s2890
      $region56: #{basic_block_forward.4} parent=47 // pred_fallthru
        _
    $region48: #{basic_block_forward.4} parent=5 // pred_fallthru
      _
  $region6: #{basic_block_forward.4} parent=0 // loop_footer
    %s16 = sadd.s32 1, %s12
  $region7: #{basic_block_forward.4} parent=0 // loop_footer_branch
    %11 = sbr.rel target = $region3
  $region8: #{basic_block_forward.4} parent=0 // loop_exit
    _

</llo_original>
